<compile_context>
chip_gen: v6e
topology: v6e:2x2x1
jax: 0.10.0
libtpu: 0.0.40
codegen_flags: <defaults>
</compile_context>

<pallas_src>
import math

import jax
import jax.numpy as jnp
from jax.experimental import pallas as pl
from jax.experimental.pallas import tpu as pltpu


K = 27                    # Conv1d kernel size used everywhere in SRResNet
PAD = (K - 1) // 2        # 'same' padding
EPS = 1e-5                # BatchNorm eps
_HALO = 128               # lane-aligned halo-chunk width


def _pick_l_tile(L, max_tile):
    """Largest 128-multiple <= max_tile that divides L, else the full length."""
    if L <= max_tile:
        return L
    t = (max_tile // _HALO) * _HALO
    while t >= _HALO:
        if L % t == 0:
            return t
        t -= _HALO
    return L


# ---------------------------------------------------------------------------
# Fused conv1d kernel:  [affine + residual + relu on the input]  ->  im2col
# matmul  ->  [bias + relu on the output]  (+ optional BN partial stats and
# materialization of the preprocessed input).
# ---------------------------------------------------------------------------
def _make_conv_kernel(*, Cin, L_tile, T, has_bias, has_affine, has_res,
                      in_relu, out_relu, want_stats, want_pre):
    multi = T > 1

    def kernel(*refs):
        i = 0
        if multi:
            xp_ref, xc_ref, xn_ref = refs[i], refs[i + 1], refs[i + 2]
            i += 3
        else:
            xc_ref = refs[i]
            xp_ref = xn_ref = None
            i += 1
        rp_ref = rc_ref = rn_ref = None
        if has_res:
            if multi:
                rp_ref, rc_ref, rn_ref = refs[i], refs[i + 1], refs[i + 2]
                i += 3
            else:
                rc_ref = refs[i]
                i += 1
        w_ref = refs[i]; i += 1
        sc_ref = sh_ref = b_ref = None
        if has_affine:
            sc_ref, sh_ref = refs[i], refs[i + 1]
            i += 2
        if has_bias:
            b_ref = refs[i]; i += 1
        out_ref = refs[i]; i += 1
        st_ref = None
        if want_stats:
            st_ref = refs[i]; i += 1
        pre_ref = None
        if want_pre:
            pre_ref = refs[i]; i += 1

        t = pl.program_id(1)

        def preprocess(v, r_chunk):
            v = v.astype(jnp.float32)
            if has_affine:                       # BN affine of the producer
                v = v * sc_ref[...] + sh_ref[...]
            if has_res:                          # residual add of the producer
                v = v + r_chunk.astype(jnp.float32)
            return v

        # centre block of the (preprocessed) conv input
        xm = preprocess(xc_ref[0], rc_ref[0] if has_res else None)
        if want_pre:
            pre_ref[0] = xm                      # materialized block input
        if in_relu:
            xm = jnp.maximum(xm, 0.0)

        # halo columns (PAD each side), zeroed at the sequence boundaries
        if multi:
            xl = preprocess(xp_ref[0, :, _HALO - PAD:],
                            rp_ref[0, :, _HALO - PAD:] if has_res else None)
            xr = preprocess(xn_ref[0, :, :PAD],
                            rn_ref[0, :, :PAD] if has_res else None)
            if in_relu:
                xl = jnp.maximum(xl, 0.0)
                xr = jnp.maximum(xr, 0.0)
            xl = jnp.where(t == 0, jnp.zeros_like(xl), xl)
            xr = jnp.where(t == T - 1, jnp.zeros_like(xr), xr)
        else:
            xl = jnp.zeros((Cin, PAD), jnp.float32)
            xr = jnp.zeros((Cin, PAD), jnp.float32)

        # im2col: (K*Cin, L_tile) shifted-input matrix.  Cast to bf16 FIRST so
        # the 27 lane-shifted slices + concatenate move half the bytes.
        xw = jnp.concatenate([xl, xm, xr], axis=-1).astype(jnp.bfloat16)
        patches = jnp.concatenate([xw[:, k:k + L_tile] for k in range(K)],
                                  axis=0)

        # single lane-dense (Cout, L_tile) matmul, f32 accumulation.
        y = jnp.dot(w_ref[...], patches, preferred_element_type=jnp.float32)

        if has_bias:
            y = y + b_ref[...]
        if out_relu:
            y = jnp.maximum(y, 0.0)
        out_ref[0] = y

        if want_stats:                           # per-tile BN partial sums
            s1 = jnp.sum(y, axis=1, keepdims=True)
            s2 = jnp.sum(y * y, axis=1, keepdims=True)
            st_ref[0, 0] = jnp.concatenate([s1, s2], axis=1)

    return kernel


def conv_layer(x, w, *, bias=None, in_scale=None, in_shift=None,
               in_residual=None, in_relu=False, out_relu=False,
               want_stats=False, want_pre=False, l_tile_max=1024):
    """Fused Conv1d(k=27, pad=13, stride=1), channels-first.

    x: (N, Cin, L) f32, w: (Cout, Cin, K) f32 (torch layout).
    Computes  conv( relu?( x*in_scale + in_shift + in_residual ) ) + bias
    then optional output ReLU.  Returns out (N, Cout, L)
    [, stats (N, T, Cout, 2) = per-tile (sum, sumsq)] [, pre (N, Cin, L)].
    """
    N, Cin, L = x.shape
    Cout, Cin2, Kk = w.shape
    assert Cin2 == Cin and Kk == K, (w.shape, x.shape)

    L_tile = _pick_l_tile(L, l_tile_max)
    T = L // L_tile
    multi = T > 1

    # im2col weight layout: w2d[co, k*Cin + ci] = w[co, ci, k]; bf16 -> MXU.
    w2d = jnp.transpose(w, (0, 2, 1)).reshape(Cout, K * Cin).astype(jnp.bfloat16)

    has_bias = bias is not None
    has_affine = in_scale is not None
    has_res = in_residual is not None
    if has_affine:
        assert in_shift is not None

    operands, in_specs = [], []

    def add_input_views(arr):
        if multi:
            cpb = L_tile // _HALO          # 128-wide chunks per tile
            nchunk = L // _HALO
            operands.extend([arr, arr, arr])
            in_specs.append(pl.BlockSpec(
                (1, Cin, _HALO),
                lambda n, t: (n, 0, jnp.maximum(t * cpb - 1, 0))))
            in_specs.append(pl.BlockSpec(
                (1, Cin, L_tile), lambda n, t: (n, 0, t)))
            in_specs.append(pl.BlockSpec(
                (1, Cin, _HALO),
                lambda n, t: (n, 0, jnp.minimum((t + 1) * cpb, nchunk - 1))))
        else:
            operands.append(arr)
            in_specs.append(pl.BlockSpec((1, Cin, L_tile),
                                         lambda n, t: (n, 0, t)))

    add_input_views(x)
    if has_res:
        add_input_views(in_residual)

    operands.append(w2d)
    in_specs.append(pl.BlockSpec((Cout, K * Cin), lambda n, t: (0, 0)))

    if has_affine:
        operands.append(jnp.asarray(in_scale, jnp.float32).reshape(Cin, 1))
        in_specs.append(pl.BlockSpec((Cin, 1), lambda n, t: (0, 0)))
        operands.append(jnp.asarray(in_shift, jnp.float32).reshape(Cin, 1))
        in_specs.append(pl.BlockSpec((Cin, 1), lambda n, t: (0, 0)))
    if has_bias:
        operands.append(jnp.asarray(bias, jnp.float32).reshape(Cout, 1))
        in_specs.append(pl.BlockSpec((Cout, 1), lambda n, t: (0, 0)))

    out_shapes = [jax.ShapeDtypeStruct((N, Cout, L), jnp.float32)]
    out_specs = [pl.BlockSpec((1, Cout, L_tile), lambda n, t: (n, 0, t))]
    if want_stats:
        out_shapes.append(jax.ShapeDtypeStruct((N, T, Cout, 2), jnp.float32))
        out_specs.append(pl.BlockSpec((1, 1, Cout, 2),
                                      lambda n, t: (n, t, 0, 0)))
    if want_pre:
        out_shapes.append(jax.ShapeDtypeStruct((N, Cin, L), jnp.float32))
        out_specs.append(pl.BlockSpec((1, Cin, L_tile), lambda n, t: (n, 0, t)))

    kernel = _make_conv_kernel(
        Cin=Cin, L_tile=L_tile, T=T, has_bias=has_bias, has_affine=has_affine,
        has_res=has_res, in_relu=in_relu, out_relu=out_relu,
        want_stats=want_stats, want_pre=want_pre)

    out = pl.pallas_call(
        kernel,
        out_shape=tuple(out_shapes),
        grid=(N, T),
        in_specs=in_specs,
        out_specs=tuple(out_specs),
        compiler_params=pltpu.CompilerParams(
            # both grid axes are independent -> megacore-shardable
            dimension_semantics=("parallel", "parallel"),
            vmem_limit_bytes=32 * 1024 * 1024),
    )(*operands)

    if not isinstance(out, (tuple, list)):
        out = (out,)
    return out[0] if len(out) == 1 else tuple(out)


def _bn_affine_from_stats(stats, count, eps=EPS):
    """Per-channel (scale, shift) reproducing training-mode BatchNorm1d with
    gamma=1 / beta=0 (the torch init) from per-tile (sum, sumsq) stats."""
    tot = jnp.sum(stats, axis=(0, 1))                    # (C, 2)
    mean = tot[:, 0] / count
    var = jnp.maximum(tot[:, 1] / count - mean * mean, 0.0)
    scale = jax.lax.rsqrt(var + eps)
    return scale, -mean * scale


# ---------------------------------------------------------------------------
# Parameters (deterministic, mirrors the torch __init__ initialization)
# ---------------------------------------------------------------------------
def init_params(key, n_channels=32, n_blocks=2):
    def conv_w(k, cout, cin):
        std = math.sqrt(2.0 / (K * cout))                # torch init
        return std * jax.random.normal(k, (cout, cin, K), jnp.float32)

    keys = jax.random.split(key, 4 + 2 * n_blocks)
    return {
        "in_w": conv_w(keys[0], n_channels, 1),
        "in_b": jnp.zeros((n_channels,), jnp.float32),   # bias zeroed in torch
        "blocks": [{"w1": conv_w(keys[4 + 2 * i], n_channels, n_channels),
                    "w2": conv_w(keys[5 + 2 * i], n_channels, n_channels)}
                   for i in range(n_blocks)],
        "glue_w": conv_w(keys[1], n_channels, n_channels),
        "glue_b": jnp.zeros((n_channels,), jnp.float32),
        "up_w": conv_w(keys[2], 2 * n_channels, n_channels),  # bias=False
        "out_w": conv_w(keys[3], 1, n_channels),
        "out_b": jnp.zeros((1,), jnp.float32),
    }


# ---------------------------------------------------------------------------
# SRResNet forward (channels-first / NCL throughout)
# ---------------------------------------------------------------------------
@jax.jit
def srresnet_forward(x, params):
    """x: (N, 1, L) in PyTorch NCL layout; returns (N, 1, 2L)."""
    N, _, L = x.shape
    C = params["in_w"].shape[0]
    count = N * L

    # inConv + ReLU
    h = conv_layer(x, params["in_w"], bias=params["in_b"], out_relu=True)

    # Residual blocks.  BN's (scale, shift) is derived from in-kernel stats
    # and fused into the NEXT conv's input read together with the residual
    # add, so block outputs are carried as "pending" (raw, scale, shift, res).
    pend = None
    for blk in params["blocks"]:
        if pend is None:                       # first block: plain input h
            y1, st1 = conv_layer(h, blk["w1"], want_stats=True)
            x_i = h
        else:                                  # fuse bn2 + residual of prev block
            raw, sc, sh, res = pend
            y1, st1, x_i = conv_layer(raw, blk["w1"], in_scale=sc, in_shift=sh,
                                      in_residual=res, want_stats=True,
                                      want_pre=True)
        s1, t1 = _bn_affine_from_stats(st1, count)
        y2, st2 = conv_layer(y1, blk["w2"], in_scale=s1, in_shift=t1,
                             in_relu=True, want_stats=True)
        s2, t2 = _bn_affine_from_stats(st2, count)
        pend = (y2, s2, t2, x_i)

    # glueConv (+bias); glueBN + skip(first_step) are fused downstream.
    if pend is None:
        yg, stg = conv_layer(h, params["glue_w"], bias=params["glue_b"],
                             want_stats=True)
    else:
        raw, sc, sh, res = pend
        yg, stg = conv_layer(raw, params["glue_w"], bias=params["glue_b"],
                             in_scale=sc, in_shift=sh, in_residual=res,
                             want_stats=True)
    sg, tg = _bn_affine_from_stats(stg, count)

    # SubPixelConv: conv(C -> 2C); ReLU commutes with the shuffle so it is
    # applied on the conv output inside the kernel.
    yu = conv_layer(yg, params["up_w"], in_scale=sg, in_shift=tg,
                    in_residual=h, out_relu=True)              # (N, 2C, L)

    # TODO(synk): nn.PixelShuffle1d is not a standard torch op; implemented as
    # the 1-D analog of torch.nn.PixelShuffle: out[n, c, 2l+j] = in[n, 2c+j, l].
    up = yu.reshape(N, C, 2, L).transpose(0, 1, 3, 2).reshape(N, C, 2 * L)

    # outConv (C -> 1): channels-first keeps the 2L output axis lane-dense.
    return conv_layer(up, params["out_w"], bias=params["out_b"])  # (N, 1, 2L)


# ---------------------------------------------------------------------------
# Pure-JAX reference (for validation only)
# ---------------------------------------------------------------------------
def _ref_conv(x, w, b=None):
    y = jax.lax.conv_general_dilated(
        x, w, window_strides=(1,), padding=[(PAD, PAD)],
        dimension_numbers=("NCH", "OIH", "NCH"),
        precision=jax.lax.Precision.HIGHEST)
    if b is not None:
        y = y + b.reshape(1, -1, 1)
    return y


def _ref_bn(y, eps=EPS):
    mean = jnp.mean(y, axis=(0, 2), keepdims=True)
    var = jnp.mean(jnp.square(y - mean), axis=(0, 2), keepdims=True)
    return (y - mean) * jax.lax.rsqrt(var + eps)


def srresnet_reference(x, params):
    N, _, L = x.shape
    C = params["in_w"].shape[0]
    h = jax.nn.relu(_ref_conv(x, params["in_w"], params["in_b"]))
    out = h
    for blk in params["blocks"]:
        inp = out
        t = jax.nn.relu(_ref_bn(_ref_conv(out, blk["w1"])))
        out = _ref_bn(_ref_conv(t, blk["w2"])) + inp
    out = _ref_bn(_ref_conv(out, params["glue_w"], params["glue_b"])) + h
    c = _ref_conv(out, params["up_w"])
    up = c.reshape(N, C, 2, L).transpose(0, 1, 3, 2).reshape(N, C, 2 * L)
    up = jax.nn.relu(up)
    return _ref_conv(up, params["out_w"], params["out_b"])


# ---------------------------------------------------------------------------
if __name__ == "__main__":
    key = jax.random.PRNGKey(0)
    pkey, xkey, tkey = jax.random.split(key, 3)

    n_channels, n_blocks = 32, 2          # small config (module defaults: 64, 15)
    batch, length = 2, 64

    params = init_params(pkey, n_channels=n_channels, n_blocks=n_blocks)
    x = jax.random.normal(xkey, (batch, 1, length), jnp.float32)   # NCL layout

    y = srresnet_forward(x, params)
    y = jax.block_until_ready(y)
    assert y.shape == (batch, 1, 2 * length), y.shape
    assert bool(jnp.all(jnp.isfinite(y)))

    # Full-model check against a pure-JAX reference (tolerance covers the
    # bf16 MXU inputs used inside the Pallas kernels).
    y_ref = srresnet_reference(x, params)
    rel = float(jnp.max(jnp.abs(y - y_ref)) / (jnp.max(jnp.abs(y_ref)) + 1e-6))
    assert rel < 0.1, f"forward mismatch: rel err {rel}"

    # Exercise the multi-tile halo path (grid over L, T=2) on one fused layer.
    k1, k2, k3 = jax.random.split(tkey, 3)
    Ct, Lt = 16, 256
    xt = jax.random.normal(k1, (2, Ct, Lt), jnp.float32)
    wt = 0.05 * jax.random.normal(k2, (Ct, Ct, K), jnp.float32)
    rt = jax.random.normal(k3, (2, Ct, Lt), jnp.float32)
    sct = jnp.full((Ct,), 0.7, jnp.float32)
    sht = jnp.full((Ct,), 0.1, jnp.float32)
    yt, _ = conv_layer(xt, wt, in_scale=sct, in_shift=sht, in_residual=rt,
                       in_relu=True, want_stats=True, l_tile_max=128)
    pre = jax.nn.relu(xt * sct.reshape(1, Ct, 1) + sht.reshape(1, Ct, 1) + rt)
    yt_ref = _ref_conv(pre, wt)
    relt = float(jnp.max(jnp.abs(yt - yt_ref)) /
                 (jnp.max(jnp.abs(yt_ref)) + 1e-6))
    assert relt < 0.05, f"tiled conv mismatch: rel err {relt}"

    print("KERNEL_OK")
</pallas_src>

<mosaic_0001>
module attributes {stable_mosaic.version = 11 : i64} {
  func.func @kernel(%arg0: i32, %arg1: i32, %arg2: memref<1x1x64xf32, #tpu.memory_space<vmem>>, %arg3: memref<32x27xbf16, #tpu.memory_space<vmem>>, %arg4: memref<32x1xf32, #tpu.memory_space<vmem>>, %arg5: memref<1x32x64xf32, #tpu.memory_space<vmem>>) attributes {dimension_semantics = [#tpu.dimension_semantics<parallel>, #tpu.dimension_semantics<parallel>], iteration_bounds = array<i64: 2, 1>, scalar_prefetch = 0 : i64, scratch_operands = 0 : i64, tpu.core_type = #tpu.core_type<tc>, window_params = [{transform_indices = @transform_0, window_bounds = array<i64: 1, 1, 64>}, {pipeline_mode = #tpu.pipeline_mode<synchronous>, transform_indices = @transform_1, window_bounds = array<i64: 32, 27>}, {pipeline_mode = #tpu.pipeline_mode<synchronous>, transform_indices = @transform_2, window_bounds = array<i64: 32, 1>}, {transform_indices = @transform_3, window_bounds = array<i64: 1, 32, 64>}]} {
    %c0 = arith.constant 0 : index
    %c0_0 = arith.constant 0 : index
    %c0_1 = arith.constant 0 : index
    %0 = vector.load %arg2[%c0, %c0_0, %c0_1] : memref<1x1x64xf32, #tpu.memory_space<vmem>>, vector<1x1x64xf32>
    %1 = vector.shape_cast %0 : vector<1x1x64xf32> to vector<1x64xf32>
    %cst = arith.constant 0.000000e+00 : f32
    %2 = vector.broadcast %cst : f32 to vector<1x13xf32>
    %cst_2 = arith.constant 0.000000e+00 : f32
    %3 = vector.broadcast %cst_2 : f32 to vector<1x13xf32>
    %4 = tpu.concatenate %2, %1, %3 in 1 : vector<1x13xf32>, vector<1x64xf32>, vector<1x13xf32> -> vector<1x90xf32>
    %5 = arith.truncf %4 : vector<1x90xf32> to vector<1x90xbf16>
    %6 = vector.extract_strided_slice %5 {offsets = [0, 0], sizes = [1, 64], strides = [1, 1]} : vector<1x90xbf16> to vector<1x64xbf16>
    %7 = vector.extract_strided_slice %5 {offsets = [0, 1], sizes = [1, 64], strides = [1, 1]} : vector<1x90xbf16> to vector<1x64xbf16>
    %8 = vector.extract_strided_slice %5 {offsets = [0, 2], sizes = [1, 64], strides = [1, 1]} : vector<1x90xbf16> to vector<1x64xbf16>
    %9 = vector.extract_strided_slice %5 {offsets = [0, 3], sizes = [1, 64], strides = [1, 1]} : vector<1x90xbf16> to vector<1x64xbf16>
    %10 = vector.extract_strided_slice %5 {offsets = [0, 4], sizes = [1, 64], strides = [1, 1]} : vector<1x90xbf16> to vector<1x64xbf16>
    %11 = vector.extract_strided_slice %5 {offsets = [0, 5], sizes = [1, 64], strides = [1, 1]} : vector<1x90xbf16> to vector<1x64xbf16>
    %12 = vector.extract_strided_slice %5 {offsets = [0, 6], sizes = [1, 64], strides = [1, 1]} : vector<1x90xbf16> to vector<1x64xbf16>
    %13 = vector.extract_strided_slice %5 {offsets = [0, 7], sizes = [1, 64], strides = [1, 1]} : vector<1x90xbf16> to vector<1x64xbf16>
    %14 = vector.extract_strided_slice %5 {offsets = [0, 8], sizes = [1, 64], strides = [1, 1]} : vector<1x90xbf16> to vector<1x64xbf16>
    %15 = vector.extract_strided_slice %5 {offsets = [0, 9], sizes = [1, 64], strides = [1, 1]} : vector<1x90xbf16> to vector<1x64xbf16>
    %16 = vector.extract_strided_slice %5 {offsets = [0, 10], sizes = [1, 64], strides = [1, 1]} : vector<1x90xbf16> to vector<1x64xbf16>
    %17 = vector.extract_strided_slice %5 {offsets = [0, 11], sizes = [1, 64], strides = [1, 1]} : vector<1x90xbf16> to vector<1x64xbf16>
    %18 = vector.extract_strided_slice %5 {offsets = [0, 12], sizes = [1, 64], strides = [1, 1]} : vector<1x90xbf16> to vector<1x64xbf16>
    %19 = vector.extract_strided_slice %5 {offsets = [0, 13], sizes = [1, 64], strides = [1, 1]} : vector<1x90xbf16> to vector<1x64xbf16>
    %20 = vector.extract_strided_slice %5 {offsets = [0, 14], sizes = [1, 64], strides = [1, 1]} : vector<1x90xbf16> to vector<1x64xbf16>
    %21 = vector.extract_strided_slice %5 {offsets = [0, 15], sizes = [1, 64], strides = [1, 1]} : vector<1x90xbf16> to vector<1x64xbf16>
    %22 = vector.extract_strided_slice %5 {offsets = [0, 16], sizes = [1, 64], strides = [1, 1]} : vector<1x90xbf16> to vector<1x64xbf16>
    %23 = vector.extract_strided_slice %5 {offsets = [0, 17], sizes = [1, 64], strides = [1, 1]} : vector<1x90xbf16> to vector<1x64xbf16>
    %24 = vector.extract_strided_slice %5 {offsets = [0, 18], sizes = [1, 64], strides = [1, 1]} : vector<1x90xbf16> to vector<1x64xbf16>
    %25 = vector.extract_strided_slice %5 {offsets = [0, 19], sizes = [1, 64], strides = [1, 1]} : vector<1x90xbf16> to vector<1x64xbf16>
    %26 = vector.extract_strided_slice %5 {offsets = [0, 20], sizes = [1, 64], strides = [1, 1]} : vector<1x90xbf16> to vector<1x64xbf16>
    %27 = vector.extract_strided_slice %5 {offsets = [0, 21], sizes = [1, 64], strides = [1, 1]} : vector<1x90xbf16> to vector<1x64xbf16>
    %28 = vector.extract_strided_slice %5 {offsets = [0, 22], sizes = [1, 64], strides = [1, 1]} : vector<1x90xbf16> to vector<1x64xbf16>
    %29 = vector.extract_strided_slice %5 {offsets = [0, 23], sizes = [1, 64], strides = [1, 1]} : vector<1x90xbf16> to vector<1x64xbf16>
    %30 = vector.extract_strided_slice %5 {offsets = [0, 24], sizes = [1, 64], strides = [1, 1]} : vector<1x90xbf16> to vector<1x64xbf16>
    %31 = vector.extract_strided_slice %5 {offsets = [0, 25], sizes = [1, 64], strides = [1, 1]} : vector<1x90xbf16> to vector<1x64xbf16>
    %32 = vector.extract_strided_slice %5 {offsets = [0, 26], sizes = [1, 64], strides = [1, 1]} : vector<1x90xbf16> to vector<1x64xbf16>
    %33 = tpu.concatenate %6, %7, %8, %9, %10, %11, %12, %13, %14, %15, %16, %17, %18, %19, %20, %21 in 0 : vector<1x64xbf16>, vector<1x64xbf16>, vector<1x64xbf16>, vector<1x64xbf16>, vector<1x64xbf16>, vector<1x64xbf16>, vector<1x64xbf16>, vector<1x64xbf16>, vector<1x64xbf16>, vector<1x64xbf16>, vector<1x64xbf16>, vector<1x64xbf16>, vector<1x64xbf16>, vector<1x64xbf16>, vector<1x64xbf16>, vector<1x64xbf16> -> vector<16x64xbf16>
    %34 = tpu.concatenate %22, %23, %24, %25, %26, %27, %28, %29, %30, %31, %32 in 0 : vector<1x64xbf16>, vector<1x64xbf16>, vector<1x64xbf16>, vector<1x64xbf16>, vector<1x64xbf16>, vector<1x64xbf16>, vector<1x64xbf16>, vector<1x64xbf16>, vector<1x64xbf16>, vector<1x64xbf16>, vector<1x64xbf16> -> vector<11x64xbf16>
    %35 = tpu.concatenate %33, %34 in 0 : vector<16x64xbf16>, vector<11x64xbf16> -> vector<27x64xbf16>
    %c0_3 = arith.constant 0 : index
    %c0_4 = arith.constant 0 : index
    %36 = vector.load %arg3[%c0_3, %c0_4] : memref<32x27xbf16, #tpu.memory_space<vmem>>, vector<32x27xbf16>
    %cst_5 = arith.constant dense<0.000000e+00> : vector<32x64xf32>
    %37 = tpu.matmul %36, %35, %cst_5 {dimension_numbers = #tpu.dot_dimension_numbers<[1], [0], [0], [1], [0, 0, 1, 1], [], []>} : vector<32x27xbf16>, vector<27x64xbf16>, vector<32x64xf32> -> vector<32x64xf32>
    %c0_6 = arith.constant 0 : index
    %c0_7 = arith.constant 0 : index
    %38 = vector.load %arg4[%c0_6, %c0_7] : memref<32x1xf32, #tpu.memory_space<vmem>>, vector<32x1xf32>
    %39 = vector.broadcast %38 : vector<32x1xf32> to vector<32x64xf32>
    %40 = arith.addf %37, %39 : vector<32x64xf32>
    %cst_8 = arith.constant 0.000000e+00 : f32
    %41 = vector.broadcast %cst_8 : f32 to vector<32x64xf32>
    %42 = arith.maximumf %40, %41 : vector<32x64xf32>
    %c0_9 = arith.constant 0 : index
    %c0_10 = arith.constant 0 : index
    %c0_11 = arith.constant 0 : index
    %43 = vector.load %arg5[%c0_9, %c0_10, %c0_11] : memref<1x32x64xf32, #tpu.memory_space<vmem>>, vector<1x32x64xf32>
    %44 = vector.shape_cast %43 : vector<1x32x64xf32> to vector<32x64xf32>
    %45 = vector.shape_cast %42 : vector<32x64xf32> to vector<1x32x64xf32>
    tpu.vector_store %arg5[%c0_9, %c0_10, %c0_11], %45 {strides = array<i32>} : memref<1x32x64xf32, #tpu.memory_space<vmem>>, vector<1x32x64xf32>,
    return
  }
  func.func @transform_0(%arg0: i32, %arg1: i32) -> (i32, i32, i32) {
    %c0_i32 = arith.constant 0 : i32
    %c0_i32_0 = arith.constant 0 : i32
    return %arg0, %c0_i32, %arg1 : i32, i32, i32
  }
  func.func @transform_1(%arg0: i32, %arg1: i32) -> (i32, i32) {
    %c0_i32 = arith.constant 0 : i32
    %c0_i32_0 = arith.constant 0 : i32
    %c0_i32_1 = arith.constant 0 : i32
    return %c0_i32, %c0_i32_0 : i32, i32
  }
  func.func @transform_2(%arg0: i32, %arg1: i32) -> (i32, i32) {
    %c0_i32 = arith.constant 0 : i32
    %c0_i32_0 = arith.constant 0 : i32
    %c0_i32_1 = arith.constant 0 : i32
    return %c0_i32, %c0_i32_0 : i32, i32
  }
  func.func @transform_3(%arg0: i32, %arg1: i32) -> (i32, i32, i32) {
    %c0_i32 = arith.constant 0 : i32
    %c0_i32_0 = arith.constant 0 : i32
    return %arg0, %c0_i32, %arg1 : i32, i32, i32
  }
}

module attributes {stable_mosaic.version = 11 : i64} {
  func.func @kernel(%arg0: i32, %arg1: i32, %arg2: memref<1x32x64xf32, #tpu.memory_space<vmem>>, %arg3: memref<32x864xbf16, #tpu.memory_space<vmem>>, %arg4: memref<1x32x64xf32, #tpu.memory_space<vmem>>, %arg5: memref<1x1x32x2xf32, #tpu.memory_space<vmem>>) attributes {dimension_semantics = [#tpu.dimension_semantics<parallel>, #tpu.dimension_semantics<parallel>], iteration_bounds = array<i64: 2, 1>, scalar_prefetch = 0 : i64, scratch_operands = 0 : i64, tpu.core_type = #tpu.core_type<tc>, window_params = [{transform_indices = @transform_0, window_bounds = array<i64: 1, 32, 64>}, {pipeline_mode = #tpu.pipeline_mode<synchronous>, transform_indices = @transform_1, window_bounds = array<i64: 32, 864>}, {transform_indices = @transform_2, window_bounds = array<i64: 1, 32, 64>}, {transform_indices = @transform_3, window_bounds = array<i64: 1, 1, 32, 2>}]} {
    %c0 = arith.constant 0 : index
    %c0_0 = arith.constant 0 : index
    %c0_1 = arith.constant 0 : index
    %0 = vector.load %arg2[%c0, %c0_0, %c0_1] : memref<1x32x64xf32, #tpu.memory_space<vmem>>, vector<1x32x64xf32>
    %1 = vector.shape_cast %0 : vector<1x32x64xf32> to vector<32x64xf32>
    %cst = arith.constant 0.000000e+00 : f32
    %2 = vector.broadcast %cst : f32 to vector<32x13xf32>
    %cst_2 = arith.constant 0.000000e+00 : f32
    %3 = vector.broadcast %cst_2 : f32 to vector<32x13xf32>
    %4 = tpu.concatenate %2, %1, %3 in 1 : vector<32x13xf32>, vector<32x64xf32>, vector<32x13xf32> -> vector<32x90xf32>
    %5 = arith.truncf %4 : vector<32x90xf32> to vector<32x90xbf16>
    %6 = vector.extract_strided_slice %5 {offsets = [0, 0], sizes = [32, 64], strides = [1, 1]} : vector<32x90xbf16> to vector<32x64xbf16>
    %7 = vector.extract_strided_slice %5 {offsets = [0, 1], sizes = [32, 64], strides = [1, 1]} : vector<32x90xbf16> to vector<32x64xbf16>
    %8 = vector.extract_strided_slice %5 {offsets = [0, 2], sizes = [32, 64], strides = [1, 1]} : vector<32x90xbf16> to vector<32x64xbf16>
    %9 = vector.extract_strided_slice %5 {offsets = [0, 3], sizes = [32, 64], strides = [1, 1]} : vector<32x90xbf16> to vector<32x64xbf16>
    %10 = vector.extract_strided_slice %5 {offsets = [0, 4], sizes = [32, 64], strides = [1, 1]} : vector<32x90xbf16> to vector<32x64xbf16>
    %11 = vector.extract_strided_slice %5 {offsets = [0, 5], sizes = [32, 64], strides = [1, 1]} : vector<32x90xbf16> to vector<32x64xbf16>
    %12 = vector.extract_strided_slice %5 {offsets = [0, 6], sizes = [32, 64], strides = [1, 1]} : vector<32x90xbf16> to vector<32x64xbf16>
    %13 = vector.extract_strided_slice %5 {offsets = [0, 7], sizes = [32, 64], strides = [1, 1]} : vector<32x90xbf16> to vector<32x64xbf16>
    %14 = vector.extract_strided_slice %5 {offsets = [0, 8], sizes = [32, 64], strides = [1, 1]} : vector<32x90xbf16> to vector<32x64xbf16>
    %15 = vector.extract_strided_slice %5 {offsets = [0, 9], sizes = [32, 64], strides = [1, 1]} : vector<32x90xbf16> to vector<32x64xbf16>
    %16 = vector.extract_strided_slice %5 {offsets = [0, 10], sizes = [32, 64], strides = [1, 1]} : vector<32x90xbf16> to vector<32x64xbf16>
    %17 = vector.extract_strided_slice %5 {offsets = [0, 11], sizes = [32, 64], strides = [1, 1]} : vector<32x90xbf16> to vector<32x64xbf16>
    %18 = vector.extract_strided_slice %5 {offsets = [0, 12], sizes = [32, 64], strides = [1, 1]} : vector<32x90xbf16> to vector<32x64xbf16>
    %19 = vector.extract_strided_slice %5 {offsets = [0, 13], sizes = [32, 64], strides = [1, 1]} : vector<32x90xbf16> to vector<32x64xbf16>
    %20 = vector.extract_strided_slice %5 {offsets = [0, 14], sizes = [32, 64], strides = [1, 1]} : vector<32x90xbf16> to vector<32x64xbf16>
    %21 = vector.extract_strided_slice %5 {offsets = [0, 15], sizes = [32, 64], strides = [1, 1]} : vector<32x90xbf16> to vector<32x64xbf16>
    %22 = vector.extract_strided_slice %5 {offsets = [0, 16], sizes = [32, 64], strides = [1, 1]} : vector<32x90xbf16> to vector<32x64xbf16>
    %23 = vector.extract_strided_slice %5 {offsets = [0, 17], sizes = [32, 64], strides = [1, 1]} : vector<32x90xbf16> to vector<32x64xbf16>
    %24 = vector.extract_strided_slice %5 {offsets = [0, 18], sizes = [32, 64], strides = [1, 1]} : vector<32x90xbf16> to vector<32x64xbf16>
    %25 = vector.extract_strided_slice %5 {offsets = [0, 19], sizes = [32, 64], strides = [1, 1]} : vector<32x90xbf16> to vector<32x64xbf16>
    %26 = vector.extract_strided_slice %5 {offsets = [0, 20], sizes = [32, 64], strides = [1, 1]} : vector<32x90xbf16> to vector<32x64xbf16>
    %27 = vector.extract_strided_slice %5 {offsets = [0, 21], sizes = [32, 64], strides = [1, 1]} : vector<32x90xbf16> to vector<32x64xbf16>
    %28 = vector.extract_strided_slice %5 {offsets = [0, 22], sizes = [32, 64], strides = [1, 1]} : vector<32x90xbf16> to vector<32x64xbf16>
    %29 = vector.extract_strided_slice %5 {offsets = [0, 23], sizes = [32, 64], strides = [1, 1]} : vector<32x90xbf16> to vector<32x64xbf16>
    %30 = vector.extract_strided_slice %5 {offsets = [0, 24], sizes = [32, 64], strides = [1, 1]} : vector<32x90xbf16> to vector<32x64xbf16>
    %31 = vector.extract_strided_slice %5 {offsets = [0, 25], sizes = [32, 64], strides = [1, 1]} : vector<32x90xbf16> to vector<32x64xbf16>
    %32 = vector.extract_strided_slice %5 {offsets = [0, 26], sizes = [32, 64], strides = [1, 1]} : vector<32x90xbf16> to vector<32x64xbf16>
    %33 = tpu.concatenate %6, %7, %8, %9, %10, %11, %12, %13, %14, %15, %16, %17, %18, %19, %20, %21 in 0 : vector<32x64xbf16>, vector<32x64xbf16>, vector<32x64xbf16>, vector<32x64xbf16>, vector<32x64xbf16>, vector<32x64xbf16>, vector<32x64xbf16>, vector<32x64xbf16>, vector<32x64xbf16>, vector<32x64xbf16>, vector<32x64xbf16>, vector<32x64xbf16>, vector<32x64xbf16>, vector<32x64xbf16>, vector<32x64xbf16>, vector<32x64xbf16> -> vector<512x64xbf16>
    %34 = tpu.concatenate %22, %23, %24, %25, %26, %27, %28, %29, %30, %31, %32 in 0 : vector<32x64xbf16>, vector<32x64xbf16>, vector<32x64xbf16>, vector<32x64xbf16>, vector<32x64xbf16>, vector<32x64xbf16>, vector<32x64xbf16>, vector<32x64xbf16>, vector<32x64xbf16>, vector<32x64xbf16>, vector<32x64xbf16> -> vector<352x64xbf16>
    %35 = tpu.concatenate %33, %34 in 0 : vector<512x64xbf16>, vector<352x64xbf16> -> vector<864x64xbf16>
    %c0_3 = arith.constant 0 : index
    %c0_4 = arith.constant 0 : index
    %36 = vector.load %arg3[%c0_3, %c0_4] : memref<32x864xbf16, #tpu.memory_space<vmem>>, vector<32x864xbf16>
    %cst_5 = arith.constant dense<0.000000e+00> : vector<32x64xf32>
    %37 = tpu.matmul %36, %35, %cst_5 {dimension_numbers = #tpu.dot_dimension_numbers<[1], [0], [0], [1], [0, 0, 1, 1], [], []>} : vector<32x864xbf16>, vector<864x64xbf16>, vector<32x64xf32> -> vector<32x64xf32>
    %c0_6 = arith.constant 0 : index
    %c0_7 = arith.constant 0 : index
    %c0_8 = arith.constant 0 : index
    %38 = vector.load %arg4[%c0_6, %c0_7, %c0_8] : memref<1x32x64xf32, #tpu.memory_space<vmem>>, vector<1x32x64xf32>
    %39 = vector.shape_cast %38 : vector<1x32x64xf32> to vector<32x64xf32>
    %40 = vector.shape_cast %37 : vector<32x64xf32> to vector<1x32x64xf32>
    tpu.vector_store %arg4[%c0_6, %c0_7, %c0_8], %40 {strides = array<i32>} : memref<1x32x64xf32, #tpu.memory_space<vmem>>, vector<1x32x64xf32>,
    %cst_9 = arith.constant dense<0.000000e+00> : vector<32xf32>
    %41 = vector.multi_reduction <add>, %37, %cst_9 [1] : vector<32x64xf32> to vector<32xf32>
    %42 = vector.shape_cast %41 : vector<32xf32> to vector<32x1xf32>
    %43 = arith.mulf %37, %37 : vector<32x64xf32>
    %cst_10 = arith.constant dense<0.000000e+00> : vector<32xf32>
    %44 = vector.multi_reduction <add>, %43, %cst_10 [1] : vector<32x64xf32> to vector<32xf32>
    %45 = vector.shape_cast %44 : vector<32xf32> to vector<32x1xf32>
    %46 = tpu.concatenate %42, %45 in 1 : vector<32x1xf32>, vector<32x1xf32> -> vector<32x2xf32>
    %c0_11 = arith.constant 0 : index
    %c0_12 = arith.constant 0 : index
    %c0_13 = arith.constant 0 : index
    %c0_14 = arith.constant 0 : index
    %47 = vector.load %arg5[%c0_11, %c0_12, %c0_13, %c0_14] : memref<1x1x32x2xf32, #tpu.memory_space<vmem>>, vector<1x1x32x2xf32>
    %48 = vector.shape_cast %47 : vector<1x1x32x2xf32> to vector<32x2xf32>
    %49 = vector.shape_cast %46 : vector<32x2xf32> to vector<1x1x32x2xf32>
    tpu.vector_store %arg5[%c0_11, %c0_12, %c0_13, %c0_14], %49 {strides = array<i32>} : memref<1x1x32x2xf32, #tpu.memory_space<vmem>>, vector<1x1x32x2xf32>,
    return
  }
  func.func @transform_0(%arg0: i32, %arg1: i32) -> (i32, i32, i32) {
    %c0_i32 = arith.constant 0 : i32
    %c0_i32_0 = arith.constant 0 : i32
    return %arg0, %c0_i32, %arg1 : i32, i32, i32
  }
  func.func @transform_1(%arg0: i32, %arg1: i32) -> (i32, i32) {
    %c0_i32 = arith.constant 0 : i32
    %c0_i32_0 = arith.constant 0 : i32
    %c0_i32_1 = arith.constant 0 : i32
    return %c0_i32, %c0_i32_0 : i32, i32
  }
  func.func @transform_2(%arg0: i32, %arg1: i32) -> (i32, i32, i32) {
    %c0_i32 = arith.constant 0 : i32
    %c0_i32_0 = arith.constant 0 : i32
    return %arg0, %c0_i32, %arg1 : i32, i32, i32
  }
  func.func @transform_3(%arg0: i32, %arg1: i32) -> (i32, i32, i32, i32) {
    %c0_i32 = arith.constant 0 : i32
    %c0_i32_0 = arith.constant 0 : i32
    %c0_i32_1 = arith.constant 0 : i32
    return %arg0, %arg1, %c0_i32, %c0_i32_0 : i32, i32, i32, i32
  }
}

module attributes {stable_mosaic.version = 11 : i64} {
  func.func @kernel(%arg0: i32, %arg1: i32, %arg2: memref<1x32x64xf32, #tpu.memory_space<vmem>>, %arg3: memref<32x864xbf16, #tpu.memory_space<vmem>>, %arg4: memref<32x1xf32, #tpu.memory_space<vmem>>, %arg5: memref<32x1xf32, #tpu.memory_space<vmem>>, %arg6: memref<1x32x64xf32, #tpu.memory_space<vmem>>, %arg7: memref<1x1x32x2xf32, #tpu.memory_space<vmem>>) attributes {dimension_semantics = [#tpu.dimension_semantics<parallel>, #tpu.dimension_semantics<parallel>], iteration_bounds = array<i64: 2, 1>, scalar_prefetch = 0 : i64, scratch_operands = 0 : i64, tpu.core_type = #tpu.core_type<tc>, window_params = [{transform_indices = @transform_0, window_bounds = array<i64: 1, 32, 64>}, {pipeline_mode = #tpu.pipeline_mode<synchronous>, transform_indices = @transform_1, window_bounds = array<i64: 32, 864>}, {pipeline_mode = #tpu.pipeline_mode<synchronous>, transform_indices = @transform_2, window_bounds = array<i64: 32, 1>}, {pipeline_mode = #tpu.pipeline_mode<synchronous>, transform_indices = @transform_3, window_bounds = array<i64: 32, 1>}, {transform_indices = @transform_4, window_bounds = array<i64: 1, 32, 64>}, {transform_indices = @transform_5, window_bounds = array<i64: 1, 1, 32, 2>}]} {
    %c0 = arith.constant 0 : index
    %c0_0 = arith.constant 0 : index
    %c0_1 = arith.constant 0 : index
    %0 = vector.load %arg2[%c0, %c0_0, %c0_1] : memref<1x32x64xf32, #tpu.memory_space<vmem>>, vector<1x32x64xf32>
    %1 = vector.shape_cast %0 : vector<1x32x64xf32> to vector<32x64xf32>
    %c0_2 = arith.constant 0 : index
    %c0_3 = arith.constant 0 : index
    %2 = vector.load %arg4[%c0_2, %c0_3] : memref<32x1xf32, #tpu.memory_space<vmem>>, vector<32x1xf32>
    %3 = vector.broadcast %2 : vector<32x1xf32> to vector<32x64xf32>
    %4 = arith.mulf %1, %3 : vector<32x64xf32>
    %c0_4 = arith.constant 0 : index
    %c0_5 = arith.constant 0 : index
    %5 = vector.load %arg5[%c0_4, %c0_5] : memref<32x1xf32, #tpu.memory_space<vmem>>, vector<32x1xf32>
    %6 = vector.broadcast %5 : vector<32x1xf32> to vector<32x64xf32>
    %7 = arith.addf %4, %6 : vector<32x64xf32>
    %cst = arith.constant 0.000000e+00 : f32
    %8 = vector.broadcast %cst : f32 to vector<32x64xf32>
    %9 = arith.maximumf %7, %8 : vector<32x64xf32>
    %cst_6 = arith.constant 0.000000e+00 : f32
    %10 = vector.broadcast %cst_6 : f32 to vector<32x13xf32>
    %cst_7 = arith.constant 0.000000e+00 : f32
    %11 = vector.broadcast %cst_7 : f32 to vector<32x13xf32>
    %12 = tpu.concatenate %10, %9, %11 in 1 : vector<32x13xf32>, vector<32x64xf32>, vector<32x13xf32> -> vector<32x90xf32>
    %13 = arith.truncf %12 : vector<32x90xf32> to vector<32x90xbf16>
    %14 = vector.extract_strided_slice %13 {offsets = [0, 0], sizes = [32, 64], strides = [1, 1]} : vector<32x90xbf16> to vector<32x64xbf16>
    %15 = vector.extract_strided_slice %13 {offsets = [0, 1], sizes = [32, 64], strides = [1, 1]} : vector<32x90xbf16> to vector<32x64xbf16>
    %16 = vector.extract_strided_slice %13 {offsets = [0, 2], sizes = [32, 64], strides = [1, 1]} : vector<32x90xbf16> to vector<32x64xbf16>
    %17 = vector.extract_strided_slice %13 {offsets = [0, 3], sizes = [32, 64], strides = [1, 1]} : vector<32x90xbf16> to vector<32x64xbf16>
    %18 = vector.extract_strided_slice %13 {offsets = [0, 4], sizes = [32, 64], strides = [1, 1]} : vector<32x90xbf16> to vector<32x64xbf16>
    %19 = vector.extract_strided_slice %13 {offsets = [0, 5], sizes = [32, 64], strides = [1, 1]} : vector<32x90xbf16> to vector<32x64xbf16>
    %20 = vector.extract_strided_slice %13 {offsets = [0, 6], sizes = [32, 64], strides = [1, 1]} : vector<32x90xbf16> to vector<32x64xbf16>
    %21 = vector.extract_strided_slice %13 {offsets = [0, 7], sizes = [32, 64], strides = [1, 1]} : vector<32x90xbf16> to vector<32x64xbf16>
    %22 = vector.extract_strided_slice %13 {offsets = [0, 8], sizes = [32, 64], strides = [1, 1]} : vector<32x90xbf16> to vector<32x64xbf16>
    %23 = vector.extract_strided_slice %13 {offsets = [0, 9], sizes = [32, 64], strides = [1, 1]} : vector<32x90xbf16> to vector<32x64xbf16>
    %24 = vector.extract_strided_slice %13 {offsets = [0, 10], sizes = [32, 64], strides = [1, 1]} : vector<32x90xbf16> to vector<32x64xbf16>
    %25 = vector.extract_strided_slice %13 {offsets = [0, 11], sizes = [32, 64], strides = [1, 1]} : vector<32x90xbf16> to vector<32x64xbf16>
    %26 = vector.extract_strided_slice %13 {offsets = [0, 12], sizes = [32, 64], strides = [1, 1]} : vector<32x90xbf16> to vector<32x64xbf16>
    %27 = vector.extract_strided_slice %13 {offsets = [0, 13], sizes = [32, 64], strides = [1, 1]} : vector<32x90xbf16> to vector<32x64xbf16>
    %28 = vector.extract_strided_slice %13 {offsets = [0, 14], sizes = [32, 64], strides = [1, 1]} : vector<32x90xbf16> to vector<32x64xbf16>
    %29 = vector.extract_strided_slice %13 {offsets = [0, 15], sizes = [32, 64], strides = [1, 1]} : vector<32x90xbf16> to vector<32x64xbf16>
    %30 = vector.extract_strided_slice %13 {offsets = [0, 16], sizes = [32, 64], strides = [1, 1]} : vector<32x90xbf16> to vector<32x64xbf16>
    %31 = vector.extract_strided_slice %13 {offsets = [0, 17], sizes = [32, 64], strides = [1, 1]} : vector<32x90xbf16> to vector<32x64xbf16>
    %32 = vector.extract_strided_slice %13 {offsets = [0, 18], sizes = [32, 64], strides = [1, 1]} : vector<32x90xbf16> to vector<32x64xbf16>
    %33 = vector.extract_strided_slice %13 {offsets = [0, 19], sizes = [32, 64], strides = [1, 1]} : vector<32x90xbf16> to vector<32x64xbf16>
    %34 = vector.extract_strided_slice %13 {offsets = [0, 20], sizes = [32, 64], strides = [1, 1]} : vector<32x90xbf16> to vector<32x64xbf16>
    %35 = vector.extract_strided_slice %13 {offsets = [0, 21], sizes = [32, 64], strides = [1, 1]} : vector<32x90xbf16> to vector<32x64xbf16>
    %36 = vector.extract_strided_slice %13 {offsets = [0, 22], sizes = [32, 64], strides = [1, 1]} : vector<32x90xbf16> to vector<32x64xbf16>
    %37 = vector.extract_strided_slice %13 {offsets = [0, 23], sizes = [32, 64], strides = [1, 1]} : vector<32x90xbf16> to vector<32x64xbf16>
    %38 = vector.extract_strided_slice %13 {offsets = [0, 24], sizes = [32, 64], strides = [1, 1]} : vector<32x90xbf16> to vector<32x64xbf16>
    %39 = vector.extract_strided_slice %13 {offsets = [0, 25], sizes = [32, 64], strides = [1, 1]} : vector<32x90xbf16> to vector<32x64xbf16>
    %40 = vector.extract_strided_slice %13 {offsets = [0, 26], sizes = [32, 64], strides = [1, 1]} : vector<32x90xbf16> to vector<32x64xbf16>
    %41 = tpu.concatenate %14, %15, %16, %17, %18, %19, %20, %21, %22, %23, %24, %25, %26, %27, %28, %29 in 0 : vector<32x64xbf16>, vector<32x64xbf16>, vector<32x64xbf16>, vector<32x64xbf16>, vector<32x64xbf16>, vector<32x64xbf16>, vector<32x64xbf16>, vector<32x64xbf16>, vector<32x64xbf16>, vector<32x64xbf16>, vector<32x64xbf16>, vector<32x64xbf16>, vector<32x64xbf16>, vector<32x64xbf16>, vector<32x64xbf16>, vector<32x64xbf16> -> vector<512x64xbf16>
    %42 = tpu.concatenate %30, %31, %32, %33, %34, %35, %36, %37, %38, %39, %40 in 0 : vector<32x64xbf16>, vector<32x64xbf16>, vector<32x64xbf16>, vector<32x64xbf16>, vector<32x64xbf16>, vector<32x64xbf16>, vector<32x64xbf16>, vector<32x64xbf16>, vector<32x64xbf16>, vector<32x64xbf16>, vector<32x64xbf16> -> vector<352x64xbf16>
    %43 = tpu.concatenate %41, %42 in 0 : vector<512x64xbf16>, vector<352x64xbf16> -> vector<864x64xbf16>
    %c0_8 = arith.constant 0 : index
    %c0_9 = arith.constant 0 : index
    %44 = vector.load %arg3[%c0_8, %c0_9] : memref<32x864xbf16, #tpu.memory_space<vmem>>, vector<32x864xbf16>
    %cst_10 = arith.constant dense<0.000000e+00> : vector<32x64xf32>
    %45 = tpu.matmul %44, %43, %cst_10 {dimension_numbers = #tpu.dot_dimension_numbers<[1], [0], [0], [1], [0, 0, 1, 1], [], []>} : vector<32x864xbf16>, vector<864x64xbf16>, vector<32x64xf32> -> vector<32x64xf32>
    %c0_11 = arith.constant 0 : index
    %c0_12 = arith.constant 0 : index
    %c0_13 = arith.constant 0 : index
    %46 = vector.load %arg6[%c0_11, %c0_12, %c0_13] : memref<1x32x64xf32, #tpu.memory_space<vmem>>, vector<1x32x64xf32>
    %47 = vector.shape_cast %46 : vector<1x32x64xf32> to vector<32x64xf32>
    %48 = vector.shape_cast %45 : vector<32x64xf32> to vector<1x32x64xf32>
    tpu.vector_store %arg6[%c0_11, %c0_12, %c0_13], %48 {strides = array<i32>} : memref<1x32x64xf32, #tpu.memory_space<vmem>>, vector<1x32x64xf32>,
    %cst_14 = arith.constant dense<0.000000e+00> : vector<32xf32>
    %49 = vector.multi_reduction <add>, %45, %cst_14 [1] : vector<32x64xf32> to vector<32xf32>
    %50 = vector.shape_cast %49 : vector<32xf32> to vector<32x1xf32>
    %51 = arith.mulf %45, %45 : vector<32x64xf32>
    %cst_15 = arith.constant dense<0.000000e+00> : vector<32xf32>
    %52 = vector.multi_reduction <add>, %51, %cst_15 [1] : vector<32x64xf32> to vector<32xf32>
    %53 = vector.shape_cast %52 : vector<32xf32> to vector<32x1xf32>
    %54 = tpu.concatenate %50, %53 in 1 : vector<32x1xf32>, vector<32x1xf32> -> vector<32x2xf32>
    %c0_16 = arith.constant 0 : index
    %c0_17 = arith.constant 0 : index
    %c0_18 = arith.constant 0 : index
    %c0_19 = arith.constant 0 : index
    %55 = vector.load %arg7[%c0_16, %c0_17, %c0_18, %c0_19] : memref<1x1x32x2xf32, #tpu.memory_space<vmem>>, vector<1x1x32x2xf32>
    %56 = vector.shape_cast %55 : vector<1x1x32x2xf32> to vector<32x2xf32>
    %57 = vector.shape_cast %54 : vector<32x2xf32> to vector<1x1x32x2xf32>
    tpu.vector_store %arg7[%c0_16, %c0_17, %c0_18, %c0_19], %57 {strides = array<i32>} : memref<1x1x32x2xf32, #tpu.memory_space<vmem>>, vector<1x1x32x2xf32>,
    return
  }
  func.func @transform_0(%arg0: i32, %arg1: i32) -> (i32, i32, i32) {
    %c0_i32 = arith.constant 0 : i32
    %c0_i32_0 = arith.constant 0 : i32
    return %arg0, %c0_i32, %arg1 : i32, i32, i32
  }
  func.func @transform_1(%arg0: i32, %arg1: i32) -> (i32, i32) {
    %c0_i32 = arith.constant 0 : i32
    %c0_i32_0 = arith.constant 0 : i32
    %c0_i32_1 = arith.constant 0 : i32
    return %c0_i32, %c0_i32_0 : i32, i32
  }
  func.func @transform_2(%arg0: i32, %arg1: i32) -> (i32, i32) {
    %c0_i32 = arith.constant 0 : i32
    %c0_i32_0 = arith.constant 0 : i32
    %c0_i32_1 = arith.constant 0 : i32
    return %c0_i32, %c0_i32_0 : i32, i32
  }
  func.func @transform_3(%arg0: i32, %arg1: i32) -> (i32, i32) {
    %c0_i32 = arith.constant 0 : i32
    %c0_i32_0 = arith.constant 0 : i32
    %c0_i32_1 = arith.constant 0 : i32
    return %c0_i32, %c0_i32_0 : i32, i32
  }
  func.func @transform_4(%arg0: i32, %arg1: i32) -> (i32, i32, i32) {
    %c0_i32 = arith.constant 0 : i32
    %c0_i32_0 = arith.constant 0 : i32
    return %arg0, %c0_i32, %arg1 : i32, i32, i32
  }
  func.func @transform_5(%arg0: i32, %arg1: i32) -> (i32, i32, i32, i32) {
    %c0_i32 = arith.constant 0 : i32
    %c0_i32_0 = arith.constant 0 : i32
    %c0_i32_1 = arith.constant 0 : i32
    return %arg0, %arg1, %c0_i32, %c0_i32_0 : i32, i32, i32, i32
  }
}

module attributes {stable_mosaic.version = 11 : i64} {
  func.func @kernel(%arg0: i32, %arg1: i32, %arg2: memref<1x32x64xf32, #tpu.memory_space<vmem>>, %arg3: memref<1x32x64xf32, #tpu.memory_space<vmem>>, %arg4: memref<32x864xbf16, #tpu.memory_space<vmem>>, %arg5: memref<32x1xf32, #tpu.memory_space<vmem>>, %arg6: memref<32x1xf32, #tpu.memory_space<vmem>>, %arg7: memref<1x32x64xf32, #tpu.memory_space<vmem>>, %arg8: memref<1x1x32x2xf32, #tpu.memory_space<vmem>>, %arg9: memref<1x32x64xf32, #tpu.memory_space<vmem>>) attributes {dimension_semantics = [#tpu.dimension_semantics<parallel>, #tpu.dimension_semantics<parallel>], iteration_bounds = array<i64: 2, 1>, scalar_prefetch = 0 : i64, scratch_operands = 0 : i64, tpu.core_type = #tpu.core_type<tc>, window_params = [{transform_indices = @transform_0, window_bounds = array<i64: 1, 32, 64>}, {transform_indices = @transform_1, window_bounds = array<i64: 1, 32, 64>}, {pipeline_mode = #tpu.pipeline_mode<synchronous>, transform_indices = @transform_2, window_bounds = array<i64: 32, 864>}, {pipeline_mode = #tpu.pipeline_mode<synchronous>, transform_indices = @transform_3, window_bounds = array<i64: 32, 1>}, {pipeline_mode = #tpu.pipeline_mode<synchronous>, transform_indices = @transform_4, window_bounds = array<i64: 32, 1>}, {transform_indices = @transform_5, window_bounds = array<i64: 1, 32, 64>}, {transform_indices = @transform_6, window_bounds = array<i64: 1, 1, 32, 2>}, {transform_indices = @transform_7, window_bounds = array<i64: 1, 32, 64>}]} {
    %c0 = arith.constant 0 : index
    %c0_0 = arith.constant 0 : index
    %c0_1 = arith.constant 0 : index
    %0 = vector.load %arg2[%c0, %c0_0, %c0_1] : memref<1x32x64xf32, #tpu.memory_space<vmem>>, vector<1x32x64xf32>
    %1 = vector.shape_cast %0 : vector<1x32x64xf32> to vector<32x64xf32>
    %c0_2 = arith.constant 0 : index
    %c0_3 = arith.constant 0 : index
    %c0_4 = arith.constant 0 : index
    %2 = vector.load %arg3[%c0_2, %c0_3, %c0_4] : memref<1x32x64xf32, #tpu.memory_space<vmem>>, vector<1x32x64xf32>
    %3 = vector.shape_cast %2 : vector<1x32x64xf32> to vector<32x64xf32>
    %c0_5 = arith.constant 0 : index
    %c0_6 = arith.constant 0 : index
    %4 = vector.load %arg5[%c0_5, %c0_6] : memref<32x1xf32, #tpu.memory_space<vmem>>, vector<32x1xf32>
    %5 = vector.broadcast %4 : vector<32x1xf32> to vector<32x64xf32>
    %6 = arith.mulf %1, %5 : vector<32x64xf32>
    %c0_7 = arith.constant 0 : index
    %c0_8 = arith.constant 0 : index
    %7 = vector.load %arg6[%c0_7, %c0_8] : memref<32x1xf32, #tpu.memory_space<vmem>>, vector<32x1xf32>
    %8 = vector.broadcast %7 : vector<32x1xf32> to vector<32x64xf32>
    %9 = arith.addf %6, %8 : vector<32x64xf32>
    %10 = arith.addf %9, %3 : vector<32x64xf32>
    %c0_9 = arith.constant 0 : index
    %c0_10 = arith.constant 0 : index
    %c0_11 = arith.constant 0 : index
    %11 = vector.load %arg9[%c0_9, %c0_10, %c0_11] : memref<1x32x64xf32, #tpu.memory_space<vmem>>, vector<1x32x64xf32>
    %12 = vector.shape_cast %11 : vector<1x32x64xf32> to vector<32x64xf32>
    %13 = vector.shape_cast %10 : vector<32x64xf32> to vector<1x32x64xf32>
    tpu.vector_store %arg9[%c0_9, %c0_10, %c0_11], %13 {strides = array<i32>} : memref<1x32x64xf32, #tpu.memory_space<vmem>>, vector<1x32x64xf32>,
    %cst = arith.constant 0.000000e+00 : f32
    %14 = vector.broadcast %cst : f32 to vector<32x13xf32>
    %cst_12 = arith.constant 0.000000e+00 : f32
    %15 = vector.broadcast %cst_12 : f32 to vector<32x13xf32>
    %16 = tpu.concatenate %14, %10, %15 in 1 : vector<32x13xf32>, vector<32x64xf32>, vector<32x13xf32> -> vector<32x90xf32>
    %17 = arith.truncf %16 : vector<32x90xf32> to vector<32x90xbf16>
    %18 = vector.extract_strided_slice %17 {offsets = [0, 0], sizes = [32, 64], strides = [1, 1]} : vector<32x90xbf16> to vector<32x64xbf16>
    %19 = vector.extract_strided_slice %17 {offsets = [0, 1], sizes = [32, 64], strides = [1, 1]} : vector<32x90xbf16> to vector<32x64xbf16>
    %20 = vector.extract_strided_slice %17 {offsets = [0, 2], sizes = [32, 64], strides = [1, 1]} : vector<32x90xbf16> to vector<32x64xbf16>
    %21 = vector.extract_strided_slice %17 {offsets = [0, 3], sizes = [32, 64], strides = [1, 1]} : vector<32x90xbf16> to vector<32x64xbf16>
    %22 = vector.extract_strided_slice %17 {offsets = [0, 4], sizes = [32, 64], strides = [1, 1]} : vector<32x90xbf16> to vector<32x64xbf16>
    %23 = vector.extract_strided_slice %17 {offsets = [0, 5], sizes = [32, 64], strides = [1, 1]} : vector<32x90xbf16> to vector<32x64xbf16>
    %24 = vector.extract_strided_slice %17 {offsets = [0, 6], sizes = [32, 64], strides = [1, 1]} : vector<32x90xbf16> to vector<32x64xbf16>
    %25 = vector.extract_strided_slice %17 {offsets = [0, 7], sizes = [32, 64], strides = [1, 1]} : vector<32x90xbf16> to vector<32x64xbf16>
    %26 = vector.extract_strided_slice %17 {offsets = [0, 8], sizes = [32, 64], strides = [1, 1]} : vector<32x90xbf16> to vector<32x64xbf16>
    %27 = vector.extract_strided_slice %17 {offsets = [0, 9], sizes = [32, 64], strides = [1, 1]} : vector<32x90xbf16> to vector<32x64xbf16>
    %28 = vector.extract_strided_slice %17 {offsets = [0, 10], sizes = [32, 64], strides = [1, 1]} : vector<32x90xbf16> to vector<32x64xbf16>
    %29 = vector.extract_strided_slice %17 {offsets = [0, 11], sizes = [32, 64], strides = [1, 1]} : vector<32x90xbf16> to vector<32x64xbf16>
    %30 = vector.extract_strided_slice %17 {offsets = [0, 12], sizes = [32, 64], strides = [1, 1]} : vector<32x90xbf16> to vector<32x64xbf16>
    %31 = vector.extract_strided_slice %17 {offsets = [0, 13], sizes = [32, 64], strides = [1, 1]} : vector<32x90xbf16> to vector<32x64xbf16>
    %32 = vector.extract_strided_slice %17 {offsets = [0, 14], sizes = [32, 64], strides = [1, 1]} : vector<32x90xbf16> to vector<32x64xbf16>
    %33 = vector.extract_strided_slice %17 {offsets = [0, 15], sizes = [32, 64], strides = [1, 1]} : vector<32x90xbf16> to vector<32x64xbf16>
    %34 = vector.extract_strided_slice %17 {offsets = [0, 16], sizes = [32, 64], strides = [1, 1]} : vector<32x90xbf16> to vector<32x64xbf16>
    %35 = vector.extract_strided_slice %17 {offsets = [0, 17], sizes = [32, 64], strides = [1, 1]} : vector<32x90xbf16> to vector<32x64xbf16>
    %36 = vector.extract_strided_slice %17 {offsets = [0, 18], sizes = [32, 64], strides = [1, 1]} : vector<32x90xbf16> to vector<32x64xbf16>
    %37 = vector.extract_strided_slice %17 {offsets = [0, 19], sizes = [32, 64], strides = [1, 1]} : vector<32x90xbf16> to vector<32x64xbf16>
    %38 = vector.extract_strided_slice %17 {offsets = [0, 20], sizes = [32, 64], strides = [1, 1]} : vector<32x90xbf16> to vector<32x64xbf16>
    %39 = vector.extract_strided_slice %17 {offsets = [0, 21], sizes = [32, 64], strides = [1, 1]} : vector<32x90xbf16> to vector<32x64xbf16>
    %40 = vector.extract_strided_slice %17 {offsets = [0, 22], sizes = [32, 64], strides = [1, 1]} : vector<32x90xbf16> to vector<32x64xbf16>
    %41 = vector.extract_strided_slice %17 {offsets = [0, 23], sizes = [32, 64], strides = [1, 1]} : vector<32x90xbf16> to vector<32x64xbf16>
    %42 = vector.extract_strided_slice %17 {offsets = [0, 24], sizes = [32, 64], strides = [1, 1]} : vector<32x90xbf16> to vector<32x64xbf16>
    %43 = vector.extract_strided_slice %17 {offsets = [0, 25], sizes = [32, 64], strides = [1, 1]} : vector<32x90xbf16> to vector<32x64xbf16>
    %44 = vector.extract_strided_slice %17 {offsets = [0, 26], sizes = [32, 64], strides = [1, 1]} : vector<32x90xbf16> to vector<32x64xbf16>
    %45 = tpu.concatenate %18, %19, %20, %21, %22, %23, %24, %25, %26, %27, %28, %29, %30, %31, %32, %33 in 0 : vector<32x64xbf16>, vector<32x64xbf16>, vector<32x64xbf16>, vector<32x64xbf16>, vector<32x64xbf16>, vector<32x64xbf16>, vector<32x64xbf16>, vector<32x64xbf16>, vector<32x64xbf16>, vector<32x64xbf16>, vector<32x64xbf16>, vector<32x64xbf16>, vector<32x64xbf16>, vector<32x64xbf16>, vector<32x64xbf16>, vector<32x64xbf16> -> vector<512x64xbf16>
    %46 = tpu.concatenate %34, %35, %36, %37, %38, %39, %40, %41, %42, %43, %44 in 0 : vector<32x64xbf16>, vector<32x64xbf16>, vector<32x64xbf16>, vector<32x64xbf16>, vector<32x64xbf16>, vector<32x64xbf16>, vector<32x64xbf16>, vector<32x64xbf16>, vector<32x64xbf16>, vector<32x64xbf16>, vector<32x64xbf16> -> vector<352x64xbf16>
    %47 = tpu.concatenate %45, %46 in 0 : vector<512x64xbf16>, vector<352x64xbf16> -> vector<864x64xbf16>
    %c0_13 = arith.constant 0 : index
    %c0_14 = arith.constant 0 : index
    %48 = vector.load %arg4[%c0_13, %c0_14] : memref<32x864xbf16, #tpu.memory_space<vmem>>, vector<32x864xbf16>
    %cst_15 = arith.constant dense<0.000000e+00> : vector<32x64xf32>
    %49 = tpu.matmul %48, %47, %cst_15 {dimension_numbers = #tpu.dot_dimension_numbers<[1], [0], [0], [1], [0, 0, 1, 1], [], []>} : vector<32x864xbf16>, vector<864x64xbf16>, vector<32x64xf32> -> vector<32x64xf32>
    %c0_16 = arith.constant 0 : index
    %c0_17 = arith.constant 0 : index
    %c0_18 = arith.constant 0 : index
    %50 = vector.load %arg7[%c0_16, %c0_17, %c0_18] : memref<1x32x64xf32, #tpu.memory_space<vmem>>, vector<1x32x64xf32>
    %51 = vector.shape_cast %50 : vector<1x32x64xf32> to vector<32x64xf32>
    %52 = vector.shape_cast %49 : vector<32x64xf32> to vector<1x32x64xf32>
    tpu.vector_store %arg7[%c0_16, %c0_17, %c0_18], %52 {strides = array<i32>} : memref<1x32x64xf32, #tpu.memory_space<vmem>>, vector<1x32x64xf32>,
    %cst_19 = arith.constant dense<0.000000e+00> : vector<32xf32>
    %53 = vector.multi_reduction <add>, %49, %cst_19 [1] : vector<32x64xf32> to vector<32xf32>
    %54 = vector.shape_cast %53 : vector<32xf32> to vector<32x1xf32>
    %55 = arith.mulf %49, %49 : vector<32x64xf32>
    %cst_20 = arith.constant dense<0.000000e+00> : vector<32xf32>
    %56 = vector.multi_reduction <add>, %55, %cst_20 [1] : vector<32x64xf32> to vector<32xf32>
    %57 = vector.shape_cast %56 : vector<32xf32> to vector<32x1xf32>
    %58 = tpu.concatenate %54, %57 in 1 : vector<32x1xf32>, vector<32x1xf32> -> vector<32x2xf32>
    %c0_21 = arith.constant 0 : index
    %c0_22 = arith.constant 0 : index
    %c0_23 = arith.constant 0 : index
    %c0_24 = arith.constant 0 : index
    %59 = vector.load %arg8[%c0_21, %c0_22, %c0_23, %c0_24] : memref<1x1x32x2xf32, #tpu.memory_space<vmem>>, vector<1x1x32x2xf32>
    %60 = vector.shape_cast %59 : vector<1x1x32x2xf32> to vector<32x2xf32>
    %61 = vector.shape_cast %58 : vector<32x2xf32> to vector<1x1x32x2xf32>
    tpu.vector_store %arg8[%c0_21, %c0_22, %c0_23, %c0_24], %61 {strides = array<i32>} : memref<1x1x32x2xf32, #tpu.memory_space<vmem>>, vector<1x1x32x2xf32>,
    return
  }
  func.func @transform_0(%arg0: i32, %arg1: i32) -> (i32, i32, i32) {
    %c0_i32 = arith.constant 0 : i32
    %c0_i32_0 = arith.constant 0 : i32
    return %arg0, %c0_i32, %arg1 : i32, i32, i32
  }
  func.func @transform_1(%arg0: i32, %arg1: i32) -> (i32, i32, i32) {
    %c0_i32 = arith.constant 0 : i32
    %c0_i32_0 = arith.constant 0 : i32
    return %arg0, %c0_i32, %arg1 : i32, i32, i32
  }
  func.func @transform_2(%arg0: i32, %arg1: i32) -> (i32, i32) {
    %c0_i32 = arith.constant 0 : i32
    %c0_i32_0 = arith.constant 0 : i32
    %c0_i32_1 = arith.constant 0 : i32
    return %c0_i32, %c0_i32_0 : i32, i32
  }
  func.func @transform_3(%arg0: i32, %arg1: i32) -> (i32, i32) {
    %c0_i32 = arith.constant 0 : i32
    %c0_i32_0 = arith.constant 0 : i32
    %c0_i32_1 = arith.constant 0 : i32
    return %c0_i32, %c0_i32_0 : i32, i32
  }
  func.func @transform_4(%arg0: i32, %arg1: i32) -> (i32, i32) {
    %c0_i32 = arith.constant 0 : i32
    %c0_i32_0 = arith.constant 0 : i32
    %c0_i32_1 = arith.constant 0 : i32
    return %c0_i32, %c0_i32_0 : i32, i32
  }
  func.func @transform_5(%arg0: i32, %arg1: i32) -> (i32, i32, i32) {
    %c0_i32 = arith.constant 0 : i32
    %c0_i32_0 = arith.constant 0 : i32
    return %arg0, %c0_i32, %arg1 : i32, i32, i32
  }
  func.func @transform_6(%arg0: i32, %arg1: i32) -> (i32, i32, i32, i32) {
    %c0_i32 = arith.constant 0 : i32
    %c0_i32_0 = arith.constant 0 : i32
    %c0_i32_1 = arith.constant 0 : i32
    return %arg0, %arg1, %c0_i32, %c0_i32_0 : i32, i32, i32, i32
  }
  func.func @transform_7(%arg0: i32, %arg1: i32) -> (i32, i32, i32) {
    %c0_i32 = arith.constant 0 : i32
    %c0_i32_0 = arith.constant 0 : i32
    return %arg0, %c0_i32, %arg1 : i32, i32, i32
  }
}

module attributes {stable_mosaic.version = 11 : i64} {
  func.func @kernel(%arg0: i32, %arg1: i32, %arg2: memref<1x32x64xf32, #tpu.memory_space<vmem>>, %arg3: memref<1x32x64xf32, #tpu.memory_space<vmem>>, %arg4: memref<32x864xbf16, #tpu.memory_space<vmem>>, %arg5: memref<32x1xf32, #tpu.memory_space<vmem>>, %arg6: memref<32x1xf32, #tpu.memory_space<vmem>>, %arg7: memref<32x1xf32, #tpu.memory_space<vmem>>, %arg8: memref<1x32x64xf32, #tpu.memory_space<vmem>>, %arg9: memref<1x1x32x2xf32, #tpu.memory_space<vmem>>) attributes {dimension_semantics = [#tpu.dimension_semantics<parallel>, #tpu.dimension_semantics<parallel>], iteration_bounds = array<i64: 2, 1>, scalar_prefetch = 0 : i64, scratch_operands = 0 : i64, tpu.core_type = #tpu.core_type<tc>, window_params = [{transform_indices = @transform_0, window_bounds = array<i64: 1, 32, 64>}, {transform_indices = @transform_1, window_bounds = array<i64: 1, 32, 64>}, {pipeline_mode = #tpu.pipeline_mode<synchronous>, transform_indices = @transform_2, window_bounds = array<i64: 32, 864>}, {pipeline_mode = #tpu.pipeline_mode<synchronous>, transform_indices = @transform_3, window_bounds = array<i64: 32, 1>}, {pipeline_mode = #tpu.pipeline_mode<synchronous>, transform_indices = @transform_4, window_bounds = array<i64: 32, 1>}, {pipeline_mode = #tpu.pipeline_mode<synchronous>, transform_indices = @transform_5, window_bounds = array<i64: 32, 1>}, {transform_indices = @transform_6, window_bounds = array<i64: 1, 32, 64>}, {transform_indices = @transform_7, window_bounds = array<i64: 1, 1, 32, 2>}]} {
    %c0 = arith.constant 0 : index
    %c0_0 = arith.constant 0 : index
    %c0_1 = arith.constant 0 : index
    %0 = vector.load %arg2[%c0, %c0_0, %c0_1] : memref<1x32x64xf32, #tpu.memory_space<vmem>>, vector<1x32x64xf32>
    %1 = vector.shape_cast %0 : vector<1x32x64xf32> to vector<32x64xf32>
    %c0_2 = arith.constant 0 : index
    %c0_3 = arith.constant 0 : index
    %c0_4 = arith.constant 0 : index
    %2 = vector.load %arg3[%c0_2, %c0_3, %c0_4] : memref<1x32x64xf32, #tpu.memory_space<vmem>>, vector<1x32x64xf32>
    %3 = vector.shape_cast %2 : vector<1x32x64xf32> to vector<32x64xf32>
    %c0_5 = arith.constant 0 : index
    %c0_6 = arith.constant 0 : index
    %4 = vector.load %arg5[%c0_5, %c0_6] : memref<32x1xf32, #tpu.memory_space<vmem>>, vector<32x1xf32>
    %5 = vector.broadcast %4 : vector<32x1xf32> to vector<32x64xf32>
    %6 = arith.mulf %1, %5 : vector<32x64xf32>
    %c0_7 = arith.constant 0 : index
    %c0_8 = arith.constant 0 : index
    %7 = vector.load %arg6[%c0_7, %c0_8] : memref<32x1xf32, #tpu.memory_space<vmem>>, vector<32x1xf32>
    %8 = vector.broadcast %7 : vector<32x1xf32> to vector<32x64xf32>
    %9 = arith.addf %6, %8 : vector<32x64xf32>
    %10 = arith.addf %9, %3 : vector<32x64xf32>
    %cst = arith.constant 0.000000e+00 : f32
    %11 = vector.broadcast %cst : f32 to vector<32x13xf32>
    %cst_9 = arith.constant 0.000000e+00 : f32
    %12 = vector.broadcast %cst_9 : f32 to vector<32x13xf32>
    %13 = tpu.concatenate %11, %10, %12 in 1 : vector<32x13xf32>, vector<32x64xf32>, vector<32x13xf32> -> vector<32x90xf32>
    %14 = arith.truncf %13 : vector<32x90xf32> to vector<32x90xbf16>
    %15 = vector.extract_strided_slice %14 {offsets = [0, 0], sizes = [32, 64], strides = [1, 1]} : vector<32x90xbf16> to vector<32x64xbf16>
    %16 = vector.extract_strided_slice %14 {offsets = [0, 1], sizes = [32, 64], strides = [1, 1]} : vector<32x90xbf16> to vector<32x64xbf16>
    %17 = vector.extract_strided_slice %14 {offsets = [0, 2], sizes = [32, 64], strides = [1, 1]} : vector<32x90xbf16> to vector<32x64xbf16>
    %18 = vector.extract_strided_slice %14 {offsets = [0, 3], sizes = [32, 64], strides = [1, 1]} : vector<32x90xbf16> to vector<32x64xbf16>
    %19 = vector.extract_strided_slice %14 {offsets = [0, 4], sizes = [32, 64], strides = [1, 1]} : vector<32x90xbf16> to vector<32x64xbf16>
    %20 = vector.extract_strided_slice %14 {offsets = [0, 5], sizes = [32, 64], strides = [1, 1]} : vector<32x90xbf16> to vector<32x64xbf16>
    %21 = vector.extract_strided_slice %14 {offsets = [0, 6], sizes = [32, 64], strides = [1, 1]} : vector<32x90xbf16> to vector<32x64xbf16>
    %22 = vector.extract_strided_slice %14 {offsets = [0, 7], sizes = [32, 64], strides = [1, 1]} : vector<32x90xbf16> to vector<32x64xbf16>
    %23 = vector.extract_strided_slice %14 {offsets = [0, 8], sizes = [32, 64], strides = [1, 1]} : vector<32x90xbf16> to vector<32x64xbf16>
    %24 = vector.extract_strided_slice %14 {offsets = [0, 9], sizes = [32, 64], strides = [1, 1]} : vector<32x90xbf16> to vector<32x64xbf16>
    %25 = vector.extract_strided_slice %14 {offsets = [0, 10], sizes = [32, 64], strides = [1, 1]} : vector<32x90xbf16> to vector<32x64xbf16>
    %26 = vector.extract_strided_slice %14 {offsets = [0, 11], sizes = [32, 64], strides = [1, 1]} : vector<32x90xbf16> to vector<32x64xbf16>
    %27 = vector.extract_strided_slice %14 {offsets = [0, 12], sizes = [32, 64], strides = [1, 1]} : vector<32x90xbf16> to vector<32x64xbf16>
    %28 = vector.extract_strided_slice %14 {offsets = [0, 13], sizes = [32, 64], strides = [1, 1]} : vector<32x90xbf16> to vector<32x64xbf16>
    %29 = vector.extract_strided_slice %14 {offsets = [0, 14], sizes = [32, 64], strides = [1, 1]} : vector<32x90xbf16> to vector<32x64xbf16>
    %30 = vector.extract_strided_slice %14 {offsets = [0, 15], sizes = [32, 64], strides = [1, 1]} : vector<32x90xbf16> to vector<32x64xbf16>
    %31 = vector.extract_strided_slice %14 {offsets = [0, 16], sizes = [32, 64], strides = [1, 1]} : vector<32x90xbf16> to vector<32x64xbf16>
    %32 = vector.extract_strided_slice %14 {offsets = [0, 17], sizes = [32, 64], strides = [1, 1]} : vector<32x90xbf16> to vector<32x64xbf16>
    %33 = vector.extract_strided_slice %14 {offsets = [0, 18], sizes = [32, 64], strides = [1, 1]} : vector<32x90xbf16> to vector<32x64xbf16>
    %34 = vector.extract_strided_slice %14 {offsets = [0, 19], sizes = [32, 64], strides = [1, 1]} : vector<32x90xbf16> to vector<32x64xbf16>
    %35 = vector.extract_strided_slice %14 {offsets = [0, 20], sizes = [32, 64], strides = [1, 1]} : vector<32x90xbf16> to vector<32x64xbf16>
    %36 = vector.extract_strided_slice %14 {offsets = [0, 21], sizes = [32, 64], strides = [1, 1]} : vector<32x90xbf16> to vector<32x64xbf16>
    %37 = vector.extract_strided_slice %14 {offsets = [0, 22], sizes = [32, 64], strides = [1, 1]} : vector<32x90xbf16> to vector<32x64xbf16>
    %38 = vector.extract_strided_slice %14 {offsets = [0, 23], sizes = [32, 64], strides = [1, 1]} : vector<32x90xbf16> to vector<32x64xbf16>
    %39 = vector.extract_strided_slice %14 {offsets = [0, 24], sizes = [32, 64], strides = [1, 1]} : vector<32x90xbf16> to vector<32x64xbf16>
    %40 = vector.extract_strided_slice %14 {offsets = [0, 25], sizes = [32, 64], strides = [1, 1]} : vector<32x90xbf16> to vector<32x64xbf16>
    %41 = vector.extract_strided_slice %14 {offsets = [0, 26], sizes = [32, 64], strides = [1, 1]} : vector<32x90xbf16> to vector<32x64xbf16>
    %42 = tpu.concatenate %15, %16, %17, %18, %19, %20, %21, %22, %23, %24, %25, %26, %27, %28, %29, %30 in 0 : vector<32x64xbf16>, vector<32x64xbf16>, vector<32x64xbf16>, vector<32x64xbf16>, vector<32x64xbf16>, vector<32x64xbf16>, vector<32x64xbf16>, vector<32x64xbf16>, vector<32x64xbf16>, vector<32x64xbf16>, vector<32x64xbf16>, vector<32x64xbf16>, vector<32x64xbf16>, vector<32x64xbf16>, vector<32x64xbf16>, vector<32x64xbf16> -> vector<512x64xbf16>
    %43 = tpu.concatenate %31, %32, %33, %34, %35, %36, %37, %38, %39, %40, %41 in 0 : vector<32x64xbf16>, vector<32x64xbf16>, vector<32x64xbf16>, vector<32x64xbf16>, vector<32x64xbf16>, vector<32x64xbf16>, vector<32x64xbf16>, vector<32x64xbf16>, vector<32x64xbf16>, vector<32x64xbf16>, vector<32x64xbf16> -> vector<352x64xbf16>
    %44 = tpu.concatenate %42, %43 in 0 : vector<512x64xbf16>, vector<352x64xbf16> -> vector<864x64xbf16>
    %c0_10 = arith.constant 0 : index
    %c0_11 = arith.constant 0 : index
    %45 = vector.load %arg4[%c0_10, %c0_11] : memref<32x864xbf16, #tpu.memory_space<vmem>>, vector<32x864xbf16>
    %cst_12 = arith.constant dense<0.000000e+00> : vector<32x64xf32>
    %46 = tpu.matmul %45, %44, %cst_12 {dimension_numbers = #tpu.dot_dimension_numbers<[1], [0], [0], [1], [0, 0, 1, 1], [], []>} : vector<32x864xbf16>, vector<864x64xbf16>, vector<32x64xf32> -> vector<32x64xf32>
    %c0_13 = arith.constant 0 : index
    %c0_14 = arith.constant 0 : index
    %47 = vector.load %arg7[%c0_13, %c0_14] : memref<32x1xf32, #tpu.memory_space<vmem>>, vector<32x1xf32>
    %48 = vector.broadcast %47 : vector<32x1xf32> to vector<32x64xf32>
    %49 = arith.addf %46, %48 : vector<32x64xf32>
    %c0_15 = arith.constant 0 : index
    %c0_16 = arith.constant 0 : index
    %c0_17 = arith.constant 0 : index
    %50 = vector.load %arg8[%c0_15, %c0_16, %c0_17] : memref<1x32x64xf32, #tpu.memory_space<vmem>>, vector<1x32x64xf32>
    %51 = vector.shape_cast %50 : vector<1x32x64xf32> to vector<32x64xf32>
    %52 = vector.shape_cast %49 : vector<32x64xf32> to vector<1x32x64xf32>
    tpu.vector_store %arg8[%c0_15, %c0_16, %c0_17], %52 {strides = array<i32>} : memref<1x32x64xf32, #tpu.memory_space<vmem>>, vector<1x32x64xf32>,
    %cst_18 = arith.constant dense<0.000000e+00> : vector<32xf32>
    %53 = vector.multi_reduction <add>, %49, %cst_18 [1] : vector<32x64xf32> to vector<32xf32>
    %54 = vector.shape_cast %53 : vector<32xf32> to vector<32x1xf32>
    %55 = arith.mulf %49, %49 : vector<32x64xf32>
    %cst_19 = arith.constant dense<0.000000e+00> : vector<32xf32>
    %56 = vector.multi_reduction <add>, %55, %cst_19 [1] : vector<32x64xf32> to vector<32xf32>
    %57 = vector.shape_cast %56 : vector<32xf32> to vector<32x1xf32>
    %58 = tpu.concatenate %54, %57 in 1 : vector<32x1xf32>, vector<32x1xf32> -> vector<32x2xf32>
    %c0_20 = arith.constant 0 : index
    %c0_21 = arith.constant 0 : index
    %c0_22 = arith.constant 0 : index
    %c0_23 = arith.constant 0 : index
    %59 = vector.load %arg9[%c0_20, %c0_21, %c0_22, %c0_23] : memref<1x1x32x2xf32, #tpu.memory_space<vmem>>, vector<1x1x32x2xf32>
    %60 = vector.shape_cast %59 : vector<1x1x32x2xf32> to vector<32x2xf32>
    %61 = vector.shape_cast %58 : vector<32x2xf32> to vector<1x1x32x2xf32>
    tpu.vector_store %arg9[%c0_20, %c0_21, %c0_22, %c0_23], %61 {strides = array<i32>} : memref<1x1x32x2xf32, #tpu.memory_space<vmem>>, vector<1x1x32x2xf32>,
    return
  }
  func.func @transform_0(%arg0: i32, %arg1: i32) -> (i32, i32, i32) {
    %c0_i32 = arith.constant 0 : i32
    %c0_i32_0 = arith.constant 0 : i32
    return %arg0, %c0_i32, %arg1 : i32, i32, i32
  }
  func.func @transform_1(%arg0: i32, %arg1: i32) -> (i32, i32, i32) {
    %c0_i32 = arith.constant 0 : i32
    %c0_i32_0 = arith.constant 0 : i32
    return %arg0, %c0_i32, %arg1 : i32, i32, i32
  }
  func.func @transform_2(%arg0: i32, %arg1: i32) -> (i32, i32) {
    %c0_i32 = arith.constant 0 : i32
    %c0_i32_0 = arith.constant 0 : i32
    %c0_i32_1 = arith.constant 0 : i32
    return %c0_i32, %c0_i32_0 : i32, i32
  }
  func.func @transform_3(%arg0: i32, %arg1: i32) -> (i32, i32) {
    %c0_i32 = arith.constant 0 : i32
    %c0_i32_0 = arith.constant 0 : i32
    %c0_i32_1 = arith.constant 0 : i32
    return %c0_i32, %c0_i32_0 : i32, i32
  }
  func.func @transform_4(%arg0: i32, %arg1: i32) -> (i32, i32) {
    %c0_i32 = arith.constant 0 : i32
    %c0_i32_0 = arith.constant 0 : i32
    %c0_i32_1 = arith.constant 0 : i32
    return %c0_i32, %c0_i32_0 : i32, i32
  }
  func.func @transform_5(%arg0: i32, %arg1: i32) -> (i32, i32) {
    %c0_i32 = arith.constant 0 : i32
    %c0_i32_0 = arith.constant 0 : i32
    %c0_i32_1 = arith.constant 0 : i32
    return %c0_i32, %c0_i32_0 : i32, i32
  }
  func.func @transform_6(%arg0: i32, %arg1: i32) -> (i32, i32, i32) {
    %c0_i32 = arith.constant 0 : i32
    %c0_i32_0 = arith.constant 0 : i32
    return %arg0, %c0_i32, %arg1 : i32, i32, i32
  }
  func.func @transform_7(%arg0: i32, %arg1: i32) -> (i32, i32, i32, i32) {
    %c0_i32 = arith.constant 0 : i32
    %c0_i32_0 = arith.constant 0 : i32
    %c0_i32_1 = arith.constant 0 : i32
    return %arg0, %arg1, %c0_i32, %c0_i32_0 : i32, i32, i32, i32
  }
}

module attributes {stable_mosaic.version = 11 : i64} {
  func.func @kernel(%arg0: i32, %arg1: i32, %arg2: memref<1x32x64xf32, #tpu.memory_space<vmem>>, %arg3: memref<1x32x64xf32, #tpu.memory_space<vmem>>, %arg4: memref<64x864xbf16, #tpu.memory_space<vmem>>, %arg5: memref<32x1xf32, #tpu.memory_space<vmem>>, %arg6: memref<32x1xf32, #tpu.memory_space<vmem>>, %arg7: memref<1x64x64xf32, #tpu.memory_space<vmem>>) attributes {dimension_semantics = [#tpu.dimension_semantics<parallel>, #tpu.dimension_semantics<parallel>], iteration_bounds = array<i64: 2, 1>, scalar_prefetch = 0 : i64, scratch_operands = 0 : i64, tpu.core_type = #tpu.core_type<tc>, window_params = [{transform_indices = @transform_0, window_bounds = array<i64: 1, 32, 64>}, {transform_indices = @transform_1, window_bounds = array<i64: 1, 32, 64>}, {pipeline_mode = #tpu.pipeline_mode<synchronous>, transform_indices = @transform_2, window_bounds = array<i64: 64, 864>}, {pipeline_mode = #tpu.pipeline_mode<synchronous>, transform_indices = @transform_3, window_bounds = array<i64: 32, 1>}, {pipeline_mode = #tpu.pipeline_mode<synchronous>, transform_indices = @transform_4, window_bounds = array<i64: 32, 1>}, {transform_indices = @transform_5, window_bounds = array<i64: 1, 64, 64>}]} {
    %c0 = arith.constant 0 : index
    %c0_0 = arith.constant 0 : index
    %c0_1 = arith.constant 0 : index
    %0 = vector.load %arg2[%c0, %c0_0, %c0_1] : memref<1x32x64xf32, #tpu.memory_space<vmem>>, vector<1x32x64xf32>
    %1 = vector.shape_cast %0 : vector<1x32x64xf32> to vector<32x64xf32>
    %c0_2 = arith.constant 0 : index
    %c0_3 = arith.constant 0 : index
    %c0_4 = arith.constant 0 : index
    %2 = vector.load %arg3[%c0_2, %c0_3, %c0_4] : memref<1x32x64xf32, #tpu.memory_space<vmem>>, vector<1x32x64xf32>
    %3 = vector.shape_cast %2 : vector<1x32x64xf32> to vector<32x64xf32>
    %c0_5 = arith.constant 0 : index
    %c0_6 = arith.constant 0 : index
    %4 = vector.load %arg5[%c0_5, %c0_6] : memref<32x1xf32, #tpu.memory_space<vmem>>, vector<32x1xf32>
    %5 = vector.broadcast %4 : vector<32x1xf32> to vector<32x64xf32>
    %6 = arith.mulf %1, %5 : vector<32x64xf32>
    %c0_7 = arith.constant 0 : index
    %c0_8 = arith.constant 0 : index
    %7 = vector.load %arg6[%c0_7, %c0_8] : memref<32x1xf32, #tpu.memory_space<vmem>>, vector<32x1xf32>
    %8 = vector.broadcast %7 : vector<32x1xf32> to vector<32x64xf32>
    %9 = arith.addf %6, %8 : vector<32x64xf32>
    %10 = arith.addf %9, %3 : vector<32x64xf32>
    %cst = arith.constant 0.000000e+00 : f32
    %11 = vector.broadcast %cst : f32 to vector<32x13xf32>
    %cst_9 = arith.constant 0.000000e+00 : f32
    %12 = vector.broadcast %cst_9 : f32 to vector<32x13xf32>
    %13 = tpu.concatenate %11, %10, %12 in 1 : vector<32x13xf32>, vector<32x64xf32>, vector<32x13xf32> -> vector<32x90xf32>
    %14 = arith.truncf %13 : vector<32x90xf32> to vector<32x90xbf16>
    %15 = vector.extract_strided_slice %14 {offsets = [0, 0], sizes = [32, 64], strides = [1, 1]} : vector<32x90xbf16> to vector<32x64xbf16>
    %16 = vector.extract_strided_slice %14 {offsets = [0, 1], sizes = [32, 64], strides = [1, 1]} : vector<32x90xbf16> to vector<32x64xbf16>
    %17 = vector.extract_strided_slice %14 {offsets = [0, 2], sizes = [32, 64], strides = [1, 1]} : vector<32x90xbf16> to vector<32x64xbf16>
    %18 = vector.extract_strided_slice %14 {offsets = [0, 3], sizes = [32, 64], strides = [1, 1]} : vector<32x90xbf16> to vector<32x64xbf16>
    %19 = vector.extract_strided_slice %14 {offsets = [0, 4], sizes = [32, 64], strides = [1, 1]} : vector<32x90xbf16> to vector<32x64xbf16>
    %20 = vector.extract_strided_slice %14 {offsets = [0, 5], sizes = [32, 64], strides = [1, 1]} : vector<32x90xbf16> to vector<32x64xbf16>
    %21 = vector.extract_strided_slice %14 {offsets = [0, 6], sizes = [32, 64], strides = [1, 1]} : vector<32x90xbf16> to vector<32x64xbf16>
    %22 = vector.extract_strided_slice %14 {offsets = [0, 7], sizes = [32, 64], strides = [1, 1]} : vector<32x90xbf16> to vector<32x64xbf16>
    %23 = vector.extract_strided_slice %14 {offsets = [0, 8], sizes = [32, 64], strides = [1, 1]} : vector<32x90xbf16> to vector<32x64xbf16>
    %24 = vector.extract_strided_slice %14 {offsets = [0, 9], sizes = [32, 64], strides = [1, 1]} : vector<32x90xbf16> to vector<32x64xbf16>
    %25 = vector.extract_strided_slice %14 {offsets = [0, 10], sizes = [32, 64], strides = [1, 1]} : vector<32x90xbf16> to vector<32x64xbf16>
    %26 = vector.extract_strided_slice %14 {offsets = [0, 11], sizes = [32, 64], strides = [1, 1]} : vector<32x90xbf16> to vector<32x64xbf16>
    %27 = vector.extract_strided_slice %14 {offsets = [0, 12], sizes = [32, 64], strides = [1, 1]} : vector<32x90xbf16> to vector<32x64xbf16>
    %28 = vector.extract_strided_slice %14 {offsets = [0, 13], sizes = [32, 64], strides = [1, 1]} : vector<32x90xbf16> to vector<32x64xbf16>
    %29 = vector.extract_strided_slice %14 {offsets = [0, 14], sizes = [32, 64], strides = [1, 1]} : vector<32x90xbf16> to vector<32x64xbf16>
    %30 = vector.extract_strided_slice %14 {offsets = [0, 15], sizes = [32, 64], strides = [1, 1]} : vector<32x90xbf16> to vector<32x64xbf16>
    %31 = vector.extract_strided_slice %14 {offsets = [0, 16], sizes = [32, 64], strides = [1, 1]} : vector<32x90xbf16> to vector<32x64xbf16>
    %32 = vector.extract_strided_slice %14 {offsets = [0, 17], sizes = [32, 64], strides = [1, 1]} : vector<32x90xbf16> to vector<32x64xbf16>
    %33 = vector.extract_strided_slice %14 {offsets = [0, 18], sizes = [32, 64], strides = [1, 1]} : vector<32x90xbf16> to vector<32x64xbf16>
    %34 = vector.extract_strided_slice %14 {offsets = [0, 19], sizes = [32, 64], strides = [1, 1]} : vector<32x90xbf16> to vector<32x64xbf16>
    %35 = vector.extract_strided_slice %14 {offsets = [0, 20], sizes = [32, 64], strides = [1, 1]} : vector<32x90xbf16> to vector<32x64xbf16>
    %36 = vector.extract_strided_slice %14 {offsets = [0, 21], sizes = [32, 64], strides = [1, 1]} : vector<32x90xbf16> to vector<32x64xbf16>
    %37 = vector.extract_strided_slice %14 {offsets = [0, 22], sizes = [32, 64], strides = [1, 1]} : vector<32x90xbf16> to vector<32x64xbf16>
    %38 = vector.extract_strided_slice %14 {offsets = [0, 23], sizes = [32, 64], strides = [1, 1]} : vector<32x90xbf16> to vector<32x64xbf16>
    %39 = vector.extract_strided_slice %14 {offsets = [0, 24], sizes = [32, 64], strides = [1, 1]} : vector<32x90xbf16> to vector<32x64xbf16>
    %40 = vector.extract_strided_slice %14 {offsets = [0, 25], sizes = [32, 64], strides = [1, 1]} : vector<32x90xbf16> to vector<32x64xbf16>
    %41 = vector.extract_strided_slice %14 {offsets = [0, 26], sizes = [32, 64], strides = [1, 1]} : vector<32x90xbf16> to vector<32x64xbf16>
    %42 = tpu.concatenate %15, %16, %17, %18, %19, %20, %21, %22, %23, %24, %25, %26, %27, %28, %29, %30 in 0 : vector<32x64xbf16>, vector<32x64xbf16>, vector<32x64xbf16>, vector<32x64xbf16>, vector<32x64xbf16>, vector<32x64xbf16>, vector<32x64xbf16>, vector<32x64xbf16>, vector<32x64xbf16>, vector<32x64xbf16>, vector<32x64xbf16>, vector<32x64xbf16>, vector<32x64xbf16>, vector<32x64xbf16>, vector<32x64xbf16>, vector<32x64xbf16> -> vector<512x64xbf16>
    %43 = tpu.concatenate %31, %32, %33, %34, %35, %36, %37, %38, %39, %40, %41 in 0 : vector<32x64xbf16>, vector<32x64xbf16>, vector<32x64xbf16>, vector<32x64xbf16>, vector<32x64xbf16>, vector<32x64xbf16>, vector<32x64xbf16>, vector<32x64xbf16>, vector<32x64xbf16>, vector<32x64xbf16>, vector<32x64xbf16> -> vector<352x64xbf16>
    %44 = tpu.concatenate %42, %43 in 0 : vector<512x64xbf16>, vector<352x64xbf16> -> vector<864x64xbf16>
    %c0_10 = arith.constant 0 : index
    %c0_11 = arith.constant 0 : index
    %45 = vector.load %arg4[%c0_10, %c0_11] : memref<64x864xbf16, #tpu.memory_space<vmem>>, vector<64x864xbf16>
    %cst_12 = arith.constant dense<0.000000e+00> : vector<64x64xf32>
    %46 = tpu.matmul %45, %44, %cst_12 {dimension_numbers = #tpu.dot_dimension_numbers<[1], [0], [0], [1], [0, 0, 1, 1], [], []>} : vector<64x864xbf16>, vector<864x64xbf16>, vector<64x64xf32> -> vector<64x64xf32>
    %cst_13 = arith.constant 0.000000e+00 : f32
    %47 = vector.broadcast %cst_13 : f32 to vector<64x64xf32>
    %48 = arith.maximumf %46, %47 : vector<64x64xf32>
    %c0_14 = arith.constant 0 : index
    %c0_15 = arith.constant 0 : index
    %c0_16 = arith.constant 0 : index
    %49 = vector.load %arg7[%c0_14, %c0_15, %c0_16] : memref<1x64x64xf32, #tpu.memory_space<vmem>>, vector<1x64x64xf32>
    %50 = vector.shape_cast %49 : vector<1x64x64xf32> to vector<64x64xf32>
    %51 = vector.shape_cast %48 : vector<64x64xf32> to vector<1x64x64xf32>
    tpu.vector_store %arg7[%c0_14, %c0_15, %c0_16], %51 {strides = array<i32>} : memref<1x64x64xf32, #tpu.memory_space<vmem>>, vector<1x64x64xf32>,
    return
  }
  func.func @transform_0(%arg0: i32, %arg1: i32) -> (i32, i32, i32) {
    %c0_i32 = arith.constant 0 : i32
    %c0_i32_0 = arith.constant 0 : i32
    return %arg0, %c0_i32, %arg1 : i32, i32, i32
  }
  func.func @transform_1(%arg0: i32, %arg1: i32) -> (i32, i32, i32) {
    %c0_i32 = arith.constant 0 : i32
    %c0_i32_0 = arith.constant 0 : i32
    return %arg0, %c0_i32, %arg1 : i32, i32, i32
  }
  func.func @transform_2(%arg0: i32, %arg1: i32) -> (i32, i32) {
    %c0_i32 = arith.constant 0 : i32
    %c0_i32_0 = arith.constant 0 : i32
    %c0_i32_1 = arith.constant 0 : i32
    return %c0_i32, %c0_i32_0 : i32, i32
  }
  func.func @transform_3(%arg0: i32, %arg1: i32) -> (i32, i32) {
    %c0_i32 = arith.constant 0 : i32
    %c0_i32_0 = arith.constant 0 : i32
    %c0_i32_1 = arith.constant 0 : i32
    return %c0_i32, %c0_i32_0 : i32, i32
  }
  func.func @transform_4(%arg0: i32, %arg1: i32) -> (i32, i32) {
    %c0_i32 = arith.constant 0 : i32
    %c0_i32_0 = arith.constant 0 : i32
    %c0_i32_1 = arith.constant 0 : i32
    return %c0_i32, %c0_i32_0 : i32, i32
  }
  func.func @transform_5(%arg0: i32, %arg1: i32) -> (i32, i32, i32) {
    %c0_i32 = arith.constant 0 : i32
    %c0_i32_0 = arith.constant 0 : i32
    return %arg0, %c0_i32, %arg1 : i32, i32, i32
  }
}

module attributes {stable_mosaic.version = 11 : i64} {
  func.func @kernel(%arg0: i32, %arg1: i32, %arg2: memref<1x32x128xf32, #tpu.memory_space<vmem>>, %arg3: memref<1x864xbf16, #tpu.memory_space<vmem>>, %arg4: memref<1x1xf32, #tpu.memory_space<vmem>>, %arg5: memref<1x1x128xf32, #tpu.memory_space<vmem>>) attributes {dimension_semantics = [#tpu.dimension_semantics<parallel>, #tpu.dimension_semantics<parallel>], iteration_bounds = array<i64: 2, 1>, scalar_prefetch = 0 : i64, scratch_operands = 0 : i64, tpu.core_type = #tpu.core_type<tc>, window_params = [{transform_indices = @transform_0, window_bounds = array<i64: 1, 32, 128>}, {pipeline_mode = #tpu.pipeline_mode<synchronous>, transform_indices = @transform_1, window_bounds = array<i64: 1, 864>}, {pipeline_mode = #tpu.pipeline_mode<synchronous>, transform_indices = @transform_2, window_bounds = array<i64: 1, 1>}, {transform_indices = @transform_3, window_bounds = array<i64: 1, 1, 128>}]} {
    %c0 = arith.constant 0 : index
    %c0_0 = arith.constant 0 : index
    %c0_1 = arith.constant 0 : index
    %0 = vector.load %arg2[%c0, %c0_0, %c0_1] : memref<1x32x128xf32, #tpu.memory_space<vmem>>, vector<1x32x128xf32>
    %1 = vector.shape_cast %0 : vector<1x32x128xf32> to vector<32x128xf32>
    %cst = arith.constant 0.000000e+00 : f32
    %2 = vector.broadcast %cst : f32 to vector<32x13xf32>
    %cst_2 = arith.constant 0.000000e+00 : f32
    %3 = vector.broadcast %cst_2 : f32 to vector<32x13xf32>
    %4 = tpu.concatenate %2, %1, %3 in 1 : vector<32x13xf32>, vector<32x128xf32>, vector<32x13xf32> -> vector<32x154xf32>
    %5 = arith.truncf %4 : vector<32x154xf32> to vector<32x154xbf16>
    %6 = vector.extract_strided_slice %5 {offsets = [0, 0], sizes = [32, 128], strides = [1, 1]} : vector<32x154xbf16> to vector<32x128xbf16>
    %7 = vector.extract_strided_slice %5 {offsets = [0, 1], sizes = [32, 128], strides = [1, 1]} : vector<32x154xbf16> to vector<32x128xbf16>
    %8 = vector.extract_strided_slice %5 {offsets = [0, 2], sizes = [32, 128], strides = [1, 1]} : vector<32x154xbf16> to vector<32x128xbf16>
    %9 = vector.extract_strided_slice %5 {offsets = [0, 3], sizes = [32, 128], strides = [1, 1]} : vector<32x154xbf16> to vector<32x128xbf16>
    %10 = vector.extract_strided_slice %5 {offsets = [0, 4], sizes = [32, 128], strides = [1, 1]} : vector<32x154xbf16> to vector<32x128xbf16>
    %11 = vector.extract_strided_slice %5 {offsets = [0, 5], sizes = [32, 128], strides = [1, 1]} : vector<32x154xbf16> to vector<32x128xbf16>
    %12 = vector.extract_strided_slice %5 {offsets = [0, 6], sizes = [32, 128], strides = [1, 1]} : vector<32x154xbf16> to vector<32x128xbf16>
    %13 = vector.extract_strided_slice %5 {offsets = [0, 7], sizes = [32, 128], strides = [1, 1]} : vector<32x154xbf16> to vector<32x128xbf16>
    %14 = vector.extract_strided_slice %5 {offsets = [0, 8], sizes = [32, 128], strides = [1, 1]} : vector<32x154xbf16> to vector<32x128xbf16>
    %15 = vector.extract_strided_slice %5 {offsets = [0, 9], sizes = [32, 128], strides = [1, 1]} : vector<32x154xbf16> to vector<32x128xbf16>
    %16 = vector.extract_strided_slice %5 {offsets = [0, 10], sizes = [32, 128], strides = [1, 1]} : vector<32x154xbf16> to vector<32x128xbf16>
    %17 = vector.extract_strided_slice %5 {offsets = [0, 11], sizes = [32, 128], strides = [1, 1]} : vector<32x154xbf16> to vector<32x128xbf16>
    %18 = vector.extract_strided_slice %5 {offsets = [0, 12], sizes = [32, 128], strides = [1, 1]} : vector<32x154xbf16> to vector<32x128xbf16>
    %19 = vector.extract_strided_slice %5 {offsets = [0, 13], sizes = [32, 128], strides = [1, 1]} : vector<32x154xbf16> to vector<32x128xbf16>
    %20 = vector.extract_strided_slice %5 {offsets = [0, 14], sizes = [32, 128], strides = [1, 1]} : vector<32x154xbf16> to vector<32x128xbf16>
    %21 = vector.extract_strided_slice %5 {offsets = [0, 15], sizes = [32, 128], strides = [1, 1]} : vector<32x154xbf16> to vector<32x128xbf16>
    %22 = vector.extract_strided_slice %5 {offsets = [0, 16], sizes = [32, 128], strides = [1, 1]} : vector<32x154xbf16> to vector<32x128xbf16>
    %23 = vector.extract_strided_slice %5 {offsets = [0, 17], sizes = [32, 128], strides = [1, 1]} : vector<32x154xbf16> to vector<32x128xbf16>
    %24 = vector.extract_strided_slice %5 {offsets = [0, 18], sizes = [32, 128], strides = [1, 1]} : vector<32x154xbf16> to vector<32x128xbf16>
    %25 = vector.extract_strided_slice %5 {offsets = [0, 19], sizes = [32, 128], strides = [1, 1]} : vector<32x154xbf16> to vector<32x128xbf16>
    %26 = vector.extract_strided_slice %5 {offsets = [0, 20], sizes = [32, 128], strides = [1, 1]} : vector<32x154xbf16> to vector<32x128xbf16>
    %27 = vector.extract_strided_slice %5 {offsets = [0, 21], sizes = [32, 128], strides = [1, 1]} : vector<32x154xbf16> to vector<32x128xbf16>
    %28 = vector.extract_strided_slice %5 {offsets = [0, 22], sizes = [32, 128], strides = [1, 1]} : vector<32x154xbf16> to vector<32x128xbf16>
    %29 = vector.extract_strided_slice %5 {offsets = [0, 23], sizes = [32, 128], strides = [1, 1]} : vector<32x154xbf16> to vector<32x128xbf16>
    %30 = vector.extract_strided_slice %5 {offsets = [0, 24], sizes = [32, 128], strides = [1, 1]} : vector<32x154xbf16> to vector<32x128xbf16>
    %31 = vector.extract_strided_slice %5 {offsets = [0, 25], sizes = [32, 128], strides = [1, 1]} : vector<32x154xbf16> to vector<32x128xbf16>
    %32 = vector.extract_strided_slice %5 {offsets = [0, 26], sizes = [32, 128], strides = [1, 1]} : vector<32x154xbf16> to vector<32x128xbf16>
    %33 = tpu.concatenate %6, %7, %8, %9, %10, %11, %12, %13, %14, %15, %16, %17, %18, %19, %20, %21 in 0 : vector<32x128xbf16>, vector<32x128xbf16>, vector<32x128xbf16>, vector<32x128xbf16>, vector<32x128xbf16>, vector<32x128xbf16>, vector<32x128xbf16>, vector<32x128xbf16>, vector<32x128xbf16>, vector<32x128xbf16>, vector<32x128xbf16>, vector<32x128xbf16>, vector<32x128xbf16>, vector<32x128xbf16>, vector<32x128xbf16>, vector<32x128xbf16> -> vector<512x128xbf16>
    %34 = tpu.concatenate %22, %23, %24, %25, %26, %27, %28, %29, %30, %31, %32 in 0 : vector<32x128xbf16>, vector<32x128xbf16>, vector<32x128xbf16>, vector<32x128xbf16>, vector<32x128xbf16>, vector<32x128xbf16>, vector<32x128xbf16>, vector<32x128xbf16>, vector<32x128xbf16>, vector<32x128xbf16>, vector<32x128xbf16> -> vector<352x128xbf16>
    %35 = tpu.concatenate %33, %34 in 0 : vector<512x128xbf16>, vector<352x128xbf16> -> vector<864x128xbf16>
    %c0_3 = arith.constant 0 : index
    %c0_4 = arith.constant 0 : index
    %36 = vector.load %arg3[%c0_3, %c0_4] : memref<1x864xbf16, #tpu.memory_space<vmem>>, vector<1x864xbf16>
    %cst_5 = arith.constant dense<0.000000e+00> : vector<1x128xf32>
    %37 = tpu.matmul %36, %35, %cst_5 {dimension_numbers = #tpu.dot_dimension_numbers<[1], [0], [0], [1], [0, 0, 1, 1], [], []>} : vector<1x864xbf16>, vector<864x128xbf16>, vector<1x128xf32> -> vector<1x128xf32>
    %c0_6 = arith.constant 0 : index
    %c0_7 = arith.constant 0 : index
    %38 = vector.load %arg4[%c0_6, %c0_7] : memref<1x1xf32, #tpu.memory_space<vmem>>, vector<1x1xf32>
    %39 = vector.broadcast %38 : vector<1x1xf32> to vector<1x128xf32>
    %40 = arith.addf %37, %39 : vector<1x128xf32>
    %c0_8 = arith.constant 0 : index
    %c0_9 = arith.constant 0 : index
    %c0_10 = arith.constant 0 : index
    %41 = vector.load %arg5[%c0_8, %c0_9, %c0_10] : memref<1x1x128xf32, #tpu.memory_space<vmem>>, vector<1x1x128xf32>
    %42 = vector.shape_cast %41 : vector<1x1x128xf32> to vector<1x128xf32>
    %43 = vector.shape_cast %40 : vector<1x128xf32> to vector<1x1x128xf32>
    tpu.vector_store %arg5[%c0_8, %c0_9, %c0_10], %43 {strides = array<i32>} : memref<1x1x128xf32, #tpu.memory_space<vmem>>, vector<1x1x128xf32>,
    return
  }
  func.func @transform_0(%arg0: i32, %arg1: i32) -> (i32, i32, i32) {
    %c0_i32 = arith.constant 0 : i32
    %c0_i32_0 = arith.constant 0 : i32
    return %arg0, %c0_i32, %arg1 : i32, i32, i32
  }
  func.func @transform_1(%arg0: i32, %arg1: i32) -> (i32, i32) {
    %c0_i32 = arith.constant 0 : i32
    %c0_i32_0 = arith.constant 0 : i32
    %c0_i32_1 = arith.constant 0 : i32
    return %c0_i32, %c0_i32_0 : i32, i32
  }
  func.func @transform_2(%arg0: i32, %arg1: i32) -> (i32, i32) {
    %c0_i32 = arith.constant 0 : i32
    %c0_i32_0 = arith.constant 0 : i32
    %c0_i32_1 = arith.constant 0 : i32
    return %c0_i32, %c0_i32_0 : i32, i32
  }
  func.func @transform_3(%arg0: i32, %arg1: i32) -> (i32, i32, i32) {
    %c0_i32 = arith.constant 0 : i32
    %c0_i32_0 = arith.constant 0 : i32
    return %arg0, %c0_i32, %arg1 : i32, i32, i32
  }
}

</mosaic_0001>

<llo_original>
// kernel: srresnet_forward.8
$region0: #{srresnet_forward.8}
  #allocation0 [shape = 'u32[]', space=smem, size = 0x4, offset = 0x4, fixed_abs, tag = 'smem constant byte address 0x4 - core index']
  #allocation1 [shape = 'u32[144,128]{1,0:T(1,128)}', space=vmem, size = 0x12000, scoped, tag = 'internal scratch']
  %s0 = inlined_call_operand.vmem [shape: f32[2,1,64], index: 0, kind: input, shape index: {}]
  %s1 = inlined_call_operand.vmem [shape: bf16[32,27], index: 1, kind: input, shape index: {}]
  %s2 = inlined_call_operand.vmem [shape: f32[32,1], index: 2, kind: input, shape index: {}]
  %s3 = inlined_call_operand.vmem [shape: f32[2,32,64], index: 3, kind: output, shape index: {}]
  %s4 = sld [smem:[#allocation0]]
  $region45: #{srresnet_forward.8} parent=0
    _
  %s6 = ssub.s32 1, %s4
  %s7 = scalar_select 0, %s6, %s4
  loop: start=0, step=1, limit=4
  $region2: #{srresnet_forward.8} parent=0 // loop_pre_header
    _
  $region3: #{srresnet_forward.8} parent=0 // loop_header
    %s9 = sphi 0, %s13
    %p10 = scmp.ge.s32.totalorder %s9, 4
    %s16 = sphi 0, %s28
    %s17 = sphi 0, %s24
    %s18 = sphi 0, %s16
    %s19 = sphi 0, %s17
    %s20 = sphi 0, %s18
    %s21 = sphi 0, %s19
    %s33 = sphi 0, %s35
    %s36 = sphi 0, %s33
    %s37 = sphi 0, %s36
    %s53 = sphi 0, %s37
    %s57 = sphi 0, %s57
    %s59 = sphi 0, %s57
    %s60 = sphi 0, %s59
    %s74 = sphi 0, %s60
    %s78 = sphi 0, %s78
    %s80 = sphi 0, %s78
    %s81 = sphi 0, %s80
    %s95 = sphi 0, %s81
    %s103 = sphi 0, %s105
    %s106 = sphi 0, %s103
    %s107 = sphi 0, %s106
    %s123 = sphi 0, %s107
  $region4: #{srresnet_forward.8} parent=0 // loop_header_branch
    %12 = sbr.rel (%p10) target = $region8
  $region5: #{srresnet_forward.8} parent=0 // loop_body
    %s14 = ssub.s32 %s9, 1
    %s15 = ssub.s32 %s9, 2
    %s22 = sadd.s32 1, %s17
    %p23 = scmp.ge.s32.totalorder %s22, 1
    %s24 = scalar_select %p23, 0, %s22
    %s25 = sadd.s32 1, %s16
    %s26 = scalar_select %p23, %s25, %s16
    %p27 = scmp.ge.s32.totalorder %s26, 2
    %s28 = scalar_select %p27, 0, %s26
    %s29 = ssub.s32 %s16, %s28
    %s30 = ssub.s32 %s17, %s24
    %s31 = sor.u32 %s29, %s30
    %p32 = scmp.eq.s32.totalorder %s31, 0
    %s34 = sadd.s32 %s33, 1
    %s35 = scalar_select %p32, %s33, %s34
    %p38 = pneg %p32
    %p39 = scmp.eq.s32.totalorder %s9, 1
    %p40 = por %p38, %p39
    %p41 = scmp.ne.s32.totalorder %s33, %s36
    %p42 = scmp.eq.s32.totalorder %s9, 0
    %p43 = por %p41, %p42
    %p44 = scmp.ne.s32.totalorder %s33, %s36
    %p45 = scmp.eq.s32.totalorder %s14, 1
    %p46 = por %p44, %p45
    %p47 = scmp.ne.s32.totalorder %s36, %s37
    %p48 = scmp.eq.s32.totalorder %s14, 0
    %p49 = por %p47, %p48
    %p50 = scmp.ne.s32.totalorder %s36, %s37
    %p51 = scmp.eq.s32.totalorder %s15, 1
    %p52 = por %p50, %p51
    %p54 = scmp.ne.s32.totalorder %s37, %s53
    %p55 = scmp.eq.s32.totalorder %s15, 0
    %p56 = por %p54, %p55
    %s58 = sadd.s32 %s57, 1
    %p61 = scmp.eq.s32.totalorder %s9, 1
    %p62 = scmp.ne.s32.totalorder %s57, %s59
    %p63 = scmp.eq.s32.totalorder %s9, 0
    %p64 = por %p62, %p63
    %p65 = scmp.ne.s32.totalorder %s57, %s59
    %p66 = scmp.eq.s32.totalorder %s14, 1
    %p67 = por %p65, %p66
    %p68 = scmp.ne.s32.totalorder %s59, %s60
    %p69 = scmp.eq.s32.totalorder %s14, 0
    %p70 = por %p68, %p69
    %p71 = scmp.ne.s32.totalorder %s59, %s60
    %p72 = scmp.eq.s32.totalorder %s15, 1
    %p73 = por %p71, %p72
    %p75 = scmp.ne.s32.totalorder %s60, %s74
    %p76 = scmp.eq.s32.totalorder %s15, 0
    %p77 = por %p75, %p76
    %s79 = sadd.s32 %s78, 1
    %p82 = scmp.eq.s32.totalorder %s9, 1
    %p83 = scmp.ne.s32.totalorder %s78, %s80
    %p84 = scmp.eq.s32.totalorder %s9, 0
    %p85 = por %p83, %p84
    %p86 = scmp.ne.s32.totalorder %s78, %s80
    %p87 = scmp.eq.s32.totalorder %s14, 1
    %p88 = por %p86, %p87
    %p89 = scmp.ne.s32.totalorder %s80, %s81
    %p90 = scmp.eq.s32.totalorder %s14, 0
    %p91 = por %p89, %p90
    %p92 = scmp.ne.s32.totalorder %s80, %s81
    %p93 = scmp.eq.s32.totalorder %s15, 1
    %p94 = por %p92, %p93
    %p96 = scmp.ne.s32.totalorder %s81, %s95
    %p97 = scmp.eq.s32.totalorder %s15, 0
    %p98 = por %p96, %p97
    %s99 = ssub.s32 %s16, %s28
    %s100 = ssub.s32 %s17, %s24
    %s101 = sor.u32 %s99, %s100
    %p102 = scmp.eq.s32.totalorder %s101, 0
    %s104 = sadd.s32 %s103, 1
    %s105 = scalar_select %p102, %s103, %s104
    %p108 = pneg %p102
    %p109 = scmp.eq.s32.totalorder %s9, 1
    %p110 = por %p108, %p109
    %p111 = scmp.ne.s32.totalorder %s103, %s106
    %p112 = scmp.eq.s32.totalorder %s9, 0
    %p113 = por %p111, %p112
    %p114 = scmp.ne.s32.totalorder %s103, %s106
    %p115 = scmp.eq.s32.totalorder %s14, 1
    %p116 = por %p114, %p115
    %p117 = scmp.ne.s32.totalorder %s106, %s107
    %p118 = scmp.eq.s32.totalorder %s14, 0
    %p119 = por %p117, %p118
    %p120 = scmp.ne.s32.totalorder %s106, %s107
    %p121 = scmp.eq.s32.totalorder %s15, 1
    %p122 = por %p120, %p121
    %p124 = scmp.ne.s32.totalorder %s107, %s123
    %p125 = scmp.eq.s32.totalorder %s15, 0
    %p126 = por %p124, %p125
    %p127 = scmp.le.s32.totalorder 1, %s9
    %p128 = scmp.lt.s32.totalorder %s9, 3
    %p129 = pnand %p127, %p128
    %p130 = pneg %p129
    // Predicated region
    $region9: #{srresnet_forward.8} parent=5 // pred_check
      _
    $region10: #{srresnet_forward.8} parent=5 // pred_check_branch
      %132 = sbr.rel (%p129) target = $region12
    $region11: #{srresnet_forward.8} parent=5 // pred_region
      %s133 = ssub.s32 %s9, 1
      // Predicated region
      $region13: #{srresnet_forward.8} parent=11 // pred_check
        %p134 = pneg %p70
      $region14: #{srresnet_forward.8} parent=11 // pred_check_branch
        %136 = sbr.rel (%p134) target = $region16
      $region15: #{srresnet_forward.8} parent=11 // pred_region
        _
      $region16: #{srresnet_forward.8} parent=11 // pred_fallthru
        _
      // Predicated region
      $region17: #{srresnet_forward.8} parent=11 // pred_check
        %p137 = pneg %p91
      $region18: #{srresnet_forward.8} parent=11 // pred_check_branch
        %139 = sbr.rel (%p137) target = $region20
      $region19: #{srresnet_forward.8} parent=11 // pred_region
        _
      $region20: #{srresnet_forward.8} parent=11 // pred_fallthru
        _
    $region12: #{srresnet_forward.8} parent=5 // pred_fallthru
      _
    %p140 = scmp.lt.s32.totalorder %s9, 2
    // Predicated region
    $region21: #{srresnet_forward.8} parent=5 // pred_check
      %p141 = pneg %p140
    $region22: #{srresnet_forward.8} parent=5 // pred_check_branch
      %143 = sbr.rel (%p141) target = $region24
    $region23: #{srresnet_forward.8} parent=5 // pred_region
      // Predicated region
      $region25: #{srresnet_forward.8} parent=23 // pred_check
        %p144 = pneg %p43
      $region26: #{srresnet_forward.8} parent=23 // pred_check_branch
        %146 = sbr.rel (%p144) target = $region28
      $region27: #{srresnet_forward.8} parent=23 // pred_region
        %p147 = scmp.lt.s32.totalorder %s16, 1
        %s148 = scalar_select %p147, %s16, 1
        %p149 = scmp.lt.s32.totalorder %s17, 0
        %s150 = scalar_select %p149, %s17, 0
        %s151 = sadd.s32 %s150, %s148
        %s152 = scalar_lea.vmem %s0, %s151
      $region28: #{srresnet_forward.8} parent=23 // pred_fallthru
        _
    $region24: #{srresnet_forward.8} parent=5 // pred_fallthru
      _
    %p153 = scmp.le.s32.totalorder 1, %s9
    %p154 = scmp.lt.s32.totalorder %s9, 3
    %p155 = pnand %p153, %p154
    %p156 = pneg %p155
    // Predicated region
    $region29: #{srresnet_forward.8} parent=5 // pred_check
      _
    $region30: #{srresnet_forward.8} parent=5 // pred_check_branch
      %158 = sbr.rel (%p155) target = $region32
    $region31: #{srresnet_forward.8} parent=5 // pred_region
      %s159 = ssub.s32 %s9, 1
      %p160 = scmp.lt.s32.totalorder %s18, 1
      %s161 = scalar_select %p160, %s18, 1
      %p162 = scmp.lt.s32.totalorder %s19, 0
      %s163 = scalar_select %p162, %s19, 0
      %s164 = sadd.s32 %s163, %s161
      %s165 = scalar_lea.vmem %s0, %s164
      %p166 = pneg %p49
      %p167 = pneg %p46
      %p168 = pneg %p70
      %p169 = pneg %p67
      %p170 = pneg %p91
      %p171 = pneg %p88
      %p172 = pneg %p119
      %p173 = pneg %p116
      %p174 = scmp.lt.s32.totalorder %s18, 1
      %s175 = scalar_select %p174, %s18, 1
      %p176 = scmp.lt.s32.totalorder %s19, 0
      %s177 = scalar_select %p176, %s19, 0
      %s178 = smul.addr %s175, 4
      %s179 = sadd.s32 %s177, %s178
      %s180 = smul.addr %s179, 8
      %s181 = scalar_lea.vmem %s3, %s180
      %p182 = scmp.lt.s32.totalorder %s18, 1
      %s183 = scalar_select %p182, %s18, 1
      %p184 = scmp.lt.s32.totalorder %s19, 0
      %s185 = scalar_select %p184, %s19, 0
      %s186 = sadd.s32 %s185, %s183
      %s187 = scalar_lea.vmem %s0, %s186
      %p188 = scmp.lt.s32.totalorder %s18, 1
      %s189 = scalar_select %p188, %s18, 1
      %p190 = scmp.lt.s32.totalorder %s19, 0
      %s191 = scalar_select %p190, %s19, 0
      %s192 = smul.addr %s189, 4
      %s193 = sadd.s32 %s191, %s192
      %s194 = smul.addr %s193, 8
      %s195 = scalar_lea.vmem %s3, %s194
      %v197 = vld [vmem:[%s187] sm:$0x1]
      %v199 = vlaneseq
      %v200 = vshrl.u32 %v199, 7
      %v201 = vsub.s32 0, %v200
      %v202 = vrot.slane %v197, %v201
      %203 = vrot.lane.b32.xlu0 %v202, 13
      %v204 = vpop.permute.xlu0 %203
      %vm206 = vcmask 105472
      %v207 = vsel %vm206, 0.0, %v204
      %vm208 = vcmask 629760
      %v209 = vsel %vm208, %v207, 0.0
      %v210 = vpack.c.bf16 %v209, %v209
      %v212 = vshll.u32 %v210, 16
      %214 = vrot.lane.b32.xlu0 %v212, 127
      %v215 = vpop.permute.xlu0 %214
      %v218 = vrot.slane %v210, 7
      %219 = vrot.lane.b32.xlu0 %v218, 126
      %v220 = vpop.permute.xlu0 %219
      %v221 = vrot.slane %v212, 7
      %222 = vrot.lane.b32.xlu0 %v221, 125
      %v223 = vpop.permute.xlu0 %222
      %v225 = vrot.slane %v210, 6
      %226 = vrot.lane.b32.xlu0 %v225, 124
      %v227 = vpop.permute.xlu0 %226
      %v228 = vrot.slane %v212, 6
      %229 = vrot.lane.b32.xlu0 %v228, 123
      %v230 = vpop.permute.xlu0 %229
      %v232 = vrot.slane %v210, 5
      %233 = vrot.lane.b32.xlu0 %v232, 122
      %v234 = vpop.permute.xlu0 %233
      %v235 = vrot.slane %v212, 5
      %236 = vrot.lane.b32.xlu0 %v235, 121
      %v237 = vpop.permute.xlu0 %236
      %v239 = vrot.slane %v210, 4
      %240 = vrot.lane.b32.xlu0 %v239, 120
      %v241 = vpop.permute.xlu0 %240
      %v242 = vrot.slane %v212, 4
      %243 = vrot.lane.b32.xlu0 %v242, 119
      %v244 = vpop.permute.xlu0 %243
      %v246 = vrot.slane %v210, 3
      %247 = vrot.lane.b32.xlu0 %v246, 118
      %v248 = vpop.permute.xlu0 %247
      %v249 = vrot.slane %v212, 3
      %250 = vrot.lane.b32.xlu0 %v249, 117
      %v251 = vpop.permute.xlu0 %250
      %v253 = vrot.slane %v210, 2
      %254 = vrot.lane.b32.xlu0 %v253, 116
      %v255 = vpop.permute.xlu0 %254
      %v256 = vrot.slane %v212, 2
      %257 = vrot.lane.b32.xlu0 %v256, 115
      %v258 = vpop.permute.xlu0 %257
      %v260 = vrot.slane %v210, 1
      %261 = vrot.lane.b32.xlu0 %v260, 114
      %v262 = vpop.permute.xlu0 %261
      %v263 = vrot.slane %v212, 1
      %264 = vrot.lane.b32.xlu0 %v263, 113
      %v265 = vpop.permute.xlu0 %264
      %vm267 = vcmask 1040384
      %vm268 = vsmask.f32 256
      %vm269 = vmand %vm267, %vm268
      %v270 = vsel %vm269, %v210, %v215
      %vm271 = vcmask 1040384
      %v274 = vsel %vm271, %v270, %v220
      %vm276 = vcmask 1041408
      %vm277 = vsmask.f32 1280
      %vm278 = vmand %vm276, %vm277
      %v279 = vsel %vm278, %v274, %v223
      %vm280 = vcmask 1041408
      %v283 = vsel %vm280, %v279, %v227
      %vm285 = vcmask 1042432
      %vm286 = vsmask.f32 2304
      %vm287 = vmand %vm285, %vm286
      %v288 = vsel %vm287, %v283, %v230
      %vm289 = vcmask 1042432
      %v292 = vsel %vm289, %v288, %v234
      %vm294 = vcmask 1043456
      %vm295 = vsmask.f32 3328
      %vm296 = vmand %vm294, %vm295
      %v297 = vsel %vm296, %v292, %v237
      %vm298 = vcmask 1043456
      %v301 = vsel %vm298, %v297, %v241
      %vm303 = vcmask 1044480
      %vm304 = vsmask.f32 4352
      %vm305 = vmand %vm303, %vm304
      %v306 = vsel %vm305, %v301, %v244
      %vm307 = vcmask 1044480
      %v310 = vsel %vm307, %v306, %v248
      %vm312 = vcmask 1045504
      %vm313 = vsmask.f32 5376
      %vm314 = vmand %vm312, %vm313
      %v315 = vsel %vm314, %v310, %v251
      %vm316 = vcmask 1045504
      %v319 = vsel %vm316, %v315, %v255
      %vm321 = vcmask 1046528
      %vm322 = vsmask.f32 6400
      %vm323 = vmand %vm321, %vm322
      %v324 = vsel %vm323, %v319, %v258
      %vm325 = vcmask 1046528
      %v328 = vsel %vm325, %v324, %v262
      %vm330 = vcmask 1047552
      %vm331 = vsmask.f32 7424
      %vm332 = vmand %vm330, %vm331
      %v333 = vsel %vm332, %v328, %v265
      %335 = vrot.lane.b32.xlu0 %v310, 112
      %v336 = vpop.permute.xlu0 %335
      %v337 = vld [vmem:[%s1] sm:$0xf]
      %v338 = vld [vmem:[%s1 + $0x4] sm:$0xf]
      %v339 = vld [vmem:[%s1 + $0x8] sm:$0xf]
      %v340 = vld [vmem:[%s1 + $0xc] sm:$0xf]
      %v341 = vld [vmem:[%s2] sm:$0xff]
      %v342 = vld [vmem:[%s2 + $0x8] sm:$0xff]
      %v343 = vld [vmem:[%s2 + $0x10] sm:$0xff]
      %v344 = vld [vmem:[%s2 + $0x18] sm:$0xff]
      %346 = vset.pattern.permute.xlu0 0
      %347 = vperm.xlu0 %346, %v341
      %v348 = vpop.permute.xlu0 %347
      %351 = vset.pattern.permute.xlu0 0
      %352 = vperm.xlu0 %351, %v342
      %v353 = vpop.permute.xlu0 %352
      %356 = vset.pattern.permute.xlu0 0
      %357 = vperm.xlu0 %356, %v343
      %v358 = vpop.permute.xlu0 %357
      %361 = vset.pattern.permute.xlu0 0
      %362 = vperm.xlu0 %361, %v344
      %v363 = vpop.permute.xlu0 %362
      %v369 = vunpack.c.l.b16 %v337
      %v370 = vunpack.c.l.b16 %v338
      %v371 = vunpack.c.l.b16 %v339
      %v372 = vunpack.c.l.b16 %v340
      %v373 = vpack.c.b16 %v370, %v369
      %v374 = vpack.c.b16 %v372, %v371
      %vm375 = vcmask 220160
      %v377 = vsel %vm375, %v373, 0
      %v380 = vsel %vm375, %v374, 0
      %v382 = vsel %vm307, 4294967295, 65535
      %v383 = vsel %vm316, %v382, 0
      %v385 = vand.u32 %v336, %v383
      %387 = vmatprep.subr.bf16.mxu0 0
      %388 = vmatpush1.bf16.msra.mxu0 0
      %389 = vmatprep.subr.bf16.mxu0 0
      %390 = vmatpush1.bf16.msra.mxu0 0
      %391 = vmatprep.subr.bf16.mxu0 0
      %392 = vmatpush1.bf16.msra.mxu0 0
      %393 = vmatprep.subr.bf16.mxu0 0
      %394 = vmatpush1.bf16.msra.mxu0 0
      %395 = vmatprep.subr.bf16.mxu0 0
      %396 = vmatpush1.bf16.msra.mxu0 0
      %397 = vmatprep.subr.bf16.mxu0 0
      %398 = vmatpush1.bf16.msra.mxu0 0
      %399 = vmatprep.subr.bf16.mxu0 0
      %400 = vmatpush1.bf16.msra.mxu0 %v385
      %401 = vmatprep.subr.bf16.mxu0 0
      %402 = vmatpush1.bf16.msra.mxu0 %v333
      %403 = vmatprep.subr.bf16.mxu0 0
      %404 = vmatpush2.bf16.msra.mxu0 0
      %405 = vmatprep.subr.bf16.mxu0 0
      %406 = vmatpush2.bf16.msra.mxu0 0
      %407 = vmatprep.subr.bf16.mxu0 0
      %408 = vmatpush2.bf16.msra.mxu0 0
      %409 = vmatprep.subr.bf16.mxu0 0
      %410 = vmatpush2.bf16.msra.mxu0 0
      %411 = vmatprep.subr.bf16.mxu0 0
      %412 = vmatpush2.bf16.msra.mxu0 0
      %413 = vmatprep.subr.bf16.mxu0 0
      %414 = vmatpush2.bf16.msra.mxu0 0
      %415 = vmatprep.subr.bf16.mxu0 0
      %416 = vmatpush2.bf16.msra.mxu0 0
      %417 = vmatprep.subr.bf16.mxu0 0
      %418 = vmatpush2.bf16.msra.mxu0 0
      %419 = vmatprep.mubr.bf16.mxu0 0
      %420 = vmatmul.mubr.bf16.gmra.mxu0 %v377
      %v421 = vpop.f32.mrf.mxu0
      %v422 = vadd.f32 %v348, %v421
      %v423 = vpop.f32.mrf.mxu0
      %v424 = vpop.f32.mrf.mxu0
      %v425 = vadd.f32 %v353, %v424
      %v426 = vpop.f32.mrf.mxu0
      %427 = vmatprep.mubr.bf16.mxu0 0
      %428 = vmatmul.mubr.bf16.gmra.mxu0 %v380
      %v429 = vpop.f32.mrf.mxu0
      %v430 = vadd.f32 %v358, %v429
      %v431 = vpop.f32.mrf.mxu0
      %v432 = vpop.f32.mrf.mxu0
      %v433 = vadd.f32 %v363, %v432
      %v434 = vpop.f32.mrf.mxu0
      %435 = vdwg.mxu0
      %v436 = vmax.f32 %v422, 0.0
      %v437 = vmax.f32 %v425, 0.0
      %v438 = vmax.f32 %v430, 0.0
      %v439 = vmax.f32 %v433, 0.0
      %vm440 = vcmask 523264
      %441 = vst.msk [vmem:[%s195] sm:$0xff] %vm440, %v436
      %442 = vst.msk [vmem:[%s195 + $0x8] sm:$0xff] %vm440, %v437
      %443 = vst.msk [vmem:[%s195 + $0x10] sm:$0xff] %vm440, %v438
      %444 = vst.msk [vmem:[%s195 + $0x18] sm:$0xff] %vm440, %v439
      %p445 = scmp.lt.s32.totalorder %s18, 1
      %s446 = scalar_select %p445, %s18, 1
      %p447 = scmp.lt.s32.totalorder %s19, 0
      %s448 = scalar_select %p447, %s19, 0
      %s449 = smul.addr %s446, 4
      %s450 = sadd.s32 %s448, %s449
      %s451 = smul.addr %s450, 8
      %s452 = scalar_lea.vmem %s3, %s451
      // Predicated region
      $region33: #{srresnet_forward.8} parent=31 // pred_check
        %p453 = pneg %p116
      $region34: #{srresnet_forward.8} parent=31 // pred_check_branch
        %455 = sbr.rel (%p453) target = $region36
      $region35: #{srresnet_forward.8} parent=31 // pred_region
        _
      $region36: #{srresnet_forward.8} parent=31 // pred_fallthru
        _
    $region32: #{srresnet_forward.8} parent=5 // pred_fallthru
      _
    %p456 = scmp.le.s32.totalorder 2, %s9
    // Predicated region
    $region37: #{srresnet_forward.8} parent=5 // pred_check
      %p457 = pneg %p456
    $region38: #{srresnet_forward.8} parent=5 // pred_check_branch
      %459 = sbr.rel (%p457) target = $region40
    $region39: #{srresnet_forward.8} parent=5 // pred_region
      %s460 = ssub.s32 %s9, 2
      // Predicated region
      $region41: #{srresnet_forward.8} parent=39 // pred_check
        %p461 = pneg %p122
      $region42: #{srresnet_forward.8} parent=39 // pred_check_branch
        %463 = sbr.rel (%p461) target = $region44
      $region43: #{srresnet_forward.8} parent=39 // pred_region
        %p464 = scmp.lt.s32.totalorder %s20, 1
        %s465 = scalar_select %p464, %s20, 1
        %p466 = scmp.lt.s32.totalorder %s21, 0
        %s467 = scalar_select %p466, %s21, 0
        %s468 = smul.addr %s465, 4
        %s469 = sadd.s32 %s467, %s468
        %s470 = smul.addr %s469, 8
        %s471 = scalar_lea.vmem %s3, %s470
      $region44: #{srresnet_forward.8} parent=39 // pred_fallthru
        _
    $region40: #{srresnet_forward.8} parent=5 // pred_fallthru
      _
  $region6: #{srresnet_forward.8} parent=0 // loop_footer
    %s13 = sadd.s32 1, %s9
  $region7: #{srresnet_forward.8} parent=0 // loop_footer_branch
    %8 = sbr.rel target = $region3
  $region8: #{srresnet_forward.8} parent=0 // loop_exit
    _

// kernel: srresnet_forward.9
$region0: #{srresnet_forward.9}
  #allocation0 [shape = 'u32[]', space=smem, size = 0x4, offset = 0x4, fixed_abs, tag = 'smem constant byte address 0x4 - core index']
  #allocation1 [shape = 'u32[144,128]{1,0:T(1,128)}', space=vmem, size = 0x12000, scoped, tag = 'internal scratch']
  %s0 = inlined_call_operand.vmem [shape: f32[2,32,64], index: 0, kind: input, shape index: {}]
  %s1 = inlined_call_operand.vmem [shape: bf16[32,864], index: 1, kind: input, shape index: {}]
  %s2 = inlined_call_operand.vmem [shape: f32[2,32,64], index: 2, kind: output, shape index: {0}]
  %s3 = inlined_call_operand.vmem [shape: f32[2,1,32,2], index: 3, kind: output, shape index: {1}]
  %4 = xla_tuple %s2, %s3
  %s5 = sld [smem:[#allocation0]]
  $region49: #{srresnet_forward.9} parent=0
    _
  %s7 = ssub.s32 1, %s5
  %s8 = scalar_select 0, %s7, %s5
  loop: start=0, step=1, limit=4
  $region2: #{srresnet_forward.9} parent=0 // loop_pre_header
    _
  $region3: #{srresnet_forward.9} parent=0 // loop_header
    %s10 = sphi 0, %s14
    %p11 = scmp.ge.s32.totalorder %s10, 4
    %s17 = sphi 0, %s29
    %s18 = sphi 0, %s25
    %s19 = sphi 0, %s17
    %s20 = sphi 0, %s18
    %s21 = sphi 0, %s19
    %s22 = sphi 0, %s20
    %s34 = sphi 0, %s36
    %s37 = sphi 0, %s34
    %s38 = sphi 0, %s37
    %s54 = sphi 0, %s38
    %s58 = sphi 0, %s58
    %s60 = sphi 0, %s58
    %s61 = sphi 0, %s60
    %s75 = sphi 0, %s61
    %s83 = sphi 0, %s85
    %s86 = sphi 0, %s83
    %s87 = sphi 0, %s86
    %s103 = sphi 0, %s87
    %s111 = sphi 0, %s113
    %s114 = sphi 0, %s111
    %s115 = sphi 0, %s114
    %s131 = sphi 0, %s115
  $region4: #{srresnet_forward.9} parent=0 // loop_header_branch
    %13 = sbr.rel (%p11) target = $region8
  $region5: #{srresnet_forward.9} parent=0 // loop_body
    %s15 = ssub.s32 %s10, 1
    %s16 = ssub.s32 %s10, 2
    %s23 = sadd.s32 1, %s18
    %p24 = scmp.ge.s32.totalorder %s23, 1
    %s25 = scalar_select %p24, 0, %s23
    %s26 = sadd.s32 1, %s17
    %s27 = scalar_select %p24, %s26, %s17
    %p28 = scmp.ge.s32.totalorder %s27, 2
    %s29 = scalar_select %p28, 0, %s27
    %s30 = ssub.s32 %s17, %s29
    %s31 = ssub.s32 %s18, %s25
    %s32 = sor.u32 %s30, %s31
    %p33 = scmp.eq.s32.totalorder %s32, 0
    %s35 = sadd.s32 %s34, 1
    %s36 = scalar_select %p33, %s34, %s35
    %p39 = pneg %p33
    %p40 = scmp.eq.s32.totalorder %s10, 1
    %p41 = por %p39, %p40
    %p42 = scmp.ne.s32.totalorder %s34, %s37
    %p43 = scmp.eq.s32.totalorder %s10, 0
    %p44 = por %p42, %p43
    %p45 = scmp.ne.s32.totalorder %s34, %s37
    %p46 = scmp.eq.s32.totalorder %s15, 1
    %p47 = por %p45, %p46
    %p48 = scmp.ne.s32.totalorder %s37, %s38
    %p49 = scmp.eq.s32.totalorder %s15, 0
    %p50 = por %p48, %p49
    %p51 = scmp.ne.s32.totalorder %s37, %s38
    %p52 = scmp.eq.s32.totalorder %s16, 1
    %p53 = por %p51, %p52
    %p55 = scmp.ne.s32.totalorder %s38, %s54
    %p56 = scmp.eq.s32.totalorder %s16, 0
    %p57 = por %p55, %p56
    %s59 = sadd.s32 %s58, 1
    %p62 = scmp.eq.s32.totalorder %s10, 1
    %p63 = scmp.ne.s32.totalorder %s58, %s60
    %p64 = scmp.eq.s32.totalorder %s10, 0
    %p65 = por %p63, %p64
    %p66 = scmp.ne.s32.totalorder %s58, %s60
    %p67 = scmp.eq.s32.totalorder %s15, 1
    %p68 = por %p66, %p67
    %p69 = scmp.ne.s32.totalorder %s60, %s61
    %p70 = scmp.eq.s32.totalorder %s15, 0
    %p71 = por %p69, %p70
    %p72 = scmp.ne.s32.totalorder %s60, %s61
    %p73 = scmp.eq.s32.totalorder %s16, 1
    %p74 = por %p72, %p73
    %p76 = scmp.ne.s32.totalorder %s61, %s75
    %p77 = scmp.eq.s32.totalorder %s16, 0
    %p78 = por %p76, %p77
    %s79 = ssub.s32 %s17, %s29
    %s80 = ssub.s32 %s18, %s25
    %s81 = sor.u32 %s79, %s80
    %p82 = scmp.eq.s32.totalorder %s81, 0
    %s84 = sadd.s32 %s83, 1
    %s85 = scalar_select %p82, %s83, %s84
    %p88 = pneg %p82
    %p89 = scmp.eq.s32.totalorder %s10, 1
    %p90 = por %p88, %p89
    %p91 = scmp.ne.s32.totalorder %s83, %s86
    %p92 = scmp.eq.s32.totalorder %s10, 0
    %p93 = por %p91, %p92
    %p94 = scmp.ne.s32.totalorder %s83, %s86
    %p95 = scmp.eq.s32.totalorder %s15, 1
    %p96 = por %p94, %p95
    %p97 = scmp.ne.s32.totalorder %s86, %s87
    %p98 = scmp.eq.s32.totalorder %s15, 0
    %p99 = por %p97, %p98
    %p100 = scmp.ne.s32.totalorder %s86, %s87
    %p101 = scmp.eq.s32.totalorder %s16, 1
    %p102 = por %p100, %p101
    %p104 = scmp.ne.s32.totalorder %s87, %s103
    %p105 = scmp.eq.s32.totalorder %s16, 0
    %p106 = por %p104, %p105
    %s107 = ssub.s32 %s17, %s29
    %s108 = ssub.s32 %s18, %s25
    %s109 = sor.u32 %s107, %s108
    %p110 = scmp.eq.s32.totalorder %s109, 0
    %s112 = sadd.s32 %s111, 1
    %s113 = scalar_select %p110, %s111, %s112
    %p116 = pneg %p110
    %p117 = scmp.eq.s32.totalorder %s10, 1
    %p118 = por %p116, %p117
    %p119 = scmp.ne.s32.totalorder %s111, %s114
    %p120 = scmp.eq.s32.totalorder %s10, 0
    %p121 = por %p119, %p120
    %p122 = scmp.ne.s32.totalorder %s111, %s114
    %p123 = scmp.eq.s32.totalorder %s15, 1
    %p124 = por %p122, %p123
    %p125 = scmp.ne.s32.totalorder %s114, %s115
    %p126 = scmp.eq.s32.totalorder %s15, 0
    %p127 = por %p125, %p126
    %p128 = scmp.ne.s32.totalorder %s114, %s115
    %p129 = scmp.eq.s32.totalorder %s16, 1
    %p130 = por %p128, %p129
    %p132 = scmp.ne.s32.totalorder %s115, %s131
    %p133 = scmp.eq.s32.totalorder %s16, 0
    %p134 = por %p132, %p133
    %p135 = scmp.le.s32.totalorder 1, %s10
    %p136 = scmp.lt.s32.totalorder %s10, 3
    %p137 = pnand %p135, %p136
    %p138 = pneg %p137
    // Predicated region
    $region9: #{srresnet_forward.9} parent=5 // pred_check
      _
    $region10: #{srresnet_forward.9} parent=5 // pred_check_branch
      %140 = sbr.rel (%p137) target = $region12
    $region11: #{srresnet_forward.9} parent=5 // pred_region
      %s141 = ssub.s32 %s10, 1
      // Predicated region
      $region13: #{srresnet_forward.9} parent=11 // pred_check
        %p142 = pneg %p71
      $region14: #{srresnet_forward.9} parent=11 // pred_check_branch
        %144 = sbr.rel (%p142) target = $region16
      $region15: #{srresnet_forward.9} parent=11 // pred_region
        _
      $region16: #{srresnet_forward.9} parent=11 // pred_fallthru
        _
    $region12: #{srresnet_forward.9} parent=5 // pred_fallthru
      _
    %p145 = scmp.lt.s32.totalorder %s10, 2
    // Predicated region
    $region17: #{srresnet_forward.9} parent=5 // pred_check
      %p146 = pneg %p145
    $region18: #{srresnet_forward.9} parent=5 // pred_check_branch
      %148 = sbr.rel (%p146) target = $region20
    $region19: #{srresnet_forward.9} parent=5 // pred_region
      // Predicated region
      $region21: #{srresnet_forward.9} parent=19 // pred_check
        %p149 = pneg %p44
      $region22: #{srresnet_forward.9} parent=19 // pred_check_branch
        %151 = sbr.rel (%p149) target = $region24
      $region23: #{srresnet_forward.9} parent=19 // pred_region
        %p152 = scmp.lt.s32.totalorder %s17, 1
        %s153 = scalar_select %p152, %s17, 1
        %p154 = scmp.lt.s32.totalorder %s18, 0
        %s155 = scalar_select %p154, %s18, 0
        %s156 = smul.addr %s153, 4
        %s157 = sadd.s32 %s155, %s156
        %s158 = smul.addr %s157, 8
        %s159 = scalar_lea.vmem %s0, %s158
      $region24: #{srresnet_forward.9} parent=19 // pred_fallthru
        _
    $region20: #{srresnet_forward.9} parent=5 // pred_fallthru
      _
    %p160 = scmp.le.s32.totalorder 1, %s10
    %p161 = scmp.lt.s32.totalorder %s10, 3
    %p162 = pnand %p160, %p161
    %p163 = pneg %p162
    // Predicated region
    $region25: #{srresnet_forward.9} parent=5 // pred_check
      _
    $region26: #{srresnet_forward.9} parent=5 // pred_check_branch
      %165 = sbr.rel (%p162) target = $region28
    $region27: #{srresnet_forward.9} parent=5 // pred_region
      %s166 = ssub.s32 %s10, 1
      %p167 = scmp.lt.s32.totalorder %s19, 1
      %s168 = scalar_select %p167, %s19, 1
      %p169 = scmp.lt.s32.totalorder %s20, 0
      %s170 = scalar_select %p169, %s20, 0
      %s171 = smul.addr %s168, 4
      %s172 = sadd.s32 %s170, %s171
      %s173 = smul.addr %s172, 8
      %s174 = scalar_lea.vmem %s0, %s173
      %p175 = pneg %p50
      %p176 = pneg %p47
      %p177 = pneg %p71
      %p178 = pneg %p68
      %p179 = pneg %p99
      %p180 = pneg %p96
      %p181 = scmp.lt.s32.totalorder %s19, 1
      %s182 = scalar_select %p181, %s19, 1
      %p183 = scmp.lt.s32.totalorder %s20, 0
      %s184 = scalar_select %p183, %s20, 0
      %s185 = smul.addr %s182, 4
      %s186 = sadd.s32 %s184, %s185
      %s187 = smul.addr %s186, 8
      %s188 = scalar_lea.vmem %s2, %s187
      %p189 = pneg %p127
      %p190 = pneg %p124
      %p191 = scmp.lt.s32.totalorder %s19, 1
      %s192 = scalar_select %p191, %s19, 1
      %p193 = scmp.lt.s32.totalorder %s20, 0
      %s194 = scalar_select %p193, %s20, 0
      %s195 = smul.addr %s194, 4
      %s196 = smul.addr %s192, 4
      %s197 = sadd.s32 %s195, %s196
      %s198 = smul.addr %s197, 8
      %s199 = scalar_lea.vmem %s3, %s198
      %p200 = scmp.lt.s32.totalorder %s19, 1
      %s201 = scalar_select %p200, %s19, 1
      %p202 = scmp.lt.s32.totalorder %s20, 0
      %s203 = scalar_select %p202, %s20, 0
      %s204 = smul.addr %s201, 4
      %s205 = sadd.s32 %s203, %s204
      %s206 = smul.addr %s205, 8
      %s207 = scalar_lea.vmem %s0, %s206
      %p208 = scmp.lt.s32.totalorder %s19, 1
      %s209 = scalar_select %p208, %s19, 1
      %p210 = scmp.lt.s32.totalorder %s20, 0
      %s211 = scalar_select %p210, %s20, 0
      %s212 = smul.addr %s209, 4
      %s213 = sadd.s32 %s211, %s212
      %s214 = smul.addr %s213, 8
      %s215 = scalar_lea.vmem %s2, %s214
      %p216 = scmp.lt.s32.totalorder %s19, 1
      %s217 = scalar_select %p216, %s19, 1
      %p218 = scmp.lt.s32.totalorder %s20, 0
      %s219 = scalar_select %p218, %s20, 0
      %s220 = smul.addr %s219, 4
      %s221 = smul.addr %s217, 4
      %s222 = sadd.s32 %s220, %s221
      %s223 = smul.addr %s222, 8
      %s224 = scalar_lea.vmem %s3, %s223
      %v226 = vld [vmem:[%s207] sm:$0xff]
      %v227 = vld [vmem:[%s207 + $0x8] sm:$0xff]
      %v228 = vld [vmem:[%s207 + $0x10] sm:$0xff]
      %v229 = vld [vmem:[%s207 + $0x18] sm:$0xff]
      %234 = vrot.lane.b32.xlu0 %v226, 13
      %v235 = vpop.permute.xlu0 %234
      %236 = vrot.lane.b32.xlu0 %v227, 13
      %v237 = vpop.permute.xlu0 %236
      %238 = vrot.lane.b32.xlu0 %v228, 13
      %v239 = vpop.permute.xlu0 %238
      %240 = vrot.lane.b32.xlu0 %v229, 13
      %v241 = vpop.permute.xlu0 %240
      %vm246 = vcmask 105472
      %v247 = vsel %vm246, 0.0, %v235
      %v248 = vsel %vm246, 0.0, %v237
      %v249 = vsel %vm246, 0.0, %v239
      %v250 = vsel %vm246, 0.0, %v241
      %vm251 = vcmask 629760
      %v252 = vsel %vm251, %v247, 0.0
      %v253 = vsel %vm251, %v248, 0.0
      %v254 = vsel %vm251, %v249, 0.0
      %v255 = vsel %vm251, %v250, 0.0
      %v256 = vpack.c.bf16 %v253, %v252
      %v257 = vpack.c.bf16 %v255, %v254
      %260 = vrot.lane.b32.xlu0 %v256, 127
      %v261 = vpop.permute.xlu0 %260
      %262 = vrot.lane.b32.xlu0 %v257, 127
      %v263 = vpop.permute.xlu0 %262
      %266 = vrot.lane.b32.xlu0 %v256, 126
      %v267 = vpop.permute.xlu0 %266
      %268 = vrot.lane.b32.xlu0 %v257, 126
      %v269 = vpop.permute.xlu0 %268
      %272 = vrot.lane.b32.xlu0 %v256, 125
      %v273 = vpop.permute.xlu0 %272
      %274 = vrot.lane.b32.xlu0 %v257, 125
      %v275 = vpop.permute.xlu0 %274
      %278 = vrot.lane.b32.xlu0 %v256, 124
      %v279 = vpop.permute.xlu0 %278
      %280 = vrot.lane.b32.xlu0 %v257, 124
      %v281 = vpop.permute.xlu0 %280
      %284 = vrot.lane.b32.xlu0 %v256, 123
      %v285 = vpop.permute.xlu0 %284
      %286 = vrot.lane.b32.xlu0 %v257, 123
      %v287 = vpop.permute.xlu0 %286
      %290 = vrot.lane.b32.xlu0 %v256, 122
      %v291 = vpop.permute.xlu0 %290
      %292 = vrot.lane.b32.xlu0 %v257, 122
      %v293 = vpop.permute.xlu0 %292
      %296 = vrot.lane.b32.xlu0 %v256, 121
      %v297 = vpop.permute.xlu0 %296
      %298 = vrot.lane.b32.xlu0 %v257, 121
      %v299 = vpop.permute.xlu0 %298
      %302 = vrot.lane.b32.xlu0 %v256, 120
      %v303 = vpop.permute.xlu0 %302
      %304 = vrot.lane.b32.xlu0 %v257, 120
      %v305 = vpop.permute.xlu0 %304
      %308 = vrot.lane.b32.xlu0 %v256, 119
      %v309 = vpop.permute.xlu0 %308
      %310 = vrot.lane.b32.xlu0 %v257, 119
      %v311 = vpop.permute.xlu0 %310
      %314 = vrot.lane.b32.xlu0 %v256, 118
      %v315 = vpop.permute.xlu0 %314
      %316 = vrot.lane.b32.xlu0 %v257, 118
      %v317 = vpop.permute.xlu0 %316
      %320 = vrot.lane.b32.xlu0 %v256, 117
      %v321 = vpop.permute.xlu0 %320
      %322 = vrot.lane.b32.xlu0 %v257, 117
      %v323 = vpop.permute.xlu0 %322
      %326 = vrot.lane.b32.xlu0 %v256, 116
      %v327 = vpop.permute.xlu0 %326
      %328 = vrot.lane.b32.xlu0 %v257, 116
      %v329 = vpop.permute.xlu0 %328
      %332 = vrot.lane.b32.xlu0 %v256, 115
      %v333 = vpop.permute.xlu0 %332
      %334 = vrot.lane.b32.xlu0 %v257, 115
      %v335 = vpop.permute.xlu0 %334
      %338 = vrot.lane.b32.xlu0 %v256, 114
      %v339 = vpop.permute.xlu0 %338
      %340 = vrot.lane.b32.xlu0 %v257, 114
      %v341 = vpop.permute.xlu0 %340
      %344 = vrot.lane.b32.xlu0 %v256, 113
      %v345 = vpop.permute.xlu0 %344
      %346 = vrot.lane.b32.xlu0 %v257, 113
      %v347 = vpop.permute.xlu0 %346
      %350 = vrot.lane.b32.xlu0 %v256, 112
      %v351 = vpop.permute.xlu0 %350
      %352 = vrot.lane.b32.xlu0 %v257, 112
      %v353 = vpop.permute.xlu0 %352
      %354 = vrot.lane.b32.xlu0 %v261, 112
      %v355 = vpop.permute.xlu0 %354
      %356 = vrot.lane.b32.xlu0 %v263, 112
      %v357 = vpop.permute.xlu0 %356
      %358 = vrot.lane.b32.xlu0 %v267, 112
      %v359 = vpop.permute.xlu0 %358
      %360 = vrot.lane.b32.xlu0 %v269, 112
      %v361 = vpop.permute.xlu0 %360
      %362 = vrot.lane.b32.xlu0 %v273, 112
      %v363 = vpop.permute.xlu0 %362
      %364 = vrot.lane.b32.xlu0 %v275, 112
      %v365 = vpop.permute.xlu0 %364
      %366 = vrot.lane.b32.xlu0 %v279, 112
      %v367 = vpop.permute.xlu0 %366
      %368 = vrot.lane.b32.xlu0 %v281, 112
      %v369 = vpop.permute.xlu0 %368
      %370 = vrot.lane.b32.xlu0 %v285, 112
      %v371 = vpop.permute.xlu0 %370
      %372 = vrot.lane.b32.xlu0 %v287, 112
      %v373 = vpop.permute.xlu0 %372
      %374 = vrot.lane.b32.xlu0 %v291, 112
      %v375 = vpop.permute.xlu0 %374
      %376 = vrot.lane.b32.xlu0 %v293, 112
      %v377 = vpop.permute.xlu0 %376
      %378 = vrot.lane.b32.xlu0 %v297, 112
      %v379 = vpop.permute.xlu0 %378
      %380 = vrot.lane.b32.xlu0 %v299, 112
      %v381 = vpop.permute.xlu0 %380
      %382 = vrot.lane.b32.xlu0 %v303, 112
      %v383 = vpop.permute.xlu0 %382
      %384 = vrot.lane.b32.xlu0 %v305, 112
      %v385 = vpop.permute.xlu0 %384
      %386 = vrot.lane.b32.xlu0 %v309, 112
      %v387 = vpop.permute.xlu0 %386
      %388 = vrot.lane.b32.xlu0 %v311, 112
      %v389 = vpop.permute.xlu0 %388
      %390 = vrot.lane.b32.xlu0 %v315, 112
      %v391 = vpop.permute.xlu0 %390
      %392 = vrot.lane.b32.xlu0 %v317, 112
      %v393 = vpop.permute.xlu0 %392
      %v416 = vld [vmem:[%s1] sm:$0xff]
      %v417 = vld [vmem:[%s1 + $0x8] sm:$0xff]
      %v418 = vld [vmem:[%s1 + $0x10] sm:$0xff]
      %v419 = vld [vmem:[%s1 + $0x18] sm:$0xf]
      %v420 = vld [vmem:[%s1 + $0x1c] sm:$0xff]
      %v421 = vld [vmem:[%s1 + $0x24] sm:$0xff]
      %v422 = vld [vmem:[%s1 + $0x2c] sm:$0xff]
      %v423 = vld [vmem:[%s1 + $0x34] sm:$0xf]
      %v424 = vld [vmem:[%s1 + $0x38] sm:$0xff]
      %v425 = vld [vmem:[%s1 + $0x40] sm:$0xff]
      %v426 = vld [vmem:[%s1 + $0x48] sm:$0xff]
      %v427 = vld [vmem:[%s1 + $0x50] sm:$0xf]
      %v428 = vld [vmem:[%s1 + $0x54] sm:$0xff]
      %v429 = vld [vmem:[%s1 + $0x5c] sm:$0xff]
      %v430 = vld [vmem:[%s1 + $0x64] sm:$0xff]
      %v431 = vld [vmem:[%s1 + $0x6c] sm:$0xf]
      %v448 = vunpack.c.l.b16 %v416
      %v449 = vunpack.c.h.b16 %v416
      %v450 = vunpack.c.l.b16 %v417
      %v451 = vunpack.c.h.b16 %v417
      %v452 = vunpack.c.l.b16 %v418
      %v453 = vunpack.c.h.b16 %v418
      %v454 = vunpack.c.l.b16 %v419
      %v455 = vunpack.c.l.b16 %v420
      %v456 = vunpack.c.h.b16 %v420
      %v457 = vunpack.c.l.b16 %v421
      %v458 = vunpack.c.h.b16 %v421
      %v459 = vunpack.c.l.b16 %v422
      %v460 = vunpack.c.h.b16 %v422
      %v461 = vunpack.c.l.b16 %v423
      %v462 = vunpack.c.l.b16 %v424
      %v463 = vunpack.c.h.b16 %v424
      %v464 = vunpack.c.l.b16 %v425
      %v465 = vunpack.c.h.b16 %v425
      %v466 = vunpack.c.l.b16 %v426
      %v467 = vunpack.c.h.b16 %v426
      %v468 = vunpack.c.l.b16 %v427
      %v469 = vunpack.c.l.b16 %v428
      %v470 = vunpack.c.h.b16 %v428
      %v471 = vunpack.c.l.b16 %v429
      %v472 = vunpack.c.h.b16 %v429
      %v473 = vunpack.c.l.b16 %v430
      %v474 = vunpack.c.h.b16 %v430
      %v475 = vunpack.c.l.b16 %v431
      %v476 = vpack.c.b16 %v455, %v448
      %v477 = vpack.c.b16 %v456, %v449
      %v478 = vpack.c.b16 %v457, %v450
      %v479 = vpack.c.b16 %v458, %v451
      %v480 = vpack.c.b16 %v459, %v452
      %v481 = vpack.c.b16 %v460, %v453
      %v482 = vpack.c.b16 %v461, %v454
      %v483 = vpack.c.b16 %v469, %v462
      %v484 = vpack.c.b16 %v470, %v463
      %v485 = vpack.c.b16 %v471, %v464
      %v486 = vpack.c.b16 %v472, %v465
      %v487 = vpack.c.b16 %v473, %v466
      %v488 = vpack.c.b16 %v474, %v467
      %v489 = vpack.c.b16 %v475, %v468
      %vm502 = vcmask 785408
      %v504 = vsel %vm502, %v482, 0
      %v507 = vsel %vm502, %v489, 0
      %509 = vmatprep.subr.bf16.mxu0 0
      %510 = vmatpush1.bf16.msra.mxu0 %v275
      %511 = vmatprep.subr.bf16.mxu0 0
      %512 = vmatpush1.bf16.msra.mxu0 %v273
      %513 = vmatprep.subr.bf16.mxu0 0
      %514 = vmatpush1.bf16.msra.mxu0 %v269
      %515 = vmatprep.subr.bf16.mxu0 0
      %516 = vmatpush1.bf16.msra.mxu0 %v267
      %517 = vmatprep.subr.bf16.mxu0 0
      %518 = vmatpush1.bf16.msra.mxu0 %v263
      %519 = vmatprep.subr.bf16.mxu0 0
      %520 = vmatpush1.bf16.msra.mxu0 %v261
      %521 = vmatprep.subr.bf16.mxu0 0
      %522 = vmatpush1.bf16.msra.mxu0 %v257
      %523 = vmatprep.subr.bf16.mxu0 0
      %524 = vmatpush1.bf16.msra.mxu0 %v256
      %525 = vmatprep.subr.bf16.mxu0 0
      %526 = vmatpush2.bf16.msra.mxu0 %v299
      %527 = vmatprep.subr.bf16.mxu0 0
      %528 = vmatpush2.bf16.msra.mxu0 %v297
      %529 = vmatprep.subr.bf16.mxu0 0
      %530 = vmatpush2.bf16.msra.mxu0 %v293
      %531 = vmatprep.subr.bf16.mxu0 0
      %532 = vmatpush2.bf16.msra.mxu0 %v291
      %533 = vmatprep.subr.bf16.mxu0 0
      %534 = vmatpush2.bf16.msra.mxu0 %v287
      %535 = vmatprep.subr.bf16.mxu0 0
      %536 = vmatpush2.bf16.msra.mxu0 %v285
      %537 = vmatprep.subr.bf16.mxu0 0
      %538 = vmatpush2.bf16.msra.mxu0 %v281
      %539 = vmatprep.subr.bf16.mxu0 0
      %540 = vmatpush2.bf16.msra.mxu0 %v279
      %541 = vmatprep.mubr.bf16.mxu0 %v477
      %542 = vmatmul.mubr.bf16.gmra.mxu0 %v476
      %v543 = vpop.f32.mrf.mxu0
      %v544 = vadd.f32 0.0, %v543
      %v545 = vpop.f32.mrf.mxu0
      %v546 = vpop.f32.mrf.mxu0
      %v547 = vadd.f32 0.0, %v546
      %v548 = vpop.f32.mrf.mxu0
      %549 = vmatprep.mubr.bf16.mxu0 %v484
      %550 = vmatmul.mubr.bf16.gmra.mxu0 %v483
      %v551 = vpop.f32.mrf.mxu0
      %v552 = vadd.f32 0.0, %v551
      %v553 = vpop.f32.mrf.mxu0
      %v554 = vpop.f32.mrf.mxu0
      %v555 = vadd.f32 0.0, %v554
      %v556 = vpop.f32.mrf.mxu0
      %557 = vdwg.mxu0
      %558 = vmatprep.subr.bf16.mxu0 0
      %559 = vmatpush1.bf16.msra.mxu0 %v323
      %560 = vmatprep.subr.bf16.mxu0 0
      %561 = vmatpush1.bf16.msra.mxu0 %v321
      %562 = vmatprep.subr.bf16.mxu0 0
      %563 = vmatpush1.bf16.msra.mxu0 %v317
      %564 = vmatprep.subr.bf16.mxu0 0
      %565 = vmatpush1.bf16.msra.mxu0 %v315
      %566 = vmatprep.subr.bf16.mxu0 0
      %567 = vmatpush1.bf16.msra.mxu0 %v311
      %568 = vmatprep.subr.bf16.mxu0 0
      %569 = vmatpush1.bf16.msra.mxu0 %v309
      %570 = vmatprep.subr.bf16.mxu0 0
      %571 = vmatpush1.bf16.msra.mxu0 %v305
      %572 = vmatprep.subr.bf16.mxu0 0
      %573 = vmatpush1.bf16.msra.mxu0 %v303
      %574 = vmatprep.subr.bf16.mxu0 0
      %575 = vmatpush2.bf16.msra.mxu0 %v347
      %576 = vmatprep.subr.bf16.mxu0 0
      %577 = vmatpush2.bf16.msra.mxu0 %v345
      %578 = vmatprep.subr.bf16.mxu0 0
      %579 = vmatpush2.bf16.msra.mxu0 %v341
      %580 = vmatprep.subr.bf16.mxu0 0
      %581 = vmatpush2.bf16.msra.mxu0 %v339
      %582 = vmatprep.subr.bf16.mxu0 0
      %583 = vmatpush2.bf16.msra.mxu0 %v335
      %584 = vmatprep.subr.bf16.mxu0 0
      %585 = vmatpush2.bf16.msra.mxu0 %v333
      %586 = vmatprep.subr.bf16.mxu0 0
      %587 = vmatpush2.bf16.msra.mxu0 %v329
      %588 = vmatprep.subr.bf16.mxu0 0
      %589 = vmatpush2.bf16.msra.mxu0 %v327
      %590 = vmatprep.mubr.bf16.mxu0 %v479
      %591 = vmatmul.mubr.bf16.gmra.mxu0 %v478
      %v592 = vpop.f32.mrf.mxu0
      %v593 = vadd.f32 %v544, %v592
      %v594 = vpop.f32.mrf.mxu0
      %v595 = vpop.f32.mrf.mxu0
      %v596 = vadd.f32 %v547, %v595
      %v597 = vpop.f32.mrf.mxu0
      %598 = vmatprep.mubr.bf16.mxu0 %v486
      %599 = vmatmul.mubr.bf16.gmra.mxu0 %v485
      %v600 = vpop.f32.mrf.mxu0
      %v601 = vadd.f32 %v552, %v600
      %v602 = vpop.f32.mrf.mxu0
      %v603 = vpop.f32.mrf.mxu0
      %v604 = vadd.f32 %v555, %v603
      %v605 = vpop.f32.mrf.mxu0
      %606 = vdwg.mxu0
      %607 = vmatprep.subr.bf16.mxu0 0
      %608 = vmatpush1.bf16.msra.mxu0 %v365
      %609 = vmatprep.subr.bf16.mxu0 0
      %610 = vmatpush1.bf16.msra.mxu0 %v363
      %611 = vmatprep.subr.bf16.mxu0 0
      %612 = vmatpush1.bf16.msra.mxu0 %v361
      %613 = vmatprep.subr.bf16.mxu0 0
      %614 = vmatpush1.bf16.msra.mxu0 %v359
      %615 = vmatprep.subr.bf16.mxu0 0
      %616 = vmatpush1.bf16.msra.mxu0 %v357
      %617 = vmatprep.subr.bf16.mxu0 0
      %618 = vmatpush1.bf16.msra.mxu0 %v355
      %619 = vmatprep.subr.bf16.mxu0 0
      %620 = vmatpush1.bf16.msra.mxu0 %v353
      %621 = vmatprep.subr.bf16.mxu0 0
      %622 = vmatpush1.bf16.msra.mxu0 %v351
      %623 = vmatprep.subr.bf16.mxu0 0
      %624 = vmatpush2.bf16.msra.mxu0 %v381
      %625 = vmatprep.subr.bf16.mxu0 0
      %626 = vmatpush2.bf16.msra.mxu0 %v379
      %627 = vmatprep.subr.bf16.mxu0 0
      %628 = vmatpush2.bf16.msra.mxu0 %v377
      %629 = vmatprep.subr.bf16.mxu0 0
      %630 = vmatpush2.bf16.msra.mxu0 %v375
      %631 = vmatprep.subr.bf16.mxu0 0
      %632 = vmatpush2.bf16.msra.mxu0 %v373
      %633 = vmatprep.subr.bf16.mxu0 0
      %634 = vmatpush2.bf16.msra.mxu0 %v371
      %635 = vmatprep.subr.bf16.mxu0 0
      %636 = vmatpush2.bf16.msra.mxu0 %v369
      %637 = vmatprep.subr.bf16.mxu0 0
      %638 = vmatpush2.bf16.msra.mxu0 %v367
      %639 = vmatprep.mubr.bf16.mxu0 %v481
      %640 = vmatmul.mubr.bf16.gmra.mxu0 %v480
      %v641 = vpop.f32.mrf.mxu0
      %v642 = vadd.f32 %v593, %v641
      %v643 = vpop.f32.mrf.mxu0
      %v644 = vpop.f32.mrf.mxu0
      %v645 = vadd.f32 %v596, %v644
      %v646 = vpop.f32.mrf.mxu0
      %647 = vmatprep.mubr.bf16.mxu0 %v488
      %648 = vmatmul.mubr.bf16.gmra.mxu0 %v487
      %v649 = vpop.f32.mrf.mxu0
      %v650 = vadd.f32 %v601, %v649
      %v651 = vpop.f32.mrf.mxu0
      %v652 = vpop.f32.mrf.mxu0
      %v653 = vadd.f32 %v604, %v652
      %v654 = vpop.f32.mrf.mxu0
      %655 = vdwg.mxu0
      %656 = vmatprep.subr.bf16.mxu0 0
      %657 = vmatpush1.bf16.msra.mxu0 0
      %658 = vmatprep.subr.bf16.mxu0 0
      %659 = vmatpush1.bf16.msra.mxu0 0
      %660 = vmatprep.subr.bf16.mxu0 0
      %661 = vmatpush1.bf16.msra.mxu0 %v393
      %662 = vmatprep.subr.bf16.mxu0 0
      %663 = vmatpush1.bf16.msra.mxu0 %v391
      %664 = vmatprep.subr.bf16.mxu0 0
      %665 = vmatpush1.bf16.msra.mxu0 %v389
      %666 = vmatprep.subr.bf16.mxu0 0
      %667 = vmatpush1.bf16.msra.mxu0 %v387
      %668 = vmatprep.subr.bf16.mxu0 0
      %669 = vmatpush1.bf16.msra.mxu0 %v385
      %670 = vmatprep.subr.bf16.mxu0 0
      %671 = vmatpush1.bf16.msra.mxu0 %v383
      %672 = vmatprep.subr.bf16.mxu0 0
      %673 = vmatpush2.bf16.msra.mxu0 0
      %674 = vmatprep.subr.bf16.mxu0 0
      %675 = vmatpush2.bf16.msra.mxu0 0
      %676 = vmatprep.subr.bf16.mxu0 0
      %677 = vmatpush2.bf16.msra.mxu0 0
      %678 = vmatprep.subr.bf16.mxu0 0
      %679 = vmatpush2.bf16.msra.mxu0 0
      %680 = vmatprep.subr.bf16.mxu0 0
      %681 = vmatpush2.bf16.msra.mxu0 0
      %682 = vmatprep.subr.bf16.mxu0 0
      %683 = vmatpush2.bf16.msra.mxu0 0
      %684 = vmatprep.subr.bf16.mxu0 0
      %685 = vmatpush2.bf16.msra.mxu0 0
      %686 = vmatprep.subr.bf16.mxu0 0
      %687 = vmatpush2.bf16.msra.mxu0 0
      %688 = vmatprep.mubr.bf16.mxu0 0
      %689 = vmatmul.mubr.bf16.gmra.mxu0 %v504
      %v690 = vpop.f32.mrf.mxu0
      %v691 = vadd.f32 %v642, %v690
      %v692 = vpop.f32.mrf.mxu0
      %v693 = vpop.f32.mrf.mxu0
      %v694 = vadd.f32 %v645, %v693
      %v695 = vpop.f32.mrf.mxu0
      %696 = vmatprep.mubr.bf16.mxu0 0
      %697 = vmatmul.mubr.bf16.gmra.mxu0 %v507
      %v698 = vpop.f32.mrf.mxu0
      %v699 = vadd.f32 %v650, %v698
      %v700 = vpop.f32.mrf.mxu0
      %v701 = vpop.f32.mrf.mxu0
      %v702 = vadd.f32 %v653, %v701
      %v703 = vpop.f32.mrf.mxu0
      %704 = vdwg.mxu0
      %vm705 = vcmask 523264
      %706 = vst.msk [vmem:[%s215] sm:$0xff] %vm705, %v691
      %707 = vst.msk [vmem:[%s215 + $0x8] sm:$0xff] %vm705, %v694
      %708 = vst.msk [vmem:[%s215 + $0x10] sm:$0xff] %vm705, %v699
      %709 = vst.msk [vmem:[%s215 + $0x18] sm:$0xff] %vm705, %v702
      %v710 = vsel %vm705, %v691, 0.0
      %711 = vadd.xlane.f32.xlu0 %v710
      %v712 = vpop.xlane.xlu0 %711
      %v713 = vsel %vm705, %v694, 0.0
      %714 = vadd.xlane.f32.xlu0 %v713
      %v715 = vpop.xlane.xlu0 %714
      %v716 = vsel %vm705, %v699, 0.0
      %717 = vadd.xlane.f32.xlu0 %v716
      %v718 = vpop.xlane.xlu0 %717
      %v719 = vsel %vm705, %v702, 0.0
      %720 = vadd.xlane.f32.xlu0 %v719
      %v721 = vpop.xlane.xlu0 %720
      %v722 = vmul.f32 %v691, %v691
      %v723 = vmul.f32 %v694, %v694
      %v724 = vmul.f32 %v699, %v699
      %v725 = vmul.f32 %v702, %v702
      %v726 = vsel %vm705, %v722, 0.0
      %727 = vadd.xlane.f32.xlu0 %v726
      %v728 = vpop.xlane.xlu0 %727
      %v729 = vsel %vm705, %v723, 0.0
      %730 = vadd.xlane.f32.xlu0 %v729
      %v731 = vpop.xlane.xlu0 %730
      %v732 = vsel %vm705, %v724, 0.0
      %733 = vadd.xlane.f32.xlu0 %v732
      %v734 = vpop.xlane.xlu0 %733
      %v735 = vsel %vm705, %v725, 0.0
      %736 = vadd.xlane.f32.xlu0 %v735
      %v737 = vpop.xlane.xlu0 %736
      %vm738 = vcmask 7168
      %v739 = vsel %vm738, %v712, %v728
      %v740 = vsel %vm738, %v715, %v731
      %v741 = vsel %vm738, %v718, %v734
      %v742 = vsel %vm738, %v721, %v737
      %vm743 = vcmask 15360
      %744 = vst.msk [vmem:[%s224] sm:$0xff] %vm743, %v739
      %745 = vst.msk [vmem:[%s224 + $0x8] sm:$0xff] %vm743, %v740
      %746 = vst.msk [vmem:[%s224 + $0x10] sm:$0xff] %vm743, %v741
      %747 = vst.msk [vmem:[%s224 + $0x18] sm:$0xff] %vm743, %v742
      %p748 = scmp.lt.s32.totalorder %s19, 1
      %s749 = scalar_select %p748, %s19, 1
      %p750 = scmp.lt.s32.totalorder %s20, 0
      %s751 = scalar_select %p750, %s20, 0
      %s752 = smul.addr %s749, 4
      %s753 = sadd.s32 %s751, %s752
      %s754 = smul.addr %s753, 8
      %s755 = scalar_lea.vmem %s2, %s754
      %p756 = scmp.lt.s32.totalorder %s19, 1
      %s757 = scalar_select %p756, %s19, 1
      %p758 = scmp.lt.s32.totalorder %s20, 0
      %s759 = scalar_select %p758, %s20, 0
      %s760 = smul.addr %s759, 4
      %s761 = smul.addr %s757, 4
      %s762 = sadd.s32 %s760, %s761
      %s763 = smul.addr %s762, 8
      %s764 = scalar_lea.vmem %s3, %s763
      // Predicated region
      $region29: #{srresnet_forward.9} parent=27 // pred_check
        %p765 = pneg %p96
      $region30: #{srresnet_forward.9} parent=27 // pred_check_branch
        %767 = sbr.rel (%p765) target = $region32
      $region31: #{srresnet_forward.9} parent=27 // pred_region
        _
      $region32: #{srresnet_forward.9} parent=27 // pred_fallthru
        _
      // Predicated region
      $region33: #{srresnet_forward.9} parent=27 // pred_check
        %p768 = pneg %p124
      $region34: #{srresnet_forward.9} parent=27 // pred_check_branch
        %770 = sbr.rel (%p768) target = $region36
      $region35: #{srresnet_forward.9} parent=27 // pred_region
        _
      $region36: #{srresnet_forward.9} parent=27 // pred_fallthru
        _
    $region28: #{srresnet_forward.9} parent=5 // pred_fallthru
      _
    %p771 = scmp.le.s32.totalorder 2, %s10
    // Predicated region
    $region37: #{srresnet_forward.9} parent=5 // pred_check
      %p772 = pneg %p771
    $region38: #{srresnet_forward.9} parent=5 // pred_check_branch
      %774 = sbr.rel (%p772) target = $region40
    $region39: #{srresnet_forward.9} parent=5 // pred_region
      %s775 = ssub.s32 %s10, 2
      // Predicated region
      $region41: #{srresnet_forward.9} parent=39 // pred_check
        %p776 = pneg %p102
      $region42: #{srresnet_forward.9} parent=39 // pred_check_branch
        %778 = sbr.rel (%p776) target = $region44
      $region43: #{srresnet_forward.9} parent=39 // pred_region
        %p779 = scmp.lt.s32.totalorder %s21, 1
        %s780 = scalar_select %p779, %s21, 1
        %p781 = scmp.lt.s32.totalorder %s22, 0
        %s782 = scalar_select %p781, %s22, 0
        %s783 = smul.addr %s780, 4
        %s784 = sadd.s32 %s782, %s783
        %s785 = smul.addr %s784, 8
        %s786 = scalar_lea.vmem %s2, %s785
      $region44: #{srresnet_forward.9} parent=39 // pred_fallthru
        _
      // Predicated region
      $region45: #{srresnet_forward.9} parent=39 // pred_check
        %p787 = pneg %p130
      $region46: #{srresnet_forward.9} parent=39 // pred_check_branch
        %789 = sbr.rel (%p787) target = $region48
      $region47: #{srresnet_forward.9} parent=39 // pred_region
        %p790 = scmp.lt.s32.totalorder %s21, 1
        %s791 = scalar_select %p790, %s21, 1
        %p792 = scmp.lt.s32.totalorder %s22, 0
        %s793 = scalar_select %p792, %s22, 0
        %s794 = smul.addr %s793, 4
        %s795 = smul.addr %s791, 4
        %s796 = sadd.s32 %s794, %s795
        %s797 = smul.addr %s796, 8
        %s798 = scalar_lea.vmem %s3, %s797
      $region48: #{srresnet_forward.9} parent=39 // pred_fallthru
        _
    $region40: #{srresnet_forward.9} parent=5 // pred_fallthru
      _
  $region6: #{srresnet_forward.9} parent=0 // loop_footer
    %s14 = sadd.s32 1, %s10
  $region7: #{srresnet_forward.9} parent=0 // loop_footer_branch
    %9 = sbr.rel target = $region3
  $region8: #{srresnet_forward.9} parent=0 // loop_exit
    _

// kernel: srresnet_forward.10
$region0: #{srresnet_forward.10}
  #allocation0 [shape = 'u32[]', space=smem, size = 0x4, offset = 0x4, fixed_abs, tag = 'smem constant byte address 0x4 - core index']
  #allocation1 [shape = 'u32[144,128]{1,0:T(1,128)}', space=vmem, size = 0x12000, scoped, tag = 'internal scratch']
  %s0 = inlined_call_operand.vmem [shape: f32[2,32,64], index: 0, kind: input, shape index: {}]
  %s1 = inlined_call_operand.vmem [shape: bf16[32,864], index: 1, kind: input, shape index: {}]
  %s2 = inlined_call_operand.vmem [shape: f32[32,1], index: 2, kind: input, shape index: {}]
  %s3 = inlined_call_operand.vmem [shape: f32[32,1], index: 3, kind: input, shape index: {}]
  %s4 = inlined_call_operand.vmem [shape: f32[2,32,64], index: 4, kind: output, shape index: {0}]
  %s5 = inlined_call_operand.vmem [shape: f32[2,1,32,2], index: 5, kind: output, shape index: {1}]
  %6 = xla_tuple %s4, %s5
  %s7 = sld [smem:[#allocation0]]
  $region57: #{srresnet_forward.10} parent=0
    _
  %s9 = ssub.s32 1, %s7
  %s10 = scalar_select 0, %s9, %s7
  loop: start=0, step=1, limit=4
  $region2: #{srresnet_forward.10} parent=0 // loop_pre_header
    _
  $region3: #{srresnet_forward.10} parent=0 // loop_header
    %s12 = sphi 0, %s16
    %p13 = scmp.ge.s32.totalorder %s12, 4
    %s19 = sphi 0, %s31
    %s20 = sphi 0, %s27
    %s21 = sphi 0, %s19
    %s22 = sphi 0, %s20
    %s23 = sphi 0, %s21
    %s24 = sphi 0, %s22
    %s36 = sphi 0, %s38
    %s39 = sphi 0, %s36
    %s40 = sphi 0, %s39
    %s56 = sphi 0, %s40
    %s60 = sphi 0, %s60
    %s62 = sphi 0, %s60
    %s63 = sphi 0, %s62
    %s77 = sphi 0, %s63
    %s81 = sphi 0, %s81
    %s83 = sphi 0, %s81
    %s84 = sphi 0, %s83
    %s98 = sphi 0, %s84
    %s102 = sphi 0, %s102
    %s104 = sphi 0, %s102
    %s105 = sphi 0, %s104
    %s119 = sphi 0, %s105
    %s127 = sphi 0, %s129
    %s130 = sphi 0, %s127
    %s131 = sphi 0, %s130
    %s147 = sphi 0, %s131
    %s155 = sphi 0, %s157
    %s158 = sphi 0, %s155
    %s159 = sphi 0, %s158
    %s175 = sphi 0, %s159
  $region4: #{srresnet_forward.10} parent=0 // loop_header_branch
    %15 = sbr.rel (%p13) target = $region8
  $region5: #{srresnet_forward.10} parent=0 // loop_body
    %s17 = ssub.s32 %s12, 1
    %s18 = ssub.s32 %s12, 2
    %s25 = sadd.s32 1, %s20
    %p26 = scmp.ge.s32.totalorder %s25, 1
    %s27 = scalar_select %p26, 0, %s25
    %s28 = sadd.s32 1, %s19
    %s29 = scalar_select %p26, %s28, %s19
    %p30 = scmp.ge.s32.totalorder %s29, 2
    %s31 = scalar_select %p30, 0, %s29
    %s32 = ssub.s32 %s19, %s31
    %s33 = ssub.s32 %s20, %s27
    %s34 = sor.u32 %s32, %s33
    %p35 = scmp.eq.s32.totalorder %s34, 0
    %s37 = sadd.s32 %s36, 1
    %s38 = scalar_select %p35, %s36, %s37
    %p41 = pneg %p35
    %p42 = scmp.eq.s32.totalorder %s12, 1
    %p43 = por %p41, %p42
    %p44 = scmp.ne.s32.totalorder %s36, %s39
    %p45 = scmp.eq.s32.totalorder %s12, 0
    %p46 = por %p44, %p45
    %p47 = scmp.ne.s32.totalorder %s36, %s39
    %p48 = scmp.eq.s32.totalorder %s17, 1
    %p49 = por %p47, %p48
    %p50 = scmp.ne.s32.totalorder %s39, %s40
    %p51 = scmp.eq.s32.totalorder %s17, 0
    %p52 = por %p50, %p51
    %p53 = scmp.ne.s32.totalorder %s39, %s40
    %p54 = scmp.eq.s32.totalorder %s18, 1
    %p55 = por %p53, %p54
    %p57 = scmp.ne.s32.totalorder %s40, %s56
    %p58 = scmp.eq.s32.totalorder %s18, 0
    %p59 = por %p57, %p58
    %s61 = sadd.s32 %s60, 1
    %p64 = scmp.eq.s32.totalorder %s12, 1
    %p65 = scmp.ne.s32.totalorder %s60, %s62
    %p66 = scmp.eq.s32.totalorder %s12, 0
    %p67 = por %p65, %p66
    %p68 = scmp.ne.s32.totalorder %s60, %s62
    %p69 = scmp.eq.s32.totalorder %s17, 1
    %p70 = por %p68, %p69
    %p71 = scmp.ne.s32.totalorder %s62, %s63
    %p72 = scmp.eq.s32.totalorder %s17, 0
    %p73 = por %p71, %p72
    %p74 = scmp.ne.s32.totalorder %s62, %s63
    %p75 = scmp.eq.s32.totalorder %s18, 1
    %p76 = por %p74, %p75
    %p78 = scmp.ne.s32.totalorder %s63, %s77
    %p79 = scmp.eq.s32.totalorder %s18, 0
    %p80 = por %p78, %p79
    %s82 = sadd.s32 %s81, 1
    %p85 = scmp.eq.s32.totalorder %s12, 1
    %p86 = scmp.ne.s32.totalorder %s81, %s83
    %p87 = scmp.eq.s32.totalorder %s12, 0
    %p88 = por %p86, %p87
    %p89 = scmp.ne.s32.totalorder %s81, %s83
    %p90 = scmp.eq.s32.totalorder %s17, 1
    %p91 = por %p89, %p90
    %p92 = scmp.ne.s32.totalorder %s83, %s84
    %p93 = scmp.eq.s32.totalorder %s17, 0
    %p94 = por %p92, %p93
    %p95 = scmp.ne.s32.totalorder %s83, %s84
    %p96 = scmp.eq.s32.totalorder %s18, 1
    %p97 = por %p95, %p96
    %p99 = scmp.ne.s32.totalorder %s84, %s98
    %p100 = scmp.eq.s32.totalorder %s18, 0
    %p101 = por %p99, %p100
    %s103 = sadd.s32 %s102, 1
    %p106 = scmp.eq.s32.totalorder %s12, 1
    %p107 = scmp.ne.s32.totalorder %s102, %s104
    %p108 = scmp.eq.s32.totalorder %s12, 0
    %p109 = por %p107, %p108
    %p110 = scmp.ne.s32.totalorder %s102, %s104
    %p111 = scmp.eq.s32.totalorder %s17, 1
    %p112 = por %p110, %p111
    %p113 = scmp.ne.s32.totalorder %s104, %s105
    %p114 = scmp.eq.s32.totalorder %s17, 0
    %p115 = por %p113, %p114
    %p116 = scmp.ne.s32.totalorder %s104, %s105
    %p117 = scmp.eq.s32.totalorder %s18, 1
    %p118 = por %p116, %p117
    %p120 = scmp.ne.s32.totalorder %s105, %s119
    %p121 = scmp.eq.s32.totalorder %s18, 0
    %p122 = por %p120, %p121
    %s123 = ssub.s32 %s19, %s31
    %s124 = ssub.s32 %s20, %s27
    %s125 = sor.u32 %s123, %s124
    %p126 = scmp.eq.s32.totalorder %s125, 0
    %s128 = sadd.s32 %s127, 1
    %s129 = scalar_select %p126, %s127, %s128
    %p132 = pneg %p126
    %p133 = scmp.eq.s32.totalorder %s12, 1
    %p134 = por %p132, %p133
    %p135 = scmp.ne.s32.totalorder %s127, %s130
    %p136 = scmp.eq.s32.totalorder %s12, 0
    %p137 = por %p135, %p136
    %p138 = scmp.ne.s32.totalorder %s127, %s130
    %p139 = scmp.eq.s32.totalorder %s17, 1
    %p140 = por %p138, %p139
    %p141 = scmp.ne.s32.totalorder %s130, %s131
    %p142 = scmp.eq.s32.totalorder %s17, 0
    %p143 = por %p141, %p142
    %p144 = scmp.ne.s32.totalorder %s130, %s131
    %p145 = scmp.eq.s32.totalorder %s18, 1
    %p146 = por %p144, %p145
    %p148 = scmp.ne.s32.totalorder %s131, %s147
    %p149 = scmp.eq.s32.totalorder %s18, 0
    %p150 = por %p148, %p149
    %s151 = ssub.s32 %s19, %s31
    %s152 = ssub.s32 %s20, %s27
    %s153 = sor.u32 %s151, %s152
    %p154 = scmp.eq.s32.totalorder %s153, 0
    %s156 = sadd.s32 %s155, 1
    %s157 = scalar_select %p154, %s155, %s156
    %p160 = pneg %p154
    %p161 = scmp.eq.s32.totalorder %s12, 1
    %p162 = por %p160, %p161
    %p163 = scmp.ne.s32.totalorder %s155, %s158
    %p164 = scmp.eq.s32.totalorder %s12, 0
    %p165 = por %p163, %p164
    %p166 = scmp.ne.s32.totalorder %s155, %s158
    %p167 = scmp.eq.s32.totalorder %s17, 1
    %p168 = por %p166, %p167
    %p169 = scmp.ne.s32.totalorder %s158, %s159
    %p170 = scmp.eq.s32.totalorder %s17, 0
    %p171 = por %p169, %p170
    %p172 = scmp.ne.s32.totalorder %s158, %s159
    %p173 = scmp.eq.s32.totalorder %s18, 1
    %p174 = por %p172, %p173
    %p176 = scmp.ne.s32.totalorder %s159, %s175
    %p177 = scmp.eq.s32.totalorder %s18, 0
    %p178 = por %p176, %p177
    %p179 = scmp.le.s32.totalorder 1, %s12
    %p180 = scmp.lt.s32.totalorder %s12, 3
    %p181 = pnand %p179, %p180
    %p182 = pneg %p181
    // Predicated region
    $region9: #{srresnet_forward.10} parent=5 // pred_check
      _
    $region10: #{srresnet_forward.10} parent=5 // pred_check_branch
      %184 = sbr.rel (%p181) target = $region12
    $region11: #{srresnet_forward.10} parent=5 // pred_region
      %s185 = ssub.s32 %s12, 1
      // Predicated region
      $region13: #{srresnet_forward.10} parent=11 // pred_check
        %p186 = pneg %p73
      $region14: #{srresnet_forward.10} parent=11 // pred_check_branch
        %188 = sbr.rel (%p186) target = $region16
      $region15: #{srresnet_forward.10} parent=11 // pred_region
        _
      $region16: #{srresnet_forward.10} parent=11 // pred_fallthru
        _
      // Predicated region
      $region17: #{srresnet_forward.10} parent=11 // pred_check
        %p189 = pneg %p94
      $region18: #{srresnet_forward.10} parent=11 // pred_check_branch
        %191 = sbr.rel (%p189) target = $region20
      $region19: #{srresnet_forward.10} parent=11 // pred_region
        _
      $region20: #{srresnet_forward.10} parent=11 // pred_fallthru
        _
      // Predicated region
      $region21: #{srresnet_forward.10} parent=11 // pred_check
        %p192 = pneg %p115
      $region22: #{srresnet_forward.10} parent=11 // pred_check_branch
        %194 = sbr.rel (%p192) target = $region24
      $region23: #{srresnet_forward.10} parent=11 // pred_region
        _
      $region24: #{srresnet_forward.10} parent=11 // pred_fallthru
        _
    $region12: #{srresnet_forward.10} parent=5 // pred_fallthru
      _
    %p195 = scmp.lt.s32.totalorder %s12, 2
    // Predicated region
    $region25: #{srresnet_forward.10} parent=5 // pred_check
      %p196 = pneg %p195
    $region26: #{srresnet_forward.10} parent=5 // pred_check_branch
      %198 = sbr.rel (%p196) target = $region28
    $region27: #{srresnet_forward.10} parent=5 // pred_region
      // Predicated region
      $region29: #{srresnet_forward.10} parent=27 // pred_check
        %p199 = pneg %p46
      $region30: #{srresnet_forward.10} parent=27 // pred_check_branch
        %201 = sbr.rel (%p199) target = $region32
      $region31: #{srresnet_forward.10} parent=27 // pred_region
        %p202 = scmp.lt.s32.totalorder %s19, 1
        %s203 = scalar_select %p202, %s19, 1
        %p204 = scmp.lt.s32.totalorder %s20, 0
        %s205 = scalar_select %p204, %s20, 0
        %s206 = smul.addr %s203, 4
        %s207 = sadd.s32 %s205, %s206
        %s208 = smul.addr %s207, 8
        %s209 = scalar_lea.vmem %s0, %s208
      $region32: #{srresnet_forward.10} parent=27 // pred_fallthru
        _
    $region28: #{srresnet_forward.10} parent=5 // pred_fallthru
      _
    %p210 = scmp.le.s32.totalorder 1, %s12
    %p211 = scmp.lt.s32.totalorder %s12, 3
    %p212 = pnand %p210, %p211
    %p213 = pneg %p212
    // Predicated region
    $region33: #{srresnet_forward.10} parent=5 // pred_check
      _
    $region34: #{srresnet_forward.10} parent=5 // pred_check_branch
      %215 = sbr.rel (%p212) target = $region36
    $region35: #{srresnet_forward.10} parent=5 // pred_region
      %s216 = ssub.s32 %s12, 1
      %p217 = scmp.lt.s32.totalorder %s21, 1
      %s218 = scalar_select %p217, %s21, 1
      %p219 = scmp.lt.s32.totalorder %s22, 0
      %s220 = scalar_select %p219, %s22, 0
      %s221 = smul.addr %s218, 4
      %s222 = sadd.s32 %s220, %s221
      %s223 = smul.addr %s222, 8
      %s224 = scalar_lea.vmem %s0, %s223
      %p225 = pneg %p52
      %p226 = pneg %p49
      %p227 = pneg %p73
      %p228 = pneg %p70
      %p229 = pneg %p94
      %p230 = pneg %p91
      %p231 = pneg %p115
      %p232 = pneg %p112
      %p233 = pneg %p143
      %p234 = pneg %p140
      %p235 = scmp.lt.s32.totalorder %s21, 1
      %s236 = scalar_select %p235, %s21, 1
      %p237 = scmp.lt.s32.totalorder %s22, 0
      %s238 = scalar_select %p237, %s22, 0
      %s239 = smul.addr %s236, 4
      %s240 = sadd.s32 %s238, %s239
      %s241 = smul.addr %s240, 8
      %s242 = scalar_lea.vmem %s4, %s241
      %p243 = pneg %p171
      %p244 = pneg %p168
      %p245 = scmp.lt.s32.totalorder %s21, 1
      %s246 = scalar_select %p245, %s21, 1
      %p247 = scmp.lt.s32.totalorder %s22, 0
      %s248 = scalar_select %p247, %s22, 0
      %s249 = smul.addr %s248, 4
      %s250 = smul.addr %s246, 4
      %s251 = sadd.s32 %s249, %s250
      %s252 = smul.addr %s251, 8
      %s253 = scalar_lea.vmem %s5, %s252
      %p254 = scmp.lt.s32.totalorder %s21, 1
      %s255 = scalar_select %p254, %s21, 1
      %p256 = scmp.lt.s32.totalorder %s22, 0
      %s257 = scalar_select %p256, %s22, 0
      %s258 = smul.addr %s255, 4
      %s259 = sadd.s32 %s257, %s258
      %s260 = smul.addr %s259, 8
      %s261 = scalar_lea.vmem %s0, %s260
      %p262 = scmp.lt.s32.totalorder %s21, 1
      %s263 = scalar_select %p262, %s21, 1
      %p264 = scmp.lt.s32.totalorder %s22, 0
      %s265 = scalar_select %p264, %s22, 0
      %s266 = smul.addr %s263, 4
      %s267 = sadd.s32 %s265, %s266
      %s268 = smul.addr %s267, 8
      %s269 = scalar_lea.vmem %s4, %s268
      %p270 = scmp.lt.s32.totalorder %s21, 1
      %s271 = scalar_select %p270, %s21, 1
      %p272 = scmp.lt.s32.totalorder %s22, 0
      %s273 = scalar_select %p272, %s22, 0
      %s274 = smul.addr %s273, 4
      %s275 = smul.addr %s271, 4
      %s276 = sadd.s32 %s274, %s275
      %s277 = smul.addr %s276, 8
      %s278 = scalar_lea.vmem %s5, %s277
      %v280 = vld [vmem:[%s261] sm:$0xff]
      %v281 = vld [vmem:[%s261 + $0x8] sm:$0xff]
      %v282 = vld [vmem:[%s261 + $0x10] sm:$0xff]
      %v283 = vld [vmem:[%s261 + $0x18] sm:$0xff]
      %v284 = vld [vmem:[%s2] sm:$0xff]
      %v285 = vld [vmem:[%s2 + $0x8] sm:$0xff]
      %v286 = vld [vmem:[%s2 + $0x10] sm:$0xff]
      %v287 = vld [vmem:[%s2 + $0x18] sm:$0xff]
      %289 = vset.pattern.permute.xlu0 0
      %290 = vperm.xlu0 %289, %v284
      %v291 = vpop.permute.xlu0 %290
      %294 = vset.pattern.permute.xlu0 0
      %295 = vperm.xlu0 %294, %v285
      %v296 = vpop.permute.xlu0 %295
      %299 = vset.pattern.permute.xlu0 0
      %300 = vperm.xlu0 %299, %v286
      %v301 = vpop.permute.xlu0 %300
      %304 = vset.pattern.permute.xlu0 0
      %305 = vperm.xlu0 %304, %v287
      %v306 = vpop.permute.xlu0 %305
      %v308 = vmul.f32 %v280, %v291
      %v309 = vmul.f32 %v281, %v296
      %v310 = vmul.f32 %v282, %v301
      %v311 = vmul.f32 %v283, %v306
      %v312 = vld [vmem:[%s3] sm:$0xff]
      %v313 = vld [vmem:[%s3 + $0x8] sm:$0xff]
      %v314 = vld [vmem:[%s3 + $0x10] sm:$0xff]
      %v315 = vld [vmem:[%s3 + $0x18] sm:$0xff]
      %317 = vset.pattern.permute.xlu0 0
      %318 = vperm.xlu0 %317, %v312
      %v319 = vpop.permute.xlu0 %318
      %322 = vset.pattern.permute.xlu0 0
      %323 = vperm.xlu0 %322, %v313
      %v324 = vpop.permute.xlu0 %323
      %327 = vset.pattern.permute.xlu0 0
      %328 = vperm.xlu0 %327, %v314
      %v329 = vpop.permute.xlu0 %328
      %332 = vset.pattern.permute.xlu0 0
      %333 = vperm.xlu0 %332, %v315
      %v334 = vpop.permute.xlu0 %333
      %v336 = vadd.f32 %v308, %v319
      %v337 = vadd.f32 %v309, %v324
      %v338 = vadd.f32 %v310, %v329
      %v339 = vadd.f32 %v311, %v334
      %v340 = vmax.f32 %v336, 0.0
      %v341 = vmax.f32 %v337, 0.0
      %v342 = vmax.f32 %v338, 0.0
      %v343 = vmax.f32 %v339, 0.0
      %348 = vrot.lane.b32.xlu0 %v340, 13
      %v349 = vpop.permute.xlu0 %348
      %350 = vrot.lane.b32.xlu0 %v341, 13
      %v351 = vpop.permute.xlu0 %350
      %352 = vrot.lane.b32.xlu0 %v342, 13
      %v353 = vpop.permute.xlu0 %352
      %354 = vrot.lane.b32.xlu0 %v343, 13
      %v355 = vpop.permute.xlu0 %354
      %vm360 = vcmask 105472
      %v361 = vsel %vm360, 0.0, %v349
      %v362 = vsel %vm360, 0.0, %v351
      %v363 = vsel %vm360, 0.0, %v353
      %v364 = vsel %vm360, 0.0, %v355
      %vm365 = vcmask 629760
      %v366 = vsel %vm365, %v361, 0.0
      %v367 = vsel %vm365, %v362, 0.0
      %v368 = vsel %vm365, %v363, 0.0
      %v369 = vsel %vm365, %v364, 0.0
      %v370 = vpack.c.bf16 %v367, %v366
      %v371 = vpack.c.bf16 %v369, %v368
      %374 = vrot.lane.b32.xlu0 %v370, 127
      %v375 = vpop.permute.xlu0 %374
      %376 = vrot.lane.b32.xlu0 %v371, 127
      %v377 = vpop.permute.xlu0 %376
      %380 = vrot.lane.b32.xlu0 %v370, 126
      %v381 = vpop.permute.xlu0 %380
      %382 = vrot.lane.b32.xlu0 %v371, 126
      %v383 = vpop.permute.xlu0 %382
      %386 = vrot.lane.b32.xlu0 %v370, 125
      %v387 = vpop.permute.xlu0 %386
      %388 = vrot.lane.b32.xlu0 %v371, 125
      %v389 = vpop.permute.xlu0 %388
      %392 = vrot.lane.b32.xlu0 %v370, 124
      %v393 = vpop.permute.xlu0 %392
      %394 = vrot.lane.b32.xlu0 %v371, 124
      %v395 = vpop.permute.xlu0 %394
      %398 = vrot.lane.b32.xlu0 %v370, 123
      %v399 = vpop.permute.xlu0 %398
      %400 = vrot.lane.b32.xlu0 %v371, 123
      %v401 = vpop.permute.xlu0 %400
      %404 = vrot.lane.b32.xlu0 %v370, 122
      %v405 = vpop.permute.xlu0 %404
      %406 = vrot.lane.b32.xlu0 %v371, 122
      %v407 = vpop.permute.xlu0 %406
      %410 = vrot.lane.b32.xlu0 %v370, 121
      %v411 = vpop.permute.xlu0 %410
      %412 = vrot.lane.b32.xlu0 %v371, 121
      %v413 = vpop.permute.xlu0 %412
      %416 = vrot.lane.b32.xlu0 %v370, 120
      %v417 = vpop.permute.xlu0 %416
      %418 = vrot.lane.b32.xlu0 %v371, 120
      %v419 = vpop.permute.xlu0 %418
      %422 = vrot.lane.b32.xlu0 %v370, 119
      %v423 = vpop.permute.xlu0 %422
      %424 = vrot.lane.b32.xlu0 %v371, 119
      %v425 = vpop.permute.xlu0 %424
      %428 = vrot.lane.b32.xlu0 %v370, 118
      %v429 = vpop.permute.xlu0 %428
      %430 = vrot.lane.b32.xlu0 %v371, 118
      %v431 = vpop.permute.xlu0 %430
      %434 = vrot.lane.b32.xlu0 %v370, 117
      %v435 = vpop.permute.xlu0 %434
      %436 = vrot.lane.b32.xlu0 %v371, 117
      %v437 = vpop.permute.xlu0 %436
      %440 = vrot.lane.b32.xlu0 %v370, 116
      %v441 = vpop.permute.xlu0 %440
      %442 = vrot.lane.b32.xlu0 %v371, 116
      %v443 = vpop.permute.xlu0 %442
      %446 = vrot.lane.b32.xlu0 %v370, 115
      %v447 = vpop.permute.xlu0 %446
      %448 = vrot.lane.b32.xlu0 %v371, 115
      %v449 = vpop.permute.xlu0 %448
      %452 = vrot.lane.b32.xlu0 %v370, 114
      %v453 = vpop.permute.xlu0 %452
      %454 = vrot.lane.b32.xlu0 %v371, 114
      %v455 = vpop.permute.xlu0 %454
      %458 = vrot.lane.b32.xlu0 %v370, 113
      %v459 = vpop.permute.xlu0 %458
      %460 = vrot.lane.b32.xlu0 %v371, 113
      %v461 = vpop.permute.xlu0 %460
      %464 = vrot.lane.b32.xlu0 %v370, 112
      %v465 = vpop.permute.xlu0 %464
      %466 = vrot.lane.b32.xlu0 %v371, 112
      %v467 = vpop.permute.xlu0 %466
      %468 = vrot.lane.b32.xlu0 %v375, 112
      %v469 = vpop.permute.xlu0 %468
      %470 = vrot.lane.b32.xlu0 %v377, 112
      %v471 = vpop.permute.xlu0 %470
      %472 = vrot.lane.b32.xlu0 %v381, 112
      %v473 = vpop.permute.xlu0 %472
      %474 = vrot.lane.b32.xlu0 %v383, 112
      %v475 = vpop.permute.xlu0 %474
      %476 = vrot.lane.b32.xlu0 %v387, 112
      %v477 = vpop.permute.xlu0 %476
      %478 = vrot.lane.b32.xlu0 %v389, 112
      %v479 = vpop.permute.xlu0 %478
      %480 = vrot.lane.b32.xlu0 %v393, 112
      %v481 = vpop.permute.xlu0 %480
      %482 = vrot.lane.b32.xlu0 %v395, 112
      %v483 = vpop.permute.xlu0 %482
      %484 = vrot.lane.b32.xlu0 %v399, 112
      %v485 = vpop.permute.xlu0 %484
      %486 = vrot.lane.b32.xlu0 %v401, 112
      %v487 = vpop.permute.xlu0 %486
      %488 = vrot.lane.b32.xlu0 %v405, 112
      %v489 = vpop.permute.xlu0 %488
      %490 = vrot.lane.b32.xlu0 %v407, 112
      %v491 = vpop.permute.xlu0 %490
      %492 = vrot.lane.b32.xlu0 %v411, 112
      %v493 = vpop.permute.xlu0 %492
      %494 = vrot.lane.b32.xlu0 %v413, 112
      %v495 = vpop.permute.xlu0 %494
      %496 = vrot.lane.b32.xlu0 %v417, 112
      %v497 = vpop.permute.xlu0 %496
      %498 = vrot.lane.b32.xlu0 %v419, 112
      %v499 = vpop.permute.xlu0 %498
      %500 = vrot.lane.b32.xlu0 %v423, 112
      %v501 = vpop.permute.xlu0 %500
      %502 = vrot.lane.b32.xlu0 %v425, 112
      %v503 = vpop.permute.xlu0 %502
      %504 = vrot.lane.b32.xlu0 %v429, 112
      %v505 = vpop.permute.xlu0 %504
      %506 = vrot.lane.b32.xlu0 %v431, 112
      %v507 = vpop.permute.xlu0 %506
      %v530 = vld [vmem:[%s1] sm:$0xff]
      %v531 = vld [vmem:[%s1 + $0x8] sm:$0xff]
      %v532 = vld [vmem:[%s1 + $0x10] sm:$0xff]
      %v533 = vld [vmem:[%s1 + $0x18] sm:$0xf]
      %v534 = vld [vmem:[%s1 + $0x1c] sm:$0xff]
      %v535 = vld [vmem:[%s1 + $0x24] sm:$0xff]
      %v536 = vld [vmem:[%s1 + $0x2c] sm:$0xff]
      %v537 = vld [vmem:[%s1 + $0x34] sm:$0xf]
      %v538 = vld [vmem:[%s1 + $0x38] sm:$0xff]
      %v539 = vld [vmem:[%s1 + $0x40] sm:$0xff]
      %v540 = vld [vmem:[%s1 + $0x48] sm:$0xff]
      %v541 = vld [vmem:[%s1 + $0x50] sm:$0xf]
      %v542 = vld [vmem:[%s1 + $0x54] sm:$0xff]
      %v543 = vld [vmem:[%s1 + $0x5c] sm:$0xff]
      %v544 = vld [vmem:[%s1 + $0x64] sm:$0xff]
      %v545 = vld [vmem:[%s1 + $0x6c] sm:$0xf]
      %v562 = vunpack.c.l.b16 %v530
      %v563 = vunpack.c.h.b16 %v530
      %v564 = vunpack.c.l.b16 %v531
      %v565 = vunpack.c.h.b16 %v531
      %v566 = vunpack.c.l.b16 %v532
      %v567 = vunpack.c.h.b16 %v532
      %v568 = vunpack.c.l.b16 %v533
      %v569 = vunpack.c.l.b16 %v534
      %v570 = vunpack.c.h.b16 %v534
      %v571 = vunpack.c.l.b16 %v535
      %v572 = vunpack.c.h.b16 %v535
      %v573 = vunpack.c.l.b16 %v536
      %v574 = vunpack.c.h.b16 %v536
      %v575 = vunpack.c.l.b16 %v537
      %v576 = vunpack.c.l.b16 %v538
      %v577 = vunpack.c.h.b16 %v538
      %v578 = vunpack.c.l.b16 %v539
      %v579 = vunpack.c.h.b16 %v539
      %v580 = vunpack.c.l.b16 %v540
      %v581 = vunpack.c.h.b16 %v540
      %v582 = vunpack.c.l.b16 %v541
      %v583 = vunpack.c.l.b16 %v542
      %v584 = vunpack.c.h.b16 %v542
      %v585 = vunpack.c.l.b16 %v543
      %v586 = vunpack.c.h.b16 %v543
      %v587 = vunpack.c.l.b16 %v544
      %v588 = vunpack.c.h.b16 %v544
      %v589 = vunpack.c.l.b16 %v545
      %v590 = vpack.c.b16 %v569, %v562
      %v591 = vpack.c.b16 %v570, %v563
      %v592 = vpack.c.b16 %v571, %v564
      %v593 = vpack.c.b16 %v572, %v565
      %v594 = vpack.c.b16 %v573, %v566
      %v595 = vpack.c.b16 %v574, %v567
      %v596 = vpack.c.b16 %v575, %v568
      %v597 = vpack.c.b16 %v583, %v576
      %v598 = vpack.c.b16 %v584, %v577
      %v599 = vpack.c.b16 %v585, %v578
      %v600 = vpack.c.b16 %v586, %v579
      %v601 = vpack.c.b16 %v587, %v580
      %v602 = vpack.c.b16 %v588, %v581
      %v603 = vpack.c.b16 %v589, %v582
      %vm616 = vcmask 785408
      %v618 = vsel %vm616, %v596, 0
      %v621 = vsel %vm616, %v603, 0
      %623 = vmatprep.subr.bf16.mxu0 0
      %624 = vmatpush1.bf16.msra.mxu0 %v389
      %625 = vmatprep.subr.bf16.mxu0 0
      %626 = vmatpush1.bf16.msra.mxu0 %v387
      %627 = vmatprep.subr.bf16.mxu0 0
      %628 = vmatpush1.bf16.msra.mxu0 %v383
      %629 = vmatprep.subr.bf16.mxu0 0
      %630 = vmatpush1.bf16.msra.mxu0 %v381
      %631 = vmatprep.subr.bf16.mxu0 0
      %632 = vmatpush1.bf16.msra.mxu0 %v377
      %633 = vmatprep.subr.bf16.mxu0 0
      %634 = vmatpush1.bf16.msra.mxu0 %v375
      %635 = vmatprep.subr.bf16.mxu0 0
      %636 = vmatpush1.bf16.msra.mxu0 %v371
      %637 = vmatprep.subr.bf16.mxu0 0
      %638 = vmatpush1.bf16.msra.mxu0 %v370
      %639 = vmatprep.subr.bf16.mxu0 0
      %640 = vmatpush2.bf16.msra.mxu0 %v413
      %641 = vmatprep.subr.bf16.mxu0 0
      %642 = vmatpush2.bf16.msra.mxu0 %v411
      %643 = vmatprep.subr.bf16.mxu0 0
      %644 = vmatpush2.bf16.msra.mxu0 %v407
      %645 = vmatprep.subr.bf16.mxu0 0
      %646 = vmatpush2.bf16.msra.mxu0 %v405
      %647 = vmatprep.subr.bf16.mxu0 0
      %648 = vmatpush2.bf16.msra.mxu0 %v401
      %649 = vmatprep.subr.bf16.mxu0 0
      %650 = vmatpush2.bf16.msra.mxu0 %v399
      %651 = vmatprep.subr.bf16.mxu0 0
      %652 = vmatpush2.bf16.msra.mxu0 %v395
      %653 = vmatprep.subr.bf16.mxu0 0
      %654 = vmatpush2.bf16.msra.mxu0 %v393
      %655 = vmatprep.mubr.bf16.mxu0 %v591
      %656 = vmatmul.mubr.bf16.gmra.mxu0 %v590
      %v657 = vpop.f32.mrf.mxu0
      %v658 = vadd.f32 0.0, %v657
      %v659 = vpop.f32.mrf.mxu0
      %v660 = vpop.f32.mrf.mxu0
      %v661 = vadd.f32 0.0, %v660
      %v662 = vpop.f32.mrf.mxu0
      %663 = vmatprep.mubr.bf16.mxu0 %v598
      %664 = vmatmul.mubr.bf16.gmra.mxu0 %v597
      %v665 = vpop.f32.mrf.mxu0
      %v666 = vadd.f32 0.0, %v665
      %v667 = vpop.f32.mrf.mxu0
      %v668 = vpop.f32.mrf.mxu0
      %v669 = vadd.f32 0.0, %v668
      %v670 = vpop.f32.mrf.mxu0
      %671 = vdwg.mxu0
      %672 = vmatprep.subr.bf16.mxu0 0
      %673 = vmatpush1.bf16.msra.mxu0 %v437
      %674 = vmatprep.subr.bf16.mxu0 0
      %675 = vmatpush1.bf16.msra.mxu0 %v435
      %676 = vmatprep.subr.bf16.mxu0 0
      %677 = vmatpush1.bf16.msra.mxu0 %v431
      %678 = vmatprep.subr.bf16.mxu0 0
      %679 = vmatpush1.bf16.msra.mxu0 %v429
      %680 = vmatprep.subr.bf16.mxu0 0
      %681 = vmatpush1.bf16.msra.mxu0 %v425
      %682 = vmatprep.subr.bf16.mxu0 0
      %683 = vmatpush1.bf16.msra.mxu0 %v423
      %684 = vmatprep.subr.bf16.mxu0 0
      %685 = vmatpush1.bf16.msra.mxu0 %v419
      %686 = vmatprep.subr.bf16.mxu0 0
      %687 = vmatpush1.bf16.msra.mxu0 %v417
      %688 = vmatprep.subr.bf16.mxu0 0
      %689 = vmatpush2.bf16.msra.mxu0 %v461
      %690 = vmatprep.subr.bf16.mxu0 0
      %691 = vmatpush2.bf16.msra.mxu0 %v459
      %692 = vmatprep.subr.bf16.mxu0 0
      %693 = vmatpush2.bf16.msra.mxu0 %v455
      %694 = vmatprep.subr.bf16.mxu0 0
      %695 = vmatpush2.bf16.msra.mxu0 %v453
      %696 = vmatprep.subr.bf16.mxu0 0
      %697 = vmatpush2.bf16.msra.mxu0 %v449
      %698 = vmatprep.subr.bf16.mxu0 0
      %699 = vmatpush2.bf16.msra.mxu0 %v447
      %700 = vmatprep.subr.bf16.mxu0 0
      %701 = vmatpush2.bf16.msra.mxu0 %v443
      %702 = vmatprep.subr.bf16.mxu0 0
      %703 = vmatpush2.bf16.msra.mxu0 %v441
      %704 = vmatprep.mubr.bf16.mxu0 %v593
      %705 = vmatmul.mubr.bf16.gmra.mxu0 %v592
      %v706 = vpop.f32.mrf.mxu0
      %v707 = vadd.f32 %v658, %v706
      %v708 = vpop.f32.mrf.mxu0
      %v709 = vpop.f32.mrf.mxu0
      %v710 = vadd.f32 %v661, %v709
      %v711 = vpop.f32.mrf.mxu0
      %712 = vmatprep.mubr.bf16.mxu0 %v600
      %713 = vmatmul.mubr.bf16.gmra.mxu0 %v599
      %v714 = vpop.f32.mrf.mxu0
      %v715 = vadd.f32 %v666, %v714
      %v716 = vpop.f32.mrf.mxu0
      %v717 = vpop.f32.mrf.mxu0
      %v718 = vadd.f32 %v669, %v717
      %v719 = vpop.f32.mrf.mxu0
      %720 = vdwg.mxu0
      %721 = vmatprep.subr.bf16.mxu0 0
      %722 = vmatpush1.bf16.msra.mxu0 %v479
      %723 = vmatprep.subr.bf16.mxu0 0
      %724 = vmatpush1.bf16.msra.mxu0 %v477
      %725 = vmatprep.subr.bf16.mxu0 0
      %726 = vmatpush1.bf16.msra.mxu0 %v475
      %727 = vmatprep.subr.bf16.mxu0 0
      %728 = vmatpush1.bf16.msra.mxu0 %v473
      %729 = vmatprep.subr.bf16.mxu0 0
      %730 = vmatpush1.bf16.msra.mxu0 %v471
      %731 = vmatprep.subr.bf16.mxu0 0
      %732 = vmatpush1.bf16.msra.mxu0 %v469
      %733 = vmatprep.subr.bf16.mxu0 0
      %734 = vmatpush1.bf16.msra.mxu0 %v467
      %735 = vmatprep.subr.bf16.mxu0 0
      %736 = vmatpush1.bf16.msra.mxu0 %v465
      %737 = vmatprep.subr.bf16.mxu0 0
      %738 = vmatpush2.bf16.msra.mxu0 %v495
      %739 = vmatprep.subr.bf16.mxu0 0
      %740 = vmatpush2.bf16.msra.mxu0 %v493
      %741 = vmatprep.subr.bf16.mxu0 0
      %742 = vmatpush2.bf16.msra.mxu0 %v491
      %743 = vmatprep.subr.bf16.mxu0 0
      %744 = vmatpush2.bf16.msra.mxu0 %v489
      %745 = vmatprep.subr.bf16.mxu0 0
      %746 = vmatpush2.bf16.msra.mxu0 %v487
      %747 = vmatprep.subr.bf16.mxu0 0
      %748 = vmatpush2.bf16.msra.mxu0 %v485
      %749 = vmatprep.subr.bf16.mxu0 0
      %750 = vmatpush2.bf16.msra.mxu0 %v483
      %751 = vmatprep.subr.bf16.mxu0 0
      %752 = vmatpush2.bf16.msra.mxu0 %v481
      %753 = vmatprep.mubr.bf16.mxu0 %v595
      %754 = vmatmul.mubr.bf16.gmra.mxu0 %v594
      %v755 = vpop.f32.mrf.mxu0
      %v756 = vadd.f32 %v707, %v755
      %v757 = vpop.f32.mrf.mxu0
      %v758 = vpop.f32.mrf.mxu0
      %v759 = vadd.f32 %v710, %v758
      %v760 = vpop.f32.mrf.mxu0
      %761 = vmatprep.mubr.bf16.mxu0 %v602
      %762 = vmatmul.mubr.bf16.gmra.mxu0 %v601
      %v763 = vpop.f32.mrf.mxu0
      %v764 = vadd.f32 %v715, %v763
      %v765 = vpop.f32.mrf.mxu0
      %v766 = vpop.f32.mrf.mxu0
      %v767 = vadd.f32 %v718, %v766
      %v768 = vpop.f32.mrf.mxu0
      %769 = vdwg.mxu0
      %770 = vmatprep.subr.bf16.mxu0 0
      %771 = vmatpush1.bf16.msra.mxu0 0
      %772 = vmatprep.subr.bf16.mxu0 0
      %773 = vmatpush1.bf16.msra.mxu0 0
      %774 = vmatprep.subr.bf16.mxu0 0
      %775 = vmatpush1.bf16.msra.mxu0 %v507
      %776 = vmatprep.subr.bf16.mxu0 0
      %777 = vmatpush1.bf16.msra.mxu0 %v505
      %778 = vmatprep.subr.bf16.mxu0 0
      %779 = vmatpush1.bf16.msra.mxu0 %v503
      %780 = vmatprep.subr.bf16.mxu0 0
      %781 = vmatpush1.bf16.msra.mxu0 %v501
      %782 = vmatprep.subr.bf16.mxu0 0
      %783 = vmatpush1.bf16.msra.mxu0 %v499
      %784 = vmatprep.subr.bf16.mxu0 0
      %785 = vmatpush1.bf16.msra.mxu0 %v497
      %786 = vmatprep.subr.bf16.mxu0 0
      %787 = vmatpush2.bf16.msra.mxu0 0
      %788 = vmatprep.subr.bf16.mxu0 0
      %789 = vmatpush2.bf16.msra.mxu0 0
      %790 = vmatprep.subr.bf16.mxu0 0
      %791 = vmatpush2.bf16.msra.mxu0 0
      %792 = vmatprep.subr.bf16.mxu0 0
      %793 = vmatpush2.bf16.msra.mxu0 0
      %794 = vmatprep.subr.bf16.mxu0 0
      %795 = vmatpush2.bf16.msra.mxu0 0
      %796 = vmatprep.subr.bf16.mxu0 0
      %797 = vmatpush2.bf16.msra.mxu0 0
      %798 = vmatprep.subr.bf16.mxu0 0
      %799 = vmatpush2.bf16.msra.mxu0 0
      %800 = vmatprep.subr.bf16.mxu0 0
      %801 = vmatpush2.bf16.msra.mxu0 0
      %802 = vmatprep.mubr.bf16.mxu0 0
      %803 = vmatmul.mubr.bf16.gmra.mxu0 %v618
      %v804 = vpop.f32.mrf.mxu0
      %v805 = vadd.f32 %v756, %v804
      %v806 = vpop.f32.mrf.mxu0
      %v807 = vpop.f32.mrf.mxu0
      %v808 = vadd.f32 %v759, %v807
      %v809 = vpop.f32.mrf.mxu0
      %810 = vmatprep.mubr.bf16.mxu0 0
      %811 = vmatmul.mubr.bf16.gmra.mxu0 %v621
      %v812 = vpop.f32.mrf.mxu0
      %v813 = vadd.f32 %v764, %v812
      %v814 = vpop.f32.mrf.mxu0
      %v815 = vpop.f32.mrf.mxu0
      %v816 = vadd.f32 %v767, %v815
      %v817 = vpop.f32.mrf.mxu0
      %818 = vdwg.mxu0
      %vm819 = vcmask 523264
      %820 = vst.msk [vmem:[%s269] sm:$0xff] %vm819, %v805
      %821 = vst.msk [vmem:[%s269 + $0x8] sm:$0xff] %vm819, %v808
      %822 = vst.msk [vmem:[%s269 + $0x10] sm:$0xff] %vm819, %v813
      %823 = vst.msk [vmem:[%s269 + $0x18] sm:$0xff] %vm819, %v816
      %v824 = vsel %vm819, %v805, 0.0
      %825 = vadd.xlane.f32.xlu0 %v824
      %v826 = vpop.xlane.xlu0 %825
      %v827 = vsel %vm819, %v808, 0.0
      %828 = vadd.xlane.f32.xlu0 %v827
      %v829 = vpop.xlane.xlu0 %828
      %v830 = vsel %vm819, %v813, 0.0
      %831 = vadd.xlane.f32.xlu0 %v830
      %v832 = vpop.xlane.xlu0 %831
      %v833 = vsel %vm819, %v816, 0.0
      %834 = vadd.xlane.f32.xlu0 %v833
      %v835 = vpop.xlane.xlu0 %834
      %v836 = vmul.f32 %v805, %v805
      %v837 = vmul.f32 %v808, %v808
      %v838 = vmul.f32 %v813, %v813
      %v839 = vmul.f32 %v816, %v816
      %v840 = vsel %vm819, %v836, 0.0
      %841 = vadd.xlane.f32.xlu0 %v840
      %v842 = vpop.xlane.xlu0 %841
      %v843 = vsel %vm819, %v837, 0.0
      %844 = vadd.xlane.f32.xlu0 %v843
      %v845 = vpop.xlane.xlu0 %844
      %v846 = vsel %vm819, %v838, 0.0
      %847 = vadd.xlane.f32.xlu0 %v846
      %v848 = vpop.xlane.xlu0 %847
      %v849 = vsel %vm819, %v839, 0.0
      %850 = vadd.xlane.f32.xlu0 %v849
      %v851 = vpop.xlane.xlu0 %850
      %vm852 = vcmask 7168
      %v853 = vsel %vm852, %v826, %v842
      %v854 = vsel %vm852, %v829, %v845
      %v855 = vsel %vm852, %v832, %v848
      %v856 = vsel %vm852, %v835, %v851
      %vm857 = vcmask 15360
      %858 = vst.msk [vmem:[%s278] sm:$0xff] %vm857, %v853
      %859 = vst.msk [vmem:[%s278 + $0x8] sm:$0xff] %vm857, %v854
      %860 = vst.msk [vmem:[%s278 + $0x10] sm:$0xff] %vm857, %v855
      %861 = vst.msk [vmem:[%s278 + $0x18] sm:$0xff] %vm857, %v856
      %p862 = scmp.lt.s32.totalorder %s21, 1
      %s863 = scalar_select %p862, %s21, 1
      %p864 = scmp.lt.s32.totalorder %s22, 0
      %s865 = scalar_select %p864, %s22, 0
      %s866 = smul.addr %s863, 4
      %s867 = sadd.s32 %s865, %s866
      %s868 = smul.addr %s867, 8
      %s869 = scalar_lea.vmem %s4, %s868
      %p870 = scmp.lt.s32.totalorder %s21, 1
      %s871 = scalar_select %p870, %s21, 1
      %p872 = scmp.lt.s32.totalorder %s22, 0
      %s873 = scalar_select %p872, %s22, 0
      %s874 = smul.addr %s873, 4
      %s875 = smul.addr %s871, 4
      %s876 = sadd.s32 %s874, %s875
      %s877 = smul.addr %s876, 8
      %s878 = scalar_lea.vmem %s5, %s877
      // Predicated region
      $region37: #{srresnet_forward.10} parent=35 // pred_check
        %p879 = pneg %p140
      $region38: #{srresnet_forward.10} parent=35 // pred_check_branch
        %881 = sbr.rel (%p879) target = $region40
      $region39: #{srresnet_forward.10} parent=35 // pred_region
        _
      $region40: #{srresnet_forward.10} parent=35 // pred_fallthru
        _
      // Predicated region
      $region41: #{srresnet_forward.10} parent=35 // pred_check
        %p882 = pneg %p168
      $region42: #{srresnet_forward.10} parent=35 // pred_check_branch
        %884 = sbr.rel (%p882) target = $region44
      $region43: #{srresnet_forward.10} parent=35 // pred_region
        _
      $region44: #{srresnet_forward.10} parent=35 // pred_fallthru
        _
    $region36: #{srresnet_forward.10} parent=5 // pred_fallthru
      _
    %p885 = scmp.le.s32.totalorder 2, %s12
    // Predicated region
    $region45: #{srresnet_forward.10} parent=5 // pred_check
      %p886 = pneg %p885
    $region46: #{srresnet_forward.10} parent=5 // pred_check_branch
      %888 = sbr.rel (%p886) target = $region48
    $region47: #{srresnet_forward.10} parent=5 // pred_region
      %s889 = ssub.s32 %s12, 2
      // Predicated region
      $region49: #{srresnet_forward.10} parent=47 // pred_check
        %p890 = pneg %p146
      $region50: #{srresnet_forward.10} parent=47 // pred_check_branch
        %892 = sbr.rel (%p890) target = $region52
      $region51: #{srresnet_forward.10} parent=47 // pred_region
        %p893 = scmp.lt.s32.totalorder %s23, 1
        %s894 = scalar_select %p893, %s23, 1
        %p895 = scmp.lt.s32.totalorder %s24, 0
        %s896 = scalar_select %p895, %s24, 0
        %s897 = smul.addr %s894, 4
        %s898 = sadd.s32 %s896, %s897
        %s899 = smul.addr %s898, 8
        %s900 = scalar_lea.vmem %s4, %s899
      $region52: #{srresnet_forward.10} parent=47 // pred_fallthru
        _
      // Predicated region
      $region53: #{srresnet_forward.10} parent=47 // pred_check
        %p901 = pneg %p174
      $region54: #{srresnet_forward.10} parent=47 // pred_check_branch
        %903 = sbr.rel (%p901) target = $region56
      $region55: #{srresnet_forward.10} parent=47 // pred_region
        %p904 = scmp.lt.s32.totalorder %s23, 1
        %s905 = scalar_select %p904, %s23, 1
        %p906 = scmp.lt.s32.totalorder %s24, 0
        %s907 = scalar_select %p906, %s24, 0
        %s908 = smul.addr %s907, 4
        %s909 = smul.addr %s905, 4
        %s910 = sadd.s32 %s908, %s909
        %s911 = smul.addr %s910, 8
        %s912 = scalar_lea.vmem %s5, %s911
      $region56: #{srresnet_forward.10} parent=47 // pred_fallthru
        _
    $region48: #{srresnet_forward.10} parent=5 // pred_fallthru
      _
  $region6: #{srresnet_forward.10} parent=0 // loop_footer
    %s16 = sadd.s32 1, %s12
  $region7: #{srresnet_forward.10} parent=0 // loop_footer_branch
    %11 = sbr.rel target = $region3
  $region8: #{srresnet_forward.10} parent=0 // loop_exit
    _

// kernel: srresnet_forward.11
$region0: #{srresnet_forward.11}
  #allocation0 [shape = 'u32[]', space=smem, size = 0x4, offset = 0x4, fixed_abs, tag = 'smem constant byte address 0x4 - core index']
  #allocation1 [shape = 'u32[144,128]{1,0:T(1,128)}', space=vmem, size = 0x12000, scoped, tag = 'internal scratch']
  %s0 = inlined_call_operand.vmem [shape: f32[2,32,64], index: 0, kind: input, shape index: {}]
  %s1 = inlined_call_operand.vmem [shape: f32[2,32,64], index: 1, kind: input, shape index: {}]
  %s2 = inlined_call_operand.vmem [shape: bf16[32,864], index: 2, kind: input, shape index: {}]
  %s3 = inlined_call_operand.vmem [shape: f32[32,1], index: 3, kind: input, shape index: {}]
  %s4 = inlined_call_operand.vmem [shape: f32[32,1], index: 4, kind: input, shape index: {}]
  %s5 = inlined_call_operand.vmem [shape: f32[2,32,64], index: 5, kind: output, shape index: {0}]
  %s6 = inlined_call_operand.vmem [shape: f32[2,1,32,2], index: 6, kind: output, shape index: {1}]
  %s7 = inlined_call_operand.vmem [shape: f32[2,32,64], index: 7, kind: output, shape index: {2}]
  %8 = xla_tuple %s5, %s6, %s7
  %s9 = sld [smem:[#allocation0]]
  $region69: #{srresnet_forward.11} parent=0
    _
  %s11 = ssub.s32 1, %s9
  %s12 = scalar_select 0, %s11, %s9
  loop: start=0, step=1, limit=4
  $region2: #{srresnet_forward.11} parent=0 // loop_pre_header
    _
  $region3: #{srresnet_forward.11} parent=0 // loop_header
    %s14 = sphi 0, %s18
    %p15 = scmp.ge.s32.totalorder %s14, 4
    %s21 = sphi 0, %s33
    %s22 = sphi 0, %s29
    %s23 = sphi 0, %s21
    %s24 = sphi 0, %s22
    %s25 = sphi 0, %s23
    %s26 = sphi 0, %s24
    %s38 = sphi 0, %s40
    %s41 = sphi 0, %s38
    %s42 = sphi 0, %s41
    %s58 = sphi 0, %s42
    %s66 = sphi 0, %s68
    %s69 = sphi 0, %s66
    %s70 = sphi 0, %s69
    %s86 = sphi 0, %s70
    %s90 = sphi 0, %s90
    %s92 = sphi 0, %s90
    %s93 = sphi 0, %s92
    %s107 = sphi 0, %s93
    %s111 = sphi 0, %s111
    %s113 = sphi 0, %s111
    %s114 = sphi 0, %s113
    %s128 = sphi 0, %s114
    %s132 = sphi 0, %s132
    %s134 = sphi 0, %s132
    %s135 = sphi 0, %s134
    %s149 = sphi 0, %s135
    %s157 = sphi 0, %s159
    %s160 = sphi 0, %s157
    %s161 = sphi 0, %s160
    %s177 = sphi 0, %s161
    %s185 = sphi 0, %s187
    %s188 = sphi 0, %s185
    %s189 = sphi 0, %s188
    %s205 = sphi 0, %s189
    %s213 = sphi 0, %s215
    %s216 = sphi 0, %s213
    %s217 = sphi 0, %s216
    %s233 = sphi 0, %s217
  $region4: #{srresnet_forward.11} parent=0 // loop_header_branch
    %17 = sbr.rel (%p15) target = $region8
  $region5: #{srresnet_forward.11} parent=0 // loop_body
    %s19 = ssub.s32 %s14, 1
    %s20 = ssub.s32 %s14, 2
    %s27 = sadd.s32 1, %s22
    %p28 = scmp.ge.s32.totalorder %s27, 1
    %s29 = scalar_select %p28, 0, %s27
    %s30 = sadd.s32 1, %s21
    %s31 = scalar_select %p28, %s30, %s21
    %p32 = scmp.ge.s32.totalorder %s31, 2
    %s33 = scalar_select %p32, 0, %s31
    %s34 = ssub.s32 %s21, %s33
    %s35 = ssub.s32 %s22, %s29
    %s36 = sor.u32 %s34, %s35
    %p37 = scmp.eq.s32.totalorder %s36, 0
    %s39 = sadd.s32 %s38, 1
    %s40 = scalar_select %p37, %s38, %s39
    %p43 = pneg %p37
    %p44 = scmp.eq.s32.totalorder %s14, 1
    %p45 = por %p43, %p44
    %p46 = scmp.ne.s32.totalorder %s38, %s41
    %p47 = scmp.eq.s32.totalorder %s14, 0
    %p48 = por %p46, %p47
    %p49 = scmp.ne.s32.totalorder %s38, %s41
    %p50 = scmp.eq.s32.totalorder %s19, 1
    %p51 = por %p49, %p50
    %p52 = scmp.ne.s32.totalorder %s41, %s42
    %p53 = scmp.eq.s32.totalorder %s19, 0
    %p54 = por %p52, %p53
    %p55 = scmp.ne.s32.totalorder %s41, %s42
    %p56 = scmp.eq.s32.totalorder %s20, 1
    %p57 = por %p55, %p56
    %p59 = scmp.ne.s32.totalorder %s42, %s58
    %p60 = scmp.eq.s32.totalorder %s20, 0
    %p61 = por %p59, %p60
    %s62 = ssub.s32 %s21, %s33
    %s63 = ssub.s32 %s22, %s29
    %s64 = sor.u32 %s62, %s63
    %p65 = scmp.eq.s32.totalorder %s64, 0
    %s67 = sadd.s32 %s66, 1
    %s68 = scalar_select %p65, %s66, %s67
    %p71 = pneg %p65
    %p72 = scmp.eq.s32.totalorder %s14, 1
    %p73 = por %p71, %p72
    %p74 = scmp.ne.s32.totalorder %s66, %s69
    %p75 = scmp.eq.s32.totalorder %s14, 0
    %p76 = por %p74, %p75
    %p77 = scmp.ne.s32.totalorder %s66, %s69
    %p78 = scmp.eq.s32.totalorder %s19, 1
    %p79 = por %p77, %p78
    %p80 = scmp.ne.s32.totalorder %s69, %s70
    %p81 = scmp.eq.s32.totalorder %s19, 0
    %p82 = por %p80, %p81
    %p83 = scmp.ne.s32.totalorder %s69, %s70
    %p84 = scmp.eq.s32.totalorder %s20, 1
    %p85 = por %p83, %p84
    %p87 = scmp.ne.s32.totalorder %s70, %s86
    %p88 = scmp.eq.s32.totalorder %s20, 0
    %p89 = por %p87, %p88
    %s91 = sadd.s32 %s90, 1
    %p94 = scmp.eq.s32.totalorder %s14, 1
    %p95 = scmp.ne.s32.totalorder %s90, %s92
    %p96 = scmp.eq.s32.totalorder %s14, 0
    %p97 = por %p95, %p96
    %p98 = scmp.ne.s32.totalorder %s90, %s92
    %p99 = scmp.eq.s32.totalorder %s19, 1
    %p100 = por %p98, %p99
    %p101 = scmp.ne.s32.totalorder %s92, %s93
    %p102 = scmp.eq.s32.totalorder %s19, 0
    %p103 = por %p101, %p102
    %p104 = scmp.ne.s32.totalorder %s92, %s93
    %p105 = scmp.eq.s32.totalorder %s20, 1
    %p106 = por %p104, %p105
    %p108 = scmp.ne.s32.totalorder %s93, %s107
    %p109 = scmp.eq.s32.totalorder %s20, 0
    %p110 = por %p108, %p109
    %s112 = sadd.s32 %s111, 1
    %p115 = scmp.eq.s32.totalorder %s14, 1
    %p116 = scmp.ne.s32.totalorder %s111, %s113
    %p117 = scmp.eq.s32.totalorder %s14, 0
    %p118 = por %p116, %p117
    %p119 = scmp.ne.s32.totalorder %s111, %s113
    %p120 = scmp.eq.s32.totalorder %s19, 1
    %p121 = por %p119, %p120
    %p122 = scmp.ne.s32.totalorder %s113, %s114
    %p123 = scmp.eq.s32.totalorder %s19, 0
    %p124 = por %p122, %p123
    %p125 = scmp.ne.s32.totalorder %s113, %s114
    %p126 = scmp.eq.s32.totalorder %s20, 1
    %p127 = por %p125, %p126
    %p129 = scmp.ne.s32.totalorder %s114, %s128
    %p130 = scmp.eq.s32.totalorder %s20, 0
    %p131 = por %p129, %p130
    %s133 = sadd.s32 %s132, 1
    %p136 = scmp.eq.s32.totalorder %s14, 1
    %p137 = scmp.ne.s32.totalorder %s132, %s134
    %p138 = scmp.eq.s32.totalorder %s14, 0
    %p139 = por %p137, %p138
    %p140 = scmp.ne.s32.totalorder %s132, %s134
    %p141 = scmp.eq.s32.totalorder %s19, 1
    %p142 = por %p140, %p141
    %p143 = scmp.ne.s32.totalorder %s134, %s135
    %p144 = scmp.eq.s32.totalorder %s19, 0
    %p145 = por %p143, %p144
    %p146 = scmp.ne.s32.totalorder %s134, %s135
    %p147 = scmp.eq.s32.totalorder %s20, 1
    %p148 = por %p146, %p147
    %p150 = scmp.ne.s32.totalorder %s135, %s149
    %p151 = scmp.eq.s32.totalorder %s20, 0
    %p152 = por %p150, %p151
    %s153 = ssub.s32 %s21, %s33
    %s154 = ssub.s32 %s22, %s29
    %s155 = sor.u32 %s153, %s154
    %p156 = scmp.eq.s32.totalorder %s155, 0
    %s158 = sadd.s32 %s157, 1
    %s159 = scalar_select %p156, %s157, %s158
    %p162 = pneg %p156
    %p163 = scmp.eq.s32.totalorder %s14, 1
    %p164 = por %p162, %p163
    %p165 = scmp.ne.s32.totalorder %s157, %s160
    %p166 = scmp.eq.s32.totalorder %s14, 0
    %p167 = por %p165, %p166
    %p168 = scmp.ne.s32.totalorder %s157, %s160
    %p169 = scmp.eq.s32.totalorder %s19, 1
    %p170 = por %p168, %p169
    %p171 = scmp.ne.s32.totalorder %s160, %s161
    %p172 = scmp.eq.s32.totalorder %s19, 0
    %p173 = por %p171, %p172
    %p174 = scmp.ne.s32.totalorder %s160, %s161
    %p175 = scmp.eq.s32.totalorder %s20, 1
    %p176 = por %p174, %p175
    %p178 = scmp.ne.s32.totalorder %s161, %s177
    %p179 = scmp.eq.s32.totalorder %s20, 0
    %p180 = por %p178, %p179
    %s181 = ssub.s32 %s21, %s33
    %s182 = ssub.s32 %s22, %s29
    %s183 = sor.u32 %s181, %s182
    %p184 = scmp.eq.s32.totalorder %s183, 0
    %s186 = sadd.s32 %s185, 1
    %s187 = scalar_select %p184, %s185, %s186
    %p190 = pneg %p184
    %p191 = scmp.eq.s32.totalorder %s14, 1
    %p192 = por %p190, %p191
    %p193 = scmp.ne.s32.totalorder %s185, %s188
    %p194 = scmp.eq.s32.totalorder %s14, 0
    %p195 = por %p193, %p194
    %p196 = scmp.ne.s32.totalorder %s185, %s188
    %p197 = scmp.eq.s32.totalorder %s19, 1
    %p198 = por %p196, %p197
    %p199 = scmp.ne.s32.totalorder %s188, %s189
    %p200 = scmp.eq.s32.totalorder %s19, 0
    %p201 = por %p199, %p200
    %p202 = scmp.ne.s32.totalorder %s188, %s189
    %p203 = scmp.eq.s32.totalorder %s20, 1
    %p204 = por %p202, %p203
    %p206 = scmp.ne.s32.totalorder %s189, %s205
    %p207 = scmp.eq.s32.totalorder %s20, 0
    %p208 = por %p206, %p207
    %s209 = ssub.s32 %s21, %s33
    %s210 = ssub.s32 %s22, %s29
    %s211 = sor.u32 %s209, %s210
    %p212 = scmp.eq.s32.totalorder %s211, 0
    %s214 = sadd.s32 %s213, 1
    %s215 = scalar_select %p212, %s213, %s214
    %p218 = pneg %p212
    %p219 = scmp.eq.s32.totalorder %s14, 1
    %p220 = por %p218, %p219
    %p221 = scmp.ne.s32.totalorder %s213, %s216
    %p222 = scmp.eq.s32.totalorder %s14, 0
    %p223 = por %p221, %p222
    %p224 = scmp.ne.s32.totalorder %s213, %s216
    %p225 = scmp.eq.s32.totalorder %s19, 1
    %p226 = por %p224, %p225
    %p227 = scmp.ne.s32.totalorder %s216, %s217
    %p228 = scmp.eq.s32.totalorder %s19, 0
    %p229 = por %p227, %p228
    %p230 = scmp.ne.s32.totalorder %s216, %s217
    %p231 = scmp.eq.s32.totalorder %s20, 1
    %p232 = por %p230, %p231
    %p234 = scmp.ne.s32.totalorder %s217, %s233
    %p235 = scmp.eq.s32.totalorder %s20, 0
    %p236 = por %p234, %p235
    %p237 = scmp.le.s32.totalorder 1, %s14
    %p238 = scmp.lt.s32.totalorder %s14, 3
    %p239 = pnand %p237, %p238
    %p240 = pneg %p239
    // Predicated region
    $region9: #{srresnet_forward.11} parent=5 // pred_check
      _
    $region10: #{srresnet_forward.11} parent=5 // pred_check_branch
      %242 = sbr.rel (%p239) target = $region12
    $region11: #{srresnet_forward.11} parent=5 // pred_region
      %s243 = ssub.s32 %s14, 1
      // Predicated region
      $region13: #{srresnet_forward.11} parent=11 // pred_check
        %p244 = pneg %p103
      $region14: #{srresnet_forward.11} parent=11 // pred_check_branch
        %246 = sbr.rel (%p244) target = $region16
      $region15: #{srresnet_forward.11} parent=11 // pred_region
        _
      $region16: #{srresnet_forward.11} parent=11 // pred_fallthru
        _
      // Predicated region
      $region17: #{srresnet_forward.11} parent=11 // pred_check
        %p247 = pneg %p124
      $region18: #{srresnet_forward.11} parent=11 // pred_check_branch
        %249 = sbr.rel (%p247) target = $region20
      $region19: #{srresnet_forward.11} parent=11 // pred_region
        _
      $region20: #{srresnet_forward.11} parent=11 // pred_fallthru
        _
      // Predicated region
      $region21: #{srresnet_forward.11} parent=11 // pred_check
        %p250 = pneg %p145
      $region22: #{srresnet_forward.11} parent=11 // pred_check_branch
        %252 = sbr.rel (%p250) target = $region24
      $region23: #{srresnet_forward.11} parent=11 // pred_region
        _
      $region24: #{srresnet_forward.11} parent=11 // pred_fallthru
        _
    $region12: #{srresnet_forward.11} parent=5 // pred_fallthru
      _
    %p253 = scmp.lt.s32.totalorder %s14, 2
    // Predicated region
    $region25: #{srresnet_forward.11} parent=5 // pred_check
      %p254 = pneg %p253
    $region26: #{srresnet_forward.11} parent=5 // pred_check_branch
      %256 = sbr.rel (%p254) target = $region28
    $region27: #{srresnet_forward.11} parent=5 // pred_region
      // Predicated region
      $region29: #{srresnet_forward.11} parent=27 // pred_check
        %p257 = pneg %p48
      $region30: #{srresnet_forward.11} parent=27 // pred_check_branch
        %259 = sbr.rel (%p257) target = $region32
      $region31: #{srresnet_forward.11} parent=27 // pred_region
        %p260 = scmp.lt.s32.totalorder %s21, 1
        %s261 = scalar_select %p260, %s21, 1
        %p262 = scmp.lt.s32.totalorder %s22, 0
        %s263 = scalar_select %p262, %s22, 0
        %s264 = smul.addr %s261, 4
        %s265 = sadd.s32 %s263, %s264
        %s266 = smul.addr %s265, 8
        %s267 = scalar_lea.vmem %s0, %s266
      $region32: #{srresnet_forward.11} parent=27 // pred_fallthru
        _
      // Predicated region
      $region33: #{srresnet_forward.11} parent=27 // pred_check
        %p268 = pneg %p76
      $region34: #{srresnet_forward.11} parent=27 // pred_check_branch
        %270 = sbr.rel (%p268) target = $region36
      $region35: #{srresnet_forward.11} parent=27 // pred_region
        %p271 = scmp.lt.s32.totalorder %s21, 1
        %s272 = scalar_select %p271, %s21, 1
        %p273 = scmp.lt.s32.totalorder %s22, 0
        %s274 = scalar_select %p273, %s22, 0
        %s275 = smul.addr %s272, 4
        %s276 = sadd.s32 %s274, %s275
        %s277 = smul.addr %s276, 8
        %s278 = scalar_lea.vmem %s1, %s277
      $region36: #{srresnet_forward.11} parent=27 // pred_fallthru
        _
    $region28: #{srresnet_forward.11} parent=5 // pred_fallthru
      _
    %p279 = scmp.le.s32.totalorder 1, %s14
    %p280 = scmp.lt.s32.totalorder %s14, 3
    %p281 = pnand %p279, %p280
    %p282 = pneg %p281
    // Predicated region
    $region37: #{srresnet_forward.11} parent=5 // pred_check
      _
    $region38: #{srresnet_forward.11} parent=5 // pred_check_branch
      %284 = sbr.rel (%p281) target = $region40
    $region39: #{srresnet_forward.11} parent=5 // pred_region
      %s285 = ssub.s32 %s14, 1
      %p286 = scmp.lt.s32.totalorder %s23, 1
      %s287 = scalar_select %p286, %s23, 1
      %p288 = scmp.lt.s32.totalorder %s24, 0
      %s289 = scalar_select %p288, %s24, 0
      %s290 = smul.addr %s287, 4
      %s291 = sadd.s32 %s289, %s290
      %s292 = smul.addr %s291, 8
      %s293 = scalar_lea.vmem %s0, %s292
      %p294 = pneg %p54
      %p295 = pneg %p51
      %p296 = scmp.lt.s32.totalorder %s23, 1
      %s297 = scalar_select %p296, %s23, 1
      %p298 = scmp.lt.s32.totalorder %s24, 0
      %s299 = scalar_select %p298, %s24, 0
      %s300 = smul.addr %s297, 4
      %s301 = sadd.s32 %s299, %s300
      %s302 = smul.addr %s301, 8
      %s303 = scalar_lea.vmem %s1, %s302
      %p304 = pneg %p82
      %p305 = pneg %p79
      %p306 = pneg %p103
      %p307 = pneg %p100
      %p308 = pneg %p124
      %p309 = pneg %p121
      %p310 = pneg %p145
      %p311 = pneg %p142
      %p312 = pneg %p173
      %p313 = pneg %p170
      %p314 = scmp.lt.s32.totalorder %s23, 1
      %s315 = scalar_select %p314, %s23, 1
      %p316 = scmp.lt.s32.totalorder %s24, 0
      %s317 = scalar_select %p316, %s24, 0
      %s318 = smul.addr %s315, 4
      %s319 = sadd.s32 %s317, %s318
      %s320 = smul.addr %s319, 8
      %s321 = scalar_lea.vmem %s5, %s320
      %p322 = pneg %p201
      %p323 = pneg %p198
      %p324 = scmp.lt.s32.totalorder %s23, 1
      %s325 = scalar_select %p324, %s23, 1
      %p326 = scmp.lt.s32.totalorder %s24, 0
      %s327 = scalar_select %p326, %s24, 0
      %s328 = smul.addr %s327, 4
      %s329 = smul.addr %s325, 4
      %s330 = sadd.s32 %s328, %s329
      %s331 = smul.addr %s330, 8
      %s332 = scalar_lea.vmem %s6, %s331
      %p333 = pneg %p229
      %p334 = pneg %p226
      %p335 = scmp.lt.s32.totalorder %s23, 1
      %s336 = scalar_select %p335, %s23, 1
      %p337 = scmp.lt.s32.totalorder %s24, 0
      %s338 = scalar_select %p337, %s24, 0
      %s339 = smul.addr %s336, 4
      %s340 = sadd.s32 %s338, %s339
      %s341 = smul.addr %s340, 8
      %s342 = scalar_lea.vmem %s7, %s341
      %p343 = scmp.lt.s32.totalorder %s23, 1
      %s344 = scalar_select %p343, %s23, 1
      %p345 = scmp.lt.s32.totalorder %s24, 0
      %s346 = scalar_select %p345, %s24, 0
      %s347 = smul.addr %s344, 4
      %s348 = sadd.s32 %s346, %s347
      %s349 = smul.addr %s348, 8
      %s350 = scalar_lea.vmem %s0, %s349
      %p351 = scmp.lt.s32.totalorder %s23, 1
      %s352 = scalar_select %p351, %s23, 1
      %p353 = scmp.lt.s32.totalorder %s24, 0
      %s354 = scalar_select %p353, %s24, 0
      %s355 = smul.addr %s352, 4
      %s356 = sadd.s32 %s354, %s355
      %s357 = smul.addr %s356, 8
      %s358 = scalar_lea.vmem %s1, %s357
      %p359 = scmp.lt.s32.totalorder %s23, 1
      %s360 = scalar_select %p359, %s23, 1
      %p361 = scmp.lt.s32.totalorder %s24, 0
      %s362 = scalar_select %p361, %s24, 0
      %s363 = smul.addr %s360, 4
      %s364 = sadd.s32 %s362, %s363
      %s365 = smul.addr %s364, 8
      %s366 = scalar_lea.vmem %s5, %s365
      %p367 = scmp.lt.s32.totalorder %s23, 1
      %s368 = scalar_select %p367, %s23, 1
      %p369 = scmp.lt.s32.totalorder %s24, 0
      %s370 = scalar_select %p369, %s24, 0
      %s371 = smul.addr %s370, 4
      %s372 = smul.addr %s368, 4
      %s373 = sadd.s32 %s371, %s372
      %s374 = smul.addr %s373, 8
      %s375 = scalar_lea.vmem %s6, %s374
      %p376 = scmp.lt.s32.totalorder %s23, 1
      %s377 = scalar_select %p376, %s23, 1
      %p378 = scmp.lt.s32.totalorder %s24, 0
      %s379 = scalar_select %p378, %s24, 0
      %s380 = smul.addr %s377, 4
      %s381 = sadd.s32 %s379, %s380
      %s382 = smul.addr %s381, 8
      %s383 = scalar_lea.vmem %s7, %s382
      %v385 = vld [vmem:[%s350] sm:$0xff]
      %v386 = vld [vmem:[%s350 + $0x8] sm:$0xff]
      %v387 = vld [vmem:[%s350 + $0x10] sm:$0xff]
      %v388 = vld [vmem:[%s350 + $0x18] sm:$0xff]
      %v389 = vld [vmem:[%s358] sm:$0xff]
      %v390 = vld [vmem:[%s358 + $0x8] sm:$0xff]
      %v391 = vld [vmem:[%s358 + $0x10] sm:$0xff]
      %v392 = vld [vmem:[%s358 + $0x18] sm:$0xff]
      %v393 = vld [vmem:[%s3] sm:$0xff]
      %v394 = vld [vmem:[%s3 + $0x8] sm:$0xff]
      %v395 = vld [vmem:[%s3 + $0x10] sm:$0xff]
      %v396 = vld [vmem:[%s3 + $0x18] sm:$0xff]
      %398 = vset.pattern.permute.xlu0 0
      %399 = vperm.xlu0 %398, %v393
      %v400 = vpop.permute.xlu0 %399
      %403 = vset.pattern.permute.xlu0 0
      %404 = vperm.xlu0 %403, %v394
      %v405 = vpop.permute.xlu0 %404
      %408 = vset.pattern.permute.xlu0 0
      %409 = vperm.xlu0 %408, %v395
      %v410 = vpop.permute.xlu0 %409
      %413 = vset.pattern.permute.xlu0 0
      %414 = vperm.xlu0 %413, %v396
      %v415 = vpop.permute.xlu0 %414
      %v417 = vmul.f32 %v385, %v400
      %v418 = vmul.f32 %v386, %v405
      %v419 = vmul.f32 %v387, %v410
      %v420 = vmul.f32 %v388, %v415
      %v421 = vld [vmem:[%s4] sm:$0xff]
      %v422 = vld [vmem:[%s4 + $0x8] sm:$0xff]
      %v423 = vld [vmem:[%s4 + $0x10] sm:$0xff]
      %v424 = vld [vmem:[%s4 + $0x18] sm:$0xff]
      %426 = vset.pattern.permute.xlu0 0
      %427 = vperm.xlu0 %426, %v421
      %v428 = vpop.permute.xlu0 %427
      %431 = vset.pattern.permute.xlu0 0
      %432 = vperm.xlu0 %431, %v422
      %v433 = vpop.permute.xlu0 %432
      %436 = vset.pattern.permute.xlu0 0
      %437 = vperm.xlu0 %436, %v423
      %v438 = vpop.permute.xlu0 %437
      %441 = vset.pattern.permute.xlu0 0
      %442 = vperm.xlu0 %441, %v424
      %v443 = vpop.permute.xlu0 %442
      %v445 = vadd.f32 %v417, %v428
      %v446 = vadd.f32 %v418, %v433
      %v447 = vadd.f32 %v419, %v438
      %v448 = vadd.f32 %v420, %v443
      %v449 = vadd.f32 %v445, %v389
      %v450 = vadd.f32 %v446, %v390
      %v451 = vadd.f32 %v447, %v391
      %v452 = vadd.f32 %v448, %v392
      %vm453 = vcmask 523264
      %454 = vst.msk [vmem:[%s383] sm:$0xff] %vm453, %v449
      %455 = vst.msk [vmem:[%s383 + $0x8] sm:$0xff] %vm453, %v450
      %456 = vst.msk [vmem:[%s383 + $0x10] sm:$0xff] %vm453, %v451
      %457 = vst.msk [vmem:[%s383 + $0x18] sm:$0xff] %vm453, %v452
      %462 = vrot.lane.b32.xlu0 %v449, 13
      %v463 = vpop.permute.xlu0 %462
      %464 = vrot.lane.b32.xlu0 %v450, 13
      %v465 = vpop.permute.xlu0 %464
      %466 = vrot.lane.b32.xlu0 %v451, 13
      %v467 = vpop.permute.xlu0 %466
      %468 = vrot.lane.b32.xlu0 %v452, 13
      %v469 = vpop.permute.xlu0 %468
      %vm474 = vcmask 105472
      %v475 = vsel %vm474, 0.0, %v463
      %v476 = vsel %vm474, 0.0, %v465
      %v477 = vsel %vm474, 0.0, %v467
      %v478 = vsel %vm474, 0.0, %v469
      %vm479 = vcmask 629760
      %v480 = vsel %vm479, %v475, 0.0
      %v481 = vsel %vm479, %v476, 0.0
      %v482 = vsel %vm479, %v477, 0.0
      %v483 = vsel %vm479, %v478, 0.0
      %v484 = vpack.c.bf16 %v481, %v480
      %v485 = vpack.c.bf16 %v483, %v482
      %488 = vrot.lane.b32.xlu0 %v484, 127
      %v489 = vpop.permute.xlu0 %488
      %490 = vrot.lane.b32.xlu0 %v485, 127
      %v491 = vpop.permute.xlu0 %490
      %494 = vrot.lane.b32.xlu0 %v484, 126
      %v495 = vpop.permute.xlu0 %494
      %496 = vrot.lane.b32.xlu0 %v485, 126
      %v497 = vpop.permute.xlu0 %496
      %500 = vrot.lane.b32.xlu0 %v484, 125
      %v501 = vpop.permute.xlu0 %500
      %502 = vrot.lane.b32.xlu0 %v485, 125
      %v503 = vpop.permute.xlu0 %502
      %506 = vrot.lane.b32.xlu0 %v484, 124
      %v507 = vpop.permute.xlu0 %506
      %508 = vrot.lane.b32.xlu0 %v485, 124
      %v509 = vpop.permute.xlu0 %508
      %512 = vrot.lane.b32.xlu0 %v484, 123
      %v513 = vpop.permute.xlu0 %512
      %514 = vrot.lane.b32.xlu0 %v485, 123
      %v515 = vpop.permute.xlu0 %514
      %518 = vrot.lane.b32.xlu0 %v484, 122
      %v519 = vpop.permute.xlu0 %518
      %520 = vrot.lane.b32.xlu0 %v485, 122
      %v521 = vpop.permute.xlu0 %520
      %524 = vrot.lane.b32.xlu0 %v484, 121
      %v525 = vpop.permute.xlu0 %524
      %526 = vrot.lane.b32.xlu0 %v485, 121
      %v527 = vpop.permute.xlu0 %526
      %530 = vrot.lane.b32.xlu0 %v484, 120
      %v531 = vpop.permute.xlu0 %530
      %532 = vrot.lane.b32.xlu0 %v485, 120
      %v533 = vpop.permute.xlu0 %532
      %536 = vrot.lane.b32.xlu0 %v484, 119
      %v537 = vpop.permute.xlu0 %536
      %538 = vrot.lane.b32.xlu0 %v485, 119
      %v539 = vpop.permute.xlu0 %538
      %542 = vrot.lane.b32.xlu0 %v484, 118
      %v543 = vpop.permute.xlu0 %542
      %544 = vrot.lane.b32.xlu0 %v485, 118
      %v545 = vpop.permute.xlu0 %544
      %548 = vrot.lane.b32.xlu0 %v484, 117
      %v549 = vpop.permute.xlu0 %548
      %550 = vrot.lane.b32.xlu0 %v485, 117
      %v551 = vpop.permute.xlu0 %550
      %554 = vrot.lane.b32.xlu0 %v484, 116
      %v555 = vpop.permute.xlu0 %554
      %556 = vrot.lane.b32.xlu0 %v485, 116
      %v557 = vpop.permute.xlu0 %556
      %560 = vrot.lane.b32.xlu0 %v484, 115
      %v561 = vpop.permute.xlu0 %560
      %562 = vrot.lane.b32.xlu0 %v485, 115
      %v563 = vpop.permute.xlu0 %562
      %566 = vrot.lane.b32.xlu0 %v484, 114
      %v567 = vpop.permute.xlu0 %566
      %568 = vrot.lane.b32.xlu0 %v485, 114
      %v569 = vpop.permute.xlu0 %568
      %572 = vrot.lane.b32.xlu0 %v484, 113
      %v573 = vpop.permute.xlu0 %572
      %574 = vrot.lane.b32.xlu0 %v485, 113
      %v575 = vpop.permute.xlu0 %574
      %578 = vrot.lane.b32.xlu0 %v484, 112
      %v579 = vpop.permute.xlu0 %578
      %580 = vrot.lane.b32.xlu0 %v485, 112
      %v581 = vpop.permute.xlu0 %580
      %582 = vrot.lane.b32.xlu0 %v489, 112
      %v583 = vpop.permute.xlu0 %582
      %584 = vrot.lane.b32.xlu0 %v491, 112
      %v585 = vpop.permute.xlu0 %584
      %586 = vrot.lane.b32.xlu0 %v495, 112
      %v587 = vpop.permute.xlu0 %586
      %588 = vrot.lane.b32.xlu0 %v497, 112
      %v589 = vpop.permute.xlu0 %588
      %590 = vrot.lane.b32.xlu0 %v501, 112
      %v591 = vpop.permute.xlu0 %590
      %592 = vrot.lane.b32.xlu0 %v503, 112
      %v593 = vpop.permute.xlu0 %592
      %594 = vrot.lane.b32.xlu0 %v507, 112
      %v595 = vpop.permute.xlu0 %594
      %596 = vrot.lane.b32.xlu0 %v509, 112
      %v597 = vpop.permute.xlu0 %596
      %598 = vrot.lane.b32.xlu0 %v513, 112
      %v599 = vpop.permute.xlu0 %598
      %600 = vrot.lane.b32.xlu0 %v515, 112
      %v601 = vpop.permute.xlu0 %600
      %602 = vrot.lane.b32.xlu0 %v519, 112
      %v603 = vpop.permute.xlu0 %602
      %604 = vrot.lane.b32.xlu0 %v521, 112
      %v605 = vpop.permute.xlu0 %604
      %606 = vrot.lane.b32.xlu0 %v525, 112
      %v607 = vpop.permute.xlu0 %606
      %608 = vrot.lane.b32.xlu0 %v527, 112
      %v609 = vpop.permute.xlu0 %608
      %610 = vrot.lane.b32.xlu0 %v531, 112
      %v611 = vpop.permute.xlu0 %610
      %612 = vrot.lane.b32.xlu0 %v533, 112
      %v613 = vpop.permute.xlu0 %612
      %614 = vrot.lane.b32.xlu0 %v537, 112
      %v615 = vpop.permute.xlu0 %614
      %616 = vrot.lane.b32.xlu0 %v539, 112
      %v617 = vpop.permute.xlu0 %616
      %618 = vrot.lane.b32.xlu0 %v543, 112
      %v619 = vpop.permute.xlu0 %618
      %620 = vrot.lane.b32.xlu0 %v545, 112
      %v621 = vpop.permute.xlu0 %620
      %v644 = vld [vmem:[%s2] sm:$0xff]
      %v645 = vld [vmem:[%s2 + $0x8] sm:$0xff]
      %v646 = vld [vmem:[%s2 + $0x10] sm:$0xff]
      %v647 = vld [vmem:[%s2 + $0x18] sm:$0xf]
      %v648 = vld [vmem:[%s2 + $0x1c] sm:$0xff]
      %v649 = vld [vmem:[%s2 + $0x24] sm:$0xff]
      %v650 = vld [vmem:[%s2 + $0x2c] sm:$0xff]
      %v651 = vld [vmem:[%s2 + $0x34] sm:$0xf]
      %v652 = vld [vmem:[%s2 + $0x38] sm:$0xff]
      %v653 = vld [vmem:[%s2 + $0x40] sm:$0xff]
      %v654 = vld [vmem:[%s2 + $0x48] sm:$0xff]
      %v655 = vld [vmem:[%s2 + $0x50] sm:$0xf]
      %v656 = vld [vmem:[%s2 + $0x54] sm:$0xff]
      %v657 = vld [vmem:[%s2 + $0x5c] sm:$0xff]
      %v658 = vld [vmem:[%s2 + $0x64] sm:$0xff]
      %v659 = vld [vmem:[%s2 + $0x6c] sm:$0xf]
      %v676 = vunpack.c.l.b16 %v644
      %v677 = vunpack.c.h.b16 %v644
      %v678 = vunpack.c.l.b16 %v645
      %v679 = vunpack.c.h.b16 %v645
      %v680 = vunpack.c.l.b16 %v646
      %v681 = vunpack.c.h.b16 %v646
      %v682 = vunpack.c.l.b16 %v647
      %v683 = vunpack.c.l.b16 %v648
      %v684 = vunpack.c.h.b16 %v648
      %v685 = vunpack.c.l.b16 %v649
      %v686 = vunpack.c.h.b16 %v649
      %v687 = vunpack.c.l.b16 %v650
      %v688 = vunpack.c.h.b16 %v650
      %v689 = vunpack.c.l.b16 %v651
      %v690 = vunpack.c.l.b16 %v652
      %v691 = vunpack.c.h.b16 %v652
      %v692 = vunpack.c.l.b16 %v653
      %v693 = vunpack.c.h.b16 %v653
      %v694 = vunpack.c.l.b16 %v654
      %v695 = vunpack.c.h.b16 %v654
      %v696 = vunpack.c.l.b16 %v655
      %v697 = vunpack.c.l.b16 %v656
      %v698 = vunpack.c.h.b16 %v656
      %v699 = vunpack.c.l.b16 %v657
      %v700 = vunpack.c.h.b16 %v657
      %v701 = vunpack.c.l.b16 %v658
      %v702 = vunpack.c.h.b16 %v658
      %v703 = vunpack.c.l.b16 %v659
      %v704 = vpack.c.b16 %v683, %v676
      %v705 = vpack.c.b16 %v684, %v677
      %v706 = vpack.c.b16 %v685, %v678
      %v707 = vpack.c.b16 %v686, %v679
      %v708 = vpack.c.b16 %v687, %v680
      %v709 = vpack.c.b16 %v688, %v681
      %v710 = vpack.c.b16 %v689, %v682
      %v711 = vpack.c.b16 %v697, %v690
      %v712 = vpack.c.b16 %v698, %v691
      %v713 = vpack.c.b16 %v699, %v692
      %v714 = vpack.c.b16 %v700, %v693
      %v715 = vpack.c.b16 %v701, %v694
      %v716 = vpack.c.b16 %v702, %v695
      %v717 = vpack.c.b16 %v703, %v696
      %vm730 = vcmask 785408
      %v732 = vsel %vm730, %v710, 0
      %v735 = vsel %vm730, %v717, 0
      %737 = vmatprep.subr.bf16.mxu0 0
      %738 = vmatpush1.bf16.msra.mxu0 %v503
      %739 = vmatprep.subr.bf16.mxu0 0
      %740 = vmatpush1.bf16.msra.mxu0 %v501
      %741 = vmatprep.subr.bf16.mxu0 0
      %742 = vmatpush1.bf16.msra.mxu0 %v497
      %743 = vmatprep.subr.bf16.mxu0 0
      %744 = vmatpush1.bf16.msra.mxu0 %v495
      %745 = vmatprep.subr.bf16.mxu0 0
      %746 = vmatpush1.bf16.msra.mxu0 %v491
      %747 = vmatprep.subr.bf16.mxu0 0
      %748 = vmatpush1.bf16.msra.mxu0 %v489
      %749 = vmatprep.subr.bf16.mxu0 0
      %750 = vmatpush1.bf16.msra.mxu0 %v485
      %751 = vmatprep.subr.bf16.mxu0 0
      %752 = vmatpush1.bf16.msra.mxu0 %v484
      %753 = vmatprep.subr.bf16.mxu0 0
      %754 = vmatpush2.bf16.msra.mxu0 %v527
      %755 = vmatprep.subr.bf16.mxu0 0
      %756 = vmatpush2.bf16.msra.mxu0 %v525
      %757 = vmatprep.subr.bf16.mxu0 0
      %758 = vmatpush2.bf16.msra.mxu0 %v521
      %759 = vmatprep.subr.bf16.mxu0 0
      %760 = vmatpush2.bf16.msra.mxu0 %v519
      %761 = vmatprep.subr.bf16.mxu0 0
      %762 = vmatpush2.bf16.msra.mxu0 %v515
      %763 = vmatprep.subr.bf16.mxu0 0
      %764 = vmatpush2.bf16.msra.mxu0 %v513
      %765 = vmatprep.subr.bf16.mxu0 0
      %766 = vmatpush2.bf16.msra.mxu0 %v509
      %767 = vmatprep.subr.bf16.mxu0 0
      %768 = vmatpush2.bf16.msra.mxu0 %v507
      %769 = vmatprep.mubr.bf16.mxu0 %v705
      %770 = vmatmul.mubr.bf16.gmra.mxu0 %v704
      %v771 = vpop.f32.mrf.mxu0
      %v772 = vadd.f32 0.0, %v771
      %v773 = vpop.f32.mrf.mxu0
      %v774 = vpop.f32.mrf.mxu0
      %v775 = vadd.f32 0.0, %v774
      %v776 = vpop.f32.mrf.mxu0
      %777 = vmatprep.mubr.bf16.mxu0 %v712
      %778 = vmatmul.mubr.bf16.gmra.mxu0 %v711
      %v779 = vpop.f32.mrf.mxu0
      %v780 = vadd.f32 0.0, %v779
      %v781 = vpop.f32.mrf.mxu0
      %v782 = vpop.f32.mrf.mxu0
      %v783 = vadd.f32 0.0, %v782
      %v784 = vpop.f32.mrf.mxu0
      %785 = vdwg.mxu0
      %786 = vmatprep.subr.bf16.mxu0 0
      %787 = vmatpush1.bf16.msra.mxu0 %v551
      %788 = vmatprep.subr.bf16.mxu0 0
      %789 = vmatpush1.bf16.msra.mxu0 %v549
      %790 = vmatprep.subr.bf16.mxu0 0
      %791 = vmatpush1.bf16.msra.mxu0 %v545
      %792 = vmatprep.subr.bf16.mxu0 0
      %793 = vmatpush1.bf16.msra.mxu0 %v543
      %794 = vmatprep.subr.bf16.mxu0 0
      %795 = vmatpush1.bf16.msra.mxu0 %v539
      %796 = vmatprep.subr.bf16.mxu0 0
      %797 = vmatpush1.bf16.msra.mxu0 %v537
      %798 = vmatprep.subr.bf16.mxu0 0
      %799 = vmatpush1.bf16.msra.mxu0 %v533
      %800 = vmatprep.subr.bf16.mxu0 0
      %801 = vmatpush1.bf16.msra.mxu0 %v531
      %802 = vmatprep.subr.bf16.mxu0 0
      %803 = vmatpush2.bf16.msra.mxu0 %v575
      %804 = vmatprep.subr.bf16.mxu0 0
      %805 = vmatpush2.bf16.msra.mxu0 %v573
      %806 = vmatprep.subr.bf16.mxu0 0
      %807 = vmatpush2.bf16.msra.mxu0 %v569
      %808 = vmatprep.subr.bf16.mxu0 0
      %809 = vmatpush2.bf16.msra.mxu0 %v567
      %810 = vmatprep.subr.bf16.mxu0 0
      %811 = vmatpush2.bf16.msra.mxu0 %v563
      %812 = vmatprep.subr.bf16.mxu0 0
      %813 = vmatpush2.bf16.msra.mxu0 %v561
      %814 = vmatprep.subr.bf16.mxu0 0
      %815 = vmatpush2.bf16.msra.mxu0 %v557
      %816 = vmatprep.subr.bf16.mxu0 0
      %817 = vmatpush2.bf16.msra.mxu0 %v555
      %818 = vmatprep.mubr.bf16.mxu0 %v707
      %819 = vmatmul.mubr.bf16.gmra.mxu0 %v706
      %v820 = vpop.f32.mrf.mxu0
      %v821 = vadd.f32 %v772, %v820
      %v822 = vpop.f32.mrf.mxu0
      %v823 = vpop.f32.mrf.mxu0
      %v824 = vadd.f32 %v775, %v823
      %v825 = vpop.f32.mrf.mxu0
      %826 = vmatprep.mubr.bf16.mxu0 %v714
      %827 = vmatmul.mubr.bf16.gmra.mxu0 %v713
      %v828 = vpop.f32.mrf.mxu0
      %v829 = vadd.f32 %v780, %v828
      %v830 = vpop.f32.mrf.mxu0
      %v831 = vpop.f32.mrf.mxu0
      %v832 = vadd.f32 %v783, %v831
      %v833 = vpop.f32.mrf.mxu0
      %834 = vdwg.mxu0
      %835 = vmatprep.subr.bf16.mxu0 0
      %836 = vmatpush1.bf16.msra.mxu0 %v593
      %837 = vmatprep.subr.bf16.mxu0 0
      %838 = vmatpush1.bf16.msra.mxu0 %v591
      %839 = vmatprep.subr.bf16.mxu0 0
      %840 = vmatpush1.bf16.msra.mxu0 %v589
      %841 = vmatprep.subr.bf16.mxu0 0
      %842 = vmatpush1.bf16.msra.mxu0 %v587
      %843 = vmatprep.subr.bf16.mxu0 0
      %844 = vmatpush1.bf16.msra.mxu0 %v585
      %845 = vmatprep.subr.bf16.mxu0 0
      %846 = vmatpush1.bf16.msra.mxu0 %v583
      %847 = vmatprep.subr.bf16.mxu0 0
      %848 = vmatpush1.bf16.msra.mxu0 %v581
      %849 = vmatprep.subr.bf16.mxu0 0
      %850 = vmatpush1.bf16.msra.mxu0 %v579
      %851 = vmatprep.subr.bf16.mxu0 0
      %852 = vmatpush2.bf16.msra.mxu0 %v609
      %853 = vmatprep.subr.bf16.mxu0 0
      %854 = vmatpush2.bf16.msra.mxu0 %v607
      %855 = vmatprep.subr.bf16.mxu0 0
      %856 = vmatpush2.bf16.msra.mxu0 %v605
      %857 = vmatprep.subr.bf16.mxu0 0
      %858 = vmatpush2.bf16.msra.mxu0 %v603
      %859 = vmatprep.subr.bf16.mxu0 0
      %860 = vmatpush2.bf16.msra.mxu0 %v601
      %861 = vmatprep.subr.bf16.mxu0 0
      %862 = vmatpush2.bf16.msra.mxu0 %v599
      %863 = vmatprep.subr.bf16.mxu0 0
      %864 = vmatpush2.bf16.msra.mxu0 %v597
      %865 = vmatprep.subr.bf16.mxu0 0
      %866 = vmatpush2.bf16.msra.mxu0 %v595
      %867 = vmatprep.mubr.bf16.mxu0 %v709
      %868 = vmatmul.mubr.bf16.gmra.mxu0 %v708
      %v869 = vpop.f32.mrf.mxu0
      %v870 = vadd.f32 %v821, %v869
      %v871 = vpop.f32.mrf.mxu0
      %v872 = vpop.f32.mrf.mxu0
      %v873 = vadd.f32 %v824, %v872
      %v874 = vpop.f32.mrf.mxu0
      %875 = vmatprep.mubr.bf16.mxu0 %v716
      %876 = vmatmul.mubr.bf16.gmra.mxu0 %v715
      %v877 = vpop.f32.mrf.mxu0
      %v878 = vadd.f32 %v829, %v877
      %v879 = vpop.f32.mrf.mxu0
      %v880 = vpop.f32.mrf.mxu0
      %v881 = vadd.f32 %v832, %v880
      %v882 = vpop.f32.mrf.mxu0
      %883 = vdwg.mxu0
      %884 = vmatprep.subr.bf16.mxu0 0
      %885 = vmatpush1.bf16.msra.mxu0 0
      %886 = vmatprep.subr.bf16.mxu0 0
      %887 = vmatpush1.bf16.msra.mxu0 0
      %888 = vmatprep.subr.bf16.mxu0 0
      %889 = vmatpush1.bf16.msra.mxu0 %v621
      %890 = vmatprep.subr.bf16.mxu0 0
      %891 = vmatpush1.bf16.msra.mxu0 %v619
      %892 = vmatprep.subr.bf16.mxu0 0
      %893 = vmatpush1.bf16.msra.mxu0 %v617
      %894 = vmatprep.subr.bf16.mxu0 0
      %895 = vmatpush1.bf16.msra.mxu0 %v615
      %896 = vmatprep.subr.bf16.mxu0 0
      %897 = vmatpush1.bf16.msra.mxu0 %v613
      %898 = vmatprep.subr.bf16.mxu0 0
      %899 = vmatpush1.bf16.msra.mxu0 %v611
      %900 = vmatprep.subr.bf16.mxu0 0
      %901 = vmatpush2.bf16.msra.mxu0 0
      %902 = vmatprep.subr.bf16.mxu0 0
      %903 = vmatpush2.bf16.msra.mxu0 0
      %904 = vmatprep.subr.bf16.mxu0 0
      %905 = vmatpush2.bf16.msra.mxu0 0
      %906 = vmatprep.subr.bf16.mxu0 0
      %907 = vmatpush2.bf16.msra.mxu0 0
      %908 = vmatprep.subr.bf16.mxu0 0
      %909 = vmatpush2.bf16.msra.mxu0 0
      %910 = vmatprep.subr.bf16.mxu0 0
      %911 = vmatpush2.bf16.msra.mxu0 0
      %912 = vmatprep.subr.bf16.mxu0 0
      %913 = vmatpush2.bf16.msra.mxu0 0
      %914 = vmatprep.subr.bf16.mxu0 0
      %915 = vmatpush2.bf16.msra.mxu0 0
      %916 = vmatprep.mubr.bf16.mxu0 0
      %917 = vmatmul.mubr.bf16.gmra.mxu0 %v732
      %v918 = vpop.f32.mrf.mxu0
      %v919 = vadd.f32 %v870, %v918
      %v920 = vpop.f32.mrf.mxu0
      %v921 = vpop.f32.mrf.mxu0
      %v922 = vadd.f32 %v873, %v921
      %v923 = vpop.f32.mrf.mxu0
      %924 = vmatprep.mubr.bf16.mxu0 0
      %925 = vmatmul.mubr.bf16.gmra.mxu0 %v735
      %v926 = vpop.f32.mrf.mxu0
      %v927 = vadd.f32 %v878, %v926
      %v928 = vpop.f32.mrf.mxu0
      %v929 = vpop.f32.mrf.mxu0
      %v930 = vadd.f32 %v881, %v929
      %v931 = vpop.f32.mrf.mxu0
      %932 = vdwg.mxu0
      %933 = vst.msk [vmem:[%s366] sm:$0xff] %vm453, %v919
      %934 = vst.msk [vmem:[%s366 + $0x8] sm:$0xff] %vm453, %v922
      %935 = vst.msk [vmem:[%s366 + $0x10] sm:$0xff] %vm453, %v927
      %936 = vst.msk [vmem:[%s366 + $0x18] sm:$0xff] %vm453, %v930
      %v937 = vsel %vm453, %v919, 0.0
      %938 = vadd.xlane.f32.xlu0 %v937
      %v939 = vpop.xlane.xlu0 %938
      %v940 = vsel %vm453, %v922, 0.0
      %941 = vadd.xlane.f32.xlu0 %v940
      %v942 = vpop.xlane.xlu0 %941
      %v943 = vsel %vm453, %v927, 0.0
      %944 = vadd.xlane.f32.xlu0 %v943
      %v945 = vpop.xlane.xlu0 %944
      %v946 = vsel %vm453, %v930, 0.0
      %947 = vadd.xlane.f32.xlu0 %v946
      %v948 = vpop.xlane.xlu0 %947
      %v949 = vmul.f32 %v919, %v919
      %v950 = vmul.f32 %v922, %v922
      %v951 = vmul.f32 %v927, %v927
      %v952 = vmul.f32 %v930, %v930
      %v953 = vsel %vm453, %v949, 0.0
      %954 = vadd.xlane.f32.xlu0 %v953
      %v955 = vpop.xlane.xlu0 %954
      %v956 = vsel %vm453, %v950, 0.0
      %957 = vadd.xlane.f32.xlu0 %v956
      %v958 = vpop.xlane.xlu0 %957
      %v959 = vsel %vm453, %v951, 0.0
      %960 = vadd.xlane.f32.xlu0 %v959
      %v961 = vpop.xlane.xlu0 %960
      %v962 = vsel %vm453, %v952, 0.0
      %963 = vadd.xlane.f32.xlu0 %v962
      %v964 = vpop.xlane.xlu0 %963
      %vm965 = vcmask 7168
      %v966 = vsel %vm965, %v939, %v955
      %v967 = vsel %vm965, %v942, %v958
      %v968 = vsel %vm965, %v945, %v961
      %v969 = vsel %vm965, %v948, %v964
      %vm970 = vcmask 15360
      %971 = vst.msk [vmem:[%s375] sm:$0xff] %vm970, %v966
      %972 = vst.msk [vmem:[%s375 + $0x8] sm:$0xff] %vm970, %v967
      %973 = vst.msk [vmem:[%s375 + $0x10] sm:$0xff] %vm970, %v968
      %974 = vst.msk [vmem:[%s375 + $0x18] sm:$0xff] %vm970, %v969
      %p975 = scmp.lt.s32.totalorder %s23, 1
      %s976 = scalar_select %p975, %s23, 1
      %p977 = scmp.lt.s32.totalorder %s24, 0
      %s978 = scalar_select %p977, %s24, 0
      %s979 = smul.addr %s976, 4
      %s980 = sadd.s32 %s978, %s979
      %s981 = smul.addr %s980, 8
      %s982 = scalar_lea.vmem %s5, %s981
      %p983 = scmp.lt.s32.totalorder %s23, 1
      %s984 = scalar_select %p983, %s23, 1
      %p985 = scmp.lt.s32.totalorder %s24, 0
      %s986 = scalar_select %p985, %s24, 0
      %s987 = smul.addr %s986, 4
      %s988 = smul.addr %s984, 4
      %s989 = sadd.s32 %s987, %s988
      %s990 = smul.addr %s989, 8
      %s991 = scalar_lea.vmem %s6, %s990
      %p992 = scmp.lt.s32.totalorder %s23, 1
      %s993 = scalar_select %p992, %s23, 1
      %p994 = scmp.lt.s32.totalorder %s24, 0
      %s995 = scalar_select %p994, %s24, 0
      %s996 = smul.addr %s993, 4
      %s997 = sadd.s32 %s995, %s996
      %s998 = smul.addr %s997, 8
      %s999 = scalar_lea.vmem %s7, %s998
      // Predicated region
      $region41: #{srresnet_forward.11} parent=39 // pred_check
        %p1000 = pneg %p170
      $region42: #{srresnet_forward.11} parent=39 // pred_check_branch
        %1002 = sbr.rel (%p1000) target = $region44
      $region43: #{srresnet_forward.11} parent=39 // pred_region
        _
      $region44: #{srresnet_forward.11} parent=39 // pred_fallthru
        _
      // Predicated region
      $region45: #{srresnet_forward.11} parent=39 // pred_check
        %p1003 = pneg %p198
      $region46: #{srresnet_forward.11} parent=39 // pred_check_branch
        %1005 = sbr.rel (%p1003) target = $region48
      $region47: #{srresnet_forward.11} parent=39 // pred_region
        _
      $region48: #{srresnet_forward.11} parent=39 // pred_fallthru
        _
      // Predicated region
      $region49: #{srresnet_forward.11} parent=39 // pred_check
        %p1006 = pneg %p226
      $region50: #{srresnet_forward.11} parent=39 // pred_check_branch
        %1008 = sbr.rel (%p1006) target = $region52
      $region51: #{srresnet_forward.11} parent=39 // pred_region
        _
      $region52: #{srresnet_forward.11} parent=39 // pred_fallthru
        _
    $region40: #{srresnet_forward.11} parent=5 // pred_fallthru
      _
    %p1009 = scmp.le.s32.totalorder 2, %s14
    // Predicated region
    $region53: #{srresnet_forward.11} parent=5 // pred_check
      %p1010 = pneg %p1009
    $region54: #{srresnet_forward.11} parent=5 // pred_check_branch
      %1012 = sbr.rel (%p1010) target = $region56
    $region55: #{srresnet_forward.11} parent=5 // pred_region
      %s1013 = ssub.s32 %s14, 2
      // Predicated region
      $region57: #{srresnet_forward.11} parent=55 // pred_check
        %p1014 = pneg %p176
      $region58: #{srresnet_forward.11} parent=55 // pred_check_branch
        %1016 = sbr.rel (%p1014) target = $region60
      $region59: #{srresnet_forward.11} parent=55 // pred_region
        %p1017 = scmp.lt.s32.totalorder %s25, 1
        %s1018 = scalar_select %p1017, %s25, 1
        %p1019 = scmp.lt.s32.totalorder %s26, 0
        %s1020 = scalar_select %p1019, %s26, 0
        %s1021 = smul.addr %s1018, 4
        %s1022 = sadd.s32 %s1020, %s1021
        %s1023 = smul.addr %s1022, 8
        %s1024 = scalar_lea.vmem %s5, %s1023
      $region60: #{srresnet_forward.11} parent=55 // pred_fallthru
        _
      // Predicated region
      $region61: #{srresnet_forward.11} parent=55 // pred_check
        %p1025 = pneg %p204
      $region62: #{srresnet_forward.11} parent=55 // pred_check_branch
        %1027 = sbr.rel (%p1025) target = $region64
      $region63: #{srresnet_forward.11} parent=55 // pred_region
        %p1028 = scmp.lt.s32.totalorder %s25, 1
        %s1029 = scalar_select %p1028, %s25, 1
        %p1030 = scmp.lt.s32.totalorder %s26, 0
        %s1031 = scalar_select %p1030, %s26, 0
        %s1032 = smul.addr %s1031, 4
        %s1033 = smul.addr %s1029, 4
        %s1034 = sadd.s32 %s1032, %s1033
        %s1035 = smul.addr %s1034, 8
        %s1036 = scalar_lea.vmem %s6, %s1035
      $region64: #{srresnet_forward.11} parent=55 // pred_fallthru
        _
      // Predicated region
      $region65: #{srresnet_forward.11} parent=55 // pred_check
        %p1037 = pneg %p232
      $region66: #{srresnet_forward.11} parent=55 // pred_check_branch
        %1039 = sbr.rel (%p1037) target = $region68
      $region67: #{srresnet_forward.11} parent=55 // pred_region
        %p1040 = scmp.lt.s32.totalorder %s25, 1
        %s1041 = scalar_select %p1040, %s25, 1
        %p1042 = scmp.lt.s32.totalorder %s26, 0
        %s1043 = scalar_select %p1042, %s26, 0
        %s1044 = smul.addr %s1041, 4
        %s1045 = sadd.s32 %s1043, %s1044
        %s1046 = smul.addr %s1045, 8
        %s1047 = scalar_lea.vmem %s7, %s1046
      $region68: #{srresnet_forward.11} parent=55 // pred_fallthru
        _
    $region56: #{srresnet_forward.11} parent=5 // pred_fallthru
      _
  $region6: #{srresnet_forward.11} parent=0 // loop_footer
    %s18 = sadd.s32 1, %s14
  $region7: #{srresnet_forward.11} parent=0 // loop_footer_branch
    %13 = sbr.rel target = $region3
  $region8: #{srresnet_forward.11} parent=0 // loop_exit
    _

// kernel: srresnet_forward.13
$region0: #{srresnet_forward.13}
  #allocation0 [shape = 'u32[]', space=smem, size = 0x4, offset = 0x4, fixed_abs, tag = 'smem constant byte address 0x4 - core index']
  #allocation1 [shape = 'u32[144,128]{1,0:T(1,128)}', space=vmem, size = 0x12000, scoped, tag = 'internal scratch']
  %s0 = inlined_call_operand.vmem [shape: f32[2,32,64], index: 0, kind: input, shape index: {}]
  %s1 = inlined_call_operand.vmem [shape: f32[2,32,64], index: 1, kind: input, shape index: {}]
  %s2 = inlined_call_operand.vmem [shape: bf16[32,864], index: 2, kind: input, shape index: {}]
  %s3 = inlined_call_operand.vmem [shape: f32[32,1], index: 3, kind: input, shape index: {}]
  %s4 = inlined_call_operand.vmem [shape: f32[32,1], index: 4, kind: input, shape index: {}]
  %s5 = inlined_call_operand.vmem [shape: f32[32,1], index: 5, kind: input, shape index: {}]
  %s6 = inlined_call_operand.vmem [shape: f32[2,32,64], index: 6, kind: output, shape index: {0}]
  %s7 = inlined_call_operand.vmem [shape: f32[2,1,32,2], index: 7, kind: output, shape index: {1}]
  %8 = xla_tuple %s6, %s7
  %s9 = sld [smem:[#allocation0]]
  $region65: #{srresnet_forward.13} parent=0
    _
  %s11 = ssub.s32 1, %s9
  %s12 = scalar_select 0, %s11, %s9
  loop: start=0, step=1, limit=4
  $region2: #{srresnet_forward.13} parent=0 // loop_pre_header
    _
  $region3: #{srresnet_forward.13} parent=0 // loop_header
    %s14 = sphi 0, %s18
    %p15 = scmp.ge.s32.totalorder %s14, 4
    %s21 = sphi 0, %s33
    %s22 = sphi 0, %s29
    %s23 = sphi 0, %s21
    %s24 = sphi 0, %s22
    %s25 = sphi 0, %s23
    %s26 = sphi 0, %s24
    %s38 = sphi 0, %s40
    %s41 = sphi 0, %s38
    %s42 = sphi 0, %s41
    %s58 = sphi 0, %s42
    %s66 = sphi 0, %s68
    %s69 = sphi 0, %s66
    %s70 = sphi 0, %s69
    %s86 = sphi 0, %s70
    %s90 = sphi 0, %s90
    %s92 = sphi 0, %s90
    %s93 = sphi 0, %s92
    %s107 = sphi 0, %s93
    %s111 = sphi 0, %s111
    %s113 = sphi 0, %s111
    %s114 = sphi 0, %s113
    %s128 = sphi 0, %s114
    %s132 = sphi 0, %s132
    %s134 = sphi 0, %s132
    %s135 = sphi 0, %s134
    %s149 = sphi 0, %s135
    %s153 = sphi 0, %s153
    %s155 = sphi 0, %s153
    %s156 = sphi 0, %s155
    %s170 = sphi 0, %s156
    %s178 = sphi 0, %s180
    %s181 = sphi 0, %s178
    %s182 = sphi 0, %s181
    %s198 = sphi 0, %s182
    %s206 = sphi 0, %s208
    %s209 = sphi 0, %s206
    %s210 = sphi 0, %s209
    %s226 = sphi 0, %s210
  $region4: #{srresnet_forward.13} parent=0 // loop_header_branch
    %17 = sbr.rel (%p15) target = $region8
  $region5: #{srresnet_forward.13} parent=0 // loop_body
    %s19 = ssub.s32 %s14, 1
    %s20 = ssub.s32 %s14, 2
    %s27 = sadd.s32 1, %s22
    %p28 = scmp.ge.s32.totalorder %s27, 1
    %s29 = scalar_select %p28, 0, %s27
    %s30 = sadd.s32 1, %s21
    %s31 = scalar_select %p28, %s30, %s21
    %p32 = scmp.ge.s32.totalorder %s31, 2
    %s33 = scalar_select %p32, 0, %s31
    %s34 = ssub.s32 %s21, %s33
    %s35 = ssub.s32 %s22, %s29
    %s36 = sor.u32 %s34, %s35
    %p37 = scmp.eq.s32.totalorder %s36, 0
    %s39 = sadd.s32 %s38, 1
    %s40 = scalar_select %p37, %s38, %s39
    %p43 = pneg %p37
    %p44 = scmp.eq.s32.totalorder %s14, 1
    %p45 = por %p43, %p44
    %p46 = scmp.ne.s32.totalorder %s38, %s41
    %p47 = scmp.eq.s32.totalorder %s14, 0
    %p48 = por %p46, %p47
    %p49 = scmp.ne.s32.totalorder %s38, %s41
    %p50 = scmp.eq.s32.totalorder %s19, 1
    %p51 = por %p49, %p50
    %p52 = scmp.ne.s32.totalorder %s41, %s42
    %p53 = scmp.eq.s32.totalorder %s19, 0
    %p54 = por %p52, %p53
    %p55 = scmp.ne.s32.totalorder %s41, %s42
    %p56 = scmp.eq.s32.totalorder %s20, 1
    %p57 = por %p55, %p56
    %p59 = scmp.ne.s32.totalorder %s42, %s58
    %p60 = scmp.eq.s32.totalorder %s20, 0
    %p61 = por %p59, %p60
    %s62 = ssub.s32 %s21, %s33
    %s63 = ssub.s32 %s22, %s29
    %s64 = sor.u32 %s62, %s63
    %p65 = scmp.eq.s32.totalorder %s64, 0
    %s67 = sadd.s32 %s66, 1
    %s68 = scalar_select %p65, %s66, %s67
    %p71 = pneg %p65
    %p72 = scmp.eq.s32.totalorder %s14, 1
    %p73 = por %p71, %p72
    %p74 = scmp.ne.s32.totalorder %s66, %s69
    %p75 = scmp.eq.s32.totalorder %s14, 0
    %p76 = por %p74, %p75
    %p77 = scmp.ne.s32.totalorder %s66, %s69
    %p78 = scmp.eq.s32.totalorder %s19, 1
    %p79 = por %p77, %p78
    %p80 = scmp.ne.s32.totalorder %s69, %s70
    %p81 = scmp.eq.s32.totalorder %s19, 0
    %p82 = por %p80, %p81
    %p83 = scmp.ne.s32.totalorder %s69, %s70
    %p84 = scmp.eq.s32.totalorder %s20, 1
    %p85 = por %p83, %p84
    %p87 = scmp.ne.s32.totalorder %s70, %s86
    %p88 = scmp.eq.s32.totalorder %s20, 0
    %p89 = por %p87, %p88
    %s91 = sadd.s32 %s90, 1
    %p94 = scmp.eq.s32.totalorder %s14, 1
    %p95 = scmp.ne.s32.totalorder %s90, %s92
    %p96 = scmp.eq.s32.totalorder %s14, 0
    %p97 = por %p95, %p96
    %p98 = scmp.ne.s32.totalorder %s90, %s92
    %p99 = scmp.eq.s32.totalorder %s19, 1
    %p100 = por %p98, %p99
    %p101 = scmp.ne.s32.totalorder %s92, %s93
    %p102 = scmp.eq.s32.totalorder %s19, 0
    %p103 = por %p101, %p102
    %p104 = scmp.ne.s32.totalorder %s92, %s93
    %p105 = scmp.eq.s32.totalorder %s20, 1
    %p106 = por %p104, %p105
    %p108 = scmp.ne.s32.totalorder %s93, %s107
    %p109 = scmp.eq.s32.totalorder %s20, 0
    %p110 = por %p108, %p109
    %s112 = sadd.s32 %s111, 1
    %p115 = scmp.eq.s32.totalorder %s14, 1
    %p116 = scmp.ne.s32.totalorder %s111, %s113
    %p117 = scmp.eq.s32.totalorder %s14, 0
    %p118 = por %p116, %p117
    %p119 = scmp.ne.s32.totalorder %s111, %s113
    %p120 = scmp.eq.s32.totalorder %s19, 1
    %p121 = por %p119, %p120
    %p122 = scmp.ne.s32.totalorder %s113, %s114
    %p123 = scmp.eq.s32.totalorder %s19, 0
    %p124 = por %p122, %p123
    %p125 = scmp.ne.s32.totalorder %s113, %s114
    %p126 = scmp.eq.s32.totalorder %s20, 1
    %p127 = por %p125, %p126
    %p129 = scmp.ne.s32.totalorder %s114, %s128
    %p130 = scmp.eq.s32.totalorder %s20, 0
    %p131 = por %p129, %p130
    %s133 = sadd.s32 %s132, 1
    %p136 = scmp.eq.s32.totalorder %s14, 1
    %p137 = scmp.ne.s32.totalorder %s132, %s134
    %p138 = scmp.eq.s32.totalorder %s14, 0
    %p139 = por %p137, %p138
    %p140 = scmp.ne.s32.totalorder %s132, %s134
    %p141 = scmp.eq.s32.totalorder %s19, 1
    %p142 = por %p140, %p141
    %p143 = scmp.ne.s32.totalorder %s134, %s135
    %p144 = scmp.eq.s32.totalorder %s19, 0
    %p145 = por %p143, %p144
    %p146 = scmp.ne.s32.totalorder %s134, %s135
    %p147 = scmp.eq.s32.totalorder %s20, 1
    %p148 = por %p146, %p147
    %p150 = scmp.ne.s32.totalorder %s135, %s149
    %p151 = scmp.eq.s32.totalorder %s20, 0
    %p152 = por %p150, %p151
    %s154 = sadd.s32 %s153, 1
    %p157 = scmp.eq.s32.totalorder %s14, 1
    %p158 = scmp.ne.s32.totalorder %s153, %s155
    %p159 = scmp.eq.s32.totalorder %s14, 0
    %p160 = por %p158, %p159
    %p161 = scmp.ne.s32.totalorder %s153, %s155
    %p162 = scmp.eq.s32.totalorder %s19, 1
    %p163 = por %p161, %p162
    %p164 = scmp.ne.s32.totalorder %s155, %s156
    %p165 = scmp.eq.s32.totalorder %s19, 0
    %p166 = por %p164, %p165
    %p167 = scmp.ne.s32.totalorder %s155, %s156
    %p168 = scmp.eq.s32.totalorder %s20, 1
    %p169 = por %p167, %p168
    %p171 = scmp.ne.s32.totalorder %s156, %s170
    %p172 = scmp.eq.s32.totalorder %s20, 0
    %p173 = por %p171, %p172
    %s174 = ssub.s32 %s21, %s33
    %s175 = ssub.s32 %s22, %s29
    %s176 = sor.u32 %s174, %s175
    %p177 = scmp.eq.s32.totalorder %s176, 0
    %s179 = sadd.s32 %s178, 1
    %s180 = scalar_select %p177, %s178, %s179
    %p183 = pneg %p177
    %p184 = scmp.eq.s32.totalorder %s14, 1
    %p185 = por %p183, %p184
    %p186 = scmp.ne.s32.totalorder %s178, %s181
    %p187 = scmp.eq.s32.totalorder %s14, 0
    %p188 = por %p186, %p187
    %p189 = scmp.ne.s32.totalorder %s178, %s181
    %p190 = scmp.eq.s32.totalorder %s19, 1
    %p191 = por %p189, %p190
    %p192 = scmp.ne.s32.totalorder %s181, %s182
    %p193 = scmp.eq.s32.totalorder %s19, 0
    %p194 = por %p192, %p193
    %p195 = scmp.ne.s32.totalorder %s181, %s182
    %p196 = scmp.eq.s32.totalorder %s20, 1
    %p197 = por %p195, %p196
    %p199 = scmp.ne.s32.totalorder %s182, %s198
    %p200 = scmp.eq.s32.totalorder %s20, 0
    %p201 = por %p199, %p200
    %s202 = ssub.s32 %s21, %s33
    %s203 = ssub.s32 %s22, %s29
    %s204 = sor.u32 %s202, %s203
    %p205 = scmp.eq.s32.totalorder %s204, 0
    %s207 = sadd.s32 %s206, 1
    %s208 = scalar_select %p205, %s206, %s207
    %p211 = pneg %p205
    %p212 = scmp.eq.s32.totalorder %s14, 1
    %p213 = por %p211, %p212
    %p214 = scmp.ne.s32.totalorder %s206, %s209
    %p215 = scmp.eq.s32.totalorder %s14, 0
    %p216 = por %p214, %p215
    %p217 = scmp.ne.s32.totalorder %s206, %s209
    %p218 = scmp.eq.s32.totalorder %s19, 1
    %p219 = por %p217, %p218
    %p220 = scmp.ne.s32.totalorder %s209, %s210
    %p221 = scmp.eq.s32.totalorder %s19, 0
    %p222 = por %p220, %p221
    %p223 = scmp.ne.s32.totalorder %s209, %s210
    %p224 = scmp.eq.s32.totalorder %s20, 1
    %p225 = por %p223, %p224
    %p227 = scmp.ne.s32.totalorder %s210, %s226
    %p228 = scmp.eq.s32.totalorder %s20, 0
    %p229 = por %p227, %p228
    %p230 = scmp.le.s32.totalorder 1, %s14
    %p231 = scmp.lt.s32.totalorder %s14, 3
    %p232 = pnand %p230, %p231
    %p233 = pneg %p232
    // Predicated region
    $region9: #{srresnet_forward.13} parent=5 // pred_check
      _
    $region10: #{srresnet_forward.13} parent=5 // pred_check_branch
      %235 = sbr.rel (%p232) target = $region12
    $region11: #{srresnet_forward.13} parent=5 // pred_region
      %s236 = ssub.s32 %s14, 1
      // Predicated region
      $region13: #{srresnet_forward.13} parent=11 // pred_check
        %p237 = pneg %p103
      $region14: #{srresnet_forward.13} parent=11 // pred_check_branch
        %239 = sbr.rel (%p237) target = $region16
      $region15: #{srresnet_forward.13} parent=11 // pred_region
        _
      $region16: #{srresnet_forward.13} parent=11 // pred_fallthru
        _
      // Predicated region
      $region17: #{srresnet_forward.13} parent=11 // pred_check
        %p240 = pneg %p124
      $region18: #{srresnet_forward.13} parent=11 // pred_check_branch
        %242 = sbr.rel (%p240) target = $region20
      $region19: #{srresnet_forward.13} parent=11 // pred_region
        _
      $region20: #{srresnet_forward.13} parent=11 // pred_fallthru
        _
      // Predicated region
      $region21: #{srresnet_forward.13} parent=11 // pred_check
        %p243 = pneg %p145
      $region22: #{srresnet_forward.13} parent=11 // pred_check_branch
        %245 = sbr.rel (%p243) target = $region24
      $region23: #{srresnet_forward.13} parent=11 // pred_region
        _
      $region24: #{srresnet_forward.13} parent=11 // pred_fallthru
        _
      // Predicated region
      $region25: #{srresnet_forward.13} parent=11 // pred_check
        %p246 = pneg %p166
      $region26: #{srresnet_forward.13} parent=11 // pred_check_branch
        %248 = sbr.rel (%p246) target = $region28
      $region27: #{srresnet_forward.13} parent=11 // pred_region
        _
      $region28: #{srresnet_forward.13} parent=11 // pred_fallthru
        _
    $region12: #{srresnet_forward.13} parent=5 // pred_fallthru
      _
    %p249 = scmp.lt.s32.totalorder %s14, 2
    // Predicated region
    $region29: #{srresnet_forward.13} parent=5 // pred_check
      %p250 = pneg %p249
    $region30: #{srresnet_forward.13} parent=5 // pred_check_branch
      %252 = sbr.rel (%p250) target = $region32
    $region31: #{srresnet_forward.13} parent=5 // pred_region
      // Predicated region
      $region33: #{srresnet_forward.13} parent=31 // pred_check
        %p253 = pneg %p48
      $region34: #{srresnet_forward.13} parent=31 // pred_check_branch
        %255 = sbr.rel (%p253) target = $region36
      $region35: #{srresnet_forward.13} parent=31 // pred_region
        %p256 = scmp.lt.s32.totalorder %s21, 1
        %s257 = scalar_select %p256, %s21, 1
        %p258 = scmp.lt.s32.totalorder %s22, 0
        %s259 = scalar_select %p258, %s22, 0
        %s260 = smul.addr %s257, 4
        %s261 = sadd.s32 %s259, %s260
        %s262 = smul.addr %s261, 8
        %s263 = scalar_lea.vmem %s0, %s262
      $region36: #{srresnet_forward.13} parent=31 // pred_fallthru
        _
      // Predicated region
      $region37: #{srresnet_forward.13} parent=31 // pred_check
        %p264 = pneg %p76
      $region38: #{srresnet_forward.13} parent=31 // pred_check_branch
        %266 = sbr.rel (%p264) target = $region40
      $region39: #{srresnet_forward.13} parent=31 // pred_region
        %p267 = scmp.lt.s32.totalorder %s21, 1
        %s268 = scalar_select %p267, %s21, 1
        %p269 = scmp.lt.s32.totalorder %s22, 0
        %s270 = scalar_select %p269, %s22, 0
        %s271 = smul.addr %s268, 4
        %s272 = sadd.s32 %s270, %s271
        %s273 = smul.addr %s272, 8
        %s274 = scalar_lea.vmem %s1, %s273
      $region40: #{srresnet_forward.13} parent=31 // pred_fallthru
        _
    $region32: #{srresnet_forward.13} parent=5 // pred_fallthru
      _
    %p275 = scmp.le.s32.totalorder 1, %s14
    %p276 = scmp.lt.s32.totalorder %s14, 3
    %p277 = pnand %p275, %p276
    %p278 = pneg %p277
    // Predicated region
    $region41: #{srresnet_forward.13} parent=5 // pred_check
      _
    $region42: #{srresnet_forward.13} parent=5 // pred_check_branch
      %280 = sbr.rel (%p277) target = $region44
    $region43: #{srresnet_forward.13} parent=5 // pred_region
      %s281 = ssub.s32 %s14, 1
      %p282 = scmp.lt.s32.totalorder %s23, 1
      %s283 = scalar_select %p282, %s23, 1
      %p284 = scmp.lt.s32.totalorder %s24, 0
      %s285 = scalar_select %p284, %s24, 0
      %s286 = smul.addr %s283, 4
      %s287 = sadd.s32 %s285, %s286
      %s288 = smul.addr %s287, 8
      %s289 = scalar_lea.vmem %s0, %s288
      %p290 = pneg %p54
      %p291 = pneg %p51
      %p292 = scmp.lt.s32.totalorder %s23, 1
      %s293 = scalar_select %p292, %s23, 1
      %p294 = scmp.lt.s32.totalorder %s24, 0
      %s295 = scalar_select %p294, %s24, 0
      %s296 = smul.addr %s293, 4
      %s297 = sadd.s32 %s295, %s296
      %s298 = smul.addr %s297, 8
      %s299 = scalar_lea.vmem %s1, %s298
      %p300 = pneg %p82
      %p301 = pneg %p79
      %p302 = pneg %p103
      %p303 = pneg %p100
      %p304 = pneg %p124
      %p305 = pneg %p121
      %p306 = pneg %p145
      %p307 = pneg %p142
      %p308 = pneg %p166
      %p309 = pneg %p163
      %p310 = pneg %p194
      %p311 = pneg %p191
      %p312 = scmp.lt.s32.totalorder %s23, 1
      %s313 = scalar_select %p312, %s23, 1
      %p314 = scmp.lt.s32.totalorder %s24, 0
      %s315 = scalar_select %p314, %s24, 0
      %s316 = smul.addr %s313, 4
      %s317 = sadd.s32 %s315, %s316
      %s318 = smul.addr %s317, 8
      %s319 = scalar_lea.vmem %s6, %s318
      %p320 = pneg %p222
      %p321 = pneg %p219
      %p322 = scmp.lt.s32.totalorder %s23, 1
      %s323 = scalar_select %p322, %s23, 1
      %p324 = scmp.lt.s32.totalorder %s24, 0
      %s325 = scalar_select %p324, %s24, 0
      %s326 = smul.addr %s325, 4
      %s327 = smul.addr %s323, 4
      %s328 = sadd.s32 %s326, %s327
      %s329 = smul.addr %s328, 8
      %s330 = scalar_lea.vmem %s7, %s329
      %p331 = scmp.lt.s32.totalorder %s23, 1
      %s332 = scalar_select %p331, %s23, 1
      %p333 = scmp.lt.s32.totalorder %s24, 0
      %s334 = scalar_select %p333, %s24, 0
      %s335 = smul.addr %s332, 4
      %s336 = sadd.s32 %s334, %s335
      %s337 = smul.addr %s336, 8
      %s338 = scalar_lea.vmem %s0, %s337
      %p339 = scmp.lt.s32.totalorder %s23, 1
      %s340 = scalar_select %p339, %s23, 1
      %p341 = scmp.lt.s32.totalorder %s24, 0
      %s342 = scalar_select %p341, %s24, 0
      %s343 = smul.addr %s340, 4
      %s344 = sadd.s32 %s342, %s343
      %s345 = smul.addr %s344, 8
      %s346 = scalar_lea.vmem %s1, %s345
      %p347 = scmp.lt.s32.totalorder %s23, 1
      %s348 = scalar_select %p347, %s23, 1
      %p349 = scmp.lt.s32.totalorder %s24, 0
      %s350 = scalar_select %p349, %s24, 0
      %s351 = smul.addr %s348, 4
      %s352 = sadd.s32 %s350, %s351
      %s353 = smul.addr %s352, 8
      %s354 = scalar_lea.vmem %s6, %s353
      %p355 = scmp.lt.s32.totalorder %s23, 1
      %s356 = scalar_select %p355, %s23, 1
      %p357 = scmp.lt.s32.totalorder %s24, 0
      %s358 = scalar_select %p357, %s24, 0
      %s359 = smul.addr %s358, 4
      %s360 = smul.addr %s356, 4
      %s361 = sadd.s32 %s359, %s360
      %s362 = smul.addr %s361, 8
      %s363 = scalar_lea.vmem %s7, %s362
      %v365 = vld [vmem:[%s338] sm:$0xff]
      %v366 = vld [vmem:[%s338 + $0x8] sm:$0xff]
      %v367 = vld [vmem:[%s338 + $0x10] sm:$0xff]
      %v368 = vld [vmem:[%s338 + $0x18] sm:$0xff]
      %v369 = vld [vmem:[%s346] sm:$0xff]
      %v370 = vld [vmem:[%s346 + $0x8] sm:$0xff]
      %v371 = vld [vmem:[%s346 + $0x10] sm:$0xff]
      %v372 = vld [vmem:[%s346 + $0x18] sm:$0xff]
      %v373 = vld [vmem:[%s3] sm:$0xff]
      %v374 = vld [vmem:[%s3 + $0x8] sm:$0xff]
      %v375 = vld [vmem:[%s3 + $0x10] sm:$0xff]
      %v376 = vld [vmem:[%s3 + $0x18] sm:$0xff]
      %378 = vset.pattern.permute.xlu0 0
      %379 = vperm.xlu0 %378, %v373
      %v380 = vpop.permute.xlu0 %379
      %383 = vset.pattern.permute.xlu0 0
      %384 = vperm.xlu0 %383, %v374
      %v385 = vpop.permute.xlu0 %384
      %388 = vset.pattern.permute.xlu0 0
      %389 = vperm.xlu0 %388, %v375
      %v390 = vpop.permute.xlu0 %389
      %393 = vset.pattern.permute.xlu0 0
      %394 = vperm.xlu0 %393, %v376
      %v395 = vpop.permute.xlu0 %394
      %v397 = vmul.f32 %v365, %v380
      %v398 = vmul.f32 %v366, %v385
      %v399 = vmul.f32 %v367, %v390
      %v400 = vmul.f32 %v368, %v395
      %v401 = vld [vmem:[%s4] sm:$0xff]
      %v402 = vld [vmem:[%s4 + $0x8] sm:$0xff]
      %v403 = vld [vmem:[%s4 + $0x10] sm:$0xff]
      %v404 = vld [vmem:[%s4 + $0x18] sm:$0xff]
      %406 = vset.pattern.permute.xlu0 0
      %407 = vperm.xlu0 %406, %v401
      %v408 = vpop.permute.xlu0 %407
      %411 = vset.pattern.permute.xlu0 0
      %412 = vperm.xlu0 %411, %v402
      %v413 = vpop.permute.xlu0 %412
      %416 = vset.pattern.permute.xlu0 0
      %417 = vperm.xlu0 %416, %v403
      %v418 = vpop.permute.xlu0 %417
      %421 = vset.pattern.permute.xlu0 0
      %422 = vperm.xlu0 %421, %v404
      %v423 = vpop.permute.xlu0 %422
      %v425 = vadd.f32 %v397, %v408
      %v426 = vadd.f32 %v398, %v413
      %v427 = vadd.f32 %v399, %v418
      %v428 = vadd.f32 %v400, %v423
      %v429 = vadd.f32 %v425, %v369
      %v430 = vadd.f32 %v426, %v370
      %v431 = vadd.f32 %v427, %v371
      %v432 = vadd.f32 %v428, %v372
      %437 = vrot.lane.b32.xlu0 %v429, 13
      %v438 = vpop.permute.xlu0 %437
      %439 = vrot.lane.b32.xlu0 %v430, 13
      %v440 = vpop.permute.xlu0 %439
      %441 = vrot.lane.b32.xlu0 %v431, 13
      %v442 = vpop.permute.xlu0 %441
      %443 = vrot.lane.b32.xlu0 %v432, 13
      %v444 = vpop.permute.xlu0 %443
      %vm449 = vcmask 105472
      %v450 = vsel %vm449, 0.0, %v438
      %v451 = vsel %vm449, 0.0, %v440
      %v452 = vsel %vm449, 0.0, %v442
      %v453 = vsel %vm449, 0.0, %v444
      %vm454 = vcmask 629760
      %v455 = vsel %vm454, %v450, 0.0
      %v456 = vsel %vm454, %v451, 0.0
      %v457 = vsel %vm454, %v452, 0.0
      %v458 = vsel %vm454, %v453, 0.0
      %v459 = vpack.c.bf16 %v456, %v455
      %v460 = vpack.c.bf16 %v458, %v457
      %463 = vrot.lane.b32.xlu0 %v459, 127
      %v464 = vpop.permute.xlu0 %463
      %465 = vrot.lane.b32.xlu0 %v460, 127
      %v466 = vpop.permute.xlu0 %465
      %469 = vrot.lane.b32.xlu0 %v459, 126
      %v470 = vpop.permute.xlu0 %469
      %471 = vrot.lane.b32.xlu0 %v460, 126
      %v472 = vpop.permute.xlu0 %471
      %475 = vrot.lane.b32.xlu0 %v459, 125
      %v476 = vpop.permute.xlu0 %475
      %477 = vrot.lane.b32.xlu0 %v460, 125
      %v478 = vpop.permute.xlu0 %477
      %481 = vrot.lane.b32.xlu0 %v459, 124
      %v482 = vpop.permute.xlu0 %481
      %483 = vrot.lane.b32.xlu0 %v460, 124
      %v484 = vpop.permute.xlu0 %483
      %487 = vrot.lane.b32.xlu0 %v459, 123
      %v488 = vpop.permute.xlu0 %487
      %489 = vrot.lane.b32.xlu0 %v460, 123
      %v490 = vpop.permute.xlu0 %489
      %493 = vrot.lane.b32.xlu0 %v459, 122
      %v494 = vpop.permute.xlu0 %493
      %495 = vrot.lane.b32.xlu0 %v460, 122
      %v496 = vpop.permute.xlu0 %495
      %499 = vrot.lane.b32.xlu0 %v459, 121
      %v500 = vpop.permute.xlu0 %499
      %501 = vrot.lane.b32.xlu0 %v460, 121
      %v502 = vpop.permute.xlu0 %501
      %505 = vrot.lane.b32.xlu0 %v459, 120
      %v506 = vpop.permute.xlu0 %505
      %507 = vrot.lane.b32.xlu0 %v460, 120
      %v508 = vpop.permute.xlu0 %507
      %511 = vrot.lane.b32.xlu0 %v459, 119
      %v512 = vpop.permute.xlu0 %511
      %513 = vrot.lane.b32.xlu0 %v460, 119
      %v514 = vpop.permute.xlu0 %513
      %517 = vrot.lane.b32.xlu0 %v459, 118
      %v518 = vpop.permute.xlu0 %517
      %519 = vrot.lane.b32.xlu0 %v460, 118
      %v520 = vpop.permute.xlu0 %519
      %523 = vrot.lane.b32.xlu0 %v459, 117
      %v524 = vpop.permute.xlu0 %523
      %525 = vrot.lane.b32.xlu0 %v460, 117
      %v526 = vpop.permute.xlu0 %525
      %529 = vrot.lane.b32.xlu0 %v459, 116
      %v530 = vpop.permute.xlu0 %529
      %531 = vrot.lane.b32.xlu0 %v460, 116
      %v532 = vpop.permute.xlu0 %531
      %535 = vrot.lane.b32.xlu0 %v459, 115
      %v536 = vpop.permute.xlu0 %535
      %537 = vrot.lane.b32.xlu0 %v460, 115
      %v538 = vpop.permute.xlu0 %537
      %541 = vrot.lane.b32.xlu0 %v459, 114
      %v542 = vpop.permute.xlu0 %541
      %543 = vrot.lane.b32.xlu0 %v460, 114
      %v544 = vpop.permute.xlu0 %543
      %547 = vrot.lane.b32.xlu0 %v459, 113
      %v548 = vpop.permute.xlu0 %547
      %549 = vrot.lane.b32.xlu0 %v460, 113
      %v550 = vpop.permute.xlu0 %549
      %553 = vrot.lane.b32.xlu0 %v459, 112
      %v554 = vpop.permute.xlu0 %553
      %555 = vrot.lane.b32.xlu0 %v460, 112
      %v556 = vpop.permute.xlu0 %555
      %557 = vrot.lane.b32.xlu0 %v464, 112
      %v558 = vpop.permute.xlu0 %557
      %559 = vrot.lane.b32.xlu0 %v466, 112
      %v560 = vpop.permute.xlu0 %559
      %561 = vrot.lane.b32.xlu0 %v470, 112
      %v562 = vpop.permute.xlu0 %561
      %563 = vrot.lane.b32.xlu0 %v472, 112
      %v564 = vpop.permute.xlu0 %563
      %565 = vrot.lane.b32.xlu0 %v476, 112
      %v566 = vpop.permute.xlu0 %565
      %567 = vrot.lane.b32.xlu0 %v478, 112
      %v568 = vpop.permute.xlu0 %567
      %569 = vrot.lane.b32.xlu0 %v482, 112
      %v570 = vpop.permute.xlu0 %569
      %571 = vrot.lane.b32.xlu0 %v484, 112
      %v572 = vpop.permute.xlu0 %571
      %573 = vrot.lane.b32.xlu0 %v488, 112
      %v574 = vpop.permute.xlu0 %573
      %575 = vrot.lane.b32.xlu0 %v490, 112
      %v576 = vpop.permute.xlu0 %575
      %577 = vrot.lane.b32.xlu0 %v494, 112
      %v578 = vpop.permute.xlu0 %577
      %579 = vrot.lane.b32.xlu0 %v496, 112
      %v580 = vpop.permute.xlu0 %579
      %581 = vrot.lane.b32.xlu0 %v500, 112
      %v582 = vpop.permute.xlu0 %581
      %583 = vrot.lane.b32.xlu0 %v502, 112
      %v584 = vpop.permute.xlu0 %583
      %585 = vrot.lane.b32.xlu0 %v506, 112
      %v586 = vpop.permute.xlu0 %585
      %587 = vrot.lane.b32.xlu0 %v508, 112
      %v588 = vpop.permute.xlu0 %587
      %589 = vrot.lane.b32.xlu0 %v512, 112
      %v590 = vpop.permute.xlu0 %589
      %591 = vrot.lane.b32.xlu0 %v514, 112
      %v592 = vpop.permute.xlu0 %591
      %593 = vrot.lane.b32.xlu0 %v518, 112
      %v594 = vpop.permute.xlu0 %593
      %595 = vrot.lane.b32.xlu0 %v520, 112
      %v596 = vpop.permute.xlu0 %595
      %v619 = vld [vmem:[%s2] sm:$0xff]
      %v620 = vld [vmem:[%s2 + $0x8] sm:$0xff]
      %v621 = vld [vmem:[%s2 + $0x10] sm:$0xff]
      %v622 = vld [vmem:[%s2 + $0x18] sm:$0xf]
      %v623 = vld [vmem:[%s2 + $0x1c] sm:$0xff]
      %v624 = vld [vmem:[%s2 + $0x24] sm:$0xff]
      %v625 = vld [vmem:[%s2 + $0x2c] sm:$0xff]
      %v626 = vld [vmem:[%s2 + $0x34] sm:$0xf]
      %v627 = vld [vmem:[%s2 + $0x38] sm:$0xff]
      %v628 = vld [vmem:[%s2 + $0x40] sm:$0xff]
      %v629 = vld [vmem:[%s2 + $0x48] sm:$0xff]
      %v630 = vld [vmem:[%s2 + $0x50] sm:$0xf]
      %v631 = vld [vmem:[%s2 + $0x54] sm:$0xff]
      %v632 = vld [vmem:[%s2 + $0x5c] sm:$0xff]
      %v633 = vld [vmem:[%s2 + $0x64] sm:$0xff]
      %v634 = vld [vmem:[%s2 + $0x6c] sm:$0xf]
      %v635 = vld [vmem:[%s5] sm:$0xff]
      %v636 = vld [vmem:[%s5 + $0x8] sm:$0xff]
      %v637 = vld [vmem:[%s5 + $0x10] sm:$0xff]
      %v638 = vld [vmem:[%s5 + $0x18] sm:$0xff]
      %640 = vset.pattern.permute.xlu0 0
      %641 = vperm.xlu0 %640, %v635
      %v642 = vpop.permute.xlu0 %641
      %645 = vset.pattern.permute.xlu0 0
      %646 = vperm.xlu0 %645, %v636
      %v647 = vpop.permute.xlu0 %646
      %650 = vset.pattern.permute.xlu0 0
      %651 = vperm.xlu0 %650, %v637
      %v652 = vpop.permute.xlu0 %651
      %655 = vset.pattern.permute.xlu0 0
      %656 = vperm.xlu0 %655, %v638
      %v657 = vpop.permute.xlu0 %656
      %v675 = vunpack.c.l.b16 %v619
      %v676 = vunpack.c.h.b16 %v619
      %v677 = vunpack.c.l.b16 %v620
      %v678 = vunpack.c.h.b16 %v620
      %v679 = vunpack.c.l.b16 %v621
      %v680 = vunpack.c.h.b16 %v621
      %v681 = vunpack.c.l.b16 %v622
      %v682 = vunpack.c.l.b16 %v623
      %v683 = vunpack.c.h.b16 %v623
      %v684 = vunpack.c.l.b16 %v624
      %v685 = vunpack.c.h.b16 %v624
      %v686 = vunpack.c.l.b16 %v625
      %v687 = vunpack.c.h.b16 %v625
      %v688 = vunpack.c.l.b16 %v626
      %v689 = vunpack.c.l.b16 %v627
      %v690 = vunpack.c.h.b16 %v627
      %v691 = vunpack.c.l.b16 %v628
      %v692 = vunpack.c.h.b16 %v628
      %v693 = vunpack.c.l.b16 %v629
      %v694 = vunpack.c.h.b16 %v629
      %v695 = vunpack.c.l.b16 %v630
      %v696 = vunpack.c.l.b16 %v631
      %v697 = vunpack.c.h.b16 %v631
      %v698 = vunpack.c.l.b16 %v632
      %v699 = vunpack.c.h.b16 %v632
      %v700 = vunpack.c.l.b16 %v633
      %v701 = vunpack.c.h.b16 %v633
      %v702 = vunpack.c.l.b16 %v634
      %v703 = vpack.c.b16 %v682, %v675
      %v704 = vpack.c.b16 %v683, %v676
      %v705 = vpack.c.b16 %v684, %v677
      %v706 = vpack.c.b16 %v685, %v678
      %v707 = vpack.c.b16 %v686, %v679
      %v708 = vpack.c.b16 %v687, %v680
      %v709 = vpack.c.b16 %v688, %v681
      %v710 = vpack.c.b16 %v696, %v689
      %v711 = vpack.c.b16 %v697, %v690
      %v712 = vpack.c.b16 %v698, %v691
      %v713 = vpack.c.b16 %v699, %v692
      %v714 = vpack.c.b16 %v700, %v693
      %v715 = vpack.c.b16 %v701, %v694
      %v716 = vpack.c.b16 %v702, %v695
      %vm729 = vcmask 785408
      %v731 = vsel %vm729, %v709, 0
      %v734 = vsel %vm729, %v716, 0
      %736 = vmatprep.subr.bf16.mxu0 0
      %737 = vmatpush1.bf16.msra.mxu0 %v478
      %738 = vmatprep.subr.bf16.mxu0 0
      %739 = vmatpush1.bf16.msra.mxu0 %v476
      %740 = vmatprep.subr.bf16.mxu0 0
      %741 = vmatpush1.bf16.msra.mxu0 %v472
      %742 = vmatprep.subr.bf16.mxu0 0
      %743 = vmatpush1.bf16.msra.mxu0 %v470
      %744 = vmatprep.subr.bf16.mxu0 0
      %745 = vmatpush1.bf16.msra.mxu0 %v466
      %746 = vmatprep.subr.bf16.mxu0 0
      %747 = vmatpush1.bf16.msra.mxu0 %v464
      %748 = vmatprep.subr.bf16.mxu0 0
      %749 = vmatpush1.bf16.msra.mxu0 %v460
      %750 = vmatprep.subr.bf16.mxu0 0
      %751 = vmatpush1.bf16.msra.mxu0 %v459
      %752 = vmatprep.subr.bf16.mxu0 0
      %753 = vmatpush2.bf16.msra.mxu0 %v502
      %754 = vmatprep.subr.bf16.mxu0 0
      %755 = vmatpush2.bf16.msra.mxu0 %v500
      %756 = vmatprep.subr.bf16.mxu0 0
      %757 = vmatpush2.bf16.msra.mxu0 %v496
      %758 = vmatprep.subr.bf16.mxu0 0
      %759 = vmatpush2.bf16.msra.mxu0 %v494
      %760 = vmatprep.subr.bf16.mxu0 0
      %761 = vmatpush2.bf16.msra.mxu0 %v490
      %762 = vmatprep.subr.bf16.mxu0 0
      %763 = vmatpush2.bf16.msra.mxu0 %v488
      %764 = vmatprep.subr.bf16.mxu0 0
      %765 = vmatpush2.bf16.msra.mxu0 %v484
      %766 = vmatprep.subr.bf16.mxu0 0
      %767 = vmatpush2.bf16.msra.mxu0 %v482
      %768 = vmatprep.mubr.bf16.mxu0 %v704
      %769 = vmatmul.mubr.bf16.gmra.mxu0 %v703
      %v770 = vpop.f32.mrf.mxu0
      %v771 = vadd.f32 %v642, %v770
      %v772 = vpop.f32.mrf.mxu0
      %v773 = vpop.f32.mrf.mxu0
      %v774 = vadd.f32 %v647, %v773
      %v775 = vpop.f32.mrf.mxu0
      %776 = vmatprep.mubr.bf16.mxu0 %v711
      %777 = vmatmul.mubr.bf16.gmra.mxu0 %v710
      %v778 = vpop.f32.mrf.mxu0
      %v779 = vadd.f32 %v652, %v778
      %v780 = vpop.f32.mrf.mxu0
      %v781 = vpop.f32.mrf.mxu0
      %v782 = vadd.f32 %v657, %v781
      %v783 = vpop.f32.mrf.mxu0
      %784 = vdwg.mxu0
      %785 = vmatprep.subr.bf16.mxu0 0
      %786 = vmatpush1.bf16.msra.mxu0 %v526
      %787 = vmatprep.subr.bf16.mxu0 0
      %788 = vmatpush1.bf16.msra.mxu0 %v524
      %789 = vmatprep.subr.bf16.mxu0 0
      %790 = vmatpush1.bf16.msra.mxu0 %v520
      %791 = vmatprep.subr.bf16.mxu0 0
      %792 = vmatpush1.bf16.msra.mxu0 %v518
      %793 = vmatprep.subr.bf16.mxu0 0
      %794 = vmatpush1.bf16.msra.mxu0 %v514
      %795 = vmatprep.subr.bf16.mxu0 0
      %796 = vmatpush1.bf16.msra.mxu0 %v512
      %797 = vmatprep.subr.bf16.mxu0 0
      %798 = vmatpush1.bf16.msra.mxu0 %v508
      %799 = vmatprep.subr.bf16.mxu0 0
      %800 = vmatpush1.bf16.msra.mxu0 %v506
      %801 = vmatprep.subr.bf16.mxu0 0
      %802 = vmatpush2.bf16.msra.mxu0 %v550
      %803 = vmatprep.subr.bf16.mxu0 0
      %804 = vmatpush2.bf16.msra.mxu0 %v548
      %805 = vmatprep.subr.bf16.mxu0 0
      %806 = vmatpush2.bf16.msra.mxu0 %v544
      %807 = vmatprep.subr.bf16.mxu0 0
      %808 = vmatpush2.bf16.msra.mxu0 %v542
      %809 = vmatprep.subr.bf16.mxu0 0
      %810 = vmatpush2.bf16.msra.mxu0 %v538
      %811 = vmatprep.subr.bf16.mxu0 0
      %812 = vmatpush2.bf16.msra.mxu0 %v536
      %813 = vmatprep.subr.bf16.mxu0 0
      %814 = vmatpush2.bf16.msra.mxu0 %v532
      %815 = vmatprep.subr.bf16.mxu0 0
      %816 = vmatpush2.bf16.msra.mxu0 %v530
      %817 = vmatprep.mubr.bf16.mxu0 %v706
      %818 = vmatmul.mubr.bf16.gmra.mxu0 %v705
      %v819 = vpop.f32.mrf.mxu0
      %v820 = vadd.f32 %v771, %v819
      %v821 = vpop.f32.mrf.mxu0
      %v822 = vpop.f32.mrf.mxu0
      %v823 = vadd.f32 %v774, %v822
      %v824 = vpop.f32.mrf.mxu0
      %825 = vmatprep.mubr.bf16.mxu0 %v713
      %826 = vmatmul.mubr.bf16.gmra.mxu0 %v712
      %v827 = vpop.f32.mrf.mxu0
      %v828 = vadd.f32 %v779, %v827
      %v829 = vpop.f32.mrf.mxu0
      %v830 = vpop.f32.mrf.mxu0
      %v831 = vadd.f32 %v782, %v830
      %v832 = vpop.f32.mrf.mxu0
      %833 = vdwg.mxu0
      %834 = vmatprep.subr.bf16.mxu0 0
      %835 = vmatpush1.bf16.msra.mxu0 %v568
      %836 = vmatprep.subr.bf16.mxu0 0
      %837 = vmatpush1.bf16.msra.mxu0 %v566
      %838 = vmatprep.subr.bf16.mxu0 0
      %839 = vmatpush1.bf16.msra.mxu0 %v564
      %840 = vmatprep.subr.bf16.mxu0 0
      %841 = vmatpush1.bf16.msra.mxu0 %v562
      %842 = vmatprep.subr.bf16.mxu0 0
      %843 = vmatpush1.bf16.msra.mxu0 %v560
      %844 = vmatprep.subr.bf16.mxu0 0
      %845 = vmatpush1.bf16.msra.mxu0 %v558
      %846 = vmatprep.subr.bf16.mxu0 0
      %847 = vmatpush1.bf16.msra.mxu0 %v556
      %848 = vmatprep.subr.bf16.mxu0 0
      %849 = vmatpush1.bf16.msra.mxu0 %v554
      %850 = vmatprep.subr.bf16.mxu0 0
      %851 = vmatpush2.bf16.msra.mxu0 %v584
      %852 = vmatprep.subr.bf16.mxu0 0
      %853 = vmatpush2.bf16.msra.mxu0 %v582
      %854 = vmatprep.subr.bf16.mxu0 0
      %855 = vmatpush2.bf16.msra.mxu0 %v580
      %856 = vmatprep.subr.bf16.mxu0 0
      %857 = vmatpush2.bf16.msra.mxu0 %v578
      %858 = vmatprep.subr.bf16.mxu0 0
      %859 = vmatpush2.bf16.msra.mxu0 %v576
      %860 = vmatprep.subr.bf16.mxu0 0
      %861 = vmatpush2.bf16.msra.mxu0 %v574
      %862 = vmatprep.subr.bf16.mxu0 0
      %863 = vmatpush2.bf16.msra.mxu0 %v572
      %864 = vmatprep.subr.bf16.mxu0 0
      %865 = vmatpush2.bf16.msra.mxu0 %v570
      %866 = vmatprep.mubr.bf16.mxu0 %v708
      %867 = vmatmul.mubr.bf16.gmra.mxu0 %v707
      %v868 = vpop.f32.mrf.mxu0
      %v869 = vadd.f32 %v820, %v868
      %v870 = vpop.f32.mrf.mxu0
      %v871 = vpop.f32.mrf.mxu0
      %v872 = vadd.f32 %v823, %v871
      %v873 = vpop.f32.mrf.mxu0
      %874 = vmatprep.mubr.bf16.mxu0 %v715
      %875 = vmatmul.mubr.bf16.gmra.mxu0 %v714
      %v876 = vpop.f32.mrf.mxu0
      %v877 = vadd.f32 %v828, %v876
      %v878 = vpop.f32.mrf.mxu0
      %v879 = vpop.f32.mrf.mxu0
      %v880 = vadd.f32 %v831, %v879
      %v881 = vpop.f32.mrf.mxu0
      %882 = vdwg.mxu0
      %883 = vmatprep.subr.bf16.mxu0 0
      %884 = vmatpush1.bf16.msra.mxu0 0
      %885 = vmatprep.subr.bf16.mxu0 0
      %886 = vmatpush1.bf16.msra.mxu0 0
      %887 = vmatprep.subr.bf16.mxu0 0
      %888 = vmatpush1.bf16.msra.mxu0 %v596
      %889 = vmatprep.subr.bf16.mxu0 0
      %890 = vmatpush1.bf16.msra.mxu0 %v594
      %891 = vmatprep.subr.bf16.mxu0 0
      %892 = vmatpush1.bf16.msra.mxu0 %v592
      %893 = vmatprep.subr.bf16.mxu0 0
      %894 = vmatpush1.bf16.msra.mxu0 %v590
      %895 = vmatprep.subr.bf16.mxu0 0
      %896 = vmatpush1.bf16.msra.mxu0 %v588
      %897 = vmatprep.subr.bf16.mxu0 0
      %898 = vmatpush1.bf16.msra.mxu0 %v586
      %899 = vmatprep.subr.bf16.mxu0 0
      %900 = vmatpush2.bf16.msra.mxu0 0
      %901 = vmatprep.subr.bf16.mxu0 0
      %902 = vmatpush2.bf16.msra.mxu0 0
      %903 = vmatprep.subr.bf16.mxu0 0
      %904 = vmatpush2.bf16.msra.mxu0 0
      %905 = vmatprep.subr.bf16.mxu0 0
      %906 = vmatpush2.bf16.msra.mxu0 0
      %907 = vmatprep.subr.bf16.mxu0 0
      %908 = vmatpush2.bf16.msra.mxu0 0
      %909 = vmatprep.subr.bf16.mxu0 0
      %910 = vmatpush2.bf16.msra.mxu0 0
      %911 = vmatprep.subr.bf16.mxu0 0
      %912 = vmatpush2.bf16.msra.mxu0 0
      %913 = vmatprep.subr.bf16.mxu0 0
      %914 = vmatpush2.bf16.msra.mxu0 0
      %915 = vmatprep.mubr.bf16.mxu0 0
      %916 = vmatmul.mubr.bf16.gmra.mxu0 %v731
      %v917 = vpop.f32.mrf.mxu0
      %v918 = vadd.f32 %v869, %v917
      %v919 = vpop.f32.mrf.mxu0
      %v920 = vpop.f32.mrf.mxu0
      %v921 = vadd.f32 %v872, %v920
      %v922 = vpop.f32.mrf.mxu0
      %923 = vmatprep.mubr.bf16.mxu0 0
      %924 = vmatmul.mubr.bf16.gmra.mxu0 %v734
      %v925 = vpop.f32.mrf.mxu0
      %v926 = vadd.f32 %v877, %v925
      %v927 = vpop.f32.mrf.mxu0
      %v928 = vpop.f32.mrf.mxu0
      %v929 = vadd.f32 %v880, %v928
      %v930 = vpop.f32.mrf.mxu0
      %931 = vdwg.mxu0
      %vm932 = vcmask 523264
      %933 = vst.msk [vmem:[%s354] sm:$0xff] %vm932, %v918
      %934 = vst.msk [vmem:[%s354 + $0x8] sm:$0xff] %vm932, %v921
      %935 = vst.msk [vmem:[%s354 + $0x10] sm:$0xff] %vm932, %v926
      %936 = vst.msk [vmem:[%s354 + $0x18] sm:$0xff] %vm932, %v929
      %v937 = vsel %vm932, %v918, 0.0
      %938 = vadd.xlane.f32.xlu0 %v937
      %v939 = vpop.xlane.xlu0 %938
      %v940 = vsel %vm932, %v921, 0.0
      %941 = vadd.xlane.f32.xlu0 %v940
      %v942 = vpop.xlane.xlu0 %941
      %v943 = vsel %vm932, %v926, 0.0
      %944 = vadd.xlane.f32.xlu0 %v943
      %v945 = vpop.xlane.xlu0 %944
      %v946 = vsel %vm932, %v929, 0.0
      %947 = vadd.xlane.f32.xlu0 %v946
      %v948 = vpop.xlane.xlu0 %947
      %v949 = vmul.f32 %v918, %v918
      %v950 = vmul.f32 %v921, %v921
      %v951 = vmul.f32 %v926, %v926
      %v952 = vmul.f32 %v929, %v929
      %v953 = vsel %vm932, %v949, 0.0
      %954 = vadd.xlane.f32.xlu0 %v953
      %v955 = vpop.xlane.xlu0 %954
      %v956 = vsel %vm932, %v950, 0.0
      %957 = vadd.xlane.f32.xlu0 %v956
      %v958 = vpop.xlane.xlu0 %957
      %v959 = vsel %vm932, %v951, 0.0
      %960 = vadd.xlane.f32.xlu0 %v959
      %v961 = vpop.xlane.xlu0 %960
      %v962 = vsel %vm932, %v952, 0.0
      %963 = vadd.xlane.f32.xlu0 %v962
      %v964 = vpop.xlane.xlu0 %963
      %vm965 = vcmask 7168
      %v966 = vsel %vm965, %v939, %v955
      %v967 = vsel %vm965, %v942, %v958
      %v968 = vsel %vm965, %v945, %v961
      %v969 = vsel %vm965, %v948, %v964
      %vm970 = vcmask 15360
      %971 = vst.msk [vmem:[%s363] sm:$0xff] %vm970, %v966
      %972 = vst.msk [vmem:[%s363 + $0x8] sm:$0xff] %vm970, %v967
      %973 = vst.msk [vmem:[%s363 + $0x10] sm:$0xff] %vm970, %v968
      %974 = vst.msk [vmem:[%s363 + $0x18] sm:$0xff] %vm970, %v969
      %p975 = scmp.lt.s32.totalorder %s23, 1
      %s976 = scalar_select %p975, %s23, 1
      %p977 = scmp.lt.s32.totalorder %s24, 0
      %s978 = scalar_select %p977, %s24, 0
      %s979 = smul.addr %s976, 4
      %s980 = sadd.s32 %s978, %s979
      %s981 = smul.addr %s980, 8
      %s982 = scalar_lea.vmem %s6, %s981
      %p983 = scmp.lt.s32.totalorder %s23, 1
      %s984 = scalar_select %p983, %s23, 1
      %p985 = scmp.lt.s32.totalorder %s24, 0
      %s986 = scalar_select %p985, %s24, 0
      %s987 = smul.addr %s986, 4
      %s988 = smul.addr %s984, 4
      %s989 = sadd.s32 %s987, %s988
      %s990 = smul.addr %s989, 8
      %s991 = scalar_lea.vmem %s7, %s990
      // Predicated region
      $region45: #{srresnet_forward.13} parent=43 // pred_check
        %p992 = pneg %p191
      $region46: #{srresnet_forward.13} parent=43 // pred_check_branch
        %994 = sbr.rel (%p992) target = $region48
      $region47: #{srresnet_forward.13} parent=43 // pred_region
        _
      $region48: #{srresnet_forward.13} parent=43 // pred_fallthru
        _
      // Predicated region
      $region49: #{srresnet_forward.13} parent=43 // pred_check
        %p995 = pneg %p219
      $region50: #{srresnet_forward.13} parent=43 // pred_check_branch
        %997 = sbr.rel (%p995) target = $region52
      $region51: #{srresnet_forward.13} parent=43 // pred_region
        _
      $region52: #{srresnet_forward.13} parent=43 // pred_fallthru
        _
    $region44: #{srresnet_forward.13} parent=5 // pred_fallthru
      _
    %p998 = scmp.le.s32.totalorder 2, %s14
    // Predicated region
    $region53: #{srresnet_forward.13} parent=5 // pred_check
      %p999 = pneg %p998
    $region54: #{srresnet_forward.13} parent=5 // pred_check_branch
      %1001 = sbr.rel (%p999) target = $region56
    $region55: #{srresnet_forward.13} parent=5 // pred_region
      %s1002 = ssub.s32 %s14, 2
      // Predicated region
      $region57: #{srresnet_forward.13} parent=55 // pred_check
        %p1003 = pneg %p197
      $region58: #{srresnet_forward.13} parent=55 // pred_check_branch
        %1005 = sbr.rel (%p1003) target = $region60
      $region59: #{srresnet_forward.13} parent=55 // pred_region
        %p1006 = scmp.lt.s32.totalorder %s25, 1
        %s1007 = scalar_select %p1006, %s25, 1
        %p1008 = scmp.lt.s32.totalorder %s26, 0
        %s1009 = scalar_select %p1008, %s26, 0
        %s1010 = smul.addr %s1007, 4
        %s1011 = sadd.s32 %s1009, %s1010
        %s1012 = smul.addr %s1011, 8
        %s1013 = scalar_lea.vmem %s6, %s1012
      $region60: #{srresnet_forward.13} parent=55 // pred_fallthru
        _
      // Predicated region
      $region61: #{srresnet_forward.13} parent=55 // pred_check
        %p1014 = pneg %p225
      $region62: #{srresnet_forward.13} parent=55 // pred_check_branch
        %1016 = sbr.rel (%p1014) target = $region64
      $region63: #{srresnet_forward.13} parent=55 // pred_region
        %p1017 = scmp.lt.s32.totalorder %s25, 1
        %s1018 = scalar_select %p1017, %s25, 1
        %p1019 = scmp.lt.s32.totalorder %s26, 0
        %s1020 = scalar_select %p1019, %s26, 0
        %s1021 = smul.addr %s1020, 4
        %s1022 = smul.addr %s1018, 4
        %s1023 = sadd.s32 %s1021, %s1022
        %s1024 = smul.addr %s1023, 8
        %s1025 = scalar_lea.vmem %s7, %s1024
      $region64: #{srresnet_forward.13} parent=55 // pred_fallthru
        _
    $region56: #{srresnet_forward.13} parent=5 // pred_fallthru
      _
  $region6: #{srresnet_forward.13} parent=0 // loop_footer
    %s18 = sadd.s32 1, %s14
  $region7: #{srresnet_forward.13} parent=0 // loop_footer_branch
    %13 = sbr.rel target = $region3
  $region8: #{srresnet_forward.13} parent=0 // loop_exit
    _

// kernel: srresnet_forward.14
$region0: #{srresnet_forward.14}
  #allocation0 [shape = 'u32[]', space=smem, size = 0x4, offset = 0x4, fixed_abs, tag = 'smem constant byte address 0x4 - core index']
  #allocation1 [shape = 'u32[144,128]{1,0:T(1,128)}', space=vmem, size = 0x12000, scoped, tag = 'internal scratch']
  %s0 = inlined_call_operand.vmem [shape: f32[2,32,64], index: 0, kind: input, shape index: {}]
  %s1 = inlined_call_operand.vmem [shape: f32[2,32,64], index: 1, kind: input, shape index: {}]
  %s2 = inlined_call_operand.vmem [shape: bf16[64,864], index: 2, kind: input, shape index: {}]
  %s3 = inlined_call_operand.vmem [shape: f32[32,1], index: 3, kind: input, shape index: {}]
  %s4 = inlined_call_operand.vmem [shape: f32[32,1], index: 4, kind: input, shape index: {}]
  %s5 = inlined_call_operand.vmem [shape: f32[2,64,64], index: 5, kind: output, shape index: {}]
  %s6 = sld [smem:[#allocation0]]
  $region53: #{srresnet_forward.14} parent=0
    _
  %s8 = ssub.s32 1, %s6
  %s9 = scalar_select 0, %s8, %s6
  loop: start=0, step=1, limit=4
  $region2: #{srresnet_forward.14} parent=0 // loop_pre_header
    _
  $region3: #{srresnet_forward.14} parent=0 // loop_header
    %s11 = sphi 0, %s15
    %p12 = scmp.ge.s32.totalorder %s11, 4
    %s18 = sphi 0, %s30
    %s19 = sphi 0, %s26
    %s20 = sphi 0, %s18
    %s21 = sphi 0, %s19
    %s22 = sphi 0, %s20
    %s23 = sphi 0, %s21
    %s35 = sphi 0, %s37
    %s38 = sphi 0, %s35
    %s39 = sphi 0, %s38
    %s55 = sphi 0, %s39
    %s63 = sphi 0, %s65
    %s66 = sphi 0, %s63
    %s67 = sphi 0, %s66
    %s83 = sphi 0, %s67
    %s87 = sphi 0, %s87
    %s89 = sphi 0, %s87
    %s90 = sphi 0, %s89
    %s104 = sphi 0, %s90
    %s108 = sphi 0, %s108
    %s110 = sphi 0, %s108
    %s111 = sphi 0, %s110
    %s125 = sphi 0, %s111
    %s129 = sphi 0, %s129
    %s131 = sphi 0, %s129
    %s132 = sphi 0, %s131
    %s146 = sphi 0, %s132
    %s154 = sphi 0, %s156
    %s157 = sphi 0, %s154
    %s158 = sphi 0, %s157
    %s174 = sphi 0, %s158
  $region4: #{srresnet_forward.14} parent=0 // loop_header_branch
    %14 = sbr.rel (%p12) target = $region8
  $region5: #{srresnet_forward.14} parent=0 // loop_body
    %s16 = ssub.s32 %s11, 1
    %s17 = ssub.s32 %s11, 2
    %s24 = sadd.s32 1, %s19
    %p25 = scmp.ge.s32.totalorder %s24, 1
    %s26 = scalar_select %p25, 0, %s24
    %s27 = sadd.s32 1, %s18
    %s28 = scalar_select %p25, %s27, %s18
    %p29 = scmp.ge.s32.totalorder %s28, 2
    %s30 = scalar_select %p29, 0, %s28
    %s31 = ssub.s32 %s18, %s30
    %s32 = ssub.s32 %s19, %s26
    %s33 = sor.u32 %s31, %s32
    %p34 = scmp.eq.s32.totalorder %s33, 0
    %s36 = sadd.s32 %s35, 1
    %s37 = scalar_select %p34, %s35, %s36
    %p40 = pneg %p34
    %p41 = scmp.eq.s32.totalorder %s11, 1
    %p42 = por %p40, %p41
    %p43 = scmp.ne.s32.totalorder %s35, %s38
    %p44 = scmp.eq.s32.totalorder %s11, 0
    %p45 = por %p43, %p44
    %p46 = scmp.ne.s32.totalorder %s35, %s38
    %p47 = scmp.eq.s32.totalorder %s16, 1
    %p48 = por %p46, %p47
    %p49 = scmp.ne.s32.totalorder %s38, %s39
    %p50 = scmp.eq.s32.totalorder %s16, 0
    %p51 = por %p49, %p50
    %p52 = scmp.ne.s32.totalorder %s38, %s39
    %p53 = scmp.eq.s32.totalorder %s17, 1
    %p54 = por %p52, %p53
    %p56 = scmp.ne.s32.totalorder %s39, %s55
    %p57 = scmp.eq.s32.totalorder %s17, 0
    %p58 = por %p56, %p57
    %s59 = ssub.s32 %s18, %s30
    %s60 = ssub.s32 %s19, %s26
    %s61 = sor.u32 %s59, %s60
    %p62 = scmp.eq.s32.totalorder %s61, 0
    %s64 = sadd.s32 %s63, 1
    %s65 = scalar_select %p62, %s63, %s64
    %p68 = pneg %p62
    %p69 = scmp.eq.s32.totalorder %s11, 1
    %p70 = por %p68, %p69
    %p71 = scmp.ne.s32.totalorder %s63, %s66
    %p72 = scmp.eq.s32.totalorder %s11, 0
    %p73 = por %p71, %p72
    %p74 = scmp.ne.s32.totalorder %s63, %s66
    %p75 = scmp.eq.s32.totalorder %s16, 1
    %p76 = por %p74, %p75
    %p77 = scmp.ne.s32.totalorder %s66, %s67
    %p78 = scmp.eq.s32.totalorder %s16, 0
    %p79 = por %p77, %p78
    %p80 = scmp.ne.s32.totalorder %s66, %s67
    %p81 = scmp.eq.s32.totalorder %s17, 1
    %p82 = por %p80, %p81
    %p84 = scmp.ne.s32.totalorder %s67, %s83
    %p85 = scmp.eq.s32.totalorder %s17, 0
    %p86 = por %p84, %p85
    %s88 = sadd.s32 %s87, 1
    %p91 = scmp.eq.s32.totalorder %s11, 1
    %p92 = scmp.ne.s32.totalorder %s87, %s89
    %p93 = scmp.eq.s32.totalorder %s11, 0
    %p94 = por %p92, %p93
    %p95 = scmp.ne.s32.totalorder %s87, %s89
    %p96 = scmp.eq.s32.totalorder %s16, 1
    %p97 = por %p95, %p96
    %p98 = scmp.ne.s32.totalorder %s89, %s90
    %p99 = scmp.eq.s32.totalorder %s16, 0
    %p100 = por %p98, %p99
    %p101 = scmp.ne.s32.totalorder %s89, %s90
    %p102 = scmp.eq.s32.totalorder %s17, 1
    %p103 = por %p101, %p102
    %p105 = scmp.ne.s32.totalorder %s90, %s104
    %p106 = scmp.eq.s32.totalorder %s17, 0
    %p107 = por %p105, %p106
    %s109 = sadd.s32 %s108, 1
    %p112 = scmp.eq.s32.totalorder %s11, 1
    %p113 = scmp.ne.s32.totalorder %s108, %s110
    %p114 = scmp.eq.s32.totalorder %s11, 0
    %p115 = por %p113, %p114
    %p116 = scmp.ne.s32.totalorder %s108, %s110
    %p117 = scmp.eq.s32.totalorder %s16, 1
    %p118 = por %p116, %p117
    %p119 = scmp.ne.s32.totalorder %s110, %s111
    %p120 = scmp.eq.s32.totalorder %s16, 0
    %p121 = por %p119, %p120
    %p122 = scmp.ne.s32.totalorder %s110, %s111
    %p123 = scmp.eq.s32.totalorder %s17, 1
    %p124 = por %p122, %p123
    %p126 = scmp.ne.s32.totalorder %s111, %s125
    %p127 = scmp.eq.s32.totalorder %s17, 0
    %p128 = por %p126, %p127
    %s130 = sadd.s32 %s129, 1
    %p133 = scmp.eq.s32.totalorder %s11, 1
    %p134 = scmp.ne.s32.totalorder %s129, %s131
    %p135 = scmp.eq.s32.totalorder %s11, 0
    %p136 = por %p134, %p135
    %p137 = scmp.ne.s32.totalorder %s129, %s131
    %p138 = scmp.eq.s32.totalorder %s16, 1
    %p139 = por %p137, %p138
    %p140 = scmp.ne.s32.totalorder %s131, %s132
    %p141 = scmp.eq.s32.totalorder %s16, 0
    %p142 = por %p140, %p141
    %p143 = scmp.ne.s32.totalorder %s131, %s132
    %p144 = scmp.eq.s32.totalorder %s17, 1
    %p145 = por %p143, %p144
    %p147 = scmp.ne.s32.totalorder %s132, %s146
    %p148 = scmp.eq.s32.totalorder %s17, 0
    %p149 = por %p147, %p148
    %s150 = ssub.s32 %s18, %s30
    %s151 = ssub.s32 %s19, %s26
    %s152 = sor.u32 %s150, %s151
    %p153 = scmp.eq.s32.totalorder %s152, 0
    %s155 = sadd.s32 %s154, 1
    %s156 = scalar_select %p153, %s154, %s155
    %p159 = pneg %p153
    %p160 = scmp.eq.s32.totalorder %s11, 1
    %p161 = por %p159, %p160
    %p162 = scmp.ne.s32.totalorder %s154, %s157
    %p163 = scmp.eq.s32.totalorder %s11, 0
    %p164 = por %p162, %p163
    %p165 = scmp.ne.s32.totalorder %s154, %s157
    %p166 = scmp.eq.s32.totalorder %s16, 1
    %p167 = por %p165, %p166
    %p168 = scmp.ne.s32.totalorder %s157, %s158
    %p169 = scmp.eq.s32.totalorder %s16, 0
    %p170 = por %p168, %p169
    %p171 = scmp.ne.s32.totalorder %s157, %s158
    %p172 = scmp.eq.s32.totalorder %s17, 1
    %p173 = por %p171, %p172
    %p175 = scmp.ne.s32.totalorder %s158, %s174
    %p176 = scmp.eq.s32.totalorder %s17, 0
    %p177 = por %p175, %p176
    %p178 = scmp.le.s32.totalorder 1, %s11
    %p179 = scmp.lt.s32.totalorder %s11, 3
    %p180 = pnand %p178, %p179
    %p181 = pneg %p180
    // Predicated region
    $region9: #{srresnet_forward.14} parent=5 // pred_check
      _
    $region10: #{srresnet_forward.14} parent=5 // pred_check_branch
      %183 = sbr.rel (%p180) target = $region12
    $region11: #{srresnet_forward.14} parent=5 // pred_region
      %s184 = ssub.s32 %s11, 1
      // Predicated region
      $region13: #{srresnet_forward.14} parent=11 // pred_check
        %p185 = pneg %p100
      $region14: #{srresnet_forward.14} parent=11 // pred_check_branch
        %187 = sbr.rel (%p185) target = $region16
      $region15: #{srresnet_forward.14} parent=11 // pred_region
        _
      $region16: #{srresnet_forward.14} parent=11 // pred_fallthru
        _
      // Predicated region
      $region17: #{srresnet_forward.14} parent=11 // pred_check
        %p188 = pneg %p121
      $region18: #{srresnet_forward.14} parent=11 // pred_check_branch
        %190 = sbr.rel (%p188) target = $region20
      $region19: #{srresnet_forward.14} parent=11 // pred_region
        _
      $region20: #{srresnet_forward.14} parent=11 // pred_fallthru
        _
      // Predicated region
      $region21: #{srresnet_forward.14} parent=11 // pred_check
        %p191 = pneg %p142
      $region22: #{srresnet_forward.14} parent=11 // pred_check_branch
        %193 = sbr.rel (%p191) target = $region24
      $region23: #{srresnet_forward.14} parent=11 // pred_region
        _
      $region24: #{srresnet_forward.14} parent=11 // pred_fallthru
        _
    $region12: #{srresnet_forward.14} parent=5 // pred_fallthru
      _
    %p194 = scmp.lt.s32.totalorder %s11, 2
    // Predicated region
    $region25: #{srresnet_forward.14} parent=5 // pred_check
      %p195 = pneg %p194
    $region26: #{srresnet_forward.14} parent=5 // pred_check_branch
      %197 = sbr.rel (%p195) target = $region28
    $region27: #{srresnet_forward.14} parent=5 // pred_region
      // Predicated region
      $region29: #{srresnet_forward.14} parent=27 // pred_check
        %p198 = pneg %p45
      $region30: #{srresnet_forward.14} parent=27 // pred_check_branch
        %200 = sbr.rel (%p198) target = $region32
      $region31: #{srresnet_forward.14} parent=27 // pred_region
        %p201 = scmp.lt.s32.totalorder %s18, 1
        %s202 = scalar_select %p201, %s18, 1
        %p203 = scmp.lt.s32.totalorder %s19, 0
        %s204 = scalar_select %p203, %s19, 0
        %s205 = smul.addr %s202, 4
        %s206 = sadd.s32 %s204, %s205
        %s207 = smul.addr %s206, 8
        %s208 = scalar_lea.vmem %s0, %s207
      $region32: #{srresnet_forward.14} parent=27 // pred_fallthru
        _
      // Predicated region
      $region33: #{srresnet_forward.14} parent=27 // pred_check
        %p209 = pneg %p73
      $region34: #{srresnet_forward.14} parent=27 // pred_check_branch
        %211 = sbr.rel (%p209) target = $region36
      $region35: #{srresnet_forward.14} parent=27 // pred_region
        %p212 = scmp.lt.s32.totalorder %s18, 1
        %s213 = scalar_select %p212, %s18, 1
        %p214 = scmp.lt.s32.totalorder %s19, 0
        %s215 = scalar_select %p214, %s19, 0
        %s216 = smul.addr %s213, 4
        %s217 = sadd.s32 %s215, %s216
        %s218 = smul.addr %s217, 8
        %s219 = scalar_lea.vmem %s1, %s218
      $region36: #{srresnet_forward.14} parent=27 // pred_fallthru
        _
    $region28: #{srresnet_forward.14} parent=5 // pred_fallthru
      _
    %p220 = scmp.le.s32.totalorder 1, %s11
    %p221 = scmp.lt.s32.totalorder %s11, 3
    %p222 = pnand %p220, %p221
    %p223 = pneg %p222
    // Predicated region
    $region37: #{srresnet_forward.14} parent=5 // pred_check
      _
    $region38: #{srresnet_forward.14} parent=5 // pred_check_branch
      %225 = sbr.rel (%p222) target = $region40
    $region39: #{srresnet_forward.14} parent=5 // pred_region
      %s226 = ssub.s32 %s11, 1
      %p227 = scmp.lt.s32.totalorder %s20, 1
      %s228 = scalar_select %p227, %s20, 1
      %p229 = scmp.lt.s32.totalorder %s21, 0
      %s230 = scalar_select %p229, %s21, 0
      %s231 = smul.addr %s228, 4
      %s232 = sadd.s32 %s230, %s231
      %s233 = smul.addr %s232, 8
      %s234 = scalar_lea.vmem %s0, %s233
      %p235 = pneg %p51
      %p236 = pneg %p48
      %p237 = scmp.lt.s32.totalorder %s20, 1
      %s238 = scalar_select %p237, %s20, 1
      %p239 = scmp.lt.s32.totalorder %s21, 0
      %s240 = scalar_select %p239, %s21, 0
      %s241 = smul.addr %s238, 4
      %s242 = sadd.s32 %s240, %s241
      %s243 = smul.addr %s242, 8
      %s244 = scalar_lea.vmem %s1, %s243
      %p245 = pneg %p79
      %p246 = pneg %p76
      %p247 = pneg %p100
      %p248 = pneg %p97
      %p249 = pneg %p121
      %p250 = pneg %p118
      %p251 = pneg %p142
      %p252 = pneg %p139
      %p253 = pneg %p170
      %p254 = pneg %p167
      %p255 = scmp.lt.s32.totalorder %s20, 1
      %s256 = scalar_select %p255, %s20, 1
      %p257 = scmp.lt.s32.totalorder %s21, 0
      %s258 = scalar_select %p257, %s21, 0
      %s259 = smul.addr %s256, 8
      %s260 = sadd.s32 %s258, %s259
      %s261 = smul.addr %s260, 8
      %s262 = scalar_lea.vmem %s5, %s261
      %p263 = scmp.lt.s32.totalorder %s20, 1
      %s264 = scalar_select %p263, %s20, 1
      %p265 = scmp.lt.s32.totalorder %s21, 0
      %s266 = scalar_select %p265, %s21, 0
      %s267 = smul.addr %s264, 4
      %s268 = sadd.s32 %s266, %s267
      %s269 = smul.addr %s268, 8
      %s270 = scalar_lea.vmem %s0, %s269
      %p271 = scmp.lt.s32.totalorder %s20, 1
      %s272 = scalar_select %p271, %s20, 1
      %p273 = scmp.lt.s32.totalorder %s21, 0
      %s274 = scalar_select %p273, %s21, 0
      %s275 = smul.addr %s272, 4
      %s276 = sadd.s32 %s274, %s275
      %s277 = smul.addr %s276, 8
      %s278 = scalar_lea.vmem %s1, %s277
      %p279 = scmp.lt.s32.totalorder %s20, 1
      %s280 = scalar_select %p279, %s20, 1
      %p281 = scmp.lt.s32.totalorder %s21, 0
      %s282 = scalar_select %p281, %s21, 0
      %s283 = smul.addr %s280, 8
      %s284 = sadd.s32 %s282, %s283
      %s285 = smul.addr %s284, 8
      %s286 = scalar_lea.vmem %s5, %s285
      %v288 = vld [vmem:[%s270] sm:$0xff]
      %v289 = vld [vmem:[%s270 + $0x8] sm:$0xff]
      %v290 = vld [vmem:[%s270 + $0x10] sm:$0xff]
      %v291 = vld [vmem:[%s270 + $0x18] sm:$0xff]
      %v292 = vld [vmem:[%s278] sm:$0xff]
      %v293 = vld [vmem:[%s278 + $0x8] sm:$0xff]
      %v294 = vld [vmem:[%s278 + $0x10] sm:$0xff]
      %v295 = vld [vmem:[%s278 + $0x18] sm:$0xff]
      %v296 = vld [vmem:[%s3] sm:$0xff]
      %v297 = vld [vmem:[%s3 + $0x8] sm:$0xff]
      %v298 = vld [vmem:[%s3 + $0x10] sm:$0xff]
      %v299 = vld [vmem:[%s3 + $0x18] sm:$0xff]
      %301 = vset.pattern.permute.xlu0 0
      %302 = vperm.xlu0 %301, %v296
      %v303 = vpop.permute.xlu0 %302
      %306 = vset.pattern.permute.xlu0 0
      %307 = vperm.xlu0 %306, %v297
      %v308 = vpop.permute.xlu0 %307
      %311 = vset.pattern.permute.xlu0 0
      %312 = vperm.xlu0 %311, %v298
      %v313 = vpop.permute.xlu0 %312
      %316 = vset.pattern.permute.xlu0 0
      %317 = vperm.xlu0 %316, %v299
      %v318 = vpop.permute.xlu0 %317
      %v320 = vmul.f32 %v288, %v303
      %v321 = vmul.f32 %v289, %v308
      %v322 = vmul.f32 %v290, %v313
      %v323 = vmul.f32 %v291, %v318
      %v324 = vld [vmem:[%s4] sm:$0xff]
      %v325 = vld [vmem:[%s4 + $0x8] sm:$0xff]
      %v326 = vld [vmem:[%s4 + $0x10] sm:$0xff]
      %v327 = vld [vmem:[%s4 + $0x18] sm:$0xff]
      %329 = vset.pattern.permute.xlu0 0
      %330 = vperm.xlu0 %329, %v324
      %v331 = vpop.permute.xlu0 %330
      %334 = vset.pattern.permute.xlu0 0
      %335 = vperm.xlu0 %334, %v325
      %v336 = vpop.permute.xlu0 %335
      %339 = vset.pattern.permute.xlu0 0
      %340 = vperm.xlu0 %339, %v326
      %v341 = vpop.permute.xlu0 %340
      %344 = vset.pattern.permute.xlu0 0
      %345 = vperm.xlu0 %344, %v327
      %v346 = vpop.permute.xlu0 %345
      %v348 = vadd.f32 %v320, %v331
      %v349 = vadd.f32 %v321, %v336
      %v350 = vadd.f32 %v322, %v341
      %v351 = vadd.f32 %v323, %v346
      %v352 = vadd.f32 %v348, %v292
      %v353 = vadd.f32 %v349, %v293
      %v354 = vadd.f32 %v350, %v294
      %v355 = vadd.f32 %v351, %v295
      %360 = vrot.lane.b32.xlu0 %v352, 13
      %v361 = vpop.permute.xlu0 %360
      %362 = vrot.lane.b32.xlu0 %v353, 13
      %v363 = vpop.permute.xlu0 %362
      %364 = vrot.lane.b32.xlu0 %v354, 13
      %v365 = vpop.permute.xlu0 %364
      %366 = vrot.lane.b32.xlu0 %v355, 13
      %v367 = vpop.permute.xlu0 %366
      %vm372 = vcmask 105472
      %v373 = vsel %vm372, 0.0, %v361
      %v374 = vsel %vm372, 0.0, %v363
      %v375 = vsel %vm372, 0.0, %v365
      %v376 = vsel %vm372, 0.0, %v367
      %vm377 = vcmask 629760
      %v378 = vsel %vm377, %v373, 0.0
      %v379 = vsel %vm377, %v374, 0.0
      %v380 = vsel %vm377, %v375, 0.0
      %v381 = vsel %vm377, %v376, 0.0
      %v382 = vpack.c.bf16 %v379, %v378
      %v383 = vpack.c.bf16 %v381, %v380
      %386 = vrot.lane.b32.xlu0 %v382, 127
      %v387 = vpop.permute.xlu0 %386
      %388 = vrot.lane.b32.xlu0 %v383, 127
      %v389 = vpop.permute.xlu0 %388
      %392 = vrot.lane.b32.xlu0 %v382, 126
      %v393 = vpop.permute.xlu0 %392
      %394 = vrot.lane.b32.xlu0 %v383, 126
      %v395 = vpop.permute.xlu0 %394
      %398 = vrot.lane.b32.xlu0 %v382, 125
      %v399 = vpop.permute.xlu0 %398
      %400 = vrot.lane.b32.xlu0 %v383, 125
      %v401 = vpop.permute.xlu0 %400
      %404 = vrot.lane.b32.xlu0 %v382, 124
      %v405 = vpop.permute.xlu0 %404
      %406 = vrot.lane.b32.xlu0 %v383, 124
      %v407 = vpop.permute.xlu0 %406
      %410 = vrot.lane.b32.xlu0 %v382, 123
      %v411 = vpop.permute.xlu0 %410
      %412 = vrot.lane.b32.xlu0 %v383, 123
      %v413 = vpop.permute.xlu0 %412
      %416 = vrot.lane.b32.xlu0 %v382, 122
      %v417 = vpop.permute.xlu0 %416
      %418 = vrot.lane.b32.xlu0 %v383, 122
      %v419 = vpop.permute.xlu0 %418
      %422 = vrot.lane.b32.xlu0 %v382, 121
      %v423 = vpop.permute.xlu0 %422
      %424 = vrot.lane.b32.xlu0 %v383, 121
      %v425 = vpop.permute.xlu0 %424
      %428 = vrot.lane.b32.xlu0 %v382, 120
      %v429 = vpop.permute.xlu0 %428
      %430 = vrot.lane.b32.xlu0 %v383, 120
      %v431 = vpop.permute.xlu0 %430
      %434 = vrot.lane.b32.xlu0 %v382, 119
      %v435 = vpop.permute.xlu0 %434
      %436 = vrot.lane.b32.xlu0 %v383, 119
      %v437 = vpop.permute.xlu0 %436
      %440 = vrot.lane.b32.xlu0 %v382, 118
      %v441 = vpop.permute.xlu0 %440
      %442 = vrot.lane.b32.xlu0 %v383, 118
      %v443 = vpop.permute.xlu0 %442
      %446 = vrot.lane.b32.xlu0 %v382, 117
      %v447 = vpop.permute.xlu0 %446
      %448 = vrot.lane.b32.xlu0 %v383, 117
      %v449 = vpop.permute.xlu0 %448
      %452 = vrot.lane.b32.xlu0 %v382, 116
      %v453 = vpop.permute.xlu0 %452
      %454 = vrot.lane.b32.xlu0 %v383, 116
      %v455 = vpop.permute.xlu0 %454
      %458 = vrot.lane.b32.xlu0 %v382, 115
      %v459 = vpop.permute.xlu0 %458
      %460 = vrot.lane.b32.xlu0 %v383, 115
      %v461 = vpop.permute.xlu0 %460
      %464 = vrot.lane.b32.xlu0 %v382, 114
      %v465 = vpop.permute.xlu0 %464
      %466 = vrot.lane.b32.xlu0 %v383, 114
      %v467 = vpop.permute.xlu0 %466
      %470 = vrot.lane.b32.xlu0 %v382, 113
      %v471 = vpop.permute.xlu0 %470
      %472 = vrot.lane.b32.xlu0 %v383, 113
      %v473 = vpop.permute.xlu0 %472
      %476 = vrot.lane.b32.xlu0 %v382, 112
      %v477 = vpop.permute.xlu0 %476
      %478 = vrot.lane.b32.xlu0 %v383, 112
      %v479 = vpop.permute.xlu0 %478
      %480 = vrot.lane.b32.xlu0 %v387, 112
      %v481 = vpop.permute.xlu0 %480
      %482 = vrot.lane.b32.xlu0 %v389, 112
      %v483 = vpop.permute.xlu0 %482
      %484 = vrot.lane.b32.xlu0 %v393, 112
      %v485 = vpop.permute.xlu0 %484
      %486 = vrot.lane.b32.xlu0 %v395, 112
      %v487 = vpop.permute.xlu0 %486
      %488 = vrot.lane.b32.xlu0 %v399, 112
      %v489 = vpop.permute.xlu0 %488
      %490 = vrot.lane.b32.xlu0 %v401, 112
      %v491 = vpop.permute.xlu0 %490
      %492 = vrot.lane.b32.xlu0 %v405, 112
      %v493 = vpop.permute.xlu0 %492
      %494 = vrot.lane.b32.xlu0 %v407, 112
      %v495 = vpop.permute.xlu0 %494
      %496 = vrot.lane.b32.xlu0 %v411, 112
      %v497 = vpop.permute.xlu0 %496
      %498 = vrot.lane.b32.xlu0 %v413, 112
      %v499 = vpop.permute.xlu0 %498
      %500 = vrot.lane.b32.xlu0 %v417, 112
      %v501 = vpop.permute.xlu0 %500
      %502 = vrot.lane.b32.xlu0 %v419, 112
      %v503 = vpop.permute.xlu0 %502
      %504 = vrot.lane.b32.xlu0 %v423, 112
      %v505 = vpop.permute.xlu0 %504
      %506 = vrot.lane.b32.xlu0 %v425, 112
      %v507 = vpop.permute.xlu0 %506
      %508 = vrot.lane.b32.xlu0 %v429, 112
      %v509 = vpop.permute.xlu0 %508
      %510 = vrot.lane.b32.xlu0 %v431, 112
      %v511 = vpop.permute.xlu0 %510
      %512 = vrot.lane.b32.xlu0 %v435, 112
      %v513 = vpop.permute.xlu0 %512
      %514 = vrot.lane.b32.xlu0 %v437, 112
      %v515 = vpop.permute.xlu0 %514
      %516 = vrot.lane.b32.xlu0 %v441, 112
      %v517 = vpop.permute.xlu0 %516
      %518 = vrot.lane.b32.xlu0 %v443, 112
      %v519 = vpop.permute.xlu0 %518
      %v542 = vld [vmem:[%s2] sm:$0xff]
      %v543 = vld [vmem:[%s2 + $0x8] sm:$0xff]
      %v544 = vld [vmem:[%s2 + $0x10] sm:$0xff]
      %v545 = vld [vmem:[%s2 + $0x18] sm:$0xf]
      %v546 = vld [vmem:[%s2 + $0x1c] sm:$0xff]
      %v547 = vld [vmem:[%s2 + $0x24] sm:$0xff]
      %v548 = vld [vmem:[%s2 + $0x2c] sm:$0xff]
      %v549 = vld [vmem:[%s2 + $0x34] sm:$0xf]
      %v550 = vld [vmem:[%s2 + $0x38] sm:$0xff]
      %v551 = vld [vmem:[%s2 + $0x40] sm:$0xff]
      %v552 = vld [vmem:[%s2 + $0x48] sm:$0xff]
      %v553 = vld [vmem:[%s2 + $0x50] sm:$0xf]
      %v554 = vld [vmem:[%s2 + $0x54] sm:$0xff]
      %v555 = vld [vmem:[%s2 + $0x5c] sm:$0xff]
      %v556 = vld [vmem:[%s2 + $0x64] sm:$0xff]
      %v557 = vld [vmem:[%s2 + $0x6c] sm:$0xf]
      %v558 = vld [vmem:[%s2 + $0x70] sm:$0xff]
      %v559 = vld [vmem:[%s2 + $0x78] sm:$0xff]
      %v560 = vld [vmem:[%s2 + $0x80] sm:$0xff]
      %v561 = vld [vmem:[%s2 + $0x88] sm:$0xf]
      %v562 = vld [vmem:[%s2 + $0x8c] sm:$0xff]
      %v563 = vld [vmem:[%s2 + $0x94] sm:$0xff]
      %v564 = vld [vmem:[%s2 + $0x9c] sm:$0xff]
      %v565 = vld [vmem:[%s2 + $0xa4] sm:$0xf]
      %v566 = vld [vmem:[%s2 + $0xa8] sm:$0xff]
      %v567 = vld [vmem:[%s2 + $0xb0] sm:$0xff]
      %v568 = vld [vmem:[%s2 + $0xb8] sm:$0xff]
      %v569 = vld [vmem:[%s2 + $0xc0] sm:$0xf]
      %v570 = vld [vmem:[%s2 + $0xc4] sm:$0xff]
      %v571 = vld [vmem:[%s2 + $0xcc] sm:$0xff]
      %v572 = vld [vmem:[%s2 + $0xd4] sm:$0xff]
      %v573 = vld [vmem:[%s2 + $0xdc] sm:$0xf]
      %v606 = vunpack.c.l.b16 %v542
      %v607 = vunpack.c.h.b16 %v542
      %v608 = vunpack.c.l.b16 %v543
      %v609 = vunpack.c.h.b16 %v543
      %v610 = vunpack.c.l.b16 %v544
      %v611 = vunpack.c.h.b16 %v544
      %v612 = vunpack.c.l.b16 %v545
      %v613 = vunpack.c.l.b16 %v546
      %v614 = vunpack.c.h.b16 %v546
      %v615 = vunpack.c.l.b16 %v547
      %v616 = vunpack.c.h.b16 %v547
      %v617 = vunpack.c.l.b16 %v548
      %v618 = vunpack.c.h.b16 %v548
      %v619 = vunpack.c.l.b16 %v549
      %v620 = vunpack.c.l.b16 %v550
      %v621 = vunpack.c.h.b16 %v550
      %v622 = vunpack.c.l.b16 %v551
      %v623 = vunpack.c.h.b16 %v551
      %v624 = vunpack.c.l.b16 %v552
      %v625 = vunpack.c.h.b16 %v552
      %v626 = vunpack.c.l.b16 %v553
      %v627 = vunpack.c.l.b16 %v554
      %v628 = vunpack.c.h.b16 %v554
      %v629 = vunpack.c.l.b16 %v555
      %v630 = vunpack.c.h.b16 %v555
      %v631 = vunpack.c.l.b16 %v556
      %v632 = vunpack.c.h.b16 %v556
      %v633 = vunpack.c.l.b16 %v557
      %v634 = vunpack.c.l.b16 %v558
      %v635 = vunpack.c.h.b16 %v558
      %v636 = vunpack.c.l.b16 %v559
      %v637 = vunpack.c.h.b16 %v559
      %v638 = vunpack.c.l.b16 %v560
      %v639 = vunpack.c.h.b16 %v560
      %v640 = vunpack.c.l.b16 %v561
      %v641 = vunpack.c.l.b16 %v562
      %v642 = vunpack.c.h.b16 %v562
      %v643 = vunpack.c.l.b16 %v563
      %v644 = vunpack.c.h.b16 %v563
      %v645 = vunpack.c.l.b16 %v564
      %v646 = vunpack.c.h.b16 %v564
      %v647 = vunpack.c.l.b16 %v565
      %v648 = vunpack.c.l.b16 %v566
      %v649 = vunpack.c.h.b16 %v566
      %v650 = vunpack.c.l.b16 %v567
      %v651 = vunpack.c.h.b16 %v567
      %v652 = vunpack.c.l.b16 %v568
      %v653 = vunpack.c.h.b16 %v568
      %v654 = vunpack.c.l.b16 %v569
      %v655 = vunpack.c.l.b16 %v570
      %v656 = vunpack.c.h.b16 %v570
      %v657 = vunpack.c.l.b16 %v571
      %v658 = vunpack.c.h.b16 %v571
      %v659 = vunpack.c.l.b16 %v572
      %v660 = vunpack.c.h.b16 %v572
      %v661 = vunpack.c.l.b16 %v573
      %v662 = vpack.c.b16 %v613, %v606
      %v663 = vpack.c.b16 %v614, %v607
      %v664 = vpack.c.b16 %v615, %v608
      %v665 = vpack.c.b16 %v616, %v609
      %v666 = vpack.c.b16 %v617, %v610
      %v667 = vpack.c.b16 %v618, %v611
      %v668 = vpack.c.b16 %v619, %v612
      %v669 = vpack.c.b16 %v627, %v620
      %v670 = vpack.c.b16 %v628, %v621
      %v671 = vpack.c.b16 %v629, %v622
      %v672 = vpack.c.b16 %v630, %v623
      %v673 = vpack.c.b16 %v631, %v624
      %v674 = vpack.c.b16 %v632, %v625
      %v675 = vpack.c.b16 %v633, %v626
      %v676 = vpack.c.b16 %v641, %v634
      %v677 = vpack.c.b16 %v642, %v635
      %v678 = vpack.c.b16 %v643, %v636
      %v679 = vpack.c.b16 %v644, %v637
      %v680 = vpack.c.b16 %v645, %v638
      %v681 = vpack.c.b16 %v646, %v639
      %v682 = vpack.c.b16 %v647, %v640
      %v683 = vpack.c.b16 %v655, %v648
      %v684 = vpack.c.b16 %v656, %v649
      %v685 = vpack.c.b16 %v657, %v650
      %v686 = vpack.c.b16 %v658, %v651
      %v687 = vpack.c.b16 %v659, %v652
      %v688 = vpack.c.b16 %v660, %v653
      %v689 = vpack.c.b16 %v661, %v654
      %vm714 = vcmask 785408
      %v716 = vsel %vm714, %v668, 0
      %v719 = vsel %vm714, %v675, 0
      %v722 = vsel %vm714, %v682, 0
      %v725 = vsel %vm714, %v689, 0
      %727 = vmatprep.subr.bf16.mxu0 0
      %728 = vmatpush1.bf16.msra.mxu0 %v401
      %729 = vmatprep.subr.bf16.mxu0 0
      %730 = vmatpush1.bf16.msra.mxu0 %v399
      %731 = vmatprep.subr.bf16.mxu0 0
      %732 = vmatpush1.bf16.msra.mxu0 %v395
      %733 = vmatprep.subr.bf16.mxu0 0
      %734 = vmatpush1.bf16.msra.mxu0 %v393
      %735 = vmatprep.subr.bf16.mxu0 0
      %736 = vmatpush1.bf16.msra.mxu0 %v389
      %737 = vmatprep.subr.bf16.mxu0 0
      %738 = vmatpush1.bf16.msra.mxu0 %v387
      %739 = vmatprep.subr.bf16.mxu0 0
      %740 = vmatpush1.bf16.msra.mxu0 %v383
      %741 = vmatprep.subr.bf16.mxu0 0
      %742 = vmatpush1.bf16.msra.mxu0 %v382
      %743 = vmatprep.subr.bf16.mxu0 0
      %744 = vmatpush2.bf16.msra.mxu0 %v425
      %745 = vmatprep.subr.bf16.mxu0 0
      %746 = vmatpush2.bf16.msra.mxu0 %v423
      %747 = vmatprep.subr.bf16.mxu0 0
      %748 = vmatpush2.bf16.msra.mxu0 %v419
      %749 = vmatprep.subr.bf16.mxu0 0
      %750 = vmatpush2.bf16.msra.mxu0 %v417
      %751 = vmatprep.subr.bf16.mxu0 0
      %752 = vmatpush2.bf16.msra.mxu0 %v413
      %753 = vmatprep.subr.bf16.mxu0 0
      %754 = vmatpush2.bf16.msra.mxu0 %v411
      %755 = vmatprep.subr.bf16.mxu0 0
      %756 = vmatpush2.bf16.msra.mxu0 %v407
      %757 = vmatprep.subr.bf16.mxu0 0
      %758 = vmatpush2.bf16.msra.mxu0 %v405
      %759 = vmatprep.mubr.bf16.mxu0 %v663
      %760 = vmatmul.mubr.bf16.gmra.mxu0 %v662
      %v761 = vpop.f32.mrf.mxu0
      %v762 = vadd.f32 0.0, %v761
      %v763 = vpop.f32.mrf.mxu0
      %v764 = vpop.f32.mrf.mxu0
      %v765 = vadd.f32 0.0, %v764
      %v766 = vpop.f32.mrf.mxu0
      %767 = vmatprep.mubr.bf16.mxu0 %v670
      %768 = vmatmul.mubr.bf16.gmra.mxu0 %v669
      %v769 = vpop.f32.mrf.mxu0
      %v770 = vadd.f32 0.0, %v769
      %v771 = vpop.f32.mrf.mxu0
      %v772 = vpop.f32.mrf.mxu0
      %v773 = vadd.f32 0.0, %v772
      %v774 = vpop.f32.mrf.mxu0
      %775 = vmatprep.mubr.bf16.mxu0 %v677
      %776 = vmatmul.mubr.bf16.gmra.mxu0 %v676
      %v777 = vpop.f32.mrf.mxu0
      %v778 = vadd.f32 0.0, %v777
      %v779 = vpop.f32.mrf.mxu0
      %v780 = vpop.f32.mrf.mxu0
      %v781 = vadd.f32 0.0, %v780
      %v782 = vpop.f32.mrf.mxu0
      %783 = vmatprep.mubr.bf16.mxu0 %v684
      %784 = vmatmul.mubr.bf16.gmra.mxu0 %v683
      %v785 = vpop.f32.mrf.mxu0
      %v786 = vadd.f32 0.0, %v785
      %v787 = vpop.f32.mrf.mxu0
      %v788 = vpop.f32.mrf.mxu0
      %v789 = vadd.f32 0.0, %v788
      %v790 = vpop.f32.mrf.mxu0
      %791 = vdwg.mxu0
      %792 = vmatprep.subr.bf16.mxu0 0
      %793 = vmatpush1.bf16.msra.mxu0 %v449
      %794 = vmatprep.subr.bf16.mxu0 0
      %795 = vmatpush1.bf16.msra.mxu0 %v447
      %796 = vmatprep.subr.bf16.mxu0 0
      %797 = vmatpush1.bf16.msra.mxu0 %v443
      %798 = vmatprep.subr.bf16.mxu0 0
      %799 = vmatpush1.bf16.msra.mxu0 %v441
      %800 = vmatprep.subr.bf16.mxu0 0
      %801 = vmatpush1.bf16.msra.mxu0 %v437
      %802 = vmatprep.subr.bf16.mxu0 0
      %803 = vmatpush1.bf16.msra.mxu0 %v435
      %804 = vmatprep.subr.bf16.mxu0 0
      %805 = vmatpush1.bf16.msra.mxu0 %v431
      %806 = vmatprep.subr.bf16.mxu0 0
      %807 = vmatpush1.bf16.msra.mxu0 %v429
      %808 = vmatprep.subr.bf16.mxu0 0
      %809 = vmatpush2.bf16.msra.mxu0 %v473
      %810 = vmatprep.subr.bf16.mxu0 0
      %811 = vmatpush2.bf16.msra.mxu0 %v471
      %812 = vmatprep.subr.bf16.mxu0 0
      %813 = vmatpush2.bf16.msra.mxu0 %v467
      %814 = vmatprep.subr.bf16.mxu0 0
      %815 = vmatpush2.bf16.msra.mxu0 %v465
      %816 = vmatprep.subr.bf16.mxu0 0
      %817 = vmatpush2.bf16.msra.mxu0 %v461
      %818 = vmatprep.subr.bf16.mxu0 0
      %819 = vmatpush2.bf16.msra.mxu0 %v459
      %820 = vmatprep.subr.bf16.mxu0 0
      %821 = vmatpush2.bf16.msra.mxu0 %v455
      %822 = vmatprep.subr.bf16.mxu0 0
      %823 = vmatpush2.bf16.msra.mxu0 %v453
      %824 = vmatprep.mubr.bf16.mxu0 %v665
      %825 = vmatmul.mubr.bf16.gmra.mxu0 %v664
      %v826 = vpop.f32.mrf.mxu0
      %v827 = vadd.f32 %v762, %v826
      %v828 = vpop.f32.mrf.mxu0
      %v829 = vpop.f32.mrf.mxu0
      %v830 = vadd.f32 %v765, %v829
      %v831 = vpop.f32.mrf.mxu0
      %832 = vmatprep.mubr.bf16.mxu0 %v672
      %833 = vmatmul.mubr.bf16.gmra.mxu0 %v671
      %v834 = vpop.f32.mrf.mxu0
      %v835 = vadd.f32 %v770, %v834
      %v836 = vpop.f32.mrf.mxu0
      %v837 = vpop.f32.mrf.mxu0
      %v838 = vadd.f32 %v773, %v837
      %v839 = vpop.f32.mrf.mxu0
      %840 = vmatprep.mubr.bf16.mxu0 %v679
      %841 = vmatmul.mubr.bf16.gmra.mxu0 %v678
      %v842 = vpop.f32.mrf.mxu0
      %v843 = vadd.f32 %v778, %v842
      %v844 = vpop.f32.mrf.mxu0
      %v845 = vpop.f32.mrf.mxu0
      %v846 = vadd.f32 %v781, %v845
      %v847 = vpop.f32.mrf.mxu0
      %848 = vmatprep.mubr.bf16.mxu0 %v686
      %849 = vmatmul.mubr.bf16.gmra.mxu0 %v685
      %v850 = vpop.f32.mrf.mxu0
      %v851 = vadd.f32 %v786, %v850
      %v852 = vpop.f32.mrf.mxu0
      %v853 = vpop.f32.mrf.mxu0
      %v854 = vadd.f32 %v789, %v853
      %v855 = vpop.f32.mrf.mxu0
      %856 = vdwg.mxu0
      %857 = vmatprep.subr.bf16.mxu0 0
      %858 = vmatpush1.bf16.msra.mxu0 %v491
      %859 = vmatprep.subr.bf16.mxu0 0
      %860 = vmatpush1.bf16.msra.mxu0 %v489
      %861 = vmatprep.subr.bf16.mxu0 0
      %862 = vmatpush1.bf16.msra.mxu0 %v487
      %863 = vmatprep.subr.bf16.mxu0 0
      %864 = vmatpush1.bf16.msra.mxu0 %v485
      %865 = vmatprep.subr.bf16.mxu0 0
      %866 = vmatpush1.bf16.msra.mxu0 %v483
      %867 = vmatprep.subr.bf16.mxu0 0
      %868 = vmatpush1.bf16.msra.mxu0 %v481
      %869 = vmatprep.subr.bf16.mxu0 0
      %870 = vmatpush1.bf16.msra.mxu0 %v479
      %871 = vmatprep.subr.bf16.mxu0 0
      %872 = vmatpush1.bf16.msra.mxu0 %v477
      %873 = vmatprep.subr.bf16.mxu0 0
      %874 = vmatpush2.bf16.msra.mxu0 %v507
      %875 = vmatprep.subr.bf16.mxu0 0
      %876 = vmatpush2.bf16.msra.mxu0 %v505
      %877 = vmatprep.subr.bf16.mxu0 0
      %878 = vmatpush2.bf16.msra.mxu0 %v503
      %879 = vmatprep.subr.bf16.mxu0 0
      %880 = vmatpush2.bf16.msra.mxu0 %v501
      %881 = vmatprep.subr.bf16.mxu0 0
      %882 = vmatpush2.bf16.msra.mxu0 %v499
      %883 = vmatprep.subr.bf16.mxu0 0
      %884 = vmatpush2.bf16.msra.mxu0 %v497
      %885 = vmatprep.subr.bf16.mxu0 0
      %886 = vmatpush2.bf16.msra.mxu0 %v495
      %887 = vmatprep.subr.bf16.mxu0 0
      %888 = vmatpush2.bf16.msra.mxu0 %v493
      %889 = vmatprep.mubr.bf16.mxu0 %v667
      %890 = vmatmul.mubr.bf16.gmra.mxu0 %v666
      %v891 = vpop.f32.mrf.mxu0
      %v892 = vadd.f32 %v827, %v891
      %v893 = vpop.f32.mrf.mxu0
      %v894 = vpop.f32.mrf.mxu0
      %v895 = vadd.f32 %v830, %v894
      %v896 = vpop.f32.mrf.mxu0
      %897 = vmatprep.mubr.bf16.mxu0 %v674
      %898 = vmatmul.mubr.bf16.gmra.mxu0 %v673
      %v899 = vpop.f32.mrf.mxu0
      %v900 = vadd.f32 %v835, %v899
      %v901 = vpop.f32.mrf.mxu0
      %v902 = vpop.f32.mrf.mxu0
      %v903 = vadd.f32 %v838, %v902
      %v904 = vpop.f32.mrf.mxu0
      %905 = vmatprep.mubr.bf16.mxu0 %v681
      %906 = vmatmul.mubr.bf16.gmra.mxu0 %v680
      %v907 = vpop.f32.mrf.mxu0
      %v908 = vadd.f32 %v843, %v907
      %v909 = vpop.f32.mrf.mxu0
      %v910 = vpop.f32.mrf.mxu0
      %v911 = vadd.f32 %v846, %v910
      %v912 = vpop.f32.mrf.mxu0
      %913 = vmatprep.mubr.bf16.mxu0 %v688
      %914 = vmatmul.mubr.bf16.gmra.mxu0 %v687
      %v915 = vpop.f32.mrf.mxu0
      %v916 = vadd.f32 %v851, %v915
      %v917 = vpop.f32.mrf.mxu0
      %v918 = vpop.f32.mrf.mxu0
      %v919 = vadd.f32 %v854, %v918
      %v920 = vpop.f32.mrf.mxu0
      %921 = vdwg.mxu0
      %922 = vmatprep.subr.bf16.mxu0 0
      %923 = vmatpush1.bf16.msra.mxu0 0
      %924 = vmatprep.subr.bf16.mxu0 0
      %925 = vmatpush1.bf16.msra.mxu0 0
      %926 = vmatprep.subr.bf16.mxu0 0
      %927 = vmatpush1.bf16.msra.mxu0 %v519
      %928 = vmatprep.subr.bf16.mxu0 0
      %929 = vmatpush1.bf16.msra.mxu0 %v517
      %930 = vmatprep.subr.bf16.mxu0 0
      %931 = vmatpush1.bf16.msra.mxu0 %v515
      %932 = vmatprep.subr.bf16.mxu0 0
      %933 = vmatpush1.bf16.msra.mxu0 %v513
      %934 = vmatprep.subr.bf16.mxu0 0
      %935 = vmatpush1.bf16.msra.mxu0 %v511
      %936 = vmatprep.subr.bf16.mxu0 0
      %937 = vmatpush1.bf16.msra.mxu0 %v509
      %938 = vmatprep.subr.bf16.mxu0 0
      %939 = vmatpush2.bf16.msra.mxu0 0
      %940 = vmatprep.subr.bf16.mxu0 0
      %941 = vmatpush2.bf16.msra.mxu0 0
      %942 = vmatprep.subr.bf16.mxu0 0
      %943 = vmatpush2.bf16.msra.mxu0 0
      %944 = vmatprep.subr.bf16.mxu0 0
      %945 = vmatpush2.bf16.msra.mxu0 0
      %946 = vmatprep.subr.bf16.mxu0 0
      %947 = vmatpush2.bf16.msra.mxu0 0
      %948 = vmatprep.subr.bf16.mxu0 0
      %949 = vmatpush2.bf16.msra.mxu0 0
      %950 = vmatprep.subr.bf16.mxu0 0
      %951 = vmatpush2.bf16.msra.mxu0 0
      %952 = vmatprep.subr.bf16.mxu0 0
      %953 = vmatpush2.bf16.msra.mxu0 0
      %954 = vmatprep.mubr.bf16.mxu0 0
      %955 = vmatmul.mubr.bf16.gmra.mxu0 %v716
      %v956 = vpop.f32.mrf.mxu0
      %v957 = vadd.f32 %v892, %v956
      %v958 = vpop.f32.mrf.mxu0
      %v959 = vpop.f32.mrf.mxu0
      %v960 = vadd.f32 %v895, %v959
      %v961 = vpop.f32.mrf.mxu0
      %962 = vmatprep.mubr.bf16.mxu0 0
      %963 = vmatmul.mubr.bf16.gmra.mxu0 %v719
      %v964 = vpop.f32.mrf.mxu0
      %v965 = vadd.f32 %v900, %v964
      %v966 = vpop.f32.mrf.mxu0
      %v967 = vpop.f32.mrf.mxu0
      %v968 = vadd.f32 %v903, %v967
      %v969 = vpop.f32.mrf.mxu0
      %970 = vmatprep.mubr.bf16.mxu0 0
      %971 = vmatmul.mubr.bf16.gmra.mxu0 %v722
      %v972 = vpop.f32.mrf.mxu0
      %v973 = vadd.f32 %v908, %v972
      %v974 = vpop.f32.mrf.mxu0
      %v975 = vpop.f32.mrf.mxu0
      %v976 = vadd.f32 %v911, %v975
      %v977 = vpop.f32.mrf.mxu0
      %978 = vmatprep.mubr.bf16.mxu0 0
      %979 = vmatmul.mubr.bf16.gmra.mxu0 %v725
      %v980 = vpop.f32.mrf.mxu0
      %v981 = vadd.f32 %v916, %v980
      %v982 = vpop.f32.mrf.mxu0
      %v983 = vpop.f32.mrf.mxu0
      %v984 = vadd.f32 %v919, %v983
      %v985 = vpop.f32.mrf.mxu0
      %986 = vdwg.mxu0
      %v987 = vmax.f32 %v957, 0.0
      %v988 = vmax.f32 %v960, 0.0
      %v989 = vmax.f32 %v965, 0.0
      %v990 = vmax.f32 %v968, 0.0
      %v991 = vmax.f32 %v973, 0.0
      %v992 = vmax.f32 %v976, 0.0
      %v993 = vmax.f32 %v981, 0.0
      %v994 = vmax.f32 %v984, 0.0
      %vm995 = vcmask 523264
      %996 = vst.msk [vmem:[%s286] sm:$0xff] %vm995, %v987
      %997 = vst.msk [vmem:[%s286 + $0x8] sm:$0xff] %vm995, %v988
      %998 = vst.msk [vmem:[%s286 + $0x10] sm:$0xff] %vm995, %v989
      %999 = vst.msk [vmem:[%s286 + $0x18] sm:$0xff] %vm995, %v990
      %1000 = vst.msk [vmem:[%s286 + $0x20] sm:$0xff] %vm995, %v991
      %1001 = vst.msk [vmem:[%s286 + $0x28] sm:$0xff] %vm995, %v992
      %1002 = vst.msk [vmem:[%s286 + $0x30] sm:$0xff] %vm995, %v993
      %1003 = vst.msk [vmem:[%s286 + $0x38] sm:$0xff] %vm995, %v994
      %p1004 = scmp.lt.s32.totalorder %s20, 1
      %s1005 = scalar_select %p1004, %s20, 1
      %p1006 = scmp.lt.s32.totalorder %s21, 0
      %s1007 = scalar_select %p1006, %s21, 0
      %s1008 = smul.addr %s1005, 8
      %s1009 = sadd.s32 %s1007, %s1008
      %s1010 = smul.addr %s1009, 8
      %s1011 = scalar_lea.vmem %s5, %s1010
      // Predicated region
      $region41: #{srresnet_forward.14} parent=39 // pred_check
        %p1012 = pneg %p167
      $region42: #{srresnet_forward.14} parent=39 // pred_check_branch
        %1014 = sbr.rel (%p1012) target = $region44
      $region43: #{srresnet_forward.14} parent=39 // pred_region
        _
      $region44: #{srresnet_forward.14} parent=39 // pred_fallthru
        _
    $region40: #{srresnet_forward.14} parent=5 // pred_fallthru
      _
    %p1015 = scmp.le.s32.totalorder 2, %s11
    // Predicated region
    $region45: #{srresnet_forward.14} parent=5 // pred_check
      %p1016 = pneg %p1015
    $region46: #{srresnet_forward.14} parent=5 // pred_check_branch
      %1018 = sbr.rel (%p1016) target = $region48
    $region47: #{srresnet_forward.14} parent=5 // pred_region
      %s1019 = ssub.s32 %s11, 2
      // Predicated region
      $region49: #{srresnet_forward.14} parent=47 // pred_check
        %p1020 = pneg %p173
      $region50: #{srresnet_forward.14} parent=47 // pred_check_branch
        %1022 = sbr.rel (%p1020) target = $region52
      $region51: #{srresnet_forward.14} parent=47 // pred_region
        %p1023 = scmp.lt.s32.totalorder %s22, 1
        %s1024 = scalar_select %p1023, %s22, 1
        %p1025 = scmp.lt.s32.totalorder %s23, 0
        %s1026 = scalar_select %p1025, %s23, 0
        %s1027 = smul.addr %s1024, 8
        %s1028 = sadd.s32 %s1026, %s1027
        %s1029 = smul.addr %s1028, 8
        %s1030 = scalar_lea.vmem %s5, %s1029
      $region52: #{srresnet_forward.14} parent=47 // pred_fallthru
        _
    $region48: #{srresnet_forward.14} parent=5 // pred_fallthru
      _
  $region6: #{srresnet_forward.14} parent=0 // loop_footer
    %s15 = sadd.s32 1, %s11
  $region7: #{srresnet_forward.14} parent=0 // loop_footer_branch
    %10 = sbr.rel target = $region3
  $region8: #{srresnet_forward.14} parent=0 // loop_exit
    _

// kernel: srresnet_forward.15
$region0: #{srresnet_forward.15}
  #allocation0 [shape = 'u32[]', space=smem, size = 0x4, offset = 0x4, fixed_abs, tag = 'smem constant byte address 0x4 - core index']
  #allocation1 [shape = 'u32[144,128]{1,0:T(1,128)}', space=vmem, size = 0x12000, scoped, tag = 'internal scratch']
  #allocation2 [shape = 'f32[1,1]{1,0:T(1,128)S(1)}', space=vmem, size = 0x200, scoped, tag = 'scoped memory for srresnet_forward.15']
  %s0 = inlined_call_operand.vmem [shape: f32[2,32,128], index: 0, kind: input, shape index: {}]
  %s1 = inlined_call_operand.vmem [shape: bf16[1,864], index: 1, kind: input, shape index: {}]
  %s2 = inlined_call_operand.<no memory space> [shape: f32[1,1], index: 2, kind: input, shape index: {}]
  %s3 = inlined_call_operand.hbm [shape: f32[2,1,128], index: 3, kind: output, shape index: {}]
  %s4 = sld [smem:[#allocation0]]
  $region45: #{srresnet_forward.15} parent=0
    _
  %s6 = ssub.s32 1, %s4
  %s7 = scalar_select 0, %s6, %s4
  %v8 = vstv %s2
  %9 = vst [vmem:[#allocation2] sm:$0x1] %v8
  $region1: #{srresnet_forward.15} parent=0
    #allocation3 [shape = 'u8[1024]{0}', space=vmem, size = 0x400, scoped, tag = 'output window, operand 0']
    #allocation4 [shape = 's32[2]{0}', space=sflag, size = 0x8, scoped, tag = 'scoped memory for srresnet_forward.15']
    %10 = vsyncpa [#allocation4], 0
    %s11 = scalar_lea.sflag [#allocation4], 1
    %12 = vsyncpa %s11, 0
    loop: start=0, step=1, limit=4
    $region2: #{srresnet_forward.15} parent=1 // loop_pre_header
      _
    $region3: #{srresnet_forward.15} parent=1 // loop_header
      %s14 = sphi 0, %s18
      %p15 = scmp.ge.s32.totalorder %s14, 4
      %s21 = sphi 0, %s33
      %s22 = sphi 0, %s29
      %s23 = sphi 0, %s21
      %s24 = sphi 0, %s22
      %s25 = sphi 0, %s23
      %s26 = sphi 0, %s24
      %s38 = sphi 0, %s40
      %s41 = sphi 0, %s38
      %s42 = sphi 0, %s41
      %s58 = sphi 0, %s42
      %s62 = sphi 0, %s62
      %s64 = sphi 0, %s62
      %s65 = sphi 0, %s64
      %s79 = sphi 0, %s65
      %s83 = sphi 0, %s83
      %s85 = sphi 0, %s83
      %s86 = sphi 0, %s85
      %s100 = sphi 0, %s86
      %s108 = sphi 0, %s110
      %s111 = sphi 0, %s108
      %s112 = sphi 0, %s111
      %s128 = sphi 0, %s112
    $region4: #{srresnet_forward.15} parent=1 // loop_header_branch
      %17 = sbr.rel (%p15) target = $region8
    $region5: #{srresnet_forward.15} parent=1 // loop_body
      %s19 = ssub.s32 %s14, 1
      %s20 = ssub.s32 %s14, 2
      %s27 = sadd.s32 1, %s22
      %p28 = scmp.ge.s32.totalorder %s27, 1
      %s29 = scalar_select %p28, 0, %s27
      %s30 = sadd.s32 1, %s21
      %s31 = scalar_select %p28, %s30, %s21
      %p32 = scmp.ge.s32.totalorder %s31, 2
      %s33 = scalar_select %p32, 0, %s31
      %s34 = ssub.s32 %s21, %s33
      %s35 = ssub.s32 %s22, %s29
      %s36 = sor.u32 %s34, %s35
      %p37 = scmp.eq.s32.totalorder %s36, 0
      %s39 = sadd.s32 %s38, 1
      %s40 = scalar_select %p37, %s38, %s39
      %p43 = pneg %p37
      %p44 = scmp.eq.s32.totalorder %s14, 1
      %p45 = por %p43, %p44
      %p46 = scmp.ne.s32.totalorder %s38, %s41
      %p47 = scmp.eq.s32.totalorder %s14, 0
      %p48 = por %p46, %p47
      %p49 = scmp.ne.s32.totalorder %s38, %s41
      %p50 = scmp.eq.s32.totalorder %s19, 1
      %p51 = por %p49, %p50
      %p52 = scmp.ne.s32.totalorder %s41, %s42
      %p53 = scmp.eq.s32.totalorder %s19, 0
      %p54 = por %p52, %p53
      %p55 = scmp.ne.s32.totalorder %s41, %s42
      %p56 = scmp.eq.s32.totalorder %s20, 1
      %p57 = por %p55, %p56
      %p59 = scmp.ne.s32.totalorder %s42, %s58
      %p60 = scmp.eq.s32.totalorder %s20, 0
      %p61 = por %p59, %p60
      %s63 = sadd.s32 %s62, 1
      %p66 = scmp.eq.s32.totalorder %s14, 1
      %p67 = scmp.ne.s32.totalorder %s62, %s64
      %p68 = scmp.eq.s32.totalorder %s14, 0
      %p69 = por %p67, %p68
      %p70 = scmp.ne.s32.totalorder %s62, %s64
      %p71 = scmp.eq.s32.totalorder %s19, 1
      %p72 = por %p70, %p71
      %p73 = scmp.ne.s32.totalorder %s64, %s65
      %p74 = scmp.eq.s32.totalorder %s19, 0
      %p75 = por %p73, %p74
      %p76 = scmp.ne.s32.totalorder %s64, %s65
      %p77 = scmp.eq.s32.totalorder %s20, 1
      %p78 = por %p76, %p77
      %p80 = scmp.ne.s32.totalorder %s65, %s79
      %p81 = scmp.eq.s32.totalorder %s20, 0
      %p82 = por %p80, %p81
      %s84 = sadd.s32 %s83, 1
      %p87 = scmp.eq.s32.totalorder %s14, 1
      %p88 = scmp.ne.s32.totalorder %s83, %s85
      %p89 = scmp.eq.s32.totalorder %s14, 0
      %p90 = por %p88, %p89
      %p91 = scmp.ne.s32.totalorder %s83, %s85
      %p92 = scmp.eq.s32.totalorder %s19, 1
      %p93 = por %p91, %p92
      %p94 = scmp.ne.s32.totalorder %s85, %s86
      %p95 = scmp.eq.s32.totalorder %s19, 0
      %p96 = por %p94, %p95
      %p97 = scmp.ne.s32.totalorder %s85, %s86
      %p98 = scmp.eq.s32.totalorder %s20, 1
      %p99 = por %p97, %p98
      %p101 = scmp.ne.s32.totalorder %s86, %s100
      %p102 = scmp.eq.s32.totalorder %s20, 0
      %p103 = por %p101, %p102
      %s104 = ssub.s32 %s21, %s33
      %s105 = ssub.s32 %s22, %s29
      %s106 = sor.u32 %s104, %s105
      %p107 = scmp.eq.s32.totalorder %s106, 0
      %s109 = sadd.s32 %s108, 1
      %s110 = scalar_select %p107, %s108, %s109
      %p113 = pneg %p107
      %p114 = scmp.eq.s32.totalorder %s14, 1
      %p115 = por %p113, %p114
      %p116 = scmp.ne.s32.totalorder %s108, %s111
      %p117 = scmp.eq.s32.totalorder %s14, 0
      %p118 = por %p116, %p117
      %p119 = scmp.ne.s32.totalorder %s108, %s111
      %p120 = scmp.eq.s32.totalorder %s19, 1
      %p121 = por %p119, %p120
      %p122 = scmp.ne.s32.totalorder %s111, %s112
      %p123 = scmp.eq.s32.totalorder %s19, 0
      %p124 = por %p122, %p123
      %p125 = scmp.ne.s32.totalorder %s111, %s112
      %p126 = scmp.eq.s32.totalorder %s20, 1
      %p127 = por %p125, %p126
      %p129 = scmp.ne.s32.totalorder %s112, %s128
      %p130 = scmp.eq.s32.totalorder %s20, 0
      %p131 = por %p129, %p130
      %p132 = scmp.le.s32.totalorder 1, %s14
      %p133 = scmp.lt.s32.totalorder %s14, 3
      %p134 = pnand %p132, %p133
      %p135 = pneg %p134
      // Predicated region
      $region9: #{srresnet_forward.15} parent=5 // pred_check
        _
      $region10: #{srresnet_forward.15} parent=5 // pred_check_branch
        %137 = sbr.rel (%p134) target = $region12
      $region11: #{srresnet_forward.15} parent=5 // pred_region
        %s138 = ssub.s32 %s14, 1
        // Predicated region
        $region13: #{srresnet_forward.15} parent=11 // pred_check
          %p139 = pneg %p75
        $region14: #{srresnet_forward.15} parent=11 // pred_check_branch
          %141 = sbr.rel (%p139) target = $region16
        $region15: #{srresnet_forward.15} parent=11 // pred_region
          _
        $region16: #{srresnet_forward.15} parent=11 // pred_fallthru
          _
        // Predicated region
        $region17: #{srresnet_forward.15} parent=11 // pred_check
          %p142 = pneg %p96
        $region18: #{srresnet_forward.15} parent=11 // pred_check_branch
          %144 = sbr.rel (%p142) target = $region20
        $region19: #{srresnet_forward.15} parent=11 // pred_region
          _
        $region20: #{srresnet_forward.15} parent=11 // pred_fallthru
          _
      $region12: #{srresnet_forward.15} parent=5 // pred_fallthru
        _
      %p145 = scmp.lt.s32.totalorder %s14, 2
      // Predicated region
      $region21: #{srresnet_forward.15} parent=5 // pred_check
        %p146 = pneg %p145
      $region22: #{srresnet_forward.15} parent=5 // pred_check_branch
        %148 = sbr.rel (%p146) target = $region24
      $region23: #{srresnet_forward.15} parent=5 // pred_region
        // Predicated region
        $region25: #{srresnet_forward.15} parent=23 // pred_check
          %p149 = pneg %p48
        $region26: #{srresnet_forward.15} parent=23 // pred_check_branch
          %151 = sbr.rel (%p149) target = $region28
        $region27: #{srresnet_forward.15} parent=23 // pred_region
          %p152 = scmp.lt.s32.totalorder %s21, 1
          %s153 = scalar_select %p152, %s21, 1
          %p154 = scmp.lt.s32.totalorder %s22, 0
          %s155 = scalar_select %p154, %s22, 0
          %s156 = smul.addr %s153, 4
          %s157 = sadd.s32 %s155, %s156
          %s158 = smul.addr %s157, 8
          %s159 = scalar_lea.vmem %s0, %s158
        $region28: #{srresnet_forward.15} parent=23 // pred_fallthru
          _
      $region24: #{srresnet_forward.15} parent=5 // pred_fallthru
        _
      %p160 = scmp.le.s32.totalorder 1, %s14
      %p161 = scmp.lt.s32.totalorder %s14, 3
      %p162 = pnand %p160, %p161
      %p163 = pneg %p162
      // Predicated region
      $region29: #{srresnet_forward.15} parent=5 // pred_check
        _
      $region30: #{srresnet_forward.15} parent=5 // pred_check_branch
        %165 = sbr.rel (%p162) target = $region32
      $region31: #{srresnet_forward.15} parent=5 // pred_region
        %s166 = ssub.s32 %s14, 1
        %p167 = scmp.lt.s32.totalorder %s23, 1
        %s168 = scalar_select %p167, %s23, 1
        %p169 = scmp.lt.s32.totalorder %s24, 0
        %s170 = scalar_select %p169, %s24, 0
        %s171 = smul.addr %s168, 4
        %s172 = sadd.s32 %s170, %s171
        %s173 = smul.addr %s172, 8
        %s174 = scalar_lea.vmem %s0, %s173
        %p175 = pneg %p54
        %p176 = pneg %p51
        %p177 = pneg %p75
        %p178 = pneg %p72
        %p179 = pneg %p96
        %p180 = pneg %p93
        %p181 = pneg %p124
        %p182 = pneg %p121
        %s183 = sand.u32 %s111, 1
        %s184 = scalar_lea.sflag [#allocation4], %s183
        %s185 = sand.u32 %s111, 1
        %s186 = scalar_lea.vmem [#allocation3], %s185
        %p187 = scmp.lt.s32.totalorder %s23, 1
        %s188 = scalar_select %p187, %s23, 1
        %p189 = scmp.lt.s32.totalorder %s24, 0
        %s190 = scalar_select %p189, %s24, 0
        %s191 = smul.addr %s188, 4
        %s192 = sadd.s32 %s190, %s191
        %s193 = smul.addr %s192, 8
        %s194 = scalar_lea.vmem %s0, %s193
        %v196 = vld [vmem:[%s194] sm:$0xff]
        %v197 = vld [vmem:[%s194 + $0x8] sm:$0xff]
        %v198 = vld [vmem:[%s194 + $0x10] sm:$0xff]
        %v199 = vld [vmem:[%s194 + $0x18] sm:$0xff]
        %204 = vrot.lane.b32.xlu0 %v196, 13
        %v205 = vpop.permute.xlu0 %204
        %206 = vrot.lane.b32.xlu0 %v197, 13
        %v207 = vpop.permute.xlu0 %206
        %208 = vrot.lane.b32.xlu0 %v198, 13
        %v209 = vpop.permute.xlu0 %208
        %210 = vrot.lane.b32.xlu0 %v199, 13
        %v211 = vpop.permute.xlu0 %210
        %vm216 = vcmask 105472
        %v217 = vsel %vm216, 0.0, %v205
        %v218 = vsel %vm216, 0.0, %v207
        %v219 = vsel %vm216, 0.0, %v209
        %v220 = vsel %vm216, 0.0, %v211
        %v221 = vsel %vm216, %v205, 0.0
        %v222 = vsel %vm216, %v207, 0.0
        %v223 = vsel %vm216, %v209, 0.0
        %v224 = vsel %vm216, %v211, 0.0
        %v225 = vpack.c.bf16 %v218, %v217
        %v226 = vpack.c.bf16 %v222, %v221
        %v227 = vpack.c.bf16 %v220, %v219
        %v228 = vpack.c.bf16 %v224, %v223
        %233 = vrot.lane.b32.xlu0 %v225, 127
        %v234 = vpop.permute.xlu0 %233
        %235 = vrot.lane.b32.xlu0 %v226, 127
        %v236 = vpop.permute.xlu0 %235
        %237 = vrot.lane.b32.xlu0 %v227, 127
        %v238 = vpop.permute.xlu0 %237
        %239 = vrot.lane.b32.xlu0 %v228, 127
        %v240 = vpop.permute.xlu0 %239
        %vm241 = vcmask 1039360
        %v242 = vsel %vm241, %v234, %v236
        %v243 = vsel %vm241, %v238, %v240
        %246 = vrot.lane.b32.xlu0 %v225, 126
        %v247 = vpop.permute.xlu0 %246
        %248 = vrot.lane.b32.xlu0 %v226, 126
        %v249 = vpop.permute.xlu0 %248
        %250 = vrot.lane.b32.xlu0 %v227, 126
        %v251 = vpop.permute.xlu0 %250
        %252 = vrot.lane.b32.xlu0 %v228, 126
        %v253 = vpop.permute.xlu0 %252
        %vm254 = vcmask 1031168
        %v255 = vsel %vm254, %v247, %v249
        %v256 = vsel %vm254, %v251, %v253
        %259 = vrot.lane.b32.xlu0 %v225, 125
        %v260 = vpop.permute.xlu0 %259
        %261 = vrot.lane.b32.xlu0 %v226, 125
        %v262 = vpop.permute.xlu0 %261
        %263 = vrot.lane.b32.xlu0 %v227, 125
        %v264 = vpop.permute.xlu0 %263
        %265 = vrot.lane.b32.xlu0 %v228, 125
        %v266 = vpop.permute.xlu0 %265
        %vm267 = vcmask 1022976
        %v268 = vsel %vm267, %v260, %v262
        %v269 = vsel %vm267, %v264, %v266
        %272 = vrot.lane.b32.xlu0 %v225, 124
        %v273 = vpop.permute.xlu0 %272
        %274 = vrot.lane.b32.xlu0 %v226, 124
        %v275 = vpop.permute.xlu0 %274
        %276 = vrot.lane.b32.xlu0 %v227, 124
        %v277 = vpop.permute.xlu0 %276
        %278 = vrot.lane.b32.xlu0 %v228, 124
        %v279 = vpop.permute.xlu0 %278
        %vm280 = vcmask 1014784
        %v281 = vsel %vm280, %v273, %v275
        %v282 = vsel %vm280, %v277, %v279
        %285 = vrot.lane.b32.xlu0 %v225, 123
        %v286 = vpop.permute.xlu0 %285
        %287 = vrot.lane.b32.xlu0 %v226, 123
        %v288 = vpop.permute.xlu0 %287
        %289 = vrot.lane.b32.xlu0 %v227, 123
        %v290 = vpop.permute.xlu0 %289
        %291 = vrot.lane.b32.xlu0 %v228, 123
        %v292 = vpop.permute.xlu0 %291
        %vm293 = vcmask 1006592
        %v294 = vsel %vm293, %v286, %v288
        %v295 = vsel %vm293, %v290, %v292
        %298 = vrot.lane.b32.xlu0 %v225, 122
        %v299 = vpop.permute.xlu0 %298
        %300 = vrot.lane.b32.xlu0 %v226, 122
        %v301 = vpop.permute.xlu0 %300
        %302 = vrot.lane.b32.xlu0 %v227, 122
        %v303 = vpop.permute.xlu0 %302
        %304 = vrot.lane.b32.xlu0 %v228, 122
        %v305 = vpop.permute.xlu0 %304
        %vm306 = vcmask 998400
        %v307 = vsel %vm306, %v299, %v301
        %v308 = vsel %vm306, %v303, %v305
        %311 = vrot.lane.b32.xlu0 %v225, 121
        %v312 = vpop.permute.xlu0 %311
        %313 = vrot.lane.b32.xlu0 %v226, 121
        %v314 = vpop.permute.xlu0 %313
        %315 = vrot.lane.b32.xlu0 %v227, 121
        %v316 = vpop.permute.xlu0 %315
        %317 = vrot.lane.b32.xlu0 %v228, 121
        %v318 = vpop.permute.xlu0 %317
        %vm319 = vcmask 990208
        %v320 = vsel %vm319, %v312, %v314
        %v321 = vsel %vm319, %v316, %v318
        %324 = vrot.lane.b32.xlu0 %v225, 120
        %v325 = vpop.permute.xlu0 %324
        %326 = vrot.lane.b32.xlu0 %v226, 120
        %v327 = vpop.permute.xlu0 %326
        %328 = vrot.lane.b32.xlu0 %v227, 120
        %v329 = vpop.permute.xlu0 %328
        %330 = vrot.lane.b32.xlu0 %v228, 120
        %v331 = vpop.permute.xlu0 %330
        %vm332 = vcmask 982016
        %v333 = vsel %vm332, %v325, %v327
        %v334 = vsel %vm332, %v329, %v331
        %337 = vrot.lane.b32.xlu0 %v225, 119
        %v338 = vpop.permute.xlu0 %337
        %339 = vrot.lane.b32.xlu0 %v226, 119
        %v340 = vpop.permute.xlu0 %339
        %341 = vrot.lane.b32.xlu0 %v227, 119
        %v342 = vpop.permute.xlu0 %341
        %343 = vrot.lane.b32.xlu0 %v228, 119
        %v344 = vpop.permute.xlu0 %343
        %vm345 = vcmask 973824
        %v346 = vsel %vm345, %v338, %v340
        %v347 = vsel %vm345, %v342, %v344
        %350 = vrot.lane.b32.xlu0 %v225, 118
        %v351 = vpop.permute.xlu0 %350
        %352 = vrot.lane.b32.xlu0 %v226, 118
        %v353 = vpop.permute.xlu0 %352
        %354 = vrot.lane.b32.xlu0 %v227, 118
        %v355 = vpop.permute.xlu0 %354
        %356 = vrot.lane.b32.xlu0 %v228, 118
        %v357 = vpop.permute.xlu0 %356
        %vm358 = vcmask 965632
        %v359 = vsel %vm358, %v351, %v353
        %v360 = vsel %vm358, %v355, %v357
        %363 = vrot.lane.b32.xlu0 %v225, 117
        %v364 = vpop.permute.xlu0 %363
        %365 = vrot.lane.b32.xlu0 %v226, 117
        %v366 = vpop.permute.xlu0 %365
        %367 = vrot.lane.b32.xlu0 %v227, 117
        %v368 = vpop.permute.xlu0 %367
        %369 = vrot.lane.b32.xlu0 %v228, 117
        %v370 = vpop.permute.xlu0 %369
        %vm371 = vcmask 957440
        %v372 = vsel %vm371, %v364, %v366
        %v373 = vsel %vm371, %v368, %v370
        %376 = vrot.lane.b32.xlu0 %v225, 116
        %v377 = vpop.permute.xlu0 %376
        %378 = vrot.lane.b32.xlu0 %v226, 116
        %v379 = vpop.permute.xlu0 %378
        %380 = vrot.lane.b32.xlu0 %v227, 116
        %v381 = vpop.permute.xlu0 %380
        %382 = vrot.lane.b32.xlu0 %v228, 116
        %v383 = vpop.permute.xlu0 %382
        %vm384 = vcmask 949248
        %v385 = vsel %vm384, %v377, %v379
        %v386 = vsel %vm384, %v381, %v383
        %389 = vrot.lane.b32.xlu0 %v225, 115
        %v390 = vpop.permute.xlu0 %389
        %391 = vrot.lane.b32.xlu0 %v226, 115
        %v392 = vpop.permute.xlu0 %391
        %393 = vrot.lane.b32.xlu0 %v227, 115
        %v394 = vpop.permute.xlu0 %393
        %395 = vrot.lane.b32.xlu0 %v228, 115
        %v396 = vpop.permute.xlu0 %395
        %vm397 = vcmask 941056
        %v398 = vsel %vm397, %v390, %v392
        %v399 = vsel %vm397, %v394, %v396
        %402 = vrot.lane.b32.xlu0 %v225, 114
        %v403 = vpop.permute.xlu0 %402
        %404 = vrot.lane.b32.xlu0 %v226, 114
        %v405 = vpop.permute.xlu0 %404
        %406 = vrot.lane.b32.xlu0 %v227, 114
        %v407 = vpop.permute.xlu0 %406
        %408 = vrot.lane.b32.xlu0 %v228, 114
        %v409 = vpop.permute.xlu0 %408
        %vm410 = vcmask 932864
        %v411 = vsel %vm410, %v403, %v405
        %v412 = vsel %vm410, %v407, %v409
        %415 = vrot.lane.b32.xlu0 %v225, 113
        %v416 = vpop.permute.xlu0 %415
        %417 = vrot.lane.b32.xlu0 %v226, 113
        %v418 = vpop.permute.xlu0 %417
        %419 = vrot.lane.b32.xlu0 %v227, 113
        %v420 = vpop.permute.xlu0 %419
        %421 = vrot.lane.b32.xlu0 %v228, 113
        %v422 = vpop.permute.xlu0 %421
        %vm423 = vcmask 924672
        %v424 = vsel %vm423, %v416, %v418
        %v425 = vsel %vm423, %v420, %v422
        %428 = vrot.lane.b32.xlu0 %v225, 112
        %v429 = vpop.permute.xlu0 %428
        %430 = vrot.lane.b32.xlu0 %v226, 112
        %v431 = vpop.permute.xlu0 %430
        %432 = vrot.lane.b32.xlu0 %v227, 112
        %v433 = vpop.permute.xlu0 %432
        %434 = vrot.lane.b32.xlu0 %v228, 112
        %v435 = vpop.permute.xlu0 %434
        %436 = vrot.lane.b32.xlu0 %v242, 112
        %v437 = vpop.permute.xlu0 %436
        %438 = vrot.lane.b32.xlu0 %v236, 112
        %v439 = vpop.permute.xlu0 %438
        %440 = vrot.lane.b32.xlu0 %v243, 112
        %v441 = vpop.permute.xlu0 %440
        %442 = vrot.lane.b32.xlu0 %v240, 112
        %v443 = vpop.permute.xlu0 %442
        %444 = vrot.lane.b32.xlu0 %v255, 112
        %v445 = vpop.permute.xlu0 %444
        %446 = vrot.lane.b32.xlu0 %v249, 112
        %v447 = vpop.permute.xlu0 %446
        %448 = vrot.lane.b32.xlu0 %v256, 112
        %v449 = vpop.permute.xlu0 %448
        %450 = vrot.lane.b32.xlu0 %v253, 112
        %v451 = vpop.permute.xlu0 %450
        %452 = vrot.lane.b32.xlu0 %v268, 112
        %v453 = vpop.permute.xlu0 %452
        %454 = vrot.lane.b32.xlu0 %v262, 112
        %v455 = vpop.permute.xlu0 %454
        %456 = vrot.lane.b32.xlu0 %v269, 112
        %v457 = vpop.permute.xlu0 %456
        %458 = vrot.lane.b32.xlu0 %v266, 112
        %v459 = vpop.permute.xlu0 %458
        %460 = vrot.lane.b32.xlu0 %v281, 112
        %v461 = vpop.permute.xlu0 %460
        %462 = vrot.lane.b32.xlu0 %v275, 112
        %v463 = vpop.permute.xlu0 %462
        %464 = vrot.lane.b32.xlu0 %v282, 112
        %v465 = vpop.permute.xlu0 %464
        %466 = vrot.lane.b32.xlu0 %v279, 112
        %v467 = vpop.permute.xlu0 %466
        %468 = vrot.lane.b32.xlu0 %v294, 112
        %v469 = vpop.permute.xlu0 %468
        %470 = vrot.lane.b32.xlu0 %v288, 112
        %v471 = vpop.permute.xlu0 %470
        %472 = vrot.lane.b32.xlu0 %v295, 112
        %v473 = vpop.permute.xlu0 %472
        %474 = vrot.lane.b32.xlu0 %v292, 112
        %v475 = vpop.permute.xlu0 %474
        %476 = vrot.lane.b32.xlu0 %v307, 112
        %v477 = vpop.permute.xlu0 %476
        %478 = vrot.lane.b32.xlu0 %v301, 112
        %v479 = vpop.permute.xlu0 %478
        %480 = vrot.lane.b32.xlu0 %v308, 112
        %v481 = vpop.permute.xlu0 %480
        %482 = vrot.lane.b32.xlu0 %v305, 112
        %v483 = vpop.permute.xlu0 %482
        %484 = vrot.lane.b32.xlu0 %v320, 112
        %v485 = vpop.permute.xlu0 %484
        %486 = vrot.lane.b32.xlu0 %v314, 112
        %v487 = vpop.permute.xlu0 %486
        %488 = vrot.lane.b32.xlu0 %v321, 112
        %v489 = vpop.permute.xlu0 %488
        %490 = vrot.lane.b32.xlu0 %v318, 112
        %v491 = vpop.permute.xlu0 %490
        %492 = vrot.lane.b32.xlu0 %v333, 112
        %v493 = vpop.permute.xlu0 %492
        %494 = vrot.lane.b32.xlu0 %v327, 112
        %v495 = vpop.permute.xlu0 %494
        %496 = vrot.lane.b32.xlu0 %v334, 112
        %v497 = vpop.permute.xlu0 %496
        %498 = vrot.lane.b32.xlu0 %v331, 112
        %v499 = vpop.permute.xlu0 %498
        %500 = vrot.lane.b32.xlu0 %v346, 112
        %v501 = vpop.permute.xlu0 %500
        %502 = vrot.lane.b32.xlu0 %v340, 112
        %v503 = vpop.permute.xlu0 %502
        %504 = vrot.lane.b32.xlu0 %v347, 112
        %v505 = vpop.permute.xlu0 %504
        %506 = vrot.lane.b32.xlu0 %v344, 112
        %v507 = vpop.permute.xlu0 %506
        %508 = vrot.lane.b32.xlu0 %v359, 112
        %v509 = vpop.permute.xlu0 %508
        %510 = vrot.lane.b32.xlu0 %v353, 112
        %v511 = vpop.permute.xlu0 %510
        %512 = vrot.lane.b32.xlu0 %v360, 112
        %v513 = vpop.permute.xlu0 %512
        %514 = vrot.lane.b32.xlu0 %v357, 112
        %v515 = vpop.permute.xlu0 %514
        %vm516 = vcmask 916480
        %v517 = vsel %vm516, %v429, %v431
        %v518 = vsel %vm516, %v433, %v435
        %v519 = vsel %vm516, %v437, %v439
        %v520 = vsel %vm516, %v441, %v443
        %v521 = vsel %vm516, %v445, %v447
        %v522 = vsel %vm516, %v449, %v451
        %v523 = vsel %vm516, %v453, %v455
        %v524 = vsel %vm516, %v457, %v459
        %v525 = vsel %vm516, %v461, %v463
        %v526 = vsel %vm516, %v465, %v467
        %v527 = vsel %vm516, %v469, %v471
        %v528 = vsel %vm516, %v473, %v475
        %v529 = vsel %vm516, %v477, %v479
        %v530 = vsel %vm516, %v481, %v483
        %v531 = vsel %vm516, %v485, %v487
        %v532 = vsel %vm516, %v489, %v491
        %v533 = vsel %vm516, %v493, %v495
        %v534 = vsel %vm516, %v497, %v499
        %v535 = vsel %vm516, %v501, %v503
        %v536 = vsel %vm516, %v505, %v507
        %v537 = vsel %vm516, %v509, %v511
        %v538 = vsel %vm516, %v513, %v515
        %v561 = vld [vmem:[%s1] sm:$0x7f]
        %v562 = vld [vmem:[#allocation2] sm:$0x1]
        %564 = vset.pattern.permute.xlu0 0
        %565 = vperm.xlu0 %564, %v562
        %v566 = vpop.permute.xlu0 %565
        %v568 = vlaneseq
        %v569 = vshrl.u32 %v568, 7
        %v570 = vsub.s32 0, %v569
        %v571 = vrot.slane %v566, %v570
        %v573 = vcombine.high %v561, %v561
        %v575 = vunpack.c.l.s4 1966171168
        %v576 = vunpack.c.0.s8 %v575
        %v577 = vlaneseq
        %v578 = vshrl.u32 %v577, 7
        %v579 = vsub.s32 %v576, %v578
        %v580 = vrot.slane %v561, %v579
        %v582 = vunpack.c.l.s4 1966171168
        %v583 = vunpack.c.0.s8 %v582
        %v584 = vlaneseq
        %v585 = vshrl.u32 %v584, 7
        %v586 = vsub.s32 %v583, %v585
        %v587 = vrot.slane %v573, %v586
        %v588 = vcombine.high %v580, %v580
        %v589 = vcombine.high %v587, %v587
        %v591 = vunpack.c.l.s4 1966171168
        %v592 = vunpack.c.0.s8 %v591
        %v593 = vlaneseq
        %v594 = vshrl.u32 %v593, 7
        %v595 = vsub.s32 %v592, %v594
        %v596 = vrot.slane %v580, %v595
        %v598 = vunpack.c.l.s4 1966171168
        %v599 = vunpack.c.0.s8 %v598
        %v600 = vlaneseq
        %v601 = vshrl.u32 %v600, 7
        %v602 = vsub.s32 %v599, %v601
        %v603 = vrot.slane %v587, %v602
        %v605 = vunpack.c.l.s4 1966171168
        %v606 = vunpack.c.0.s8 %v605
        %v607 = vlaneseq
        %v608 = vshrl.u32 %v607, 7
        %v609 = vsub.s32 %v606, %v608
        %v610 = vrot.slane %v588, %v609
        %v612 = vunpack.c.l.s4 1966171168
        %v613 = vunpack.c.0.s8 %v612
        %v614 = vlaneseq
        %v615 = vshrl.u32 %v614, 7
        %v616 = vsub.s32 %v613, %v615
        %v617 = vrot.slane %v589, %v616
        %v618 = vcombine.high %v596, %v596
        %v619 = vcombine.high %v603, %v603
        %v620 = vcombine.high %v610, %v610
        %vm627 = vcmask 785408
        %v629 = vsel %vm627, %v619, 0
        %631 = vmatprep.subr.bf16.mxu0 0
        %632 = vmatpush1.bf16.msra.mxu0 %v269
        %633 = vmatprep.subr.bf16.mxu0 0
        %634 = vmatpush1.bf16.msra.mxu0 %v268
        %635 = vmatprep.subr.bf16.mxu0 0
        %636 = vmatpush1.bf16.msra.mxu0 %v256
        %637 = vmatprep.subr.bf16.mxu0 0
        %638 = vmatpush1.bf16.msra.mxu0 %v255
        %639 = vmatprep.subr.bf16.mxu0 0
        %640 = vmatpush1.bf16.msra.mxu0 %v243
        %641 = vmatprep.subr.bf16.mxu0 0
        %642 = vmatpush1.bf16.msra.mxu0 %v242
        %643 = vmatprep.subr.bf16.mxu0 0
        %644 = vmatpush1.bf16.msra.mxu0 %v227
        %645 = vmatprep.subr.bf16.mxu0 0
        %646 = vmatpush1.bf16.msra.mxu0 %v225
        %647 = vmatprep.subr.bf16.mxu0 0
        %648 = vmatpush2.bf16.msra.mxu0 %v321
        %649 = vmatprep.subr.bf16.mxu0 0
        %650 = vmatpush2.bf16.msra.mxu0 %v320
        %651 = vmatprep.subr.bf16.mxu0 0
        %652 = vmatpush2.bf16.msra.mxu0 %v308
        %653 = vmatprep.subr.bf16.mxu0 0
        %654 = vmatpush2.bf16.msra.mxu0 %v307
        %655 = vmatprep.subr.bf16.mxu0 0
        %656 = vmatpush2.bf16.msra.mxu0 %v295
        %657 = vmatprep.subr.bf16.mxu0 0
        %658 = vmatpush2.bf16.msra.mxu0 %v294
        %659 = vmatprep.subr.bf16.mxu0 0
        %660 = vmatpush2.bf16.msra.mxu0 %v282
        %661 = vmatprep.subr.bf16.mxu0 0
        %662 = vmatpush2.bf16.msra.mxu0 %v281
        %663 = vmatprep.mubr.bf16.mxu0 %v610
        %664 = vmatmul.mubr.bf16.gmra.mxu0 %v596
        %v665 = vpop.f32.mrf.mxu0
        %v666 = vadd.f32 %v571, %v665
        %v667 = vpop.f32.mrf.mxu0
        %v668 = vpop.f32.mrf.mxu0
        %v669 = vpop.f32.mrf.mxu0
        %670 = vdwg.mxu0
        %671 = vmatprep.subr.bf16.mxu0 0
        %672 = vmatpush1.bf16.msra.mxu0 %v373
        %673 = vmatprep.subr.bf16.mxu0 0
        %674 = vmatpush1.bf16.msra.mxu0 %v372
        %675 = vmatprep.subr.bf16.mxu0 0
        %676 = vmatpush1.bf16.msra.mxu0 %v360
        %677 = vmatprep.subr.bf16.mxu0 0
        %678 = vmatpush1.bf16.msra.mxu0 %v359
        %679 = vmatprep.subr.bf16.mxu0 0
        %680 = vmatpush1.bf16.msra.mxu0 %v347
        %681 = vmatprep.subr.bf16.mxu0 0
        %682 = vmatpush1.bf16.msra.mxu0 %v346
        %683 = vmatprep.subr.bf16.mxu0 0
        %684 = vmatpush1.bf16.msra.mxu0 %v334
        %685 = vmatprep.subr.bf16.mxu0 0
        %686 = vmatpush1.bf16.msra.mxu0 %v333
        %687 = vmatprep.subr.bf16.mxu0 0
        %688 = vmatpush2.bf16.msra.mxu0 %v425
        %689 = vmatprep.subr.bf16.mxu0 0
        %690 = vmatpush2.bf16.msra.mxu0 %v424
        %691 = vmatprep.subr.bf16.mxu0 0
        %692 = vmatpush2.bf16.msra.mxu0 %v412
        %693 = vmatprep.subr.bf16.mxu0 0
        %694 = vmatpush2.bf16.msra.mxu0 %v411
        %695 = vmatprep.subr.bf16.mxu0 0
        %696 = vmatpush2.bf16.msra.mxu0 %v399
        %697 = vmatprep.subr.bf16.mxu0 0
        %698 = vmatpush2.bf16.msra.mxu0 %v398
        %699 = vmatprep.subr.bf16.mxu0 0
        %700 = vmatpush2.bf16.msra.mxu0 %v386
        %701 = vmatprep.subr.bf16.mxu0 0
        %702 = vmatpush2.bf16.msra.mxu0 %v385
        %703 = vmatprep.mubr.bf16.mxu0 %v620
        %704 = vmatmul.mubr.bf16.gmra.mxu0 %v618
        %v705 = vpop.f32.mrf.mxu0
        %v706 = vadd.f32 %v666, %v705
        %v707 = vpop.f32.mrf.mxu0
        %v708 = vpop.f32.mrf.mxu0
        %v709 = vpop.f32.mrf.mxu0
        %710 = vdwg.mxu0
        %711 = vmatprep.subr.bf16.mxu0 0
        %712 = vmatpush1.bf16.msra.mxu0 %v524
        %713 = vmatprep.subr.bf16.mxu0 0
        %714 = vmatpush1.bf16.msra.mxu0 %v523
        %715 = vmatprep.subr.bf16.mxu0 0
        %716 = vmatpush1.bf16.msra.mxu0 %v522
        %717 = vmatprep.subr.bf16.mxu0 0
        %718 = vmatpush1.bf16.msra.mxu0 %v521
        %719 = vmatprep.subr.bf16.mxu0 0
        %720 = vmatpush1.bf16.msra.mxu0 %v520
        %721 = vmatprep.subr.bf16.mxu0 0
        %722 = vmatpush1.bf16.msra.mxu0 %v519
        %723 = vmatprep.subr.bf16.mxu0 0
        %724 = vmatpush1.bf16.msra.mxu0 %v518
        %725 = vmatprep.subr.bf16.mxu0 0
        %726 = vmatpush1.bf16.msra.mxu0 %v517
        %727 = vmatprep.subr.bf16.mxu0 0
        %728 = vmatpush2.bf16.msra.mxu0 %v532
        %729 = vmatprep.subr.bf16.mxu0 0
        %730 = vmatpush2.bf16.msra.mxu0 %v531
        %731 = vmatprep.subr.bf16.mxu0 0
        %732 = vmatpush2.bf16.msra.mxu0 %v530
        %733 = vmatprep.subr.bf16.mxu0 0
        %734 = vmatpush2.bf16.msra.mxu0 %v529
        %735 = vmatprep.subr.bf16.mxu0 0
        %736 = vmatpush2.bf16.msra.mxu0 %v528
        %737 = vmatprep.subr.bf16.mxu0 0
        %738 = vmatpush2.bf16.msra.mxu0 %v527
        %739 = vmatprep.subr.bf16.mxu0 0
        %740 = vmatpush2.bf16.msra.mxu0 %v526
        %741 = vmatprep.subr.bf16.mxu0 0
        %742 = vmatpush2.bf16.msra.mxu0 %v525
        %743 = vmatprep.mubr.bf16.mxu0 %v617
        %744 = vmatmul.mubr.bf16.gmra.mxu0 %v603
        %v745 = vpop.f32.mrf.mxu0
        %v746 = vadd.f32 %v706, %v745
        %v747 = vpop.f32.mrf.mxu0
        %v748 = vpop.f32.mrf.mxu0
        %v749 = vpop.f32.mrf.mxu0
        %750 = vdwg.mxu0
        %751 = vmatprep.subr.bf16.mxu0 0
        %752 = vmatpush1.bf16.msra.mxu0 0
        %753 = vmatprep.subr.bf16.mxu0 0
        %754 = vmatpush1.bf16.msra.mxu0 0
        %755 = vmatprep.subr.bf16.mxu0 0
        %756 = vmatpush1.bf16.msra.mxu0 %v538
        %757 = vmatprep.subr.bf16.mxu0 0
        %758 = vmatpush1.bf16.msra.mxu0 %v537
        %759 = vmatprep.subr.bf16.mxu0 0
        %760 = vmatpush1.bf16.msra.mxu0 %v536
        %761 = vmatprep.subr.bf16.mxu0 0
        %762 = vmatpush1.bf16.msra.mxu0 %v535
        %763 = vmatprep.subr.bf16.mxu0 0
        %764 = vmatpush1.bf16.msra.mxu0 %v534
        %765 = vmatprep.subr.bf16.mxu0 0
        %766 = vmatpush1.bf16.msra.mxu0 %v533
        %767 = vmatprep.subr.bf16.mxu0 0
        %768 = vmatpush2.bf16.msra.mxu0 0
        %769 = vmatprep.subr.bf16.mxu0 0
        %770 = vmatpush2.bf16.msra.mxu0 0
        %771 = vmatprep.subr.bf16.mxu0 0
        %772 = vmatpush2.bf16.msra.mxu0 0
        %773 = vmatprep.subr.bf16.mxu0 0
        %774 = vmatpush2.bf16.msra.mxu0 0
        %775 = vmatprep.subr.bf16.mxu0 0
        %776 = vmatpush2.bf16.msra.mxu0 0
        %777 = vmatprep.subr.bf16.mxu0 0
        %778 = vmatpush2.bf16.msra.mxu0 0
        %779 = vmatprep.subr.bf16.mxu0 0
        %780 = vmatpush2.bf16.msra.mxu0 0
        %781 = vmatprep.subr.bf16.mxu0 0
        %782 = vmatpush2.bf16.msra.mxu0 0
        %783 = vmatprep.mubr.bf16.mxu0 0
        %784 = vmatmul.mubr.bf16.gmra.mxu0 %v629
        %v785 = vpop.f32.mrf.mxu0
        %v786 = vadd.f32 %v746, %v785
        %v787 = vpop.f32.mrf.mxu0
        %v788 = vpop.f32.mrf.mxu0
        %v789 = vpop.f32.mrf.mxu0
        %790 = vdwg.mxu0
        %791 = vst [vmem:[%s186] sm:$0x1] %v786
        %s792 = sand.u32 %s111, 1
        %s793 = scalar_lea.sflag [#allocation4], %s792
        %s794 = sand.u32 %s111, 1
        %s795 = scalar_lea.vmem [#allocation3], %s794
        // Predicated region
        $region33: #{srresnet_forward.15} parent=31 // pred_check
          %p796 = pneg %p121
        $region34: #{srresnet_forward.15} parent=31 // pred_check_branch
          %798 = sbr.rel (%p796) target = $region36
        $region35: #{srresnet_forward.15} parent=31 // pred_region
          %s800 = ssub.s32 16, 16
          %801 = vsyncadd %s793, %s800
          %s802 = sadd.s32 %s24, %s23
          %s803 = smul.addr %s802, 16
          %s804 = scalar_lea.hbm %s3, %s803
          %s806 = sshll.u32 %s795, 4
          %s807 = int_to_ptr.vmem [resolvable:$true] %s806
          %809 = dma.vmem_to_hbm [thread:$0]  %s807, 16, %s804, %s793
        $region36: #{srresnet_forward.15} parent=31 // pred_fallthru
          _
      $region32: #{srresnet_forward.15} parent=5 // pred_fallthru
        _
      %p810 = scmp.le.s32.totalorder 2, %s14
      // Predicated region
      $region37: #{srresnet_forward.15} parent=5 // pred_check
        %p811 = pneg %p810
      $region38: #{srresnet_forward.15} parent=5 // pred_check_branch
        %813 = sbr.rel (%p811) target = $region40
      $region39: #{srresnet_forward.15} parent=5 // pred_region
        %s814 = ssub.s32 %s14, 2
        // Predicated region
        $region41: #{srresnet_forward.15} parent=39 // pred_check
          %p815 = pneg %p127
        $region42: #{srresnet_forward.15} parent=39 // pred_check_branch
          %817 = sbr.rel (%p815) target = $region44
        $region43: #{srresnet_forward.15} parent=39 // pred_region
          %s818 = sand.u32 %s112, 1
          %s819 = scalar_lea.sflag [#allocation4], %s818
          %s820 = sand.u32 %s112, 1
          %s821 = scalar_lea.vmem [#allocation3], %s820
          %822 = dma.done %s819, 16
        $region44: #{srresnet_forward.15} parent=39 // pred_fallthru
          _
      $region40: #{srresnet_forward.15} parent=5 // pred_fallthru
        _
    $region6: #{srresnet_forward.15} parent=1 // loop_footer
      %s18 = sadd.s32 1, %s14
    $region7: #{srresnet_forward.15} parent=1 // loop_footer_branch
      %13 = sbr.rel target = $region3
    $region8: #{srresnet_forward.15} parent=1 // loop_exit
      _
    %823 = vsyncpa [#allocation4], 1
    %s824 = scalar_lea.sflag [#allocation4], 1
    %825 = vsyncpa %s824, 1

</llo_original>
